<compile_context>
chip_gen: v7x
topology: tpu7x:2x2x1
jax: 0.10.0
libtpu: 0.0.40
codegen_flags: <defaults>
</compile_context>

<pallas_src>
import functools

import numpy as np
import jax
import jax.numpy as jnp
from jax.experimental import pallas as pl
from jax.experimental.pallas import tpu as pltpu

KH = KW = 7
PAD = 3


# --------------------------------------------------------------------------
# reflect padding helpers (torch 'reflect': edge excluded), trace-time only.
# `gs` = lane-group size (C for the wide layout, 1 for plain 2-D maps).
# --------------------------------------------------------------------------
def _reflect_rows(a):
    n = a.shape[0]
    top = jnp.concatenate([a[3:4], a[2:3], a[1:2]], axis=0)
    bot = jnp.concatenate([a[n - 2:n - 1], a[n - 3:n - 2], a[n - 4:n - 3]], axis=0)
    return jnp.concatenate([top, a, bot], axis=0)


def _reflect_cols(a, gs):
    n = a.shape[1] // gs
    g = lambda i: a[:, i * gs:(i + 1) * gs]
    left = jnp.concatenate([g(3), g(2), g(1)], axis=1)
    right = jnp.concatenate([g(n - 2), g(n - 3), g(n - 4)], axis=1)
    return jnp.concatenate([left, a, right], axis=1)


def _reflect_pad(a, gs=1):
    return _reflect_rows(_reflect_cols(a, gs))


# --------------------------------------------------------------------------
# kernel
# --------------------------------------------------------------------------
def _cga_kernel(x_ref, y_ref, w1_ref, b1_ref, w2_ref, b2_ref, wsa_ref, bsa_ref,
                wpa_a_ref, wpa_b_ref, bpa_ref, out_ref, ip_ref, pp_ref, *, C):
    H, WC = x_ref.shape[1], x_ref.shape[2]
    W = WC // C

    x = x_ref[0]                      # (H, W*C), lane-dense
    y = y_ref[0]
    initial = x + y

    # ---------------- ChannelAttention ----------------
    # Both "pools" are AdaptiveAvgPool2d(1); the duplicated pool and the 1/W of
    # the lane-group mean are folded into w1 in the wrapper, and w2/b2 are
    # pre-tiled so cattn is produced directly in the wide layout.
    mean_h = jnp.mean(initial, axis=0, keepdims=True)                       # (1, W*C)
    h = jnp.dot(mean_h, w1_ref[...], preferred_element_type=jnp.float32) + b1_ref[...]
    h = jnp.maximum(h, 0.0)                                                 # (1, hid_pad)
    cattn = jnp.dot(h, w2_ref[...], preferred_element_type=jnp.float32) + b2_ref[...]  # (1, W*C)

    # ---------------- SpatialAttention (2-D, W on lanes) ----------------
    avg_cols = []
    max_cols = []
    for w in range(W):
        g = initial[:, w * C:(w + 1) * C]                                   # (H, C)
        avg_cols.append(jnp.mean(g, axis=1, keepdims=True))                 # (H, 1)
        max_cols.append(jnp.max(g, axis=1, keepdims=True))
    ch_avg = jnp.concatenate(avg_cols, axis=1)                              # (H, W)
    ch_max = jnp.concatenate(max_cols, axis=1)

    avg_p = _reflect_pad(ch_avg)                                            # (H+6, W+6)
    max_p = _reflect_pad(ch_max)
    sattn = jnp.zeros((H, W), jnp.float32) + bsa_ref[0]
    for kh in range(KH):
        for kw in range(KW):
            sattn = (sattn
                     + wsa_ref[kh * KW + kw] * avg_p[kh:kh + H, kw:kw + W]
                     + wsa_ref[KH * KW + kh * KW + kw] * max_p[kh:kh + H, kw:kw + W])

    # pattn1 = sattn (per pixel) + cattn (per channel), in the wide layout.
    sattn_wide = jnp.concatenate(
        [jnp.broadcast_to(sattn[:, w:w + 1], (H, C)) for w in range(W)], axis=1)
    pattn1 = sattn_wide + cattn                                             # (H, W*C)

    # ---------------- PixelAttention (depthwise 7x7, reflect) ----------------
    # Reflect-padded buffers are written once to VMEM scratch; the tap loop
    # reads one row-block per kh and shifts kw via cheap static lane slices.
    ip_ref[...] = _reflect_pad(initial, C)                                  # (H+6, (W+6)*C)
    pp_ref[...] = _reflect_pad(pattn1, C)

    acc = jnp.zeros((H, WC), jnp.float32) + bpa_ref[...]
    for kh in range(KH):
        ip_rows = ip_ref[kh:kh + H, :]                                      # (H, (W+6)*C)
        pp_rows = pp_ref[kh:kh + H, :]
        for kw in range(KW):
            tap = kh * KW + kw
            lo = kw * C
            acc = acc + (wpa_a_ref[tap:tap + 1, :] * ip_rows[:, lo:lo + WC]
                         + wpa_b_ref[tap:tap + 1, :] * pp_rows[:, lo:lo + WC])

    # sigmoid inside PixelAttention, then sigmoid again in CGAFusion (faithful).
    pattn2 = jax.nn.sigmoid(jax.nn.sigmoid(acc))
    out_ref[0] = initial + pattn2 * x + (1.0 - pattn2) * y


# --------------------------------------------------------------------------
# wrapper
# --------------------------------------------------------------------------
def cga_fusion(x, y, params):
    """x, y: (B, H, W, C) float32 (NHWC).  params: PyTorch-layout parameters."""
    B, H, W, C = x.shape
    assert H >= 4 and W >= 4, "reflect padding of 3 requires H, W >= 4"
    w1, b1, w2, b2, wsa, bsa, wpa, bpa = params
    hid = w1.shape[0]
    hid_pad = max(8, ((hid + 7) // 8) * 8)
    WC = W * C

    # ---- fold & tile parameters into the lane-dense kernel layout ----
    # Both CA pools are avg -> fold the two weight halves; fold the 1/W of the
    # per-lane-group mean too, so the kernel only needs a mean over H.
    w1_eff = (w1[:, :C] + w1[:, C:]).T / float(W)                           # (C, hid)
    w1_wide = jnp.pad(jnp.tile(w1_eff, (W, 1)), ((0, 0), (0, hid_pad - hid)))      # (W*C, hid_pad)
    b1k = jnp.pad(b1.reshape(1, hid), ((0, 0), (0, hid_pad - hid)))                # (1, hid_pad)
    w2_wide = jnp.pad(jnp.tile(w2.T, (1, W)), ((0, hid_pad - hid), (0, 0)))        # (hid_pad, W*C)
    b2_wide = jnp.tile(b2.reshape(1, C), (1, W))                                   # (1, W*C)
    wsa_flat = wsa.reshape(-1)                                                     # (98,)
    # depthwise taps: weight[c, 0] hits initial_c, weight[c, 1] hits pattn1_c
    wpa_a = jnp.tile(jnp.transpose(wpa[:, 0], (1, 2, 0)).reshape(KH * KW, C), (1, W))  # (49, W*C)
    wpa_b = jnp.tile(jnp.transpose(wpa[:, 1], (1, 2, 0)).reshape(KH * KW, C), (1, W))  # (49, W*C)
    bpa_wide = jnp.tile(bpa.reshape(1, C), (1, W))                                 # (1, W*C)

    # Lane-dense view of the contiguous NHWC data (free reshape).
    xw = x.reshape(B, H, WC)
    yw = y.reshape(B, H, WC)

    grid_spec = pltpu.PrefetchScalarGridSpec(
        num_scalar_prefetch=0,
        grid=(B,),
        in_specs=[
            pl.BlockSpec((1, H, WC), lambda b: (b, 0, 0)),        # x (wide)
            pl.BlockSpec((1, H, WC), lambda b: (b, 0, 0)),        # y (wide)
            pl.BlockSpec((WC, hid_pad), lambda b: (0, 0)),        # CA conv1 weight (folded, tiled)
            pl.BlockSpec((1, hid_pad), lambda b: (0, 0)),         # CA conv1 bias
            pl.BlockSpec((hid_pad, WC), lambda b: (0, 0)),        # CA conv2 weight (tiled)
            pl.BlockSpec((1, WC), lambda b: (0, 0)),              # CA conv2 bias (tiled)
            pl.BlockSpec(memory_space=pltpu.MemorySpace.SMEM),    # SA 7x7 weights (98,)
            pl.BlockSpec(memory_space=pltpu.MemorySpace.SMEM),    # SA bias (1,)
            pl.BlockSpec((KH * KW, WC), lambda b: (0, 0)),        # PA taps for initial (49, W*C)
            pl.BlockSpec((KH * KW, WC), lambda b: (0, 0)),        # PA taps for pattn1 (49, W*C)
            pl.BlockSpec((1, WC), lambda b: (0, 0)),              # PA bias (tiled)
        ],
        out_specs=pl.BlockSpec((1, H, WC), lambda b: (b, 0, 0)),
        scratch_shapes=[
            pltpu.VMEM((H + 6, (W + 6) * C), jnp.float32),        # reflect-padded initial
            pltpu.VMEM((H + 6, (W + 6) * C), jnp.float32),        # reflect-padded pattn1
        ],
    )

    out_wide = pl.pallas_call(
        functools.partial(_cga_kernel, C=C),
        out_shape=jax.ShapeDtypeStruct((B, H, WC), jnp.float32),
        grid_spec=grid_spec,
        compiler_params=pltpu.CompilerParams(
            dimension_semantics=("parallel",),
            vmem_limit_bytes=32 * 1024 * 1024,
        ),
    )(xw, yw, w1_wide, b1k, w2_wide, b2_wide, wsa_flat, bsa, wpa_a, wpa_b, bpa_wide)

    return out_wide.reshape(B, H, W, C)


# --------------------------------------------------------------------------
# plain-JAX reference (NHWC) mirroring the PyTorch forward
# --------------------------------------------------------------------------
def cga_fusion_reference(x, y, params):
    w1, b1, w2, b2, wsa, bsa, wpa, bpa = params
    B, H, W, C = x.shape
    hp = jax.lax.Precision.HIGHEST
    initial = x + y
    gap = jnp.mean(initial, axis=(1, 2))                                   # (B, C)
    x_gap = jnp.concatenate([gap, gap], axis=1)                            # both pools are avg
    h = jax.nn.relu(jnp.dot(x_gap, w1.T, precision=hp) + b1)
    cattn = jnp.dot(h, w2.T, precision=hp) + b2                            # (B, C)
    ch_avg = jnp.mean(initial, axis=3, keepdims=True)
    ch_max = jnp.max(initial, axis=3, keepdims=True)
    x2 = jnp.concatenate([ch_avg, ch_max], axis=3)
    x2p = jnp.pad(x2, ((0, 0), (3, 3), (3, 3), (0, 0)), mode="reflect")
    wsa_hwio = jnp.transpose(wsa, (1, 2, 0))[:, :, :, None]                # (7,7,2,1)
    sattn = jax.lax.conv_general_dilated(
        x2p, wsa_hwio, (1, 1), "VALID",
        dimension_numbers=("NHWC", "HWIO", "NHWC"), precision=hp) + bsa[0]
    pattn1 = sattn + cattn[:, None, None, :]
    x3 = jnp.stack([initial, pattn1], axis=-1).reshape(B, H, W, 2 * C)     # interleave (c t)
    x3p = jnp.pad(x3, ((0, 0), (3, 3), (3, 3), (0, 0)), mode="reflect")
    rhs = jnp.transpose(wpa, (2, 3, 1, 0))                                 # (7,7,2,C)
    pa = jax.lax.conv_general_dilated(
        x3p, rhs, (1, 1), "VALID",
        dimension_numbers=("NHWC", "HWIO", "NHWC"),
        feature_group_count=C, precision=hp) + bpa[None, None, None, :]
    pattn2 = jax.nn.sigmoid(jax.nn.sigmoid(pa))
    return initial + pattn2 * x + (1.0 - pattn2) * y


if __name__ == "__main__":
    B, C, H, W = 2, 16, 16, 16
    reduction = 8
    hid = C // reduction

    key = jax.random.PRNGKey(0)
    keys = jax.random.split(key, 10)
    # PyTorch-layout inputs (NCHW) and weights, deterministically initialized.
    x_nchw = jax.random.normal(keys[0], (B, C, H, W), jnp.float32)
    y_nchw = jax.random.normal(keys[1], (B, C, H, W), jnp.float32)
    w1 = 0.2 * jax.random.normal(keys[2], (hid, 2 * C), jnp.float32)       # Conv2d(2C->hid,1x1)
    b1 = 0.1 * jax.random.normal(keys[3], (hid,), jnp.float32)
    w2 = 0.2 * jax.random.normal(keys[4], (C, hid), jnp.float32)           # Conv2d(hid->C,1x1)
    b2 = 0.1 * jax.random.normal(keys[5], (C,), jnp.float32)
    wsa = 0.05 * jax.random.normal(keys[6], (2, KH, KW), jnp.float32)      # Conv2d(2->1,7x7)
    bsa = 0.1 * jax.random.normal(keys[7], (1,), jnp.float32)
    wpa = 0.05 * jax.random.normal(keys[8], (C, 2, KH, KW), jnp.float32)   # Conv2d(2C->C,7x7,groups=C)
    bpa = 0.1 * jax.random.normal(keys[9], (C,), jnp.float32)

    # NCHW -> NHWC for the kernel layout.
    x = jnp.transpose(x_nchw, (0, 2, 3, 1))
    y = jnp.transpose(y_nchw, (0, 2, 3, 1))

    params = (w1, b1, w2, b2, wsa, bsa, wpa, bpa)

    out = cga_fusion(x, y, params)
    out = jax.block_until_ready(out)

    ref = cga_fusion_reference(x, y, params)
    np.testing.assert_allclose(np.asarray(out), np.asarray(ref), atol=1e-2, rtol=1e-2)
    print("KERNEL_OK")
</pallas_src>

<mosaic_0001>
module attributes {stable_mosaic.version = 11 : i64} {
  func.func @_cga_kernel(%arg0: i32, %arg1: memref<1x16x256xf32, #tpu.memory_space<vmem>>, %arg2: memref<1x16x256xf32, #tpu.memory_space<vmem>>, %arg3: memref<256x8xf32, #tpu.memory_space<vmem>>, %arg4: memref<1x8xf32, #tpu.memory_space<vmem>>, %arg5: memref<8x256xf32, #tpu.memory_space<vmem>>, %arg6: memref<1x256xf32, #tpu.memory_space<vmem>>, %arg7: memref<98xf32, #tpu.memory_space<smem>>, %arg8: memref<1xf32, #tpu.memory_space<smem>>, %arg9: memref<49x256xf32, #tpu.memory_space<vmem>>, %arg10: memref<49x256xf32, #tpu.memory_space<vmem>>, %arg11: memref<1x256xf32, #tpu.memory_space<vmem>>, %arg12: memref<1x16x256xf32, #tpu.memory_space<vmem>>, %arg13: memref<22x352xf32, #tpu.memory_space<vmem>>, %arg14: memref<22x352xf32, #tpu.memory_space<vmem>>) attributes {dimension_semantics = [#tpu.dimension_semantics<parallel>], iteration_bounds = array<i64: 2>, scalar_prefetch = 0 : i64, scratch_operands = 2 : i64, tpu.core_type = #tpu.core_type<tc>, window_params = [{transform_indices = @transform_0, window_bounds = array<i64: 1, 16, 256>}, {transform_indices = @transform_1, window_bounds = array<i64: 1, 16, 256>}, {pipeline_mode = #tpu.pipeline_mode<synchronous>, transform_indices = @transform_2, window_bounds = array<i64: 256, 8>}, {pipeline_mode = #tpu.pipeline_mode<synchronous>, transform_indices = @transform_3, window_bounds = array<i64: 1, 8>}, {pipeline_mode = #tpu.pipeline_mode<synchronous>, transform_indices = @transform_4, window_bounds = array<i64: 8, 256>}, {pipeline_mode = #tpu.pipeline_mode<synchronous>, transform_indices = @transform_5, window_bounds = array<i64: 1, 256>}, {transform_indices = @transform_6, window_bounds = array<i64: 98>}, {transform_indices = @transform_7, window_bounds = array<i64: 1>}, {pipeline_mode = #tpu.pipeline_mode<synchronous>, transform_indices = @transform_8, window_bounds = array<i64: 49, 256>}, {pipeline_mode = #tpu.pipeline_mode<synchronous>, transform_indices = @transform_9, window_bounds = array<i64: 49, 256>}, {pipeline_mode = #tpu.pipeline_mode<synchronous>, transform_indices = @transform_10, window_bounds = array<i64: 1, 256>}, {transform_indices = @transform_11, window_bounds = array<i64: 1, 16, 256>}]} {
    %c0 = arith.constant 0 : index
    %c0_0 = arith.constant 0 : index
    %c0_1 = arith.constant 0 : index
    %0 = vector.load %arg1[%c0, %c0_0, %c0_1] : memref<1x16x256xf32, #tpu.memory_space<vmem>>, vector<1x16x256xf32>
    %1 = vector.shape_cast %0 : vector<1x16x256xf32> to vector<16x256xf32>
    %c0_2 = arith.constant 0 : index
    %c0_3 = arith.constant 0 : index
    %c0_4 = arith.constant 0 : index
    %2 = vector.load %arg2[%c0_2, %c0_3, %c0_4] : memref<1x16x256xf32, #tpu.memory_space<vmem>>, vector<1x16x256xf32>
    %3 = vector.shape_cast %2 : vector<1x16x256xf32> to vector<16x256xf32>
    %4 = arith.addf %1, %3 : vector<16x256xf32>
    %cst = arith.constant dense<0.000000e+00> : vector<256xf32>
    %5 = vector.multi_reduction <add>, %4, %cst [0] : vector<16x256xf32> to vector<256xf32>
    %6 = vector.shape_cast %5 : vector<256xf32> to vector<1x256xf32>
    %cst_5 = arith.constant 1.600000e+01 : f32
    %7 = vector.broadcast %cst_5 : f32 to vector<1x256xf32>
    %8 = arith.divf %6, %7 : vector<1x256xf32>
    %c0_6 = arith.constant 0 : index
    %c0_7 = arith.constant 0 : index
    %9 = vector.load %arg3[%c0_6, %c0_7] : memref<256x8xf32, #tpu.memory_space<vmem>>, vector<256x8xf32>
    %cst_8 = arith.constant dense<0.000000e+00> : vector<1x8xf32>
    %10 = tpu.matmul %8, %9, %cst_8 {dimension_numbers = #tpu.dot_dimension_numbers<[1], [0], [0], [1], [0, 0, 1, 1], [], []>} : vector<1x256xf32>, vector<256x8xf32>, vector<1x8xf32> -> vector<1x8xf32>
    %c0_9 = arith.constant 0 : index
    %c0_10 = arith.constant 0 : index
    %11 = vector.load %arg4[%c0_9, %c0_10] : memref<1x8xf32, #tpu.memory_space<vmem>>, vector<1x8xf32>
    %12 = arith.addf %10, %11 : vector<1x8xf32>
    %cst_11 = arith.constant 0.000000e+00 : f32
    %13 = vector.broadcast %cst_11 : f32 to vector<1x8xf32>
    %14 = arith.maximumf %12, %13 : vector<1x8xf32>
    %c0_12 = arith.constant 0 : index
    %c0_13 = arith.constant 0 : index
    %15 = vector.load %arg5[%c0_12, %c0_13] : memref<8x256xf32, #tpu.memory_space<vmem>>, vector<8x256xf32>
    %cst_14 = arith.constant dense<0.000000e+00> : vector<1x256xf32>
    %16 = tpu.matmul %14, %15, %cst_14 {dimension_numbers = #tpu.dot_dimension_numbers<[1], [0], [0], [1], [0, 0, 1, 1], [], []>} : vector<1x8xf32>, vector<8x256xf32>, vector<1x256xf32> -> vector<1x256xf32>
    %c0_15 = arith.constant 0 : index
    %c0_16 = arith.constant 0 : index
    %17 = vector.load %arg6[%c0_15, %c0_16] : memref<1x256xf32, #tpu.memory_space<vmem>>, vector<1x256xf32>
    %18 = arith.addf %16, %17 : vector<1x256xf32>
    %19 = vector.extract_strided_slice %4 {offsets = [0, 0], sizes = [16, 16], strides = [1, 1]} : vector<16x256xf32> to vector<16x16xf32>
    %cst_17 = arith.constant dense<0.000000e+00> : vector<16xf32>
    %20 = vector.multi_reduction <add>, %19, %cst_17 [1] : vector<16x16xf32> to vector<16xf32>
    %21 = vector.shape_cast %20 : vector<16xf32> to vector<16x1xf32>
    %cst_18 = arith.constant 1.600000e+01 : f32
    %22 = vector.broadcast %cst_18 : f32 to vector<16x1xf32>
    %23 = arith.divf %21, %22 : vector<16x1xf32>
    %cst_19 = arith.constant dense<0xFF800000> : vector<16xf32>
    %24 = vector.multi_reduction <maximumf>, %19, %cst_19 [1] : vector<16x16xf32> to vector<16xf32>
    %25 = vector.shape_cast %24 : vector<16xf32> to vector<16x1xf32>
    %26 = vector.extract_strided_slice %4 {offsets = [0, 16], sizes = [16, 16], strides = [1, 1]} : vector<16x256xf32> to vector<16x16xf32>
    %cst_20 = arith.constant dense<0.000000e+00> : vector<16xf32>
    %27 = vector.multi_reduction <add>, %26, %cst_20 [1] : vector<16x16xf32> to vector<16xf32>
    %28 = vector.shape_cast %27 : vector<16xf32> to vector<16x1xf32>
    %cst_21 = arith.constant 1.600000e+01 : f32
    %29 = vector.broadcast %cst_21 : f32 to vector<16x1xf32>
    %30 = arith.divf %28, %29 : vector<16x1xf32>
    %cst_22 = arith.constant dense<0xFF800000> : vector<16xf32>
    %31 = vector.multi_reduction <maximumf>, %26, %cst_22 [1] : vector<16x16xf32> to vector<16xf32>
    %32 = vector.shape_cast %31 : vector<16xf32> to vector<16x1xf32>
    %33 = vector.extract_strided_slice %4 {offsets = [0, 32], sizes = [16, 16], strides = [1, 1]} : vector<16x256xf32> to vector<16x16xf32>
    %cst_23 = arith.constant dense<0.000000e+00> : vector<16xf32>
    %34 = vector.multi_reduction <add>, %33, %cst_23 [1] : vector<16x16xf32> to vector<16xf32>
    %35 = vector.shape_cast %34 : vector<16xf32> to vector<16x1xf32>
    %cst_24 = arith.constant 1.600000e+01 : f32
    %36 = vector.broadcast %cst_24 : f32 to vector<16x1xf32>
    %37 = arith.divf %35, %36 : vector<16x1xf32>
    %cst_25 = arith.constant dense<0xFF800000> : vector<16xf32>
    %38 = vector.multi_reduction <maximumf>, %33, %cst_25 [1] : vector<16x16xf32> to vector<16xf32>
    %39 = vector.shape_cast %38 : vector<16xf32> to vector<16x1xf32>
    %40 = vector.extract_strided_slice %4 {offsets = [0, 48], sizes = [16, 16], strides = [1, 1]} : vector<16x256xf32> to vector<16x16xf32>
    %cst_26 = arith.constant dense<0.000000e+00> : vector<16xf32>
    %41 = vector.multi_reduction <add>, %40, %cst_26 [1] : vector<16x16xf32> to vector<16xf32>
    %42 = vector.shape_cast %41 : vector<16xf32> to vector<16x1xf32>
    %cst_27 = arith.constant 1.600000e+01 : f32
    %43 = vector.broadcast %cst_27 : f32 to vector<16x1xf32>
    %44 = arith.divf %42, %43 : vector<16x1xf32>
    %cst_28 = arith.constant dense<0xFF800000> : vector<16xf32>
    %45 = vector.multi_reduction <maximumf>, %40, %cst_28 [1] : vector<16x16xf32> to vector<16xf32>
    %46 = vector.shape_cast %45 : vector<16xf32> to vector<16x1xf32>
    %47 = vector.extract_strided_slice %4 {offsets = [0, 64], sizes = [16, 16], strides = [1, 1]} : vector<16x256xf32> to vector<16x16xf32>
    %cst_29 = arith.constant dense<0.000000e+00> : vector<16xf32>
    %48 = vector.multi_reduction <add>, %47, %cst_29 [1] : vector<16x16xf32> to vector<16xf32>
    %49 = vector.shape_cast %48 : vector<16xf32> to vector<16x1xf32>
    %cst_30 = arith.constant 1.600000e+01 : f32
    %50 = vector.broadcast %cst_30 : f32 to vector<16x1xf32>
    %51 = arith.divf %49, %50 : vector<16x1xf32>
    %cst_31 = arith.constant dense<0xFF800000> : vector<16xf32>
    %52 = vector.multi_reduction <maximumf>, %47, %cst_31 [1] : vector<16x16xf32> to vector<16xf32>
    %53 = vector.shape_cast %52 : vector<16xf32> to vector<16x1xf32>
    %54 = vector.extract_strided_slice %4 {offsets = [0, 80], sizes = [16, 16], strides = [1, 1]} : vector<16x256xf32> to vector<16x16xf32>
    %cst_32 = arith.constant dense<0.000000e+00> : vector<16xf32>
    %55 = vector.multi_reduction <add>, %54, %cst_32 [1] : vector<16x16xf32> to vector<16xf32>
    %56 = vector.shape_cast %55 : vector<16xf32> to vector<16x1xf32>
    %cst_33 = arith.constant 1.600000e+01 : f32
    %57 = vector.broadcast %cst_33 : f32 to vector<16x1xf32>
    %58 = arith.divf %56, %57 : vector<16x1xf32>
    %cst_34 = arith.constant dense<0xFF800000> : vector<16xf32>
    %59 = vector.multi_reduction <maximumf>, %54, %cst_34 [1] : vector<16x16xf32> to vector<16xf32>
    %60 = vector.shape_cast %59 : vector<16xf32> to vector<16x1xf32>
    %61 = vector.extract_strided_slice %4 {offsets = [0, 96], sizes = [16, 16], strides = [1, 1]} : vector<16x256xf32> to vector<16x16xf32>
    %cst_35 = arith.constant dense<0.000000e+00> : vector<16xf32>
    %62 = vector.multi_reduction <add>, %61, %cst_35 [1] : vector<16x16xf32> to vector<16xf32>
    %63 = vector.shape_cast %62 : vector<16xf32> to vector<16x1xf32>
    %cst_36 = arith.constant 1.600000e+01 : f32
    %64 = vector.broadcast %cst_36 : f32 to vector<16x1xf32>
    %65 = arith.divf %63, %64 : vector<16x1xf32>
    %cst_37 = arith.constant dense<0xFF800000> : vector<16xf32>
    %66 = vector.multi_reduction <maximumf>, %61, %cst_37 [1] : vector<16x16xf32> to vector<16xf32>
    %67 = vector.shape_cast %66 : vector<16xf32> to vector<16x1xf32>
    %68 = vector.extract_strided_slice %4 {offsets = [0, 112], sizes = [16, 16], strides = [1, 1]} : vector<16x256xf32> to vector<16x16xf32>
    %cst_38 = arith.constant dense<0.000000e+00> : vector<16xf32>
    %69 = vector.multi_reduction <add>, %68, %cst_38 [1] : vector<16x16xf32> to vector<16xf32>
    %70 = vector.shape_cast %69 : vector<16xf32> to vector<16x1xf32>
    %cst_39 = arith.constant 1.600000e+01 : f32
    %71 = vector.broadcast %cst_39 : f32 to vector<16x1xf32>
    %72 = arith.divf %70, %71 : vector<16x1xf32>
    %cst_40 = arith.constant dense<0xFF800000> : vector<16xf32>
    %73 = vector.multi_reduction <maximumf>, %68, %cst_40 [1] : vector<16x16xf32> to vector<16xf32>
    %74 = vector.shape_cast %73 : vector<16xf32> to vector<16x1xf32>
    %75 = vector.extract_strided_slice %4 {offsets = [0, 128], sizes = [16, 16], strides = [1, 1]} : vector<16x256xf32> to vector<16x16xf32>
    %cst_41 = arith.constant dense<0.000000e+00> : vector<16xf32>
    %76 = vector.multi_reduction <add>, %75, %cst_41 [1] : vector<16x16xf32> to vector<16xf32>
    %77 = vector.shape_cast %76 : vector<16xf32> to vector<16x1xf32>
    %cst_42 = arith.constant 1.600000e+01 : f32
    %78 = vector.broadcast %cst_42 : f32 to vector<16x1xf32>
    %79 = arith.divf %77, %78 : vector<16x1xf32>
    %cst_43 = arith.constant dense<0xFF800000> : vector<16xf32>
    %80 = vector.multi_reduction <maximumf>, %75, %cst_43 [1] : vector<16x16xf32> to vector<16xf32>
    %81 = vector.shape_cast %80 : vector<16xf32> to vector<16x1xf32>
    %82 = vector.extract_strided_slice %4 {offsets = [0, 144], sizes = [16, 16], strides = [1, 1]} : vector<16x256xf32> to vector<16x16xf32>
    %cst_44 = arith.constant dense<0.000000e+00> : vector<16xf32>
    %83 = vector.multi_reduction <add>, %82, %cst_44 [1] : vector<16x16xf32> to vector<16xf32>
    %84 = vector.shape_cast %83 : vector<16xf32> to vector<16x1xf32>
    %cst_45 = arith.constant 1.600000e+01 : f32
    %85 = vector.broadcast %cst_45 : f32 to vector<16x1xf32>
    %86 = arith.divf %84, %85 : vector<16x1xf32>
    %cst_46 = arith.constant dense<0xFF800000> : vector<16xf32>
    %87 = vector.multi_reduction <maximumf>, %82, %cst_46 [1] : vector<16x16xf32> to vector<16xf32>
    %88 = vector.shape_cast %87 : vector<16xf32> to vector<16x1xf32>
    %89 = vector.extract_strided_slice %4 {offsets = [0, 160], sizes = [16, 16], strides = [1, 1]} : vector<16x256xf32> to vector<16x16xf32>
    %cst_47 = arith.constant dense<0.000000e+00> : vector<16xf32>
    %90 = vector.multi_reduction <add>, %89, %cst_47 [1] : vector<16x16xf32> to vector<16xf32>
    %91 = vector.shape_cast %90 : vector<16xf32> to vector<16x1xf32>
    %cst_48 = arith.constant 1.600000e+01 : f32
    %92 = vector.broadcast %cst_48 : f32 to vector<16x1xf32>
    %93 = arith.divf %91, %92 : vector<16x1xf32>
    %cst_49 = arith.constant dense<0xFF800000> : vector<16xf32>
    %94 = vector.multi_reduction <maximumf>, %89, %cst_49 [1] : vector<16x16xf32> to vector<16xf32>
    %95 = vector.shape_cast %94 : vector<16xf32> to vector<16x1xf32>
    %96 = vector.extract_strided_slice %4 {offsets = [0, 176], sizes = [16, 16], strides = [1, 1]} : vector<16x256xf32> to vector<16x16xf32>
    %cst_50 = arith.constant dense<0.000000e+00> : vector<16xf32>
    %97 = vector.multi_reduction <add>, %96, %cst_50 [1] : vector<16x16xf32> to vector<16xf32>
    %98 = vector.shape_cast %97 : vector<16xf32> to vector<16x1xf32>
    %cst_51 = arith.constant 1.600000e+01 : f32
    %99 = vector.broadcast %cst_51 : f32 to vector<16x1xf32>
    %100 = arith.divf %98, %99 : vector<16x1xf32>
    %cst_52 = arith.constant dense<0xFF800000> : vector<16xf32>
    %101 = vector.multi_reduction <maximumf>, %96, %cst_52 [1] : vector<16x16xf32> to vector<16xf32>
    %102 = vector.shape_cast %101 : vector<16xf32> to vector<16x1xf32>
    %103 = vector.extract_strided_slice %4 {offsets = [0, 192], sizes = [16, 16], strides = [1, 1]} : vector<16x256xf32> to vector<16x16xf32>
    %cst_53 = arith.constant dense<0.000000e+00> : vector<16xf32>
    %104 = vector.multi_reduction <add>, %103, %cst_53 [1] : vector<16x16xf32> to vector<16xf32>
    %105 = vector.shape_cast %104 : vector<16xf32> to vector<16x1xf32>
    %cst_54 = arith.constant 1.600000e+01 : f32
    %106 = vector.broadcast %cst_54 : f32 to vector<16x1xf32>
    %107 = arith.divf %105, %106 : vector<16x1xf32>
    %cst_55 = arith.constant dense<0xFF800000> : vector<16xf32>
    %108 = vector.multi_reduction <maximumf>, %103, %cst_55 [1] : vector<16x16xf32> to vector<16xf32>
    %109 = vector.shape_cast %108 : vector<16xf32> to vector<16x1xf32>
    %110 = vector.extract_strided_slice %4 {offsets = [0, 208], sizes = [16, 16], strides = [1, 1]} : vector<16x256xf32> to vector<16x16xf32>
    %cst_56 = arith.constant dense<0.000000e+00> : vector<16xf32>
    %111 = vector.multi_reduction <add>, %110, %cst_56 [1] : vector<16x16xf32> to vector<16xf32>
    %112 = vector.shape_cast %111 : vector<16xf32> to vector<16x1xf32>
    %cst_57 = arith.constant 1.600000e+01 : f32
    %113 = vector.broadcast %cst_57 : f32 to vector<16x1xf32>
    %114 = arith.divf %112, %113 : vector<16x1xf32>
    %cst_58 = arith.constant dense<0xFF800000> : vector<16xf32>
    %115 = vector.multi_reduction <maximumf>, %110, %cst_58 [1] : vector<16x16xf32> to vector<16xf32>
    %116 = vector.shape_cast %115 : vector<16xf32> to vector<16x1xf32>
    %117 = vector.extract_strided_slice %4 {offsets = [0, 224], sizes = [16, 16], strides = [1, 1]} : vector<16x256xf32> to vector<16x16xf32>
    %cst_59 = arith.constant dense<0.000000e+00> : vector<16xf32>
    %118 = vector.multi_reduction <add>, %117, %cst_59 [1] : vector<16x16xf32> to vector<16xf32>
    %119 = vector.shape_cast %118 : vector<16xf32> to vector<16x1xf32>
    %cst_60 = arith.constant 1.600000e+01 : f32
    %120 = vector.broadcast %cst_60 : f32 to vector<16x1xf32>
    %121 = arith.divf %119, %120 : vector<16x1xf32>
    %cst_61 = arith.constant dense<0xFF800000> : vector<16xf32>
    %122 = vector.multi_reduction <maximumf>, %117, %cst_61 [1] : vector<16x16xf32> to vector<16xf32>
    %123 = vector.shape_cast %122 : vector<16xf32> to vector<16x1xf32>
    %124 = vector.extract_strided_slice %4 {offsets = [0, 240], sizes = [16, 16], strides = [1, 1]} : vector<16x256xf32> to vector<16x16xf32>
    %cst_62 = arith.constant dense<0.000000e+00> : vector<16xf32>
    %125 = vector.multi_reduction <add>, %124, %cst_62 [1] : vector<16x16xf32> to vector<16xf32>
    %126 = vector.shape_cast %125 : vector<16xf32> to vector<16x1xf32>
    %cst_63 = arith.constant 1.600000e+01 : f32
    %127 = vector.broadcast %cst_63 : f32 to vector<16x1xf32>
    %128 = arith.divf %126, %127 : vector<16x1xf32>
    %cst_64 = arith.constant dense<0xFF800000> : vector<16xf32>
    %129 = vector.multi_reduction <maximumf>, %124, %cst_64 [1] : vector<16x16xf32> to vector<16xf32>
    %130 = vector.shape_cast %129 : vector<16xf32> to vector<16x1xf32>
    %131 = tpu.concatenate %23, %30, %37, %44, %51, %58, %65, %72, %79, %86, %93, %100, %107, %114, %121, %128 in 1 : vector<16x1xf32>, vector<16x1xf32>, vector<16x1xf32>, vector<16x1xf32>, vector<16x1xf32>, vector<16x1xf32>, vector<16x1xf32>, vector<16x1xf32>, vector<16x1xf32>, vector<16x1xf32>, vector<16x1xf32>, vector<16x1xf32>, vector<16x1xf32>, vector<16x1xf32>, vector<16x1xf32>, vector<16x1xf32> -> vector<16x16xf32>
    %132 = tpu.concatenate %25, %32, %39, %46, %53, %60, %67, %74, %81, %88, %95, %102, %109, %116, %123, %130 in 1 : vector<16x1xf32>, vector<16x1xf32>, vector<16x1xf32>, vector<16x1xf32>, vector<16x1xf32>, vector<16x1xf32>, vector<16x1xf32>, vector<16x1xf32>, vector<16x1xf32>, vector<16x1xf32>, vector<16x1xf32>, vector<16x1xf32>, vector<16x1xf32>, vector<16x1xf32>, vector<16x1xf32>, vector<16x1xf32> -> vector<16x16xf32>
    %133 = vector.extract_strided_slice %131 {offsets = [0, 3], sizes = [16, 1], strides = [1, 1]} : vector<16x16xf32> to vector<16x1xf32>
    %134 = vector.extract_strided_slice %131 {offsets = [0, 2], sizes = [16, 1], strides = [1, 1]} : vector<16x16xf32> to vector<16x1xf32>
    %135 = vector.extract_strided_slice %131 {offsets = [0, 1], sizes = [16, 1], strides = [1, 1]} : vector<16x16xf32> to vector<16x1xf32>
    %136 = tpu.concatenate %133, %134, %135 in 1 : vector<16x1xf32>, vector<16x1xf32>, vector<16x1xf32> -> vector<16x3xf32>
    %137 = vector.extract_strided_slice %131 {offsets = [0, 14], sizes = [16, 1], strides = [1, 1]} : vector<16x16xf32> to vector<16x1xf32>
    %138 = vector.extract_strided_slice %131 {offsets = [0, 13], sizes = [16, 1], strides = [1, 1]} : vector<16x16xf32> to vector<16x1xf32>
    %139 = vector.extract_strided_slice %131 {offsets = [0, 12], sizes = [16, 1], strides = [1, 1]} : vector<16x16xf32> to vector<16x1xf32>
    %140 = tpu.concatenate %137, %138, %139 in 1 : vector<16x1xf32>, vector<16x1xf32>, vector<16x1xf32> -> vector<16x3xf32>
    %141 = tpu.concatenate %136, %131, %140 in 1 : vector<16x3xf32>, vector<16x16xf32>, vector<16x3xf32> -> vector<16x22xf32>
    %142 = vector.extract_strided_slice %141 {offsets = [3, 0], sizes = [1, 22], strides = [1, 1]} : vector<16x22xf32> to vector<1x22xf32>
    %143 = vector.extract_strided_slice %141 {offsets = [2, 0], sizes = [1, 22], strides = [1, 1]} : vector<16x22xf32> to vector<1x22xf32>
    %144 = vector.extract_strided_slice %141 {offsets = [1, 0], sizes = [1, 22], strides = [1, 1]} : vector<16x22xf32> to vector<1x22xf32>
    %145 = tpu.concatenate %142, %143, %144 in 0 : vector<1x22xf32>, vector<1x22xf32>, vector<1x22xf32> -> vector<3x22xf32>
    %146 = vector.extract_strided_slice %141 {offsets = [14, 0], sizes = [1, 22], strides = [1, 1]} : vector<16x22xf32> to vector<1x22xf32>
    %147 = vector.extract_strided_slice %141 {offsets = [13, 0], sizes = [1, 22], strides = [1, 1]} : vector<16x22xf32> to vector<1x22xf32>
    %148 = vector.extract_strided_slice %141 {offsets = [12, 0], sizes = [1, 22], strides = [1, 1]} : vector<16x22xf32> to vector<1x22xf32>
    %149 = tpu.concatenate %146, %147, %148 in 0 : vector<1x22xf32>, vector<1x22xf32>, vector<1x22xf32> -> vector<3x22xf32>
    %150 = tpu.concatenate %145, %141, %149 in 0 : vector<3x22xf32>, vector<16x22xf32>, vector<3x22xf32> -> vector<22x22xf32>
    %151 = vector.extract_strided_slice %132 {offsets = [0, 3], sizes = [16, 1], strides = [1, 1]} : vector<16x16xf32> to vector<16x1xf32>
    %152 = vector.extract_strided_slice %132 {offsets = [0, 2], sizes = [16, 1], strides = [1, 1]} : vector<16x16xf32> to vector<16x1xf32>
    %153 = vector.extract_strided_slice %132 {offsets = [0, 1], sizes = [16, 1], strides = [1, 1]} : vector<16x16xf32> to vector<16x1xf32>
    %154 = tpu.concatenate %151, %152, %153 in 1 : vector<16x1xf32>, vector<16x1xf32>, vector<16x1xf32> -> vector<16x3xf32>
    %155 = vector.extract_strided_slice %132 {offsets = [0, 14], sizes = [16, 1], strides = [1, 1]} : vector<16x16xf32> to vector<16x1xf32>
    %156 = vector.extract_strided_slice %132 {offsets = [0, 13], sizes = [16, 1], strides = [1, 1]} : vector<16x16xf32> to vector<16x1xf32>
    %157 = vector.extract_strided_slice %132 {offsets = [0, 12], sizes = [16, 1], strides = [1, 1]} : vector<16x16xf32> to vector<16x1xf32>
    %158 = tpu.concatenate %155, %156, %157 in 1 : vector<16x1xf32>, vector<16x1xf32>, vector<16x1xf32> -> vector<16x3xf32>
    %159 = tpu.concatenate %154, %132, %158 in 1 : vector<16x3xf32>, vector<16x16xf32>, vector<16x3xf32> -> vector<16x22xf32>
    %160 = vector.extract_strided_slice %159 {offsets = [3, 0], sizes = [1, 22], strides = [1, 1]} : vector<16x22xf32> to vector<1x22xf32>
    %161 = vector.extract_strided_slice %159 {offsets = [2, 0], sizes = [1, 22], strides = [1, 1]} : vector<16x22xf32> to vector<1x22xf32>
    %162 = vector.extract_strided_slice %159 {offsets = [1, 0], sizes = [1, 22], strides = [1, 1]} : vector<16x22xf32> to vector<1x22xf32>
    %163 = tpu.concatenate %160, %161, %162 in 0 : vector<1x22xf32>, vector<1x22xf32>, vector<1x22xf32> -> vector<3x22xf32>
    %164 = vector.extract_strided_slice %159 {offsets = [14, 0], sizes = [1, 22], strides = [1, 1]} : vector<16x22xf32> to vector<1x22xf32>
    %165 = vector.extract_strided_slice %159 {offsets = [13, 0], sizes = [1, 22], strides = [1, 1]} : vector<16x22xf32> to vector<1x22xf32>
    %166 = vector.extract_strided_slice %159 {offsets = [12, 0], sizes = [1, 22], strides = [1, 1]} : vector<16x22xf32> to vector<1x22xf32>
    %167 = tpu.concatenate %164, %165, %166 in 0 : vector<1x22xf32>, vector<1x22xf32>, vector<1x22xf32> -> vector<3x22xf32>
    %168 = tpu.concatenate %163, %159, %167 in 0 : vector<3x22xf32>, vector<16x22xf32>, vector<3x22xf32> -> vector<22x22xf32>
    %cst_65 = arith.constant 0.000000e+00 : f32
    %169 = vector.broadcast %cst_65 : f32 to vector<16x16xf32>
    %c0_66 = arith.constant 0 : index
    %170 = memref.load %arg8[%c0_66] : memref<1xf32, #tpu.memory_space<smem>>
    %171 = vector.broadcast %170 : f32 to vector<16x16xf32>
    %172 = arith.addf %169, %171 : vector<16x16xf32>
    %c0_67 = arith.constant 0 : index
    %173 = memref.load %arg7[%c0_67] : memref<98xf32, #tpu.memory_space<smem>>
    %174 = vector.extract_strided_slice %150 {offsets = [0, 0], sizes = [16, 16], strides = [1, 1]} : vector<22x22xf32> to vector<16x16xf32>
    %175 = vector.broadcast %173 : f32 to vector<16x16xf32>
    %176 = arith.mulf %175, %174 : vector<16x16xf32>
    %177 = arith.addf %172, %176 : vector<16x16xf32>
    %c49 = arith.constant 49 : index
    %178 = memref.load %arg7[%c49] : memref<98xf32, #tpu.memory_space<smem>>
    %179 = vector.extract_strided_slice %168 {offsets = [0, 0], sizes = [16, 16], strides = [1, 1]} : vector<22x22xf32> to vector<16x16xf32>
    %180 = vector.broadcast %178 : f32 to vector<16x16xf32>
    %181 = arith.mulf %180, %179 : vector<16x16xf32>
    %182 = arith.addf %177, %181 : vector<16x16xf32>
    %c1 = arith.constant 1 : index
    %183 = memref.load %arg7[%c1] : memref<98xf32, #tpu.memory_space<smem>>
    %184 = vector.extract_strided_slice %150 {offsets = [0, 1], sizes = [16, 16], strides = [1, 1]} : vector<22x22xf32> to vector<16x16xf32>
    %185 = vector.broadcast %183 : f32 to vector<16x16xf32>
    %186 = arith.mulf %185, %184 : vector<16x16xf32>
    %187 = arith.addf %182, %186 : vector<16x16xf32>
    %c50 = arith.constant 50 : index
    %188 = memref.load %arg7[%c50] : memref<98xf32, #tpu.memory_space<smem>>
    %189 = vector.extract_strided_slice %168 {offsets = [0, 1], sizes = [16, 16], strides = [1, 1]} : vector<22x22xf32> to vector<16x16xf32>
    %190 = vector.broadcast %188 : f32 to vector<16x16xf32>
    %191 = arith.mulf %190, %189 : vector<16x16xf32>
    %192 = arith.addf %187, %191 : vector<16x16xf32>
    %c2 = arith.constant 2 : index
    %193 = memref.load %arg7[%c2] : memref<98xf32, #tpu.memory_space<smem>>
    %194 = vector.extract_strided_slice %150 {offsets = [0, 2], sizes = [16, 16], strides = [1, 1]} : vector<22x22xf32> to vector<16x16xf32>
    %195 = vector.broadcast %193 : f32 to vector<16x16xf32>
    %196 = arith.mulf %195, %194 : vector<16x16xf32>
    %197 = arith.addf %192, %196 : vector<16x16xf32>
    %c51 = arith.constant 51 : index
    %198 = memref.load %arg7[%c51] : memref<98xf32, #tpu.memory_space<smem>>
    %199 = vector.extract_strided_slice %168 {offsets = [0, 2], sizes = [16, 16], strides = [1, 1]} : vector<22x22xf32> to vector<16x16xf32>
    %200 = vector.broadcast %198 : f32 to vector<16x16xf32>
    %201 = arith.mulf %200, %199 : vector<16x16xf32>
    %202 = arith.addf %197, %201 : vector<16x16xf32>
    %c3 = arith.constant 3 : index
    %203 = memref.load %arg7[%c3] : memref<98xf32, #tpu.memory_space<smem>>
    %204 = vector.extract_strided_slice %150 {offsets = [0, 3], sizes = [16, 16], strides = [1, 1]} : vector<22x22xf32> to vector<16x16xf32>
    %205 = vector.broadcast %203 : f32 to vector<16x16xf32>
    %206 = arith.mulf %205, %204 : vector<16x16xf32>
    %207 = arith.addf %202, %206 : vector<16x16xf32>
    %c52 = arith.constant 52 : index
    %208 = memref.load %arg7[%c52] : memref<98xf32, #tpu.memory_space<smem>>
    %209 = vector.extract_strided_slice %168 {offsets = [0, 3], sizes = [16, 16], strides = [1, 1]} : vector<22x22xf32> to vector<16x16xf32>
    %210 = vector.broadcast %208 : f32 to vector<16x16xf32>
    %211 = arith.mulf %210, %209 : vector<16x16xf32>
    %212 = arith.addf %207, %211 : vector<16x16xf32>
    %c4 = arith.constant 4 : index
    %213 = memref.load %arg7[%c4] : memref<98xf32, #tpu.memory_space<smem>>
    %214 = vector.extract_strided_slice %150 {offsets = [0, 4], sizes = [16, 16], strides = [1, 1]} : vector<22x22xf32> to vector<16x16xf32>
    %215 = vector.broadcast %213 : f32 to vector<16x16xf32>
    %216 = arith.mulf %215, %214 : vector<16x16xf32>
    %217 = arith.addf %212, %216 : vector<16x16xf32>
    %c53 = arith.constant 53 : index
    %218 = memref.load %arg7[%c53] : memref<98xf32, #tpu.memory_space<smem>>
    %219 = vector.extract_strided_slice %168 {offsets = [0, 4], sizes = [16, 16], strides = [1, 1]} : vector<22x22xf32> to vector<16x16xf32>
    %220 = vector.broadcast %218 : f32 to vector<16x16xf32>
    %221 = arith.mulf %220, %219 : vector<16x16xf32>
    %222 = arith.addf %217, %221 : vector<16x16xf32>
    %c5 = arith.constant 5 : index
    %223 = memref.load %arg7[%c5] : memref<98xf32, #tpu.memory_space<smem>>
    %224 = vector.extract_strided_slice %150 {offsets = [0, 5], sizes = [16, 16], strides = [1, 1]} : vector<22x22xf32> to vector<16x16xf32>
    %225 = vector.broadcast %223 : f32 to vector<16x16xf32>
    %226 = arith.mulf %225, %224 : vector<16x16xf32>
    %227 = arith.addf %222, %226 : vector<16x16xf32>
    %c54 = arith.constant 54 : index
    %228 = memref.load %arg7[%c54] : memref<98xf32, #tpu.memory_space<smem>>
    %229 = vector.extract_strided_slice %168 {offsets = [0, 5], sizes = [16, 16], strides = [1, 1]} : vector<22x22xf32> to vector<16x16xf32>
    %230 = vector.broadcast %228 : f32 to vector<16x16xf32>
    %231 = arith.mulf %230, %229 : vector<16x16xf32>
    %232 = arith.addf %227, %231 : vector<16x16xf32>
    %c6 = arith.constant 6 : index
    %233 = memref.load %arg7[%c6] : memref<98xf32, #tpu.memory_space<smem>>
    %234 = vector.extract_strided_slice %150 {offsets = [0, 6], sizes = [16, 16], strides = [1, 1]} : vector<22x22xf32> to vector<16x16xf32>
    %235 = vector.broadcast %233 : f32 to vector<16x16xf32>
    %236 = arith.mulf %235, %234 : vector<16x16xf32>
    %237 = arith.addf %232, %236 : vector<16x16xf32>
    %c55 = arith.constant 55 : index
    %238 = memref.load %arg7[%c55] : memref<98xf32, #tpu.memory_space<smem>>
    %239 = vector.extract_strided_slice %168 {offsets = [0, 6], sizes = [16, 16], strides = [1, 1]} : vector<22x22xf32> to vector<16x16xf32>
    %240 = vector.broadcast %238 : f32 to vector<16x16xf32>
    %241 = arith.mulf %240, %239 : vector<16x16xf32>
    %242 = arith.addf %237, %241 : vector<16x16xf32>
    %c7 = arith.constant 7 : index
    %243 = memref.load %arg7[%c7] : memref<98xf32, #tpu.memory_space<smem>>
    %244 = vector.extract_strided_slice %150 {offsets = [1, 0], sizes = [16, 16], strides = [1, 1]} : vector<22x22xf32> to vector<16x16xf32>
    %245 = vector.broadcast %243 : f32 to vector<16x16xf32>
    %246 = arith.mulf %245, %244 : vector<16x16xf32>
    %247 = arith.addf %242, %246 : vector<16x16xf32>
    %c56 = arith.constant 56 : index
    %248 = memref.load %arg7[%c56] : memref<98xf32, #tpu.memory_space<smem>>
    %249 = vector.extract_strided_slice %168 {offsets = [1, 0], sizes = [16, 16], strides = [1, 1]} : vector<22x22xf32> to vector<16x16xf32>
    %250 = vector.broadcast %248 : f32 to vector<16x16xf32>
    %251 = arith.mulf %250, %249 : vector<16x16xf32>
    %252 = arith.addf %247, %251 : vector<16x16xf32>
    %c8 = arith.constant 8 : index
    %253 = memref.load %arg7[%c8] : memref<98xf32, #tpu.memory_space<smem>>
    %254 = vector.extract_strided_slice %150 {offsets = [1, 1], sizes = [16, 16], strides = [1, 1]} : vector<22x22xf32> to vector<16x16xf32>
    %255 = vector.broadcast %253 : f32 to vector<16x16xf32>
    %256 = arith.mulf %255, %254 : vector<16x16xf32>
    %257 = arith.addf %252, %256 : vector<16x16xf32>
    %c57 = arith.constant 57 : index
    %258 = memref.load %arg7[%c57] : memref<98xf32, #tpu.memory_space<smem>>
    %259 = vector.extract_strided_slice %168 {offsets = [1, 1], sizes = [16, 16], strides = [1, 1]} : vector<22x22xf32> to vector<16x16xf32>
    %260 = vector.broadcast %258 : f32 to vector<16x16xf32>
    %261 = arith.mulf %260, %259 : vector<16x16xf32>
    %262 = arith.addf %257, %261 : vector<16x16xf32>
    %c9 = arith.constant 9 : index
    %263 = memref.load %arg7[%c9] : memref<98xf32, #tpu.memory_space<smem>>
    %264 = vector.extract_strided_slice %150 {offsets = [1, 2], sizes = [16, 16], strides = [1, 1]} : vector<22x22xf32> to vector<16x16xf32>
    %265 = vector.broadcast %263 : f32 to vector<16x16xf32>
    %266 = arith.mulf %265, %264 : vector<16x16xf32>
    %267 = arith.addf %262, %266 : vector<16x16xf32>
    %c58 = arith.constant 58 : index
    %268 = memref.load %arg7[%c58] : memref<98xf32, #tpu.memory_space<smem>>
    %269 = vector.extract_strided_slice %168 {offsets = [1, 2], sizes = [16, 16], strides = [1, 1]} : vector<22x22xf32> to vector<16x16xf32>
    %270 = vector.broadcast %268 : f32 to vector<16x16xf32>
    %271 = arith.mulf %270, %269 : vector<16x16xf32>
    %272 = arith.addf %267, %271 : vector<16x16xf32>
    %c10 = arith.constant 10 : index
    %273 = memref.load %arg7[%c10] : memref<98xf32, #tpu.memory_space<smem>>
    %274 = vector.extract_strided_slice %150 {offsets = [1, 3], sizes = [16, 16], strides = [1, 1]} : vector<22x22xf32> to vector<16x16xf32>
    %275 = vector.broadcast %273 : f32 to vector<16x16xf32>
    %276 = arith.mulf %275, %274 : vector<16x16xf32>
    %277 = arith.addf %272, %276 : vector<16x16xf32>
    %c59 = arith.constant 59 : index
    %278 = memref.load %arg7[%c59] : memref<98xf32, #tpu.memory_space<smem>>
    %279 = vector.extract_strided_slice %168 {offsets = [1, 3], sizes = [16, 16], strides = [1, 1]} : vector<22x22xf32> to vector<16x16xf32>
    %280 = vector.broadcast %278 : f32 to vector<16x16xf32>
    %281 = arith.mulf %280, %279 : vector<16x16xf32>
    %282 = arith.addf %277, %281 : vector<16x16xf32>
    %c11 = arith.constant 11 : index
    %283 = memref.load %arg7[%c11] : memref<98xf32, #tpu.memory_space<smem>>
    %284 = vector.extract_strided_slice %150 {offsets = [1, 4], sizes = [16, 16], strides = [1, 1]} : vector<22x22xf32> to vector<16x16xf32>
    %285 = vector.broadcast %283 : f32 to vector<16x16xf32>
    %286 = arith.mulf %285, %284 : vector<16x16xf32>
    %287 = arith.addf %282, %286 : vector<16x16xf32>
    %c60 = arith.constant 60 : index
    %288 = memref.load %arg7[%c60] : memref<98xf32, #tpu.memory_space<smem>>
    %289 = vector.extract_strided_slice %168 {offsets = [1, 4], sizes = [16, 16], strides = [1, 1]} : vector<22x22xf32> to vector<16x16xf32>
    %290 = vector.broadcast %288 : f32 to vector<16x16xf32>
    %291 = arith.mulf %290, %289 : vector<16x16xf32>
    %292 = arith.addf %287, %291 : vector<16x16xf32>
    %c12 = arith.constant 12 : index
    %293 = memref.load %arg7[%c12] : memref<98xf32, #tpu.memory_space<smem>>
    %294 = vector.extract_strided_slice %150 {offsets = [1, 5], sizes = [16, 16], strides = [1, 1]} : vector<22x22xf32> to vector<16x16xf32>
    %295 = vector.broadcast %293 : f32 to vector<16x16xf32>
    %296 = arith.mulf %295, %294 : vector<16x16xf32>
    %297 = arith.addf %292, %296 : vector<16x16xf32>
    %c61 = arith.constant 61 : index
    %298 = memref.load %arg7[%c61] : memref<98xf32, #tpu.memory_space<smem>>
    %299 = vector.extract_strided_slice %168 {offsets = [1, 5], sizes = [16, 16], strides = [1, 1]} : vector<22x22xf32> to vector<16x16xf32>
    %300 = vector.broadcast %298 : f32 to vector<16x16xf32>
    %301 = arith.mulf %300, %299 : vector<16x16xf32>
    %302 = arith.addf %297, %301 : vector<16x16xf32>
    %c13 = arith.constant 13 : index
    %303 = memref.load %arg7[%c13] : memref<98xf32, #tpu.memory_space<smem>>
    %304 = vector.extract_strided_slice %150 {offsets = [1, 6], sizes = [16, 16], strides = [1, 1]} : vector<22x22xf32> to vector<16x16xf32>
    %305 = vector.broadcast %303 : f32 to vector<16x16xf32>
    %306 = arith.mulf %305, %304 : vector<16x16xf32>
    %307 = arith.addf %302, %306 : vector<16x16xf32>
    %c62 = arith.constant 62 : index
    %308 = memref.load %arg7[%c62] : memref<98xf32, #tpu.memory_space<smem>>
    %309 = vector.extract_strided_slice %168 {offsets = [1, 6], sizes = [16, 16], strides = [1, 1]} : vector<22x22xf32> to vector<16x16xf32>
    %310 = vector.broadcast %308 : f32 to vector<16x16xf32>
    %311 = arith.mulf %310, %309 : vector<16x16xf32>
    %312 = arith.addf %307, %311 : vector<16x16xf32>
    %c14 = arith.constant 14 : index
    %313 = memref.load %arg7[%c14] : memref<98xf32, #tpu.memory_space<smem>>
    %314 = vector.extract_strided_slice %150 {offsets = [2, 0], sizes = [16, 16], strides = [1, 1]} : vector<22x22xf32> to vector<16x16xf32>
    %315 = vector.broadcast %313 : f32 to vector<16x16xf32>
    %316 = arith.mulf %315, %314 : vector<16x16xf32>
    %317 = arith.addf %312, %316 : vector<16x16xf32>
    %c63 = arith.constant 63 : index
    %318 = memref.load %arg7[%c63] : memref<98xf32, #tpu.memory_space<smem>>
    %319 = vector.extract_strided_slice %168 {offsets = [2, 0], sizes = [16, 16], strides = [1, 1]} : vector<22x22xf32> to vector<16x16xf32>
    %320 = vector.broadcast %318 : f32 to vector<16x16xf32>
    %321 = arith.mulf %320, %319 : vector<16x16xf32>
    %322 = arith.addf %317, %321 : vector<16x16xf32>
    %c15 = arith.constant 15 : index
    %323 = memref.load %arg7[%c15] : memref<98xf32, #tpu.memory_space<smem>>
    %324 = vector.extract_strided_slice %150 {offsets = [2, 1], sizes = [16, 16], strides = [1, 1]} : vector<22x22xf32> to vector<16x16xf32>
    %325 = vector.broadcast %323 : f32 to vector<16x16xf32>
    %326 = arith.mulf %325, %324 : vector<16x16xf32>
    %327 = arith.addf %322, %326 : vector<16x16xf32>
    %c64 = arith.constant 64 : index
    %328 = memref.load %arg7[%c64] : memref<98xf32, #tpu.memory_space<smem>>
    %329 = vector.extract_strided_slice %168 {offsets = [2, 1], sizes = [16, 16], strides = [1, 1]} : vector<22x22xf32> to vector<16x16xf32>
    %330 = vector.broadcast %328 : f32 to vector<16x16xf32>
    %331 = arith.mulf %330, %329 : vector<16x16xf32>
    %332 = arith.addf %327, %331 : vector<16x16xf32>
    %c16 = arith.constant 16 : index
    %333 = memref.load %arg7[%c16] : memref<98xf32, #tpu.memory_space<smem>>
    %334 = vector.extract_strided_slice %150 {offsets = [2, 2], sizes = [16, 16], strides = [1, 1]} : vector<22x22xf32> to vector<16x16xf32>
    %335 = vector.broadcast %333 : f32 to vector<16x16xf32>
    %336 = arith.mulf %335, %334 : vector<16x16xf32>
    %337 = arith.addf %332, %336 : vector<16x16xf32>
    %c65 = arith.constant 65 : index
    %338 = memref.load %arg7[%c65] : memref<98xf32, #tpu.memory_space<smem>>
    %339 = vector.extract_strided_slice %168 {offsets = [2, 2], sizes = [16, 16], strides = [1, 1]} : vector<22x22xf32> to vector<16x16xf32>
    %340 = vector.broadcast %338 : f32 to vector<16x16xf32>
    %341 = arith.mulf %340, %339 : vector<16x16xf32>
    %342 = arith.addf %337, %341 : vector<16x16xf32>
    %c17 = arith.constant 17 : index
    %343 = memref.load %arg7[%c17] : memref<98xf32, #tpu.memory_space<smem>>
    %344 = vector.extract_strided_slice %150 {offsets = [2, 3], sizes = [16, 16], strides = [1, 1]} : vector<22x22xf32> to vector<16x16xf32>
    %345 = vector.broadcast %343 : f32 to vector<16x16xf32>
    %346 = arith.mulf %345, %344 : vector<16x16xf32>
    %347 = arith.addf %342, %346 : vector<16x16xf32>
    %c66 = arith.constant 66 : index
    %348 = memref.load %arg7[%c66] : memref<98xf32, #tpu.memory_space<smem>>
    %349 = vector.extract_strided_slice %168 {offsets = [2, 3], sizes = [16, 16], strides = [1, 1]} : vector<22x22xf32> to vector<16x16xf32>
    %350 = vector.broadcast %348 : f32 to vector<16x16xf32>
    %351 = arith.mulf %350, %349 : vector<16x16xf32>
    %352 = arith.addf %347, %351 : vector<16x16xf32>
    %c18 = arith.constant 18 : index
    %353 = memref.load %arg7[%c18] : memref<98xf32, #tpu.memory_space<smem>>
    %354 = vector.extract_strided_slice %150 {offsets = [2, 4], sizes = [16, 16], strides = [1, 1]} : vector<22x22xf32> to vector<16x16xf32>
    %355 = vector.broadcast %353 : f32 to vector<16x16xf32>
    %356 = arith.mulf %355, %354 : vector<16x16xf32>
    %357 = arith.addf %352, %356 : vector<16x16xf32>
    %c67 = arith.constant 67 : index
    %358 = memref.load %arg7[%c67] : memref<98xf32, #tpu.memory_space<smem>>
    %359 = vector.extract_strided_slice %168 {offsets = [2, 4], sizes = [16, 16], strides = [1, 1]} : vector<22x22xf32> to vector<16x16xf32>
    %360 = vector.broadcast %358 : f32 to vector<16x16xf32>
    %361 = arith.mulf %360, %359 : vector<16x16xf32>
    %362 = arith.addf %357, %361 : vector<16x16xf32>
    %c19 = arith.constant 19 : index
    %363 = memref.load %arg7[%c19] : memref<98xf32, #tpu.memory_space<smem>>
    %364 = vector.extract_strided_slice %150 {offsets = [2, 5], sizes = [16, 16], strides = [1, 1]} : vector<22x22xf32> to vector<16x16xf32>
    %365 = vector.broadcast %363 : f32 to vector<16x16xf32>
    %366 = arith.mulf %365, %364 : vector<16x16xf32>
    %367 = arith.addf %362, %366 : vector<16x16xf32>
    %c68 = arith.constant 68 : index
    %368 = memref.load %arg7[%c68] : memref<98xf32, #tpu.memory_space<smem>>
    %369 = vector.extract_strided_slice %168 {offsets = [2, 5], sizes = [16, 16], strides = [1, 1]} : vector<22x22xf32> to vector<16x16xf32>
    %370 = vector.broadcast %368 : f32 to vector<16x16xf32>
    %371 = arith.mulf %370, %369 : vector<16x16xf32>
    %372 = arith.addf %367, %371 : vector<16x16xf32>
    %c20 = arith.constant 20 : index
    %373 = memref.load %arg7[%c20] : memref<98xf32, #tpu.memory_space<smem>>
    %374 = vector.extract_strided_slice %150 {offsets = [2, 6], sizes = [16, 16], strides = [1, 1]} : vector<22x22xf32> to vector<16x16xf32>
    %375 = vector.broadcast %373 : f32 to vector<16x16xf32>
    %376 = arith.mulf %375, %374 : vector<16x16xf32>
    %377 = arith.addf %372, %376 : vector<16x16xf32>
    %c69 = arith.constant 69 : index
    %378 = memref.load %arg7[%c69] : memref<98xf32, #tpu.memory_space<smem>>
    %379 = vector.extract_strided_slice %168 {offsets = [2, 6], sizes = [16, 16], strides = [1, 1]} : vector<22x22xf32> to vector<16x16xf32>
    %380 = vector.broadcast %378 : f32 to vector<16x16xf32>
    %381 = arith.mulf %380, %379 : vector<16x16xf32>
    %382 = arith.addf %377, %381 : vector<16x16xf32>
    %c21 = arith.constant 21 : index
    %383 = memref.load %arg7[%c21] : memref<98xf32, #tpu.memory_space<smem>>
    %384 = vector.extract_strided_slice %150 {offsets = [3, 0], sizes = [16, 16], strides = [1, 1]} : vector<22x22xf32> to vector<16x16xf32>
    %385 = vector.broadcast %383 : f32 to vector<16x16xf32>
    %386 = arith.mulf %385, %384 : vector<16x16xf32>
    %387 = arith.addf %382, %386 : vector<16x16xf32>
    %c70 = arith.constant 70 : index
    %388 = memref.load %arg7[%c70] : memref<98xf32, #tpu.memory_space<smem>>
    %389 = vector.extract_strided_slice %168 {offsets = [3, 0], sizes = [16, 16], strides = [1, 1]} : vector<22x22xf32> to vector<16x16xf32>
    %390 = vector.broadcast %388 : f32 to vector<16x16xf32>
    %391 = arith.mulf %390, %389 : vector<16x16xf32>
    %392 = arith.addf %387, %391 : vector<16x16xf32>
    %c22 = arith.constant 22 : index
    %393 = memref.load %arg7[%c22] : memref<98xf32, #tpu.memory_space<smem>>
    %394 = vector.extract_strided_slice %150 {offsets = [3, 1], sizes = [16, 16], strides = [1, 1]} : vector<22x22xf32> to vector<16x16xf32>
    %395 = vector.broadcast %393 : f32 to vector<16x16xf32>
    %396 = arith.mulf %395, %394 : vector<16x16xf32>
    %397 = arith.addf %392, %396 : vector<16x16xf32>
    %c71 = arith.constant 71 : index
    %398 = memref.load %arg7[%c71] : memref<98xf32, #tpu.memory_space<smem>>
    %399 = vector.extract_strided_slice %168 {offsets = [3, 1], sizes = [16, 16], strides = [1, 1]} : vector<22x22xf32> to vector<16x16xf32>
    %400 = vector.broadcast %398 : f32 to vector<16x16xf32>
    %401 = arith.mulf %400, %399 : vector<16x16xf32>
    %402 = arith.addf %397, %401 : vector<16x16xf32>
    %c23 = arith.constant 23 : index
    %403 = memref.load %arg7[%c23] : memref<98xf32, #tpu.memory_space<smem>>
    %404 = vector.extract_strided_slice %150 {offsets = [3, 2], sizes = [16, 16], strides = [1, 1]} : vector<22x22xf32> to vector<16x16xf32>
    %405 = vector.broadcast %403 : f32 to vector<16x16xf32>
    %406 = arith.mulf %405, %404 : vector<16x16xf32>
    %407 = arith.addf %402, %406 : vector<16x16xf32>
    %c72 = arith.constant 72 : index
    %408 = memref.load %arg7[%c72] : memref<98xf32, #tpu.memory_space<smem>>
    %409 = vector.extract_strided_slice %168 {offsets = [3, 2], sizes = [16, 16], strides = [1, 1]} : vector<22x22xf32> to vector<16x16xf32>
    %410 = vector.broadcast %408 : f32 to vector<16x16xf32>
    %411 = arith.mulf %410, %409 : vector<16x16xf32>
    %412 = arith.addf %407, %411 : vector<16x16xf32>
    %c24 = arith.constant 24 : index
    %413 = memref.load %arg7[%c24] : memref<98xf32, #tpu.memory_space<smem>>
    %414 = vector.extract_strided_slice %150 {offsets = [3, 3], sizes = [16, 16], strides = [1, 1]} : vector<22x22xf32> to vector<16x16xf32>
    %415 = vector.broadcast %413 : f32 to vector<16x16xf32>
    %416 = arith.mulf %415, %414 : vector<16x16xf32>
    %417 = arith.addf %412, %416 : vector<16x16xf32>
    %c73 = arith.constant 73 : index
    %418 = memref.load %arg7[%c73] : memref<98xf32, #tpu.memory_space<smem>>
    %419 = vector.extract_strided_slice %168 {offsets = [3, 3], sizes = [16, 16], strides = [1, 1]} : vector<22x22xf32> to vector<16x16xf32>
    %420 = vector.broadcast %418 : f32 to vector<16x16xf32>
    %421 = arith.mulf %420, %419 : vector<16x16xf32>
    %422 = arith.addf %417, %421 : vector<16x16xf32>
    %c25 = arith.constant 25 : index
    %423 = memref.load %arg7[%c25] : memref<98xf32, #tpu.memory_space<smem>>
    %424 = vector.extract_strided_slice %150 {offsets = [3, 4], sizes = [16, 16], strides = [1, 1]} : vector<22x22xf32> to vector<16x16xf32>
    %425 = vector.broadcast %423 : f32 to vector<16x16xf32>
    %426 = arith.mulf %425, %424 : vector<16x16xf32>
    %427 = arith.addf %422, %426 : vector<16x16xf32>
    %c74 = arith.constant 74 : index
    %428 = memref.load %arg7[%c74] : memref<98xf32, #tpu.memory_space<smem>>
    %429 = vector.extract_strided_slice %168 {offsets = [3, 4], sizes = [16, 16], strides = [1, 1]} : vector<22x22xf32> to vector<16x16xf32>
    %430 = vector.broadcast %428 : f32 to vector<16x16xf32>
    %431 = arith.mulf %430, %429 : vector<16x16xf32>
    %432 = arith.addf %427, %431 : vector<16x16xf32>
    %c26 = arith.constant 26 : index
    %433 = memref.load %arg7[%c26] : memref<98xf32, #tpu.memory_space<smem>>
    %434 = vector.extract_strided_slice %150 {offsets = [3, 5], sizes = [16, 16], strides = [1, 1]} : vector<22x22xf32> to vector<16x16xf32>
    %435 = vector.broadcast %433 : f32 to vector<16x16xf32>
    %436 = arith.mulf %435, %434 : vector<16x16xf32>
    %437 = arith.addf %432, %436 : vector<16x16xf32>
    %c75 = arith.constant 75 : index
    %438 = memref.load %arg7[%c75] : memref<98xf32, #tpu.memory_space<smem>>
    %439 = vector.extract_strided_slice %168 {offsets = [3, 5], sizes = [16, 16], strides = [1, 1]} : vector<22x22xf32> to vector<16x16xf32>
    %440 = vector.broadcast %438 : f32 to vector<16x16xf32>
    %441 = arith.mulf %440, %439 : vector<16x16xf32>
    %442 = arith.addf %437, %441 : vector<16x16xf32>
    %c27 = arith.constant 27 : index
    %443 = memref.load %arg7[%c27] : memref<98xf32, #tpu.memory_space<smem>>
    %444 = vector.extract_strided_slice %150 {offsets = [3, 6], sizes = [16, 16], strides = [1, 1]} : vector<22x22xf32> to vector<16x16xf32>
    %445 = vector.broadcast %443 : f32 to vector<16x16xf32>
    %446 = arith.mulf %445, %444 : vector<16x16xf32>
    %447 = arith.addf %442, %446 : vector<16x16xf32>
    %c76 = arith.constant 76 : index
    %448 = memref.load %arg7[%c76] : memref<98xf32, #tpu.memory_space<smem>>
    %449 = vector.extract_strided_slice %168 {offsets = [3, 6], sizes = [16, 16], strides = [1, 1]} : vector<22x22xf32> to vector<16x16xf32>
    %450 = vector.broadcast %448 : f32 to vector<16x16xf32>
    %451 = arith.mulf %450, %449 : vector<16x16xf32>
    %452 = arith.addf %447, %451 : vector<16x16xf32>
    %c28 = arith.constant 28 : index
    %453 = memref.load %arg7[%c28] : memref<98xf32, #tpu.memory_space<smem>>
    %454 = vector.extract_strided_slice %150 {offsets = [4, 0], sizes = [16, 16], strides = [1, 1]} : vector<22x22xf32> to vector<16x16xf32>
    %455 = vector.broadcast %453 : f32 to vector<16x16xf32>
    %456 = arith.mulf %455, %454 : vector<16x16xf32>
    %457 = arith.addf %452, %456 : vector<16x16xf32>
    %c77 = arith.constant 77 : index
    %458 = memref.load %arg7[%c77] : memref<98xf32, #tpu.memory_space<smem>>
    %459 = vector.extract_strided_slice %168 {offsets = [4, 0], sizes = [16, 16], strides = [1, 1]} : vector<22x22xf32> to vector<16x16xf32>
    %460 = vector.broadcast %458 : f32 to vector<16x16xf32>
    %461 = arith.mulf %460, %459 : vector<16x16xf32>
    %462 = arith.addf %457, %461 : vector<16x16xf32>
    %c29 = arith.constant 29 : index
    %463 = memref.load %arg7[%c29] : memref<98xf32, #tpu.memory_space<smem>>
    %464 = vector.extract_strided_slice %150 {offsets = [4, 1], sizes = [16, 16], strides = [1, 1]} : vector<22x22xf32> to vector<16x16xf32>
    %465 = vector.broadcast %463 : f32 to vector<16x16xf32>
    %466 = arith.mulf %465, %464 : vector<16x16xf32>
    %467 = arith.addf %462, %466 : vector<16x16xf32>
    %c78 = arith.constant 78 : index
    %468 = memref.load %arg7[%c78] : memref<98xf32, #tpu.memory_space<smem>>
    %469 = vector.extract_strided_slice %168 {offsets = [4, 1], sizes = [16, 16], strides = [1, 1]} : vector<22x22xf32> to vector<16x16xf32>
    %470 = vector.broadcast %468 : f32 to vector<16x16xf32>
    %471 = arith.mulf %470, %469 : vector<16x16xf32>
    %472 = arith.addf %467, %471 : vector<16x16xf32>
    %c30 = arith.constant 30 : index
    %473 = memref.load %arg7[%c30] : memref<98xf32, #tpu.memory_space<smem>>
    %474 = vector.extract_strided_slice %150 {offsets = [4, 2], sizes = [16, 16], strides = [1, 1]} : vector<22x22xf32> to vector<16x16xf32>
    %475 = vector.broadcast %473 : f32 to vector<16x16xf32>
    %476 = arith.mulf %475, %474 : vector<16x16xf32>
    %477 = arith.addf %472, %476 : vector<16x16xf32>
    %c79 = arith.constant 79 : index
    %478 = memref.load %arg7[%c79] : memref<98xf32, #tpu.memory_space<smem>>
    %479 = vector.extract_strided_slice %168 {offsets = [4, 2], sizes = [16, 16], strides = [1, 1]} : vector<22x22xf32> to vector<16x16xf32>
    %480 = vector.broadcast %478 : f32 to vector<16x16xf32>
    %481 = arith.mulf %480, %479 : vector<16x16xf32>
    %482 = arith.addf %477, %481 : vector<16x16xf32>
    %c31 = arith.constant 31 : index
    %483 = memref.load %arg7[%c31] : memref<98xf32, #tpu.memory_space<smem>>
    %484 = vector.extract_strided_slice %150 {offsets = [4, 3], sizes = [16, 16], strides = [1, 1]} : vector<22x22xf32> to vector<16x16xf32>
    %485 = vector.broadcast %483 : f32 to vector<16x16xf32>
    %486 = arith.mulf %485, %484 : vector<16x16xf32>
    %487 = arith.addf %482, %486 : vector<16x16xf32>
    %c80 = arith.constant 80 : index
    %488 = memref.load %arg7[%c80] : memref<98xf32, #tpu.memory_space<smem>>
    %489 = vector.extract_strided_slice %168 {offsets = [4, 3], sizes = [16, 16], strides = [1, 1]} : vector<22x22xf32> to vector<16x16xf32>
    %490 = vector.broadcast %488 : f32 to vector<16x16xf32>
    %491 = arith.mulf %490, %489 : vector<16x16xf32>
    %492 = arith.addf %487, %491 : vector<16x16xf32>
    %c32 = arith.constant 32 : index
    %493 = memref.load %arg7[%c32] : memref<98xf32, #tpu.memory_space<smem>>
    %494 = vector.extract_strided_slice %150 {offsets = [4, 4], sizes = [16, 16], strides = [1, 1]} : vector<22x22xf32> to vector<16x16xf32>
    %495 = vector.broadcast %493 : f32 to vector<16x16xf32>
    %496 = arith.mulf %495, %494 : vector<16x16xf32>
    %497 = arith.addf %492, %496 : vector<16x16xf32>
    %c81 = arith.constant 81 : index
    %498 = memref.load %arg7[%c81] : memref<98xf32, #tpu.memory_space<smem>>
    %499 = vector.extract_strided_slice %168 {offsets = [4, 4], sizes = [16, 16], strides = [1, 1]} : vector<22x22xf32> to vector<16x16xf32>
    %500 = vector.broadcast %498 : f32 to vector<16x16xf32>
    %501 = arith.mulf %500, %499 : vector<16x16xf32>
    %502 = arith.addf %497, %501 : vector<16x16xf32>
    %c33 = arith.constant 33 : index
    %503 = memref.load %arg7[%c33] : memref<98xf32, #tpu.memory_space<smem>>
    %504 = vector.extract_strided_slice %150 {offsets = [4, 5], sizes = [16, 16], strides = [1, 1]} : vector<22x22xf32> to vector<16x16xf32>
    %505 = vector.broadcast %503 : f32 to vector<16x16xf32>
    %506 = arith.mulf %505, %504 : vector<16x16xf32>
    %507 = arith.addf %502, %506 : vector<16x16xf32>
    %c82 = arith.constant 82 : index
    %508 = memref.load %arg7[%c82] : memref<98xf32, #tpu.memory_space<smem>>
    %509 = vector.extract_strided_slice %168 {offsets = [4, 5], sizes = [16, 16], strides = [1, 1]} : vector<22x22xf32> to vector<16x16xf32>
    %510 = vector.broadcast %508 : f32 to vector<16x16xf32>
    %511 = arith.mulf %510, %509 : vector<16x16xf32>
    %512 = arith.addf %507, %511 : vector<16x16xf32>
    %c34 = arith.constant 34 : index
    %513 = memref.load %arg7[%c34] : memref<98xf32, #tpu.memory_space<smem>>
    %514 = vector.extract_strided_slice %150 {offsets = [4, 6], sizes = [16, 16], strides = [1, 1]} : vector<22x22xf32> to vector<16x16xf32>
    %515 = vector.broadcast %513 : f32 to vector<16x16xf32>
    %516 = arith.mulf %515, %514 : vector<16x16xf32>
    %517 = arith.addf %512, %516 : vector<16x16xf32>
    %c83 = arith.constant 83 : index
    %518 = memref.load %arg7[%c83] : memref<98xf32, #tpu.memory_space<smem>>
    %519 = vector.extract_strided_slice %168 {offsets = [4, 6], sizes = [16, 16], strides = [1, 1]} : vector<22x22xf32> to vector<16x16xf32>
    %520 = vector.broadcast %518 : f32 to vector<16x16xf32>
    %521 = arith.mulf %520, %519 : vector<16x16xf32>
    %522 = arith.addf %517, %521 : vector<16x16xf32>
    %c35 = arith.constant 35 : index
    %523 = memref.load %arg7[%c35] : memref<98xf32, #tpu.memory_space<smem>>
    %524 = vector.extract_strided_slice %150 {offsets = [5, 0], sizes = [16, 16], strides = [1, 1]} : vector<22x22xf32> to vector<16x16xf32>
    %525 = vector.broadcast %523 : f32 to vector<16x16xf32>
    %526 = arith.mulf %525, %524 : vector<16x16xf32>
    %527 = arith.addf %522, %526 : vector<16x16xf32>
    %c84 = arith.constant 84 : index
    %528 = memref.load %arg7[%c84] : memref<98xf32, #tpu.memory_space<smem>>
    %529 = vector.extract_strided_slice %168 {offsets = [5, 0], sizes = [16, 16], strides = [1, 1]} : vector<22x22xf32> to vector<16x16xf32>
    %530 = vector.broadcast %528 : f32 to vector<16x16xf32>
    %531 = arith.mulf %530, %529 : vector<16x16xf32>
    %532 = arith.addf %527, %531 : vector<16x16xf32>
    %c36 = arith.constant 36 : index
    %533 = memref.load %arg7[%c36] : memref<98xf32, #tpu.memory_space<smem>>
    %534 = vector.extract_strided_slice %150 {offsets = [5, 1], sizes = [16, 16], strides = [1, 1]} : vector<22x22xf32> to vector<16x16xf32>
    %535 = vector.broadcast %533 : f32 to vector<16x16xf32>
    %536 = arith.mulf %535, %534 : vector<16x16xf32>
    %537 = arith.addf %532, %536 : vector<16x16xf32>
    %c85 = arith.constant 85 : index
    %538 = memref.load %arg7[%c85] : memref<98xf32, #tpu.memory_space<smem>>
    %539 = vector.extract_strided_slice %168 {offsets = [5, 1], sizes = [16, 16], strides = [1, 1]} : vector<22x22xf32> to vector<16x16xf32>
    %540 = vector.broadcast %538 : f32 to vector<16x16xf32>
    %541 = arith.mulf %540, %539 : vector<16x16xf32>
    %542 = arith.addf %537, %541 : vector<16x16xf32>
    %c37 = arith.constant 37 : index
    %543 = memref.load %arg7[%c37] : memref<98xf32, #tpu.memory_space<smem>>
    %544 = vector.extract_strided_slice %150 {offsets = [5, 2], sizes = [16, 16], strides = [1, 1]} : vector<22x22xf32> to vector<16x16xf32>
    %545 = vector.broadcast %543 : f32 to vector<16x16xf32>
    %546 = arith.mulf %545, %544 : vector<16x16xf32>
    %547 = arith.addf %542, %546 : vector<16x16xf32>
    %c86 = arith.constant 86 : index
    %548 = memref.load %arg7[%c86] : memref<98xf32, #tpu.memory_space<smem>>
    %549 = vector.extract_strided_slice %168 {offsets = [5, 2], sizes = [16, 16], strides = [1, 1]} : vector<22x22xf32> to vector<16x16xf32>
    %550 = vector.broadcast %548 : f32 to vector<16x16xf32>
    %551 = arith.mulf %550, %549 : vector<16x16xf32>
    %552 = arith.addf %547, %551 : vector<16x16xf32>
    %c38 = arith.constant 38 : index
    %553 = memref.load %arg7[%c38] : memref<98xf32, #tpu.memory_space<smem>>
    %554 = vector.extract_strided_slice %150 {offsets = [5, 3], sizes = [16, 16], strides = [1, 1]} : vector<22x22xf32> to vector<16x16xf32>
    %555 = vector.broadcast %553 : f32 to vector<16x16xf32>
    %556 = arith.mulf %555, %554 : vector<16x16xf32>
    %557 = arith.addf %552, %556 : vector<16x16xf32>
    %c87 = arith.constant 87 : index
    %558 = memref.load %arg7[%c87] : memref<98xf32, #tpu.memory_space<smem>>
    %559 = vector.extract_strided_slice %168 {offsets = [5, 3], sizes = [16, 16], strides = [1, 1]} : vector<22x22xf32> to vector<16x16xf32>
    %560 = vector.broadcast %558 : f32 to vector<16x16xf32>
    %561 = arith.mulf %560, %559 : vector<16x16xf32>
    %562 = arith.addf %557, %561 : vector<16x16xf32>
    %c39 = arith.constant 39 : index
    %563 = memref.load %arg7[%c39] : memref<98xf32, #tpu.memory_space<smem>>
    %564 = vector.extract_strided_slice %150 {offsets = [5, 4], sizes = [16, 16], strides = [1, 1]} : vector<22x22xf32> to vector<16x16xf32>
    %565 = vector.broadcast %563 : f32 to vector<16x16xf32>
    %566 = arith.mulf %565, %564 : vector<16x16xf32>
    %567 = arith.addf %562, %566 : vector<16x16xf32>
    %c88 = arith.constant 88 : index
    %568 = memref.load %arg7[%c88] : memref<98xf32, #tpu.memory_space<smem>>
    %569 = vector.extract_strided_slice %168 {offsets = [5, 4], sizes = [16, 16], strides = [1, 1]} : vector<22x22xf32> to vector<16x16xf32>
    %570 = vector.broadcast %568 : f32 to vector<16x16xf32>
    %571 = arith.mulf %570, %569 : vector<16x16xf32>
    %572 = arith.addf %567, %571 : vector<16x16xf32>
    %c40 = arith.constant 40 : index
    %573 = memref.load %arg7[%c40] : memref<98xf32, #tpu.memory_space<smem>>
    %574 = vector.extract_strided_slice %150 {offsets = [5, 5], sizes = [16, 16], strides = [1, 1]} : vector<22x22xf32> to vector<16x16xf32>
    %575 = vector.broadcast %573 : f32 to vector<16x16xf32>
    %576 = arith.mulf %575, %574 : vector<16x16xf32>
    %577 = arith.addf %572, %576 : vector<16x16xf32>
    %c89 = arith.constant 89 : index
    %578 = memref.load %arg7[%c89] : memref<98xf32, #tpu.memory_space<smem>>
    %579 = vector.extract_strided_slice %168 {offsets = [5, 5], sizes = [16, 16], strides = [1, 1]} : vector<22x22xf32> to vector<16x16xf32>
    %580 = vector.broadcast %578 : f32 to vector<16x16xf32>
    %581 = arith.mulf %580, %579 : vector<16x16xf32>
    %582 = arith.addf %577, %581 : vector<16x16xf32>
    %c41 = arith.constant 41 : index
    %583 = memref.load %arg7[%c41] : memref<98xf32, #tpu.memory_space<smem>>
    %584 = vector.extract_strided_slice %150 {offsets = [5, 6], sizes = [16, 16], strides = [1, 1]} : vector<22x22xf32> to vector<16x16xf32>
    %585 = vector.broadcast %583 : f32 to vector<16x16xf32>
    %586 = arith.mulf %585, %584 : vector<16x16xf32>
    %587 = arith.addf %582, %586 : vector<16x16xf32>
    %c90 = arith.constant 90 : index
    %588 = memref.load %arg7[%c90] : memref<98xf32, #tpu.memory_space<smem>>
    %589 = vector.extract_strided_slice %168 {offsets = [5, 6], sizes = [16, 16], strides = [1, 1]} : vector<22x22xf32> to vector<16x16xf32>
    %590 = vector.broadcast %588 : f32 to vector<16x16xf32>
    %591 = arith.mulf %590, %589 : vector<16x16xf32>
    %592 = arith.addf %587, %591 : vector<16x16xf32>
    %c42 = arith.constant 42 : index
    %593 = memref.load %arg7[%c42] : memref<98xf32, #tpu.memory_space<smem>>
    %594 = vector.extract_strided_slice %150 {offsets = [6, 0], sizes = [16, 16], strides = [1, 1]} : vector<22x22xf32> to vector<16x16xf32>
    %595 = vector.broadcast %593 : f32 to vector<16x16xf32>
    %596 = arith.mulf %595, %594 : vector<16x16xf32>
    %597 = arith.addf %592, %596 : vector<16x16xf32>
    %c91 = arith.constant 91 : index
    %598 = memref.load %arg7[%c91] : memref<98xf32, #tpu.memory_space<smem>>
    %599 = vector.extract_strided_slice %168 {offsets = [6, 0], sizes = [16, 16], strides = [1, 1]} : vector<22x22xf32> to vector<16x16xf32>
    %600 = vector.broadcast %598 : f32 to vector<16x16xf32>
    %601 = arith.mulf %600, %599 : vector<16x16xf32>
    %602 = arith.addf %597, %601 : vector<16x16xf32>
    %c43 = arith.constant 43 : index
    %603 = memref.load %arg7[%c43] : memref<98xf32, #tpu.memory_space<smem>>
    %604 = vector.extract_strided_slice %150 {offsets = [6, 1], sizes = [16, 16], strides = [1, 1]} : vector<22x22xf32> to vector<16x16xf32>
    %605 = vector.broadcast %603 : f32 to vector<16x16xf32>
    %606 = arith.mulf %605, %604 : vector<16x16xf32>
    %607 = arith.addf %602, %606 : vector<16x16xf32>
    %c92 = arith.constant 92 : index
    %608 = memref.load %arg7[%c92] : memref<98xf32, #tpu.memory_space<smem>>
    %609 = vector.extract_strided_slice %168 {offsets = [6, 1], sizes = [16, 16], strides = [1, 1]} : vector<22x22xf32> to vector<16x16xf32>
    %610 = vector.broadcast %608 : f32 to vector<16x16xf32>
    %611 = arith.mulf %610, %609 : vector<16x16xf32>
    %612 = arith.addf %607, %611 : vector<16x16xf32>
    %c44 = arith.constant 44 : index
    %613 = memref.load %arg7[%c44] : memref<98xf32, #tpu.memory_space<smem>>
    %614 = vector.extract_strided_slice %150 {offsets = [6, 2], sizes = [16, 16], strides = [1, 1]} : vector<22x22xf32> to vector<16x16xf32>
    %615 = vector.broadcast %613 : f32 to vector<16x16xf32>
    %616 = arith.mulf %615, %614 : vector<16x16xf32>
    %617 = arith.addf %612, %616 : vector<16x16xf32>
    %c93 = arith.constant 93 : index
    %618 = memref.load %arg7[%c93] : memref<98xf32, #tpu.memory_space<smem>>
    %619 = vector.extract_strided_slice %168 {offsets = [6, 2], sizes = [16, 16], strides = [1, 1]} : vector<22x22xf32> to vector<16x16xf32>
    %620 = vector.broadcast %618 : f32 to vector<16x16xf32>
    %621 = arith.mulf %620, %619 : vector<16x16xf32>
    %622 = arith.addf %617, %621 : vector<16x16xf32>
    %c45 = arith.constant 45 : index
    %623 = memref.load %arg7[%c45] : memref<98xf32, #tpu.memory_space<smem>>
    %624 = vector.extract_strided_slice %150 {offsets = [6, 3], sizes = [16, 16], strides = [1, 1]} : vector<22x22xf32> to vector<16x16xf32>
    %625 = vector.broadcast %623 : f32 to vector<16x16xf32>
    %626 = arith.mulf %625, %624 : vector<16x16xf32>
    %627 = arith.addf %622, %626 : vector<16x16xf32>
    %c94 = arith.constant 94 : index
    %628 = memref.load %arg7[%c94] : memref<98xf32, #tpu.memory_space<smem>>
    %629 = vector.extract_strided_slice %168 {offsets = [6, 3], sizes = [16, 16], strides = [1, 1]} : vector<22x22xf32> to vector<16x16xf32>
    %630 = vector.broadcast %628 : f32 to vector<16x16xf32>
    %631 = arith.mulf %630, %629 : vector<16x16xf32>
    %632 = arith.addf %627, %631 : vector<16x16xf32>
    %c46 = arith.constant 46 : index
    %633 = memref.load %arg7[%c46] : memref<98xf32, #tpu.memory_space<smem>>
    %634 = vector.extract_strided_slice %150 {offsets = [6, 4], sizes = [16, 16], strides = [1, 1]} : vector<22x22xf32> to vector<16x16xf32>
    %635 = vector.broadcast %633 : f32 to vector<16x16xf32>
    %636 = arith.mulf %635, %634 : vector<16x16xf32>
    %637 = arith.addf %632, %636 : vector<16x16xf32>
    %c95 = arith.constant 95 : index
    %638 = memref.load %arg7[%c95] : memref<98xf32, #tpu.memory_space<smem>>
    %639 = vector.extract_strided_slice %168 {offsets = [6, 4], sizes = [16, 16], strides = [1, 1]} : vector<22x22xf32> to vector<16x16xf32>
    %640 = vector.broadcast %638 : f32 to vector<16x16xf32>
    %641 = arith.mulf %640, %639 : vector<16x16xf32>
    %642 = arith.addf %637, %641 : vector<16x16xf32>
    %c47 = arith.constant 47 : index
    %643 = memref.load %arg7[%c47] : memref<98xf32, #tpu.memory_space<smem>>
    %644 = vector.extract_strided_slice %150 {offsets = [6, 5], sizes = [16, 16], strides = [1, 1]} : vector<22x22xf32> to vector<16x16xf32>
    %645 = vector.broadcast %643 : f32 to vector<16x16xf32>
    %646 = arith.mulf %645, %644 : vector<16x16xf32>
    %647 = arith.addf %642, %646 : vector<16x16xf32>
    %c96 = arith.constant 96 : index
    %648 = memref.load %arg7[%c96] : memref<98xf32, #tpu.memory_space<smem>>
    %649 = vector.extract_strided_slice %168 {offsets = [6, 5], sizes = [16, 16], strides = [1, 1]} : vector<22x22xf32> to vector<16x16xf32>
    %650 = vector.broadcast %648 : f32 to vector<16x16xf32>
    %651 = arith.mulf %650, %649 : vector<16x16xf32>
    %652 = arith.addf %647, %651 : vector<16x16xf32>
    %c48 = arith.constant 48 : index
    %653 = memref.load %arg7[%c48] : memref<98xf32, #tpu.memory_space<smem>>
    %654 = vector.extract_strided_slice %150 {offsets = [6, 6], sizes = [16, 16], strides = [1, 1]} : vector<22x22xf32> to vector<16x16xf32>
    %655 = vector.broadcast %653 : f32 to vector<16x16xf32>
    %656 = arith.mulf %655, %654 : vector<16x16xf32>
    %657 = arith.addf %652, %656 : vector<16x16xf32>
    %c97 = arith.constant 97 : index
    %658 = memref.load %arg7[%c97] : memref<98xf32, #tpu.memory_space<smem>>
    %659 = vector.extract_strided_slice %168 {offsets = [6, 6], sizes = [16, 16], strides = [1, 1]} : vector<22x22xf32> to vector<16x16xf32>
    %660 = vector.broadcast %658 : f32 to vector<16x16xf32>
    %661 = arith.mulf %660, %659 : vector<16x16xf32>
    %662 = arith.addf %657, %661 : vector<16x16xf32>
    %663 = vector.extract_strided_slice %662 {offsets = [0, 0], sizes = [16, 1], strides = [1, 1]} : vector<16x16xf32> to vector<16x1xf32>
    %664 = vector.shape_cast %663 : vector<16x1xf32> to vector<16x1xf32>
    %665 = vector.broadcast %664 : vector<16x1xf32> to vector<16x16xf32>
    %666 = vector.extract_strided_slice %662 {offsets = [0, 1], sizes = [16, 1], strides = [1, 1]} : vector<16x16xf32> to vector<16x1xf32>
    %667 = vector.shape_cast %666 : vector<16x1xf32> to vector<16x1xf32>
    %668 = vector.broadcast %667 : vector<16x1xf32> to vector<16x16xf32>
    %669 = vector.extract_strided_slice %662 {offsets = [0, 2], sizes = [16, 1], strides = [1, 1]} : vector<16x16xf32> to vector<16x1xf32>
    %670 = vector.shape_cast %669 : vector<16x1xf32> to vector<16x1xf32>
    %671 = vector.broadcast %670 : vector<16x1xf32> to vector<16x16xf32>
    %672 = vector.extract_strided_slice %662 {offsets = [0, 3], sizes = [16, 1], strides = [1, 1]} : vector<16x16xf32> to vector<16x1xf32>
    %673 = vector.shape_cast %672 : vector<16x1xf32> to vector<16x1xf32>
    %674 = vector.broadcast %673 : vector<16x1xf32> to vector<16x16xf32>
    %675 = vector.extract_strided_slice %662 {offsets = [0, 4], sizes = [16, 1], strides = [1, 1]} : vector<16x16xf32> to vector<16x1xf32>
    %676 = vector.shape_cast %675 : vector<16x1xf32> to vector<16x1xf32>
    %677 = vector.broadcast %676 : vector<16x1xf32> to vector<16x16xf32>
    %678 = vector.extract_strided_slice %662 {offsets = [0, 5], sizes = [16, 1], strides = [1, 1]} : vector<16x16xf32> to vector<16x1xf32>
    %679 = vector.shape_cast %678 : vector<16x1xf32> to vector<16x1xf32>
    %680 = vector.broadcast %679 : vector<16x1xf32> to vector<16x16xf32>
    %681 = vector.extract_strided_slice %662 {offsets = [0, 6], sizes = [16, 1], strides = [1, 1]} : vector<16x16xf32> to vector<16x1xf32>
    %682 = vector.shape_cast %681 : vector<16x1xf32> to vector<16x1xf32>
    %683 = vector.broadcast %682 : vector<16x1xf32> to vector<16x16xf32>
    %684 = vector.extract_strided_slice %662 {offsets = [0, 7], sizes = [16, 1], strides = [1, 1]} : vector<16x16xf32> to vector<16x1xf32>
    %685 = vector.shape_cast %684 : vector<16x1xf32> to vector<16x1xf32>
    %686 = vector.broadcast %685 : vector<16x1xf32> to vector<16x16xf32>
    %687 = vector.extract_strided_slice %662 {offsets = [0, 8], sizes = [16, 1], strides = [1, 1]} : vector<16x16xf32> to vector<16x1xf32>
    %688 = vector.shape_cast %687 : vector<16x1xf32> to vector<16x1xf32>
    %689 = vector.broadcast %688 : vector<16x1xf32> to vector<16x16xf32>
    %690 = vector.extract_strided_slice %662 {offsets = [0, 9], sizes = [16, 1], strides = [1, 1]} : vector<16x16xf32> to vector<16x1xf32>
    %691 = vector.shape_cast %690 : vector<16x1xf32> to vector<16x1xf32>
    %692 = vector.broadcast %691 : vector<16x1xf32> to vector<16x16xf32>
    %693 = vector.extract_strided_slice %662 {offsets = [0, 10], sizes = [16, 1], strides = [1, 1]} : vector<16x16xf32> to vector<16x1xf32>
    %694 = vector.shape_cast %693 : vector<16x1xf32> to vector<16x1xf32>
    %695 = vector.broadcast %694 : vector<16x1xf32> to vector<16x16xf32>
    %696 = vector.extract_strided_slice %662 {offsets = [0, 11], sizes = [16, 1], strides = [1, 1]} : vector<16x16xf32> to vector<16x1xf32>
    %697 = vector.shape_cast %696 : vector<16x1xf32> to vector<16x1xf32>
    %698 = vector.broadcast %697 : vector<16x1xf32> to vector<16x16xf32>
    %699 = vector.extract_strided_slice %662 {offsets = [0, 12], sizes = [16, 1], strides = [1, 1]} : vector<16x16xf32> to vector<16x1xf32>
    %700 = vector.shape_cast %699 : vector<16x1xf32> to vector<16x1xf32>
    %701 = vector.broadcast %700 : vector<16x1xf32> to vector<16x16xf32>
    %702 = vector.extract_strided_slice %662 {offsets = [0, 13], sizes = [16, 1], strides = [1, 1]} : vector<16x16xf32> to vector<16x1xf32>
    %703 = vector.shape_cast %702 : vector<16x1xf32> to vector<16x1xf32>
    %704 = vector.broadcast %703 : vector<16x1xf32> to vector<16x16xf32>
    %705 = vector.extract_strided_slice %662 {offsets = [0, 14], sizes = [16, 1], strides = [1, 1]} : vector<16x16xf32> to vector<16x1xf32>
    %706 = vector.shape_cast %705 : vector<16x1xf32> to vector<16x1xf32>
    %707 = vector.broadcast %706 : vector<16x1xf32> to vector<16x16xf32>
    %708 = vector.extract_strided_slice %662 {offsets = [0, 15], sizes = [16, 1], strides = [1, 1]} : vector<16x16xf32> to vector<16x1xf32>
    %709 = vector.shape_cast %708 : vector<16x1xf32> to vector<16x1xf32>
    %710 = vector.broadcast %709 : vector<16x1xf32> to vector<16x16xf32>
    %711 = tpu.concatenate %665, %668, %671, %674, %677, %680, %683, %686, %689, %692, %695, %698, %701, %704, %707, %710 in 1 : vector<16x16xf32>, vector<16x16xf32>, vector<16x16xf32>, vector<16x16xf32>, vector<16x16xf32>, vector<16x16xf32>, vector<16x16xf32>, vector<16x16xf32>, vector<16x16xf32>, vector<16x16xf32>, vector<16x16xf32>, vector<16x16xf32>, vector<16x16xf32>, vector<16x16xf32>, vector<16x16xf32>, vector<16x16xf32> -> vector<16x256xf32>
    %712 = vector.broadcast %18 : vector<1x256xf32> to vector<16x256xf32>
    %713 = arith.addf %711, %712 : vector<16x256xf32>
    %714 = vector.extract_strided_slice %4 {offsets = [0, 48], sizes = [16, 16], strides = [1, 1]} : vector<16x256xf32> to vector<16x16xf32>
    %715 = vector.extract_strided_slice %4 {offsets = [0, 32], sizes = [16, 16], strides = [1, 1]} : vector<16x256xf32> to vector<16x16xf32>
    %716 = vector.extract_strided_slice %4 {offsets = [0, 16], sizes = [16, 16], strides = [1, 1]} : vector<16x256xf32> to vector<16x16xf32>
    %717 = tpu.concatenate %714, %715, %716 in 1 : vector<16x16xf32>, vector<16x16xf32>, vector<16x16xf32> -> vector<16x48xf32>
    %718 = vector.extract_strided_slice %4 {offsets = [0, 224], sizes = [16, 16], strides = [1, 1]} : vector<16x256xf32> to vector<16x16xf32>
    %719 = vector.extract_strided_slice %4 {offsets = [0, 208], sizes = [16, 16], strides = [1, 1]} : vector<16x256xf32> to vector<16x16xf32>
    %720 = vector.extract_strided_slice %4 {offsets = [0, 192], sizes = [16, 16], strides = [1, 1]} : vector<16x256xf32> to vector<16x16xf32>
    %721 = tpu.concatenate %718, %719, %720 in 1 : vector<16x16xf32>, vector<16x16xf32>, vector<16x16xf32> -> vector<16x48xf32>
    %722 = tpu.concatenate %717, %4, %721 in 1 : vector<16x48xf32>, vector<16x256xf32>, vector<16x48xf32> -> vector<16x352xf32>
    %723 = vector.extract_strided_slice %722 {offsets = [3, 0], sizes = [1, 352], strides = [1, 1]} : vector<16x352xf32> to vector<1x352xf32>
    %724 = vector.extract_strided_slice %722 {offsets = [2, 0], sizes = [1, 352], strides = [1, 1]} : vector<16x352xf32> to vector<1x352xf32>
    %725 = vector.extract_strided_slice %722 {offsets = [1, 0], sizes = [1, 352], strides = [1, 1]} : vector<16x352xf32> to vector<1x352xf32>
    %726 = tpu.concatenate %723, %724, %725 in 0 : vector<1x352xf32>, vector<1x352xf32>, vector<1x352xf32> -> vector<3x352xf32>
    %727 = vector.extract_strided_slice %722 {offsets = [14, 0], sizes = [1, 352], strides = [1, 1]} : vector<16x352xf32> to vector<1x352xf32>
    %728 = vector.extract_strided_slice %722 {offsets = [13, 0], sizes = [1, 352], strides = [1, 1]} : vector<16x352xf32> to vector<1x352xf32>
    %729 = vector.extract_strided_slice %722 {offsets = [12, 0], sizes = [1, 352], strides = [1, 1]} : vector<16x352xf32> to vector<1x352xf32>
    %730 = tpu.concatenate %727, %728, %729 in 0 : vector<1x352xf32>, vector<1x352xf32>, vector<1x352xf32> -> vector<3x352xf32>
    %731 = tpu.concatenate %726, %722, %730 in 0 : vector<3x352xf32>, vector<16x352xf32>, vector<3x352xf32> -> vector<22x352xf32>
    %c0_68 = arith.constant 0 : index
    %c0_69 = arith.constant 0 : index
    %732 = vector.load %arg13[%c0_68, %c0_69] : memref<22x352xf32, #tpu.memory_space<vmem>>, vector<22x352xf32>
    tpu.vector_store %arg13[%c0_68, %c0_69], %731 {strides = array<i32>} : memref<22x352xf32, #tpu.memory_space<vmem>>, vector<22x352xf32>,
    %733 = vector.extract_strided_slice %713 {offsets = [0, 48], sizes = [16, 16], strides = [1, 1]} : vector<16x256xf32> to vector<16x16xf32>
    %734 = vector.extract_strided_slice %713 {offsets = [0, 32], sizes = [16, 16], strides = [1, 1]} : vector<16x256xf32> to vector<16x16xf32>
    %735 = vector.extract_strided_slice %713 {offsets = [0, 16], sizes = [16, 16], strides = [1, 1]} : vector<16x256xf32> to vector<16x16xf32>
    %736 = tpu.concatenate %733, %734, %735 in 1 : vector<16x16xf32>, vector<16x16xf32>, vector<16x16xf32> -> vector<16x48xf32>
    %737 = vector.extract_strided_slice %713 {offsets = [0, 224], sizes = [16, 16], strides = [1, 1]} : vector<16x256xf32> to vector<16x16xf32>
    %738 = vector.extract_strided_slice %713 {offsets = [0, 208], sizes = [16, 16], strides = [1, 1]} : vector<16x256xf32> to vector<16x16xf32>
    %739 = vector.extract_strided_slice %713 {offsets = [0, 192], sizes = [16, 16], strides = [1, 1]} : vector<16x256xf32> to vector<16x16xf32>
    %740 = tpu.concatenate %737, %738, %739 in 1 : vector<16x16xf32>, vector<16x16xf32>, vector<16x16xf32> -> vector<16x48xf32>
    %741 = tpu.concatenate %736, %713, %740 in 1 : vector<16x48xf32>, vector<16x256xf32>, vector<16x48xf32> -> vector<16x352xf32>
    %742 = vector.extract_strided_slice %741 {offsets = [3, 0], sizes = [1, 352], strides = [1, 1]} : vector<16x352xf32> to vector<1x352xf32>
    %743 = vector.extract_strided_slice %741 {offsets = [2, 0], sizes = [1, 352], strides = [1, 1]} : vector<16x352xf32> to vector<1x352xf32>
    %744 = vector.extract_strided_slice %741 {offsets = [1, 0], sizes = [1, 352], strides = [1, 1]} : vector<16x352xf32> to vector<1x352xf32>
    %745 = tpu.concatenate %742, %743, %744 in 0 : vector<1x352xf32>, vector<1x352xf32>, vector<1x352xf32> -> vector<3x352xf32>
    %746 = vector.extract_strided_slice %741 {offsets = [14, 0], sizes = [1, 352], strides = [1, 1]} : vector<16x352xf32> to vector<1x352xf32>
    %747 = vector.extract_strided_slice %741 {offsets = [13, 0], sizes = [1, 352], strides = [1, 1]} : vector<16x352xf32> to vector<1x352xf32>
    %748 = vector.extract_strided_slice %741 {offsets = [12, 0], sizes = [1, 352], strides = [1, 1]} : vector<16x352xf32> to vector<1x352xf32>
    %749 = tpu.concatenate %746, %747, %748 in 0 : vector<1x352xf32>, vector<1x352xf32>, vector<1x352xf32> -> vector<3x352xf32>
    %750 = tpu.concatenate %745, %741, %749 in 0 : vector<3x352xf32>, vector<16x352xf32>, vector<3x352xf32> -> vector<22x352xf32>
    %c0_70 = arith.constant 0 : index
    %c0_71 = arith.constant 0 : index
    %751 = vector.load %arg14[%c0_70, %c0_71] : memref<22x352xf32, #tpu.memory_space<vmem>>, vector<22x352xf32>
    tpu.vector_store %arg14[%c0_70, %c0_71], %750 {strides = array<i32>} : memref<22x352xf32, #tpu.memory_space<vmem>>, vector<22x352xf32>,
    %cst_72 = arith.constant 0.000000e+00 : f32
    %752 = vector.broadcast %cst_72 : f32 to vector<16x256xf32>
    %c0_73 = arith.constant 0 : index
    %c0_74 = arith.constant 0 : index
    %753 = vector.load %arg11[%c0_73, %c0_74] : memref<1x256xf32, #tpu.memory_space<vmem>>, vector<1x256xf32>
    %754 = vector.broadcast %753 : vector<1x256xf32> to vector<16x256xf32>
    %755 = arith.addf %752, %754 : vector<16x256xf32>
    %c0_75 = arith.constant 0 : index
    %c0_76 = arith.constant 0 : index
    %756 = vector.load %arg13[%c0_75, %c0_76] : memref<22x352xf32, #tpu.memory_space<vmem>>, vector<16x352xf32>
    %c0_77 = arith.constant 0 : index
    %c0_78 = arith.constant 0 : index
    %757 = vector.load %arg14[%c0_77, %c0_78] : memref<22x352xf32, #tpu.memory_space<vmem>>, vector<16x352xf32>
    %c0_79 = arith.constant 0 : index
    %c0_80 = arith.constant 0 : index
    %758 = vector.load %arg9[%c0_79, %c0_80] : memref<49x256xf32, #tpu.memory_space<vmem>>, vector<1x256xf32>
    %759 = vector.extract_strided_slice %756 {offsets = [0, 0], sizes = [16, 256], strides = [1, 1]} : vector<16x352xf32> to vector<16x256xf32>
    %760 = vector.broadcast %758 : vector<1x256xf32> to vector<16x256xf32>
    %761 = arith.mulf %760, %759 : vector<16x256xf32>
    %c0_81 = arith.constant 0 : index
    %c0_82 = arith.constant 0 : index
    %762 = vector.load %arg10[%c0_81, %c0_82] : memref<49x256xf32, #tpu.memory_space<vmem>>, vector<1x256xf32>
    %763 = vector.extract_strided_slice %757 {offsets = [0, 0], sizes = [16, 256], strides = [1, 1]} : vector<16x352xf32> to vector<16x256xf32>
    %764 = vector.broadcast %762 : vector<1x256xf32> to vector<16x256xf32>
    %765 = arith.mulf %764, %763 : vector<16x256xf32>
    %766 = arith.addf %761, %765 : vector<16x256xf32>
    %767 = arith.addf %755, %766 : vector<16x256xf32>
    %c1_83 = arith.constant 1 : index
    %c0_84 = arith.constant 0 : index
    %768 = vector.load %arg9[%c1_83, %c0_84] : memref<49x256xf32, #tpu.memory_space<vmem>>, vector<1x256xf32>
    %769 = vector.extract_strided_slice %756 {offsets = [0, 16], sizes = [16, 256], strides = [1, 1]} : vector<16x352xf32> to vector<16x256xf32>
    %770 = vector.broadcast %768 : vector<1x256xf32> to vector<16x256xf32>
    %771 = arith.mulf %770, %769 : vector<16x256xf32>
    %c1_85 = arith.constant 1 : index
    %c0_86 = arith.constant 0 : index
    %772 = vector.load %arg10[%c1_85, %c0_86] : memref<49x256xf32, #tpu.memory_space<vmem>>, vector<1x256xf32>
    %773 = vector.extract_strided_slice %757 {offsets = [0, 16], sizes = [16, 256], strides = [1, 1]} : vector<16x352xf32> to vector<16x256xf32>
    %774 = vector.broadcast %772 : vector<1x256xf32> to vector<16x256xf32>
    %775 = arith.mulf %774, %773 : vector<16x256xf32>
    %776 = arith.addf %771, %775 : vector<16x256xf32>
    %777 = arith.addf %767, %776 : vector<16x256xf32>
    %c2_87 = arith.constant 2 : index
    %c0_88 = arith.constant 0 : index
    %778 = vector.load %arg9[%c2_87, %c0_88] : memref<49x256xf32, #tpu.memory_space<vmem>>, vector<1x256xf32>
    %779 = vector.extract_strided_slice %756 {offsets = [0, 32], sizes = [16, 256], strides = [1, 1]} : vector<16x352xf32> to vector<16x256xf32>
    %780 = vector.broadcast %778 : vector<1x256xf32> to vector<16x256xf32>
    %781 = arith.mulf %780, %779 : vector<16x256xf32>
    %c2_89 = arith.constant 2 : index
    %c0_90 = arith.constant 0 : index
    %782 = vector.load %arg10[%c2_89, %c0_90] : memref<49x256xf32, #tpu.memory_space<vmem>>, vector<1x256xf32>
    %783 = vector.extract_strided_slice %757 {offsets = [0, 32], sizes = [16, 256], strides = [1, 1]} : vector<16x352xf32> to vector<16x256xf32>
    %784 = vector.broadcast %782 : vector<1x256xf32> to vector<16x256xf32>
    %785 = arith.mulf %784, %783 : vector<16x256xf32>
    %786 = arith.addf %781, %785 : vector<16x256xf32>
    %787 = arith.addf %777, %786 : vector<16x256xf32>
    %c3_91 = arith.constant 3 : index
    %c0_92 = arith.constant 0 : index
    %788 = vector.load %arg9[%c3_91, %c0_92] : memref<49x256xf32, #tpu.memory_space<vmem>>, vector<1x256xf32>
    %789 = vector.extract_strided_slice %756 {offsets = [0, 48], sizes = [16, 256], strides = [1, 1]} : vector<16x352xf32> to vector<16x256xf32>
    %790 = vector.broadcast %788 : vector<1x256xf32> to vector<16x256xf32>
    %791 = arith.mulf %790, %789 : vector<16x256xf32>
    %c3_93 = arith.constant 3 : index
    %c0_94 = arith.constant 0 : index
    %792 = vector.load %arg10[%c3_93, %c0_94] : memref<49x256xf32, #tpu.memory_space<vmem>>, vector<1x256xf32>
    %793 = vector.extract_strided_slice %757 {offsets = [0, 48], sizes = [16, 256], strides = [1, 1]} : vector<16x352xf32> to vector<16x256xf32>
    %794 = vector.broadcast %792 : vector<1x256xf32> to vector<16x256xf32>
    %795 = arith.mulf %794, %793 : vector<16x256xf32>
    %796 = arith.addf %791, %795 : vector<16x256xf32>
    %797 = arith.addf %787, %796 : vector<16x256xf32>
    %c4_95 = arith.constant 4 : index
    %c0_96 = arith.constant 0 : index
    %798 = vector.load %arg9[%c4_95, %c0_96] : memref<49x256xf32, #tpu.memory_space<vmem>>, vector<1x256xf32>
    %799 = vector.extract_strided_slice %756 {offsets = [0, 64], sizes = [16, 256], strides = [1, 1]} : vector<16x352xf32> to vector<16x256xf32>
    %800 = vector.broadcast %798 : vector<1x256xf32> to vector<16x256xf32>
    %801 = arith.mulf %800, %799 : vector<16x256xf32>
    %c4_97 = arith.constant 4 : index
    %c0_98 = arith.constant 0 : index
    %802 = vector.load %arg10[%c4_97, %c0_98] : memref<49x256xf32, #tpu.memory_space<vmem>>, vector<1x256xf32>
    %803 = vector.extract_strided_slice %757 {offsets = [0, 64], sizes = [16, 256], strides = [1, 1]} : vector<16x352xf32> to vector<16x256xf32>
    %804 = vector.broadcast %802 : vector<1x256xf32> to vector<16x256xf32>
    %805 = arith.mulf %804, %803 : vector<16x256xf32>
    %806 = arith.addf %801, %805 : vector<16x256xf32>
    %807 = arith.addf %797, %806 : vector<16x256xf32>
    %c5_99 = arith.constant 5 : index
    %c0_100 = arith.constant 0 : index
    %808 = vector.load %arg9[%c5_99, %c0_100] : memref<49x256xf32, #tpu.memory_space<vmem>>, vector<1x256xf32>
    %809 = vector.extract_strided_slice %756 {offsets = [0, 80], sizes = [16, 256], strides = [1, 1]} : vector<16x352xf32> to vector<16x256xf32>
    %810 = vector.broadcast %808 : vector<1x256xf32> to vector<16x256xf32>
    %811 = arith.mulf %810, %809 : vector<16x256xf32>
    %c5_101 = arith.constant 5 : index
    %c0_102 = arith.constant 0 : index
    %812 = vector.load %arg10[%c5_101, %c0_102] : memref<49x256xf32, #tpu.memory_space<vmem>>, vector<1x256xf32>
    %813 = vector.extract_strided_slice %757 {offsets = [0, 80], sizes = [16, 256], strides = [1, 1]} : vector<16x352xf32> to vector<16x256xf32>
    %814 = vector.broadcast %812 : vector<1x256xf32> to vector<16x256xf32>
    %815 = arith.mulf %814, %813 : vector<16x256xf32>
    %816 = arith.addf %811, %815 : vector<16x256xf32>
    %817 = arith.addf %807, %816 : vector<16x256xf32>
    %c6_103 = arith.constant 6 : index
    %c0_104 = arith.constant 0 : index
    %818 = vector.load %arg9[%c6_103, %c0_104] : memref<49x256xf32, #tpu.memory_space<vmem>>, vector<1x256xf32>
    %819 = vector.extract_strided_slice %756 {offsets = [0, 96], sizes = [16, 256], strides = [1, 1]} : vector<16x352xf32> to vector<16x256xf32>
    %820 = vector.broadcast %818 : vector<1x256xf32> to vector<16x256xf32>
    %821 = arith.mulf %820, %819 : vector<16x256xf32>
    %c6_105 = arith.constant 6 : index
    %c0_106 = arith.constant 0 : index
    %822 = vector.load %arg10[%c6_105, %c0_106] : memref<49x256xf32, #tpu.memory_space<vmem>>, vector<1x256xf32>
    %823 = vector.extract_strided_slice %757 {offsets = [0, 96], sizes = [16, 256], strides = [1, 1]} : vector<16x352xf32> to vector<16x256xf32>
    %824 = vector.broadcast %822 : vector<1x256xf32> to vector<16x256xf32>
    %825 = arith.mulf %824, %823 : vector<16x256xf32>
    %826 = arith.addf %821, %825 : vector<16x256xf32>
    %827 = arith.addf %817, %826 : vector<16x256xf32>
    %c1_107 = arith.constant 1 : index
    %c0_108 = arith.constant 0 : index
    %828 = vector.load %arg13[%c1_107, %c0_108] : memref<22x352xf32, #tpu.memory_space<vmem>>, vector<16x352xf32>
    %c1_109 = arith.constant 1 : index
    %c0_110 = arith.constant 0 : index
    %829 = vector.load %arg14[%c1_109, %c0_110] : memref<22x352xf32, #tpu.memory_space<vmem>>, vector<16x352xf32>
    %c7_111 = arith.constant 7 : index
    %c0_112 = arith.constant 0 : index
    %830 = vector.load %arg9[%c7_111, %c0_112] : memref<49x256xf32, #tpu.memory_space<vmem>>, vector<1x256xf32>
    %831 = vector.extract_strided_slice %828 {offsets = [0, 0], sizes = [16, 256], strides = [1, 1]} : vector<16x352xf32> to vector<16x256xf32>
    %832 = vector.broadcast %830 : vector<1x256xf32> to vector<16x256xf32>
    %833 = arith.mulf %832, %831 : vector<16x256xf32>
    %c7_113 = arith.constant 7 : index
    %c0_114 = arith.constant 0 : index
    %834 = vector.load %arg10[%c7_113, %c0_114] : memref<49x256xf32, #tpu.memory_space<vmem>>, vector<1x256xf32>
    %835 = vector.extract_strided_slice %829 {offsets = [0, 0], sizes = [16, 256], strides = [1, 1]} : vector<16x352xf32> to vector<16x256xf32>
    %836 = vector.broadcast %834 : vector<1x256xf32> to vector<16x256xf32>
    %837 = arith.mulf %836, %835 : vector<16x256xf32>
    %838 = arith.addf %833, %837 : vector<16x256xf32>
    %839 = arith.addf %827, %838 : vector<16x256xf32>
    %c8_115 = arith.constant 8 : index
    %c0_116 = arith.constant 0 : index
    %840 = vector.load %arg9[%c8_115, %c0_116] : memref<49x256xf32, #tpu.memory_space<vmem>>, vector<1x256xf32>
    %841 = vector.extract_strided_slice %828 {offsets = [0, 16], sizes = [16, 256], strides = [1, 1]} : vector<16x352xf32> to vector<16x256xf32>
    %842 = vector.broadcast %840 : vector<1x256xf32> to vector<16x256xf32>
    %843 = arith.mulf %842, %841 : vector<16x256xf32>
    %c8_117 = arith.constant 8 : index
    %c0_118 = arith.constant 0 : index
    %844 = vector.load %arg10[%c8_117, %c0_118] : memref<49x256xf32, #tpu.memory_space<vmem>>, vector<1x256xf32>
    %845 = vector.extract_strided_slice %829 {offsets = [0, 16], sizes = [16, 256], strides = [1, 1]} : vector<16x352xf32> to vector<16x256xf32>
    %846 = vector.broadcast %844 : vector<1x256xf32> to vector<16x256xf32>
    %847 = arith.mulf %846, %845 : vector<16x256xf32>
    %848 = arith.addf %843, %847 : vector<16x256xf32>
    %849 = arith.addf %839, %848 : vector<16x256xf32>
    %c9_119 = arith.constant 9 : index
    %c0_120 = arith.constant 0 : index
    %850 = vector.load %arg9[%c9_119, %c0_120] : memref<49x256xf32, #tpu.memory_space<vmem>>, vector<1x256xf32>
    %851 = vector.extract_strided_slice %828 {offsets = [0, 32], sizes = [16, 256], strides = [1, 1]} : vector<16x352xf32> to vector<16x256xf32>
    %852 = vector.broadcast %850 : vector<1x256xf32> to vector<16x256xf32>
    %853 = arith.mulf %852, %851 : vector<16x256xf32>
    %c9_121 = arith.constant 9 : index
    %c0_122 = arith.constant 0 : index
    %854 = vector.load %arg10[%c9_121, %c0_122] : memref<49x256xf32, #tpu.memory_space<vmem>>, vector<1x256xf32>
    %855 = vector.extract_strided_slice %829 {offsets = [0, 32], sizes = [16, 256], strides = [1, 1]} : vector<16x352xf32> to vector<16x256xf32>
    %856 = vector.broadcast %854 : vector<1x256xf32> to vector<16x256xf32>
    %857 = arith.mulf %856, %855 : vector<16x256xf32>
    %858 = arith.addf %853, %857 : vector<16x256xf32>
    %859 = arith.addf %849, %858 : vector<16x256xf32>
    %c10_123 = arith.constant 10 : index
    %c0_124 = arith.constant 0 : index
    %860 = vector.load %arg9[%c10_123, %c0_124] : memref<49x256xf32, #tpu.memory_space<vmem>>, vector<1x256xf32>
    %861 = vector.extract_strided_slice %828 {offsets = [0, 48], sizes = [16, 256], strides = [1, 1]} : vector<16x352xf32> to vector<16x256xf32>
    %862 = vector.broadcast %860 : vector<1x256xf32> to vector<16x256xf32>
    %863 = arith.mulf %862, %861 : vector<16x256xf32>
    %c10_125 = arith.constant 10 : index
    %c0_126 = arith.constant 0 : index
    %864 = vector.load %arg10[%c10_125, %c0_126] : memref<49x256xf32, #tpu.memory_space<vmem>>, vector<1x256xf32>
    %865 = vector.extract_strided_slice %829 {offsets = [0, 48], sizes = [16, 256], strides = [1, 1]} : vector<16x352xf32> to vector<16x256xf32>
    %866 = vector.broadcast %864 : vector<1x256xf32> to vector<16x256xf32>
    %867 = arith.mulf %866, %865 : vector<16x256xf32>
    %868 = arith.addf %863, %867 : vector<16x256xf32>
    %869 = arith.addf %859, %868 : vector<16x256xf32>
    %c11_127 = arith.constant 11 : index
    %c0_128 = arith.constant 0 : index
    %870 = vector.load %arg9[%c11_127, %c0_128] : memref<49x256xf32, #tpu.memory_space<vmem>>, vector<1x256xf32>
    %871 = vector.extract_strided_slice %828 {offsets = [0, 64], sizes = [16, 256], strides = [1, 1]} : vector<16x352xf32> to vector<16x256xf32>
    %872 = vector.broadcast %870 : vector<1x256xf32> to vector<16x256xf32>
    %873 = arith.mulf %872, %871 : vector<16x256xf32>
    %c11_129 = arith.constant 11 : index
    %c0_130 = arith.constant 0 : index
    %874 = vector.load %arg10[%c11_129, %c0_130] : memref<49x256xf32, #tpu.memory_space<vmem>>, vector<1x256xf32>
    %875 = vector.extract_strided_slice %829 {offsets = [0, 64], sizes = [16, 256], strides = [1, 1]} : vector<16x352xf32> to vector<16x256xf32>
    %876 = vector.broadcast %874 : vector<1x256xf32> to vector<16x256xf32>
    %877 = arith.mulf %876, %875 : vector<16x256xf32>
    %878 = arith.addf %873, %877 : vector<16x256xf32>
    %879 = arith.addf %869, %878 : vector<16x256xf32>
    %c12_131 = arith.constant 12 : index
    %c0_132 = arith.constant 0 : index
    %880 = vector.load %arg9[%c12_131, %c0_132] : memref<49x256xf32, #tpu.memory_space<vmem>>, vector<1x256xf32>
    %881 = vector.extract_strided_slice %828 {offsets = [0, 80], sizes = [16, 256], strides = [1, 1]} : vector<16x352xf32> to vector<16x256xf32>
    %882 = vector.broadcast %880 : vector<1x256xf32> to vector<16x256xf32>
    %883 = arith.mulf %882, %881 : vector<16x256xf32>
    %c12_133 = arith.constant 12 : index
    %c0_134 = arith.constant 0 : index
    %884 = vector.load %arg10[%c12_133, %c0_134] : memref<49x256xf32, #tpu.memory_space<vmem>>, vector<1x256xf32>
    %885 = vector.extract_strided_slice %829 {offsets = [0, 80], sizes = [16, 256], strides = [1, 1]} : vector<16x352xf32> to vector<16x256xf32>
    %886 = vector.broadcast %884 : vector<1x256xf32> to vector<16x256xf32>
    %887 = arith.mulf %886, %885 : vector<16x256xf32>
    %888 = arith.addf %883, %887 : vector<16x256xf32>
    %889 = arith.addf %879, %888 : vector<16x256xf32>
    %c13_135 = arith.constant 13 : index
    %c0_136 = arith.constant 0 : index
    %890 = vector.load %arg9[%c13_135, %c0_136] : memref<49x256xf32, #tpu.memory_space<vmem>>, vector<1x256xf32>
    %891 = vector.extract_strided_slice %828 {offsets = [0, 96], sizes = [16, 256], strides = [1, 1]} : vector<16x352xf32> to vector<16x256xf32>
    %892 = vector.broadcast %890 : vector<1x256xf32> to vector<16x256xf32>
    %893 = arith.mulf %892, %891 : vector<16x256xf32>
    %c13_137 = arith.constant 13 : index
    %c0_138 = arith.constant 0 : index
    %894 = vector.load %arg10[%c13_137, %c0_138] : memref<49x256xf32, #tpu.memory_space<vmem>>, vector<1x256xf32>
    %895 = vector.extract_strided_slice %829 {offsets = [0, 96], sizes = [16, 256], strides = [1, 1]} : vector<16x352xf32> to vector<16x256xf32>
    %896 = vector.broadcast %894 : vector<1x256xf32> to vector<16x256xf32>
    %897 = arith.mulf %896, %895 : vector<16x256xf32>
    %898 = arith.addf %893, %897 : vector<16x256xf32>
    %899 = arith.addf %889, %898 : vector<16x256xf32>
    %c2_139 = arith.constant 2 : index
    %c0_140 = arith.constant 0 : index
    %900 = vector.load %arg13[%c2_139, %c0_140] : memref<22x352xf32, #tpu.memory_space<vmem>>, vector<16x352xf32>
    %c2_141 = arith.constant 2 : index
    %c0_142 = arith.constant 0 : index
    %901 = vector.load %arg14[%c2_141, %c0_142] : memref<22x352xf32, #tpu.memory_space<vmem>>, vector<16x352xf32>
    %c14_143 = arith.constant 14 : index
    %c0_144 = arith.constant 0 : index
    %902 = vector.load %arg9[%c14_143, %c0_144] : memref<49x256xf32, #tpu.memory_space<vmem>>, vector<1x256xf32>
    %903 = vector.extract_strided_slice %900 {offsets = [0, 0], sizes = [16, 256], strides = [1, 1]} : vector<16x352xf32> to vector<16x256xf32>
    %904 = vector.broadcast %902 : vector<1x256xf32> to vector<16x256xf32>
    %905 = arith.mulf %904, %903 : vector<16x256xf32>
    %c14_145 = arith.constant 14 : index
    %c0_146 = arith.constant 0 : index
    %906 = vector.load %arg10[%c14_145, %c0_146] : memref<49x256xf32, #tpu.memory_space<vmem>>, vector<1x256xf32>
    %907 = vector.extract_strided_slice %901 {offsets = [0, 0], sizes = [16, 256], strides = [1, 1]} : vector<16x352xf32> to vector<16x256xf32>
    %908 = vector.broadcast %906 : vector<1x256xf32> to vector<16x256xf32>
    %909 = arith.mulf %908, %907 : vector<16x256xf32>
    %910 = arith.addf %905, %909 : vector<16x256xf32>
    %911 = arith.addf %899, %910 : vector<16x256xf32>
    %c15_147 = arith.constant 15 : index
    %c0_148 = arith.constant 0 : index
    %912 = vector.load %arg9[%c15_147, %c0_148] : memref<49x256xf32, #tpu.memory_space<vmem>>, vector<1x256xf32>
    %913 = vector.extract_strided_slice %900 {offsets = [0, 16], sizes = [16, 256], strides = [1, 1]} : vector<16x352xf32> to vector<16x256xf32>
    %914 = vector.broadcast %912 : vector<1x256xf32> to vector<16x256xf32>
    %915 = arith.mulf %914, %913 : vector<16x256xf32>
    %c15_149 = arith.constant 15 : index
    %c0_150 = arith.constant 0 : index
    %916 = vector.load %arg10[%c15_149, %c0_150] : memref<49x256xf32, #tpu.memory_space<vmem>>, vector<1x256xf32>
    %917 = vector.extract_strided_slice %901 {offsets = [0, 16], sizes = [16, 256], strides = [1, 1]} : vector<16x352xf32> to vector<16x256xf32>
    %918 = vector.broadcast %916 : vector<1x256xf32> to vector<16x256xf32>
    %919 = arith.mulf %918, %917 : vector<16x256xf32>
    %920 = arith.addf %915, %919 : vector<16x256xf32>
    %921 = arith.addf %911, %920 : vector<16x256xf32>
    %c16_151 = arith.constant 16 : index
    %c0_152 = arith.constant 0 : index
    %922 = vector.load %arg9[%c16_151, %c0_152] : memref<49x256xf32, #tpu.memory_space<vmem>>, vector<1x256xf32>
    %923 = vector.extract_strided_slice %900 {offsets = [0, 32], sizes = [16, 256], strides = [1, 1]} : vector<16x352xf32> to vector<16x256xf32>
    %924 = vector.broadcast %922 : vector<1x256xf32> to vector<16x256xf32>
    %925 = arith.mulf %924, %923 : vector<16x256xf32>
    %c16_153 = arith.constant 16 : index
    %c0_154 = arith.constant 0 : index
    %926 = vector.load %arg10[%c16_153, %c0_154] : memref<49x256xf32, #tpu.memory_space<vmem>>, vector<1x256xf32>
    %927 = vector.extract_strided_slice %901 {offsets = [0, 32], sizes = [16, 256], strides = [1, 1]} : vector<16x352xf32> to vector<16x256xf32>
    %928 = vector.broadcast %926 : vector<1x256xf32> to vector<16x256xf32>
    %929 = arith.mulf %928, %927 : vector<16x256xf32>
    %930 = arith.addf %925, %929 : vector<16x256xf32>
    %931 = arith.addf %921, %930 : vector<16x256xf32>
    %c17_155 = arith.constant 17 : index
    %c0_156 = arith.constant 0 : index
    %932 = vector.load %arg9[%c17_155, %c0_156] : memref<49x256xf32, #tpu.memory_space<vmem>>, vector<1x256xf32>
    %933 = vector.extract_strided_slice %900 {offsets = [0, 48], sizes = [16, 256], strides = [1, 1]} : vector<16x352xf32> to vector<16x256xf32>
    %934 = vector.broadcast %932 : vector<1x256xf32> to vector<16x256xf32>
    %935 = arith.mulf %934, %933 : vector<16x256xf32>
    %c17_157 = arith.constant 17 : index
    %c0_158 = arith.constant 0 : index
    %936 = vector.load %arg10[%c17_157, %c0_158] : memref<49x256xf32, #tpu.memory_space<vmem>>, vector<1x256xf32>
    %937 = vector.extract_strided_slice %901 {offsets = [0, 48], sizes = [16, 256], strides = [1, 1]} : vector<16x352xf32> to vector<16x256xf32>
    %938 = vector.broadcast %936 : vector<1x256xf32> to vector<16x256xf32>
    %939 = arith.mulf %938, %937 : vector<16x256xf32>
    %940 = arith.addf %935, %939 : vector<16x256xf32>
    %941 = arith.addf %931, %940 : vector<16x256xf32>
    %c18_159 = arith.constant 18 : index
    %c0_160 = arith.constant 0 : index
    %942 = vector.load %arg9[%c18_159, %c0_160] : memref<49x256xf32, #tpu.memory_space<vmem>>, vector<1x256xf32>
    %943 = vector.extract_strided_slice %900 {offsets = [0, 64], sizes = [16, 256], strides = [1, 1]} : vector<16x352xf32> to vector<16x256xf32>
    %944 = vector.broadcast %942 : vector<1x256xf32> to vector<16x256xf32>
    %945 = arith.mulf %944, %943 : vector<16x256xf32>
    %c18_161 = arith.constant 18 : index
    %c0_162 = arith.constant 0 : index
    %946 = vector.load %arg10[%c18_161, %c0_162] : memref<49x256xf32, #tpu.memory_space<vmem>>, vector<1x256xf32>
    %947 = vector.extract_strided_slice %901 {offsets = [0, 64], sizes = [16, 256], strides = [1, 1]} : vector<16x352xf32> to vector<16x256xf32>
    %948 = vector.broadcast %946 : vector<1x256xf32> to vector<16x256xf32>
    %949 = arith.mulf %948, %947 : vector<16x256xf32>
    %950 = arith.addf %945, %949 : vector<16x256xf32>
    %951 = arith.addf %941, %950 : vector<16x256xf32>
    %c19_163 = arith.constant 19 : index
    %c0_164 = arith.constant 0 : index
    %952 = vector.load %arg9[%c19_163, %c0_164] : memref<49x256xf32, #tpu.memory_space<vmem>>, vector<1x256xf32>
    %953 = vector.extract_strided_slice %900 {offsets = [0, 80], sizes = [16, 256], strides = [1, 1]} : vector<16x352xf32> to vector<16x256xf32>
    %954 = vector.broadcast %952 : vector<1x256xf32> to vector<16x256xf32>
    %955 = arith.mulf %954, %953 : vector<16x256xf32>
    %c19_165 = arith.constant 19 : index
    %c0_166 = arith.constant 0 : index
    %956 = vector.load %arg10[%c19_165, %c0_166] : memref<49x256xf32, #tpu.memory_space<vmem>>, vector<1x256xf32>
    %957 = vector.extract_strided_slice %901 {offsets = [0, 80], sizes = [16, 256], strides = [1, 1]} : vector<16x352xf32> to vector<16x256xf32>
    %958 = vector.broadcast %956 : vector<1x256xf32> to vector<16x256xf32>
    %959 = arith.mulf %958, %957 : vector<16x256xf32>
    %960 = arith.addf %955, %959 : vector<16x256xf32>
    %961 = arith.addf %951, %960 : vector<16x256xf32>
    %c20_167 = arith.constant 20 : index
    %c0_168 = arith.constant 0 : index
    %962 = vector.load %arg9[%c20_167, %c0_168] : memref<49x256xf32, #tpu.memory_space<vmem>>, vector<1x256xf32>
    %963 = vector.extract_strided_slice %900 {offsets = [0, 96], sizes = [16, 256], strides = [1, 1]} : vector<16x352xf32> to vector<16x256xf32>
    %964 = vector.broadcast %962 : vector<1x256xf32> to vector<16x256xf32>
    %965 = arith.mulf %964, %963 : vector<16x256xf32>
    %c20_169 = arith.constant 20 : index
    %c0_170 = arith.constant 0 : index
    %966 = vector.load %arg10[%c20_169, %c0_170] : memref<49x256xf32, #tpu.memory_space<vmem>>, vector<1x256xf32>
    %967 = vector.extract_strided_slice %901 {offsets = [0, 96], sizes = [16, 256], strides = [1, 1]} : vector<16x352xf32> to vector<16x256xf32>
    %968 = vector.broadcast %966 : vector<1x256xf32> to vector<16x256xf32>
    %969 = arith.mulf %968, %967 : vector<16x256xf32>
    %970 = arith.addf %965, %969 : vector<16x256xf32>
    %971 = arith.addf %961, %970 : vector<16x256xf32>
    %c3_171 = arith.constant 3 : index
    %c0_172 = arith.constant 0 : index
    %972 = vector.load %arg13[%c3_171, %c0_172] : memref<22x352xf32, #tpu.memory_space<vmem>>, vector<16x352xf32>
    %c3_173 = arith.constant 3 : index
    %c0_174 = arith.constant 0 : index
    %973 = vector.load %arg14[%c3_173, %c0_174] : memref<22x352xf32, #tpu.memory_space<vmem>>, vector<16x352xf32>
    %c21_175 = arith.constant 21 : index
    %c0_176 = arith.constant 0 : index
    %974 = vector.load %arg9[%c21_175, %c0_176] : memref<49x256xf32, #tpu.memory_space<vmem>>, vector<1x256xf32>
    %975 = vector.extract_strided_slice %972 {offsets = [0, 0], sizes = [16, 256], strides = [1, 1]} : vector<16x352xf32> to vector<16x256xf32>
    %976 = vector.broadcast %974 : vector<1x256xf32> to vector<16x256xf32>
    %977 = arith.mulf %976, %975 : vector<16x256xf32>
    %c21_177 = arith.constant 21 : index
    %c0_178 = arith.constant 0 : index
    %978 = vector.load %arg10[%c21_177, %c0_178] : memref<49x256xf32, #tpu.memory_space<vmem>>, vector<1x256xf32>
    %979 = vector.extract_strided_slice %973 {offsets = [0, 0], sizes = [16, 256], strides = [1, 1]} : vector<16x352xf32> to vector<16x256xf32>
    %980 = vector.broadcast %978 : vector<1x256xf32> to vector<16x256xf32>
    %981 = arith.mulf %980, %979 : vector<16x256xf32>
    %982 = arith.addf %977, %981 : vector<16x256xf32>
    %983 = arith.addf %971, %982 : vector<16x256xf32>
    %c22_179 = arith.constant 22 : index
    %c0_180 = arith.constant 0 : index
    %984 = vector.load %arg9[%c22_179, %c0_180] : memref<49x256xf32, #tpu.memory_space<vmem>>, vector<1x256xf32>
    %985 = vector.extract_strided_slice %972 {offsets = [0, 16], sizes = [16, 256], strides = [1, 1]} : vector<16x352xf32> to vector<16x256xf32>
    %986 = vector.broadcast %984 : vector<1x256xf32> to vector<16x256xf32>
    %987 = arith.mulf %986, %985 : vector<16x256xf32>
    %c22_181 = arith.constant 22 : index
    %c0_182 = arith.constant 0 : index
    %988 = vector.load %arg10[%c22_181, %c0_182] : memref<49x256xf32, #tpu.memory_space<vmem>>, vector<1x256xf32>
    %989 = vector.extract_strided_slice %973 {offsets = [0, 16], sizes = [16, 256], strides = [1, 1]} : vector<16x352xf32> to vector<16x256xf32>
    %990 = vector.broadcast %988 : vector<1x256xf32> to vector<16x256xf32>
    %991 = arith.mulf %990, %989 : vector<16x256xf32>
    %992 = arith.addf %987, %991 : vector<16x256xf32>
    %993 = arith.addf %983, %992 : vector<16x256xf32>
    %c23_183 = arith.constant 23 : index
    %c0_184 = arith.constant 0 : index
    %994 = vector.load %arg9[%c23_183, %c0_184] : memref<49x256xf32, #tpu.memory_space<vmem>>, vector<1x256xf32>
    %995 = vector.extract_strided_slice %972 {offsets = [0, 32], sizes = [16, 256], strides = [1, 1]} : vector<16x352xf32> to vector<16x256xf32>
    %996 = vector.broadcast %994 : vector<1x256xf32> to vector<16x256xf32>
    %997 = arith.mulf %996, %995 : vector<16x256xf32>
    %c23_185 = arith.constant 23 : index
    %c0_186 = arith.constant 0 : index
    %998 = vector.load %arg10[%c23_185, %c0_186] : memref<49x256xf32, #tpu.memory_space<vmem>>, vector<1x256xf32>
    %999 = vector.extract_strided_slice %973 {offsets = [0, 32], sizes = [16, 256], strides = [1, 1]} : vector<16x352xf32> to vector<16x256xf32>
    %1000 = vector.broadcast %998 : vector<1x256xf32> to vector<16x256xf32>
    %1001 = arith.mulf %1000, %999 : vector<16x256xf32>
    %1002 = arith.addf %997, %1001 : vector<16x256xf32>
    %1003 = arith.addf %993, %1002 : vector<16x256xf32>
    %c24_187 = arith.constant 24 : index
    %c0_188 = arith.constant 0 : index
    %1004 = vector.load %arg9[%c24_187, %c0_188] : memref<49x256xf32, #tpu.memory_space<vmem>>, vector<1x256xf32>
    %1005 = vector.extract_strided_slice %972 {offsets = [0, 48], sizes = [16, 256], strides = [1, 1]} : vector<16x352xf32> to vector<16x256xf32>
    %1006 = vector.broadcast %1004 : vector<1x256xf32> to vector<16x256xf32>
    %1007 = arith.mulf %1006, %1005 : vector<16x256xf32>
    %c24_189 = arith.constant 24 : index
    %c0_190 = arith.constant 0 : index
    %1008 = vector.load %arg10[%c24_189, %c0_190] : memref<49x256xf32, #tpu.memory_space<vmem>>, vector<1x256xf32>
    %1009 = vector.extract_strided_slice %973 {offsets = [0, 48], sizes = [16, 256], strides = [1, 1]} : vector<16x352xf32> to vector<16x256xf32>
    %1010 = vector.broadcast %1008 : vector<1x256xf32> to vector<16x256xf32>
    %1011 = arith.mulf %1010, %1009 : vector<16x256xf32>
    %1012 = arith.addf %1007, %1011 : vector<16x256xf32>
    %1013 = arith.addf %1003, %1012 : vector<16x256xf32>
    %c25_191 = arith.constant 25 : index
    %c0_192 = arith.constant 0 : index
    %1014 = vector.load %arg9[%c25_191, %c0_192] : memref<49x256xf32, #tpu.memory_space<vmem>>, vector<1x256xf32>
    %1015 = vector.extract_strided_slice %972 {offsets = [0, 64], sizes = [16, 256], strides = [1, 1]} : vector<16x352xf32> to vector<16x256xf32>
    %1016 = vector.broadcast %1014 : vector<1x256xf32> to vector<16x256xf32>
    %1017 = arith.mulf %1016, %1015 : vector<16x256xf32>
    %c25_193 = arith.constant 25 : index
    %c0_194 = arith.constant 0 : index
    %1018 = vector.load %arg10[%c25_193, %c0_194] : memref<49x256xf32, #tpu.memory_space<vmem>>, vector<1x256xf32>
    %1019 = vector.extract_strided_slice %973 {offsets = [0, 64], sizes = [16, 256], strides = [1, 1]} : vector<16x352xf32> to vector<16x256xf32>
    %1020 = vector.broadcast %1018 : vector<1x256xf32> to vector<16x256xf32>
    %1021 = arith.mulf %1020, %1019 : vector<16x256xf32>
    %1022 = arith.addf %1017, %1021 : vector<16x256xf32>
    %1023 = arith.addf %1013, %1022 : vector<16x256xf32>
    %c26_195 = arith.constant 26 : index
    %c0_196 = arith.constant 0 : index
    %1024 = vector.load %arg9[%c26_195, %c0_196] : memref<49x256xf32, #tpu.memory_space<vmem>>, vector<1x256xf32>
    %1025 = vector.extract_strided_slice %972 {offsets = [0, 80], sizes = [16, 256], strides = [1, 1]} : vector<16x352xf32> to vector<16x256xf32>
    %1026 = vector.broadcast %1024 : vector<1x256xf32> to vector<16x256xf32>
    %1027 = arith.mulf %1026, %1025 : vector<16x256xf32>
    %c26_197 = arith.constant 26 : index
    %c0_198 = arith.constant 0 : index
    %1028 = vector.load %arg10[%c26_197, %c0_198] : memref<49x256xf32, #tpu.memory_space<vmem>>, vector<1x256xf32>
    %1029 = vector.extract_strided_slice %973 {offsets = [0, 80], sizes = [16, 256], strides = [1, 1]} : vector<16x352xf32> to vector<16x256xf32>
    %1030 = vector.broadcast %1028 : vector<1x256xf32> to vector<16x256xf32>
    %1031 = arith.mulf %1030, %1029 : vector<16x256xf32>
    %1032 = arith.addf %1027, %1031 : vector<16x256xf32>
    %1033 = arith.addf %1023, %1032 : vector<16x256xf32>
    %c27_199 = arith.constant 27 : index
    %c0_200 = arith.constant 0 : index
    %1034 = vector.load %arg9[%c27_199, %c0_200] : memref<49x256xf32, #tpu.memory_space<vmem>>, vector<1x256xf32>
    %1035 = vector.extract_strided_slice %972 {offsets = [0, 96], sizes = [16, 256], strides = [1, 1]} : vector<16x352xf32> to vector<16x256xf32>
    %1036 = vector.broadcast %1034 : vector<1x256xf32> to vector<16x256xf32>
    %1037 = arith.mulf %1036, %1035 : vector<16x256xf32>
    %c27_201 = arith.constant 27 : index
    %c0_202 = arith.constant 0 : index
    %1038 = vector.load %arg10[%c27_201, %c0_202] : memref<49x256xf32, #tpu.memory_space<vmem>>, vector<1x256xf32>
    %1039 = vector.extract_strided_slice %973 {offsets = [0, 96], sizes = [16, 256], strides = [1, 1]} : vector<16x352xf32> to vector<16x256xf32>
    %1040 = vector.broadcast %1038 : vector<1x256xf32> to vector<16x256xf32>
    %1041 = arith.mulf %1040, %1039 : vector<16x256xf32>
    %1042 = arith.addf %1037, %1041 : vector<16x256xf32>
    %1043 = arith.addf %1033, %1042 : vector<16x256xf32>
    %c4_203 = arith.constant 4 : index
    %c0_204 = arith.constant 0 : index
    %1044 = vector.load %arg13[%c4_203, %c0_204] : memref<22x352xf32, #tpu.memory_space<vmem>>, vector<16x352xf32>
    %c4_205 = arith.constant 4 : index
    %c0_206 = arith.constant 0 : index
    %1045 = vector.load %arg14[%c4_205, %c0_206] : memref<22x352xf32, #tpu.memory_space<vmem>>, vector<16x352xf32>
    %c28_207 = arith.constant 28 : index
    %c0_208 = arith.constant 0 : index
    %1046 = vector.load %arg9[%c28_207, %c0_208] : memref<49x256xf32, #tpu.memory_space<vmem>>, vector<1x256xf32>
    %1047 = vector.extract_strided_slice %1044 {offsets = [0, 0], sizes = [16, 256], strides = [1, 1]} : vector<16x352xf32> to vector<16x256xf32>
    %1048 = vector.broadcast %1046 : vector<1x256xf32> to vector<16x256xf32>
    %1049 = arith.mulf %1048, %1047 : vector<16x256xf32>
    %c28_209 = arith.constant 28 : index
    %c0_210 = arith.constant 0 : index
    %1050 = vector.load %arg10[%c28_209, %c0_210] : memref<49x256xf32, #tpu.memory_space<vmem>>, vector<1x256xf32>
    %1051 = vector.extract_strided_slice %1045 {offsets = [0, 0], sizes = [16, 256], strides = [1, 1]} : vector<16x352xf32> to vector<16x256xf32>
    %1052 = vector.broadcast %1050 : vector<1x256xf32> to vector<16x256xf32>
    %1053 = arith.mulf %1052, %1051 : vector<16x256xf32>
    %1054 = arith.addf %1049, %1053 : vector<16x256xf32>
    %1055 = arith.addf %1043, %1054 : vector<16x256xf32>
    %c29_211 = arith.constant 29 : index
    %c0_212 = arith.constant 0 : index
    %1056 = vector.load %arg9[%c29_211, %c0_212] : memref<49x256xf32, #tpu.memory_space<vmem>>, vector<1x256xf32>
    %1057 = vector.extract_strided_slice %1044 {offsets = [0, 16], sizes = [16, 256], strides = [1, 1]} : vector<16x352xf32> to vector<16x256xf32>
    %1058 = vector.broadcast %1056 : vector<1x256xf32> to vector<16x256xf32>
    %1059 = arith.mulf %1058, %1057 : vector<16x256xf32>
    %c29_213 = arith.constant 29 : index
    %c0_214 = arith.constant 0 : index
    %1060 = vector.load %arg10[%c29_213, %c0_214] : memref<49x256xf32, #tpu.memory_space<vmem>>, vector<1x256xf32>
    %1061 = vector.extract_strided_slice %1045 {offsets = [0, 16], sizes = [16, 256], strides = [1, 1]} : vector<16x352xf32> to vector<16x256xf32>
    %1062 = vector.broadcast %1060 : vector<1x256xf32> to vector<16x256xf32>
    %1063 = arith.mulf %1062, %1061 : vector<16x256xf32>
    %1064 = arith.addf %1059, %1063 : vector<16x256xf32>
    %1065 = arith.addf %1055, %1064 : vector<16x256xf32>
    %c30_215 = arith.constant 30 : index
    %c0_216 = arith.constant 0 : index
    %1066 = vector.load %arg9[%c30_215, %c0_216] : memref<49x256xf32, #tpu.memory_space<vmem>>, vector<1x256xf32>
    %1067 = vector.extract_strided_slice %1044 {offsets = [0, 32], sizes = [16, 256], strides = [1, 1]} : vector<16x352xf32> to vector<16x256xf32>
    %1068 = vector.broadcast %1066 : vector<1x256xf32> to vector<16x256xf32>
    %1069 = arith.mulf %1068, %1067 : vector<16x256xf32>
    %c30_217 = arith.constant 30 : index
    %c0_218 = arith.constant 0 : index
    %1070 = vector.load %arg10[%c30_217, %c0_218] : memref<49x256xf32, #tpu.memory_space<vmem>>, vector<1x256xf32>
    %1071 = vector.extract_strided_slice %1045 {offsets = [0, 32], sizes = [16, 256], strides = [1, 1]} : vector<16x352xf32> to vector<16x256xf32>
    %1072 = vector.broadcast %1070 : vector<1x256xf32> to vector<16x256xf32>
    %1073 = arith.mulf %1072, %1071 : vector<16x256xf32>
    %1074 = arith.addf %1069, %1073 : vector<16x256xf32>
    %1075 = arith.addf %1065, %1074 : vector<16x256xf32>
    %c31_219 = arith.constant 31 : index
    %c0_220 = arith.constant 0 : index
    %1076 = vector.load %arg9[%c31_219, %c0_220] : memref<49x256xf32, #tpu.memory_space<vmem>>, vector<1x256xf32>
    %1077 = vector.extract_strided_slice %1044 {offsets = [0, 48], sizes = [16, 256], strides = [1, 1]} : vector<16x352xf32> to vector<16x256xf32>
    %1078 = vector.broadcast %1076 : vector<1x256xf32> to vector<16x256xf32>
    %1079 = arith.mulf %1078, %1077 : vector<16x256xf32>
    %c31_221 = arith.constant 31 : index
    %c0_222 = arith.constant 0 : index
    %1080 = vector.load %arg10[%c31_221, %c0_222] : memref<49x256xf32, #tpu.memory_space<vmem>>, vector<1x256xf32>
    %1081 = vector.extract_strided_slice %1045 {offsets = [0, 48], sizes = [16, 256], strides = [1, 1]} : vector<16x352xf32> to vector<16x256xf32>
    %1082 = vector.broadcast %1080 : vector<1x256xf32> to vector<16x256xf32>
    %1083 = arith.mulf %1082, %1081 : vector<16x256xf32>
    %1084 = arith.addf %1079, %1083 : vector<16x256xf32>
    %1085 = arith.addf %1075, %1084 : vector<16x256xf32>
    %c32_223 = arith.constant 32 : index
    %c0_224 = arith.constant 0 : index
    %1086 = vector.load %arg9[%c32_223, %c0_224] : memref<49x256xf32, #tpu.memory_space<vmem>>, vector<1x256xf32>
    %1087 = vector.extract_strided_slice %1044 {offsets = [0, 64], sizes = [16, 256], strides = [1, 1]} : vector<16x352xf32> to vector<16x256xf32>
    %1088 = vector.broadcast %1086 : vector<1x256xf32> to vector<16x256xf32>
    %1089 = arith.mulf %1088, %1087 : vector<16x256xf32>
    %c32_225 = arith.constant 32 : index
    %c0_226 = arith.constant 0 : index
    %1090 = vector.load %arg10[%c32_225, %c0_226] : memref<49x256xf32, #tpu.memory_space<vmem>>, vector<1x256xf32>
    %1091 = vector.extract_strided_slice %1045 {offsets = [0, 64], sizes = [16, 256], strides = [1, 1]} : vector<16x352xf32> to vector<16x256xf32>
    %1092 = vector.broadcast %1090 : vector<1x256xf32> to vector<16x256xf32>
    %1093 = arith.mulf %1092, %1091 : vector<16x256xf32>
    %1094 = arith.addf %1089, %1093 : vector<16x256xf32>
    %1095 = arith.addf %1085, %1094 : vector<16x256xf32>
    %c33_227 = arith.constant 33 : index
    %c0_228 = arith.constant 0 : index
    %1096 = vector.load %arg9[%c33_227, %c0_228] : memref<49x256xf32, #tpu.memory_space<vmem>>, vector<1x256xf32>
    %1097 = vector.extract_strided_slice %1044 {offsets = [0, 80], sizes = [16, 256], strides = [1, 1]} : vector<16x352xf32> to vector<16x256xf32>
    %1098 = vector.broadcast %1096 : vector<1x256xf32> to vector<16x256xf32>
    %1099 = arith.mulf %1098, %1097 : vector<16x256xf32>
    %c33_229 = arith.constant 33 : index
    %c0_230 = arith.constant 0 : index
    %1100 = vector.load %arg10[%c33_229, %c0_230] : memref<49x256xf32, #tpu.memory_space<vmem>>, vector<1x256xf32>
    %1101 = vector.extract_strided_slice %1045 {offsets = [0, 80], sizes = [16, 256], strides = [1, 1]} : vector<16x352xf32> to vector<16x256xf32>
    %1102 = vector.broadcast %1100 : vector<1x256xf32> to vector<16x256xf32>
    %1103 = arith.mulf %1102, %1101 : vector<16x256xf32>
    %1104 = arith.addf %1099, %1103 : vector<16x256xf32>
    %1105 = arith.addf %1095, %1104 : vector<16x256xf32>
    %c34_231 = arith.constant 34 : index
    %c0_232 = arith.constant 0 : index
    %1106 = vector.load %arg9[%c34_231, %c0_232] : memref<49x256xf32, #tpu.memory_space<vmem>>, vector<1x256xf32>
    %1107 = vector.extract_strided_slice %1044 {offsets = [0, 96], sizes = [16, 256], strides = [1, 1]} : vector<16x352xf32> to vector<16x256xf32>
    %1108 = vector.broadcast %1106 : vector<1x256xf32> to vector<16x256xf32>
    %1109 = arith.mulf %1108, %1107 : vector<16x256xf32>
    %c34_233 = arith.constant 34 : index
    %c0_234 = arith.constant 0 : index
    %1110 = vector.load %arg10[%c34_233, %c0_234] : memref<49x256xf32, #tpu.memory_space<vmem>>, vector<1x256xf32>
    %1111 = vector.extract_strided_slice %1045 {offsets = [0, 96], sizes = [16, 256], strides = [1, 1]} : vector<16x352xf32> to vector<16x256xf32>
    %1112 = vector.broadcast %1110 : vector<1x256xf32> to vector<16x256xf32>
    %1113 = arith.mulf %1112, %1111 : vector<16x256xf32>
    %1114 = arith.addf %1109, %1113 : vector<16x256xf32>
    %1115 = arith.addf %1105, %1114 : vector<16x256xf32>
    %c5_235 = arith.constant 5 : index
    %c0_236 = arith.constant 0 : index
    %1116 = vector.load %arg13[%c5_235, %c0_236] : memref<22x352xf32, #tpu.memory_space<vmem>>, vector<16x352xf32>
    %c5_237 = arith.constant 5 : index
    %c0_238 = arith.constant 0 : index
    %1117 = vector.load %arg14[%c5_237, %c0_238] : memref<22x352xf32, #tpu.memory_space<vmem>>, vector<16x352xf32>
    %c35_239 = arith.constant 35 : index
    %c0_240 = arith.constant 0 : index
    %1118 = vector.load %arg9[%c35_239, %c0_240] : memref<49x256xf32, #tpu.memory_space<vmem>>, vector<1x256xf32>
    %1119 = vector.extract_strided_slice %1116 {offsets = [0, 0], sizes = [16, 256], strides = [1, 1]} : vector<16x352xf32> to vector<16x256xf32>
    %1120 = vector.broadcast %1118 : vector<1x256xf32> to vector<16x256xf32>
    %1121 = arith.mulf %1120, %1119 : vector<16x256xf32>
    %c35_241 = arith.constant 35 : index
    %c0_242 = arith.constant 0 : index
    %1122 = vector.load %arg10[%c35_241, %c0_242] : memref<49x256xf32, #tpu.memory_space<vmem>>, vector<1x256xf32>
    %1123 = vector.extract_strided_slice %1117 {offsets = [0, 0], sizes = [16, 256], strides = [1, 1]} : vector<16x352xf32> to vector<16x256xf32>
    %1124 = vector.broadcast %1122 : vector<1x256xf32> to vector<16x256xf32>
    %1125 = arith.mulf %1124, %1123 : vector<16x256xf32>
    %1126 = arith.addf %1121, %1125 : vector<16x256xf32>
    %1127 = arith.addf %1115, %1126 : vector<16x256xf32>
    %c36_243 = arith.constant 36 : index
    %c0_244 = arith.constant 0 : index
    %1128 = vector.load %arg9[%c36_243, %c0_244] : memref<49x256xf32, #tpu.memory_space<vmem>>, vector<1x256xf32>
    %1129 = vector.extract_strided_slice %1116 {offsets = [0, 16], sizes = [16, 256], strides = [1, 1]} : vector<16x352xf32> to vector<16x256xf32>
    %1130 = vector.broadcast %1128 : vector<1x256xf32> to vector<16x256xf32>
    %1131 = arith.mulf %1130, %1129 : vector<16x256xf32>
    %c36_245 = arith.constant 36 : index
    %c0_246 = arith.constant 0 : index
    %1132 = vector.load %arg10[%c36_245, %c0_246] : memref<49x256xf32, #tpu.memory_space<vmem>>, vector<1x256xf32>
    %1133 = vector.extract_strided_slice %1117 {offsets = [0, 16], sizes = [16, 256], strides = [1, 1]} : vector<16x352xf32> to vector<16x256xf32>
    %1134 = vector.broadcast %1132 : vector<1x256xf32> to vector<16x256xf32>
    %1135 = arith.mulf %1134, %1133 : vector<16x256xf32>
    %1136 = arith.addf %1131, %1135 : vector<16x256xf32>
    %1137 = arith.addf %1127, %1136 : vector<16x256xf32>
    %c37_247 = arith.constant 37 : index
    %c0_248 = arith.constant 0 : index
    %1138 = vector.load %arg9[%c37_247, %c0_248] : memref<49x256xf32, #tpu.memory_space<vmem>>, vector<1x256xf32>
    %1139 = vector.extract_strided_slice %1116 {offsets = [0, 32], sizes = [16, 256], strides = [1, 1]} : vector<16x352xf32> to vector<16x256xf32>
    %1140 = vector.broadcast %1138 : vector<1x256xf32> to vector<16x256xf32>
    %1141 = arith.mulf %1140, %1139 : vector<16x256xf32>
    %c37_249 = arith.constant 37 : index
    %c0_250 = arith.constant 0 : index
    %1142 = vector.load %arg10[%c37_249, %c0_250] : memref<49x256xf32, #tpu.memory_space<vmem>>, vector<1x256xf32>
    %1143 = vector.extract_strided_slice %1117 {offsets = [0, 32], sizes = [16, 256], strides = [1, 1]} : vector<16x352xf32> to vector<16x256xf32>
    %1144 = vector.broadcast %1142 : vector<1x256xf32> to vector<16x256xf32>
    %1145 = arith.mulf %1144, %1143 : vector<16x256xf32>
    %1146 = arith.addf %1141, %1145 : vector<16x256xf32>
    %1147 = arith.addf %1137, %1146 : vector<16x256xf32>
    %c38_251 = arith.constant 38 : index
    %c0_252 = arith.constant 0 : index
    %1148 = vector.load %arg9[%c38_251, %c0_252] : memref<49x256xf32, #tpu.memory_space<vmem>>, vector<1x256xf32>
    %1149 = vector.extract_strided_slice %1116 {offsets = [0, 48], sizes = [16, 256], strides = [1, 1]} : vector<16x352xf32> to vector<16x256xf32>
    %1150 = vector.broadcast %1148 : vector<1x256xf32> to vector<16x256xf32>
    %1151 = arith.mulf %1150, %1149 : vector<16x256xf32>
    %c38_253 = arith.constant 38 : index
    %c0_254 = arith.constant 0 : index
    %1152 = vector.load %arg10[%c38_253, %c0_254] : memref<49x256xf32, #tpu.memory_space<vmem>>, vector<1x256xf32>
    %1153 = vector.extract_strided_slice %1117 {offsets = [0, 48], sizes = [16, 256], strides = [1, 1]} : vector<16x352xf32> to vector<16x256xf32>
    %1154 = vector.broadcast %1152 : vector<1x256xf32> to vector<16x256xf32>
    %1155 = arith.mulf %1154, %1153 : vector<16x256xf32>
    %1156 = arith.addf %1151, %1155 : vector<16x256xf32>
    %1157 = arith.addf %1147, %1156 : vector<16x256xf32>
    %c39_255 = arith.constant 39 : index
    %c0_256 = arith.constant 0 : index
    %1158 = vector.load %arg9[%c39_255, %c0_256] : memref<49x256xf32, #tpu.memory_space<vmem>>, vector<1x256xf32>
    %1159 = vector.extract_strided_slice %1116 {offsets = [0, 64], sizes = [16, 256], strides = [1, 1]} : vector<16x352xf32> to vector<16x256xf32>
    %1160 = vector.broadcast %1158 : vector<1x256xf32> to vector<16x256xf32>
    %1161 = arith.mulf %1160, %1159 : vector<16x256xf32>
    %c39_257 = arith.constant 39 : index
    %c0_258 = arith.constant 0 : index
    %1162 = vector.load %arg10[%c39_257, %c0_258] : memref<49x256xf32, #tpu.memory_space<vmem>>, vector<1x256xf32>
    %1163 = vector.extract_strided_slice %1117 {offsets = [0, 64], sizes = [16, 256], strides = [1, 1]} : vector<16x352xf32> to vector<16x256xf32>
    %1164 = vector.broadcast %1162 : vector<1x256xf32> to vector<16x256xf32>
    %1165 = arith.mulf %1164, %1163 : vector<16x256xf32>
    %1166 = arith.addf %1161, %1165 : vector<16x256xf32>
    %1167 = arith.addf %1157, %1166 : vector<16x256xf32>
    %c40_259 = arith.constant 40 : index
    %c0_260 = arith.constant 0 : index
    %1168 = vector.load %arg9[%c40_259, %c0_260] : memref<49x256xf32, #tpu.memory_space<vmem>>, vector<1x256xf32>
    %1169 = vector.extract_strided_slice %1116 {offsets = [0, 80], sizes = [16, 256], strides = [1, 1]} : vector<16x352xf32> to vector<16x256xf32>
    %1170 = vector.broadcast %1168 : vector<1x256xf32> to vector<16x256xf32>
    %1171 = arith.mulf %1170, %1169 : vector<16x256xf32>
    %c40_261 = arith.constant 40 : index
    %c0_262 = arith.constant 0 : index
    %1172 = vector.load %arg10[%c40_261, %c0_262] : memref<49x256xf32, #tpu.memory_space<vmem>>, vector<1x256xf32>
    %1173 = vector.extract_strided_slice %1117 {offsets = [0, 80], sizes = [16, 256], strides = [1, 1]} : vector<16x352xf32> to vector<16x256xf32>
    %1174 = vector.broadcast %1172 : vector<1x256xf32> to vector<16x256xf32>
    %1175 = arith.mulf %1174, %1173 : vector<16x256xf32>
    %1176 = arith.addf %1171, %1175 : vector<16x256xf32>
    %1177 = arith.addf %1167, %1176 : vector<16x256xf32>
    %c41_263 = arith.constant 41 : index
    %c0_264 = arith.constant 0 : index
    %1178 = vector.load %arg9[%c41_263, %c0_264] : memref<49x256xf32, #tpu.memory_space<vmem>>, vector<1x256xf32>
    %1179 = vector.extract_strided_slice %1116 {offsets = [0, 96], sizes = [16, 256], strides = [1, 1]} : vector<16x352xf32> to vector<16x256xf32>
    %1180 = vector.broadcast %1178 : vector<1x256xf32> to vector<16x256xf32>
    %1181 = arith.mulf %1180, %1179 : vector<16x256xf32>
    %c41_265 = arith.constant 41 : index
    %c0_266 = arith.constant 0 : index
    %1182 = vector.load %arg10[%c41_265, %c0_266] : memref<49x256xf32, #tpu.memory_space<vmem>>, vector<1x256xf32>
    %1183 = vector.extract_strided_slice %1117 {offsets = [0, 96], sizes = [16, 256], strides = [1, 1]} : vector<16x352xf32> to vector<16x256xf32>
    %1184 = vector.broadcast %1182 : vector<1x256xf32> to vector<16x256xf32>
    %1185 = arith.mulf %1184, %1183 : vector<16x256xf32>
    %1186 = arith.addf %1181, %1185 : vector<16x256xf32>
    %1187 = arith.addf %1177, %1186 : vector<16x256xf32>
    %c6_267 = arith.constant 6 : index
    %c0_268 = arith.constant 0 : index
    %1188 = vector.load %arg13[%c6_267, %c0_268] : memref<22x352xf32, #tpu.memory_space<vmem>>, vector<16x352xf32>
    %c6_269 = arith.constant 6 : index
    %c0_270 = arith.constant 0 : index
    %1189 = vector.load %arg14[%c6_269, %c0_270] : memref<22x352xf32, #tpu.memory_space<vmem>>, vector<16x352xf32>
    %c42_271 = arith.constant 42 : index
    %c0_272 = arith.constant 0 : index
    %1190 = vector.load %arg9[%c42_271, %c0_272] : memref<49x256xf32, #tpu.memory_space<vmem>>, vector<1x256xf32>
    %1191 = vector.extract_strided_slice %1188 {offsets = [0, 0], sizes = [16, 256], strides = [1, 1]} : vector<16x352xf32> to vector<16x256xf32>
    %1192 = vector.broadcast %1190 : vector<1x256xf32> to vector<16x256xf32>
    %1193 = arith.mulf %1192, %1191 : vector<16x256xf32>
    %c42_273 = arith.constant 42 : index
    %c0_274 = arith.constant 0 : index
    %1194 = vector.load %arg10[%c42_273, %c0_274] : memref<49x256xf32, #tpu.memory_space<vmem>>, vector<1x256xf32>
    %1195 = vector.extract_strided_slice %1189 {offsets = [0, 0], sizes = [16, 256], strides = [1, 1]} : vector<16x352xf32> to vector<16x256xf32>
    %1196 = vector.broadcast %1194 : vector<1x256xf32> to vector<16x256xf32>
    %1197 = arith.mulf %1196, %1195 : vector<16x256xf32>
    %1198 = arith.addf %1193, %1197 : vector<16x256xf32>
    %1199 = arith.addf %1187, %1198 : vector<16x256xf32>
    %c43_275 = arith.constant 43 : index
    %c0_276 = arith.constant 0 : index
    %1200 = vector.load %arg9[%c43_275, %c0_276] : memref<49x256xf32, #tpu.memory_space<vmem>>, vector<1x256xf32>
    %1201 = vector.extract_strided_slice %1188 {offsets = [0, 16], sizes = [16, 256], strides = [1, 1]} : vector<16x352xf32> to vector<16x256xf32>
    %1202 = vector.broadcast %1200 : vector<1x256xf32> to vector<16x256xf32>
    %1203 = arith.mulf %1202, %1201 : vector<16x256xf32>
    %c43_277 = arith.constant 43 : index
    %c0_278 = arith.constant 0 : index
    %1204 = vector.load %arg10[%c43_277, %c0_278] : memref<49x256xf32, #tpu.memory_space<vmem>>, vector<1x256xf32>
    %1205 = vector.extract_strided_slice %1189 {offsets = [0, 16], sizes = [16, 256], strides = [1, 1]} : vector<16x352xf32> to vector<16x256xf32>
    %1206 = vector.broadcast %1204 : vector<1x256xf32> to vector<16x256xf32>
    %1207 = arith.mulf %1206, %1205 : vector<16x256xf32>
    %1208 = arith.addf %1203, %1207 : vector<16x256xf32>
    %1209 = arith.addf %1199, %1208 : vector<16x256xf32>
    %c44_279 = arith.constant 44 : index
    %c0_280 = arith.constant 0 : index
    %1210 = vector.load %arg9[%c44_279, %c0_280] : memref<49x256xf32, #tpu.memory_space<vmem>>, vector<1x256xf32>
    %1211 = vector.extract_strided_slice %1188 {offsets = [0, 32], sizes = [16, 256], strides = [1, 1]} : vector<16x352xf32> to vector<16x256xf32>
    %1212 = vector.broadcast %1210 : vector<1x256xf32> to vector<16x256xf32>
    %1213 = arith.mulf %1212, %1211 : vector<16x256xf32>
    %c44_281 = arith.constant 44 : index
    %c0_282 = arith.constant 0 : index
    %1214 = vector.load %arg10[%c44_281, %c0_282] : memref<49x256xf32, #tpu.memory_space<vmem>>, vector<1x256xf32>
    %1215 = vector.extract_strided_slice %1189 {offsets = [0, 32], sizes = [16, 256], strides = [1, 1]} : vector<16x352xf32> to vector<16x256xf32>
    %1216 = vector.broadcast %1214 : vector<1x256xf32> to vector<16x256xf32>
    %1217 = arith.mulf %1216, %1215 : vector<16x256xf32>
    %1218 = arith.addf %1213, %1217 : vector<16x256xf32>
    %1219 = arith.addf %1209, %1218 : vector<16x256xf32>
    %c45_283 = arith.constant 45 : index
    %c0_284 = arith.constant 0 : index
    %1220 = vector.load %arg9[%c45_283, %c0_284] : memref<49x256xf32, #tpu.memory_space<vmem>>, vector<1x256xf32>
    %1221 = vector.extract_strided_slice %1188 {offsets = [0, 48], sizes = [16, 256], strides = [1, 1]} : vector<16x352xf32> to vector<16x256xf32>
    %1222 = vector.broadcast %1220 : vector<1x256xf32> to vector<16x256xf32>
    %1223 = arith.mulf %1222, %1221 : vector<16x256xf32>
    %c45_285 = arith.constant 45 : index
    %c0_286 = arith.constant 0 : index
    %1224 = vector.load %arg10[%c45_285, %c0_286] : memref<49x256xf32, #tpu.memory_space<vmem>>, vector<1x256xf32>
    %1225 = vector.extract_strided_slice %1189 {offsets = [0, 48], sizes = [16, 256], strides = [1, 1]} : vector<16x352xf32> to vector<16x256xf32>
    %1226 = vector.broadcast %1224 : vector<1x256xf32> to vector<16x256xf32>
    %1227 = arith.mulf %1226, %1225 : vector<16x256xf32>
    %1228 = arith.addf %1223, %1227 : vector<16x256xf32>
    %1229 = arith.addf %1219, %1228 : vector<16x256xf32>
    %c46_287 = arith.constant 46 : index
    %c0_288 = arith.constant 0 : index
    %1230 = vector.load %arg9[%c46_287, %c0_288] : memref<49x256xf32, #tpu.memory_space<vmem>>, vector<1x256xf32>
    %1231 = vector.extract_strided_slice %1188 {offsets = [0, 64], sizes = [16, 256], strides = [1, 1]} : vector<16x352xf32> to vector<16x256xf32>
    %1232 = vector.broadcast %1230 : vector<1x256xf32> to vector<16x256xf32>
    %1233 = arith.mulf %1232, %1231 : vector<16x256xf32>
    %c46_289 = arith.constant 46 : index
    %c0_290 = arith.constant 0 : index
    %1234 = vector.load %arg10[%c46_289, %c0_290] : memref<49x256xf32, #tpu.memory_space<vmem>>, vector<1x256xf32>
    %1235 = vector.extract_strided_slice %1189 {offsets = [0, 64], sizes = [16, 256], strides = [1, 1]} : vector<16x352xf32> to vector<16x256xf32>
    %1236 = vector.broadcast %1234 : vector<1x256xf32> to vector<16x256xf32>
    %1237 = arith.mulf %1236, %1235 : vector<16x256xf32>
    %1238 = arith.addf %1233, %1237 : vector<16x256xf32>
    %1239 = arith.addf %1229, %1238 : vector<16x256xf32>
    %c47_291 = arith.constant 47 : index
    %c0_292 = arith.constant 0 : index
    %1240 = vector.load %arg9[%c47_291, %c0_292] : memref<49x256xf32, #tpu.memory_space<vmem>>, vector<1x256xf32>
    %1241 = vector.extract_strided_slice %1188 {offsets = [0, 80], sizes = [16, 256], strides = [1, 1]} : vector<16x352xf32> to vector<16x256xf32>
    %1242 = vector.broadcast %1240 : vector<1x256xf32> to vector<16x256xf32>
    %1243 = arith.mulf %1242, %1241 : vector<16x256xf32>
    %c47_293 = arith.constant 47 : index
    %c0_294 = arith.constant 0 : index
    %1244 = vector.load %arg10[%c47_293, %c0_294] : memref<49x256xf32, #tpu.memory_space<vmem>>, vector<1x256xf32>
    %1245 = vector.extract_strided_slice %1189 {offsets = [0, 80], sizes = [16, 256], strides = [1, 1]} : vector<16x352xf32> to vector<16x256xf32>
    %1246 = vector.broadcast %1244 : vector<1x256xf32> to vector<16x256xf32>
    %1247 = arith.mulf %1246, %1245 : vector<16x256xf32>
    %1248 = arith.addf %1243, %1247 : vector<16x256xf32>
    %1249 = arith.addf %1239, %1248 : vector<16x256xf32>
    %c48_295 = arith.constant 48 : index
    %c0_296 = arith.constant 0 : index
    %1250 = vector.load %arg9[%c48_295, %c0_296] : memref<49x256xf32, #tpu.memory_space<vmem>>, vector<1x256xf32>
    %1251 = vector.extract_strided_slice %1188 {offsets = [0, 96], sizes = [16, 256], strides = [1, 1]} : vector<16x352xf32> to vector<16x256xf32>
    %1252 = vector.broadcast %1250 : vector<1x256xf32> to vector<16x256xf32>
    %1253 = arith.mulf %1252, %1251 : vector<16x256xf32>
    %c48_297 = arith.constant 48 : index
    %c0_298 = arith.constant 0 : index
    %1254 = vector.load %arg10[%c48_297, %c0_298] : memref<49x256xf32, #tpu.memory_space<vmem>>, vector<1x256xf32>
    %1255 = vector.extract_strided_slice %1189 {offsets = [0, 96], sizes = [16, 256], strides = [1, 1]} : vector<16x352xf32> to vector<16x256xf32>
    %1256 = vector.broadcast %1254 : vector<1x256xf32> to vector<16x256xf32>
    %1257 = arith.mulf %1256, %1255 : vector<16x256xf32>
    %1258 = arith.addf %1253, %1257 : vector<16x256xf32>
    %1259 = arith.addf %1249, %1258 : vector<16x256xf32>
    %1260 = arith.negf %1259 : vector<16x256xf32>
    %1261 = math.exp %1260 : vector<16x256xf32>
    %cst_299 = arith.constant 1.000000e+00 : f32
    %1262 = vector.broadcast %cst_299 : f32 to vector<16x256xf32>
    %1263 = arith.addf %1262, %1261 : vector<16x256xf32>
    %1264 = arith.divf %1262, %1263 : vector<16x256xf32>
    %1265 = arith.negf %1264 : vector<16x256xf32>
    %1266 = math.exp %1265 : vector<16x256xf32>
    %cst_300 = arith.constant 1.000000e+00 : f32
    %1267 = vector.broadcast %cst_300 : f32 to vector<16x256xf32>
    %1268 = arith.addf %1267, %1266 : vector<16x256xf32>
    %1269 = arith.divf %1267, %1268 : vector<16x256xf32>
    %1270 = arith.mulf %1269, %1 : vector<16x256xf32>
    %1271 = arith.addf %4, %1270 : vector<16x256xf32>
    %cst_301 = arith.constant 1.000000e+00 : f32
    %1272 = vector.broadcast %cst_301 : f32 to vector<16x256xf32>
    %1273 = arith.subf %1272, %1269 : vector<16x256xf32>
    %1274 = arith.mulf %1273, %3 : vector<16x256xf32>
    %1275 = arith.addf %1271, %1274 : vector<16x256xf32>
    %c0_302 = arith.constant 0 : index
    %c0_303 = arith.constant 0 : index
    %c0_304 = arith.constant 0 : index
    %1276 = vector.load %arg12[%c0_302, %c0_303, %c0_304] : memref<1x16x256xf32, #tpu.memory_space<vmem>>, vector<1x16x256xf32>
    %1277 = vector.shape_cast %1276 : vector<1x16x256xf32> to vector<16x256xf32>
    %1278 = vector.shape_cast %1275 : vector<16x256xf32> to vector<1x16x256xf32>
    tpu.vector_store %arg12[%c0_302, %c0_303, %c0_304], %1278 {strides = array<i32>} : memref<1x16x256xf32, #tpu.memory_space<vmem>>, vector<1x16x256xf32>,
    return
  }
  func.func @transform_0(%arg0: i32) -> (i32, i32, i32) {
    %c0_i32 = arith.constant 0 : i32
    %c0_i32_0 = arith.constant 0 : i32
    %c0_i32_1 = arith.constant 0 : i32
    return %arg0, %c0_i32, %c0_i32_0 : i32, i32, i32
  }
  func.func @transform_1(%arg0: i32) -> (i32, i32, i32) {
    %c0_i32 = arith.constant 0 : i32
    %c0_i32_0 = arith.constant 0 : i32
    %c0_i32_1 = arith.constant 0 : i32
    return %arg0, %c0_i32, %c0_i32_0 : i32, i32, i32
  }
  func.func @transform_2(%arg0: i32) -> (i32, i32) {
    %c0_i32 = arith.constant 0 : i32
    %c0_i32_0 = arith.constant 0 : i32
    %c0_i32_1 = arith.constant 0 : i32
    return %c0_i32, %c0_i32_0 : i32, i32
  }
  func.func @transform_3(%arg0: i32) -> (i32, i32) {
    %c0_i32 = arith.constant 0 : i32
    %c0_i32_0 = arith.constant 0 : i32
    %c0_i32_1 = arith.constant 0 : i32
    return %c0_i32, %c0_i32_0 : i32, i32
  }
  func.func @transform_4(%arg0: i32) -> (i32, i32) {
    %c0_i32 = arith.constant 0 : i32
    %c0_i32_0 = arith.constant 0 : i32
    %c0_i32_1 = arith.constant 0 : i32
    return %c0_i32, %c0_i32_0 : i32, i32
  }
  func.func @transform_5(%arg0: i32) -> (i32, i32) {
    %c0_i32 = arith.constant 0 : i32
    %c0_i32_0 = arith.constant 0 : i32
    %c0_i32_1 = arith.constant 0 : i32
    return %c0_i32, %c0_i32_0 : i32, i32
  }
  func.func @transform_6(%arg0: i32) -> i32 {
    %c0_i32 = arith.constant 0 : i32
    %c0_i32_0 = arith.constant 0 : i32
    return %c0_i32 : i32
  }
  func.func @transform_7(%arg0: i32) -> i32 {
    %c0_i32 = arith.constant 0 : i32
    %c0_i32_0 = arith.constant 0 : i32
    return %c0_i32 : i32
  }
  func.func @transform_8(%arg0: i32) -> (i32, i32) {
    %c0_i32 = arith.constant 0 : i32
    %c0_i32_0 = arith.constant 0 : i32
    %c0_i32_1 = arith.constant 0 : i32
    return %c0_i32, %c0_i32_0 : i32, i32
  }
  func.func @transform_9(%arg0: i32) -> (i32, i32) {
    %c0_i32 = arith.constant 0 : i32
    %c0_i32_0 = arith.constant 0 : i32
    %c0_i32_1 = arith.constant 0 : i32
    return %c0_i32, %c0_i32_0 : i32, i32
  }
  func.func @transform_10(%arg0: i32) -> (i32, i32) {
    %c0_i32 = arith.constant 0 : i32
    %c0_i32_0 = arith.constant 0 : i32
    %c0_i32_1 = arith.constant 0 : i32
    return %c0_i32, %c0_i32_0 : i32, i32
  }
  func.func @transform_11(%arg0: i32) -> (i32, i32, i32) {
    %c0_i32 = arith.constant 0 : i32
    %c0_i32_0 = arith.constant 0 : i32
    %c0_i32_1 = arith.constant 0 : i32
    return %arg0, %c0_i32, %c0_i32_0 : i32, i32, i32
  }
}

</mosaic_0001>

<llo_original>
// kernel: tpu_custom_call.1
$region0: #{tpu_custom_call.1}
  #allocation0 [shape = 'u32[]', space=smem, size = 0x4, offset = 0x4, fixed_abs, tag = 'smem constant byte address 0x4 - core index']
  #allocation1 [shape = 'u32[144,128]{1,0:T(1,128)}', space=vmem, size = 0x12000, scoped, tag = 'internal scratch']
  #allocation2 [shape = 'f32[22,352]{1,0:T(8,128)}', space=vmem, size = 0x9000, scoped, tag = 'scratch operand']
  #allocation3 [shape = 'f32[22,352]{1,0:T(8,128)}', space=vmem, size = 0x9000, scoped, tag = 'scratch operand']
  #allocation4 [shape = 'f32[1]{0:T(128)S(6)}', space=smem, size = 0x200, scoped, tag = 'scoped memory for tpu_custom_call.1']
  %s0 = inlined_call_operand.hbm [shape: f32[2,16,256], index: 0, kind: input, shape index: {}]
  %s1 = inlined_call_operand.hbm [shape: f32[2,16,256], index: 1, kind: input, shape index: {}]
  %s2 = inlined_call_operand.vmem [shape: f32[256,8], index: 2, kind: input, shape index: {}]
  %s3 = inlined_call_operand.vmem [shape: f32[1,8], index: 3, kind: input, shape index: {}]
  %s4 = inlined_call_operand.vmem [shape: f32[8,256], index: 4, kind: input, shape index: {}]
  %s5 = inlined_call_operand.vmem [shape: f32[1,256], index: 5, kind: input, shape index: {}]
  %s6 = inlined_call_operand.vmem [shape: f32[98], index: 6, kind: input, shape index: {}]
  %s7 = inlined_call_operand.<no memory space> [shape: f32[1], index: 7, kind: input, shape index: {}]
  %s8 = inlined_call_operand.vmem [shape: f32[49,256], index: 8, kind: input, shape index: {}]
  %s9 = inlined_call_operand.vmem [shape: f32[49,256], index: 9, kind: input, shape index: {}]
  %s10 = inlined_call_operand.vmem [shape: f32[1,256], index: 10, kind: input, shape index: {}]
  %s11 = inlined_call_operand.hbm [shape: f32[2,16,256], index: 11, kind: output, shape index: {}]
  %s12 = sld [smem:[#allocation0]]
  $region89: #{tpu_custom_call.1} parent=0
    _
  %s14 = ssub.s32 1, %s12
  %s15 = scalar_select 0, %s14, %s12
  %16 = sst [smem:[#allocation4]] %s7
  $region1: #{tpu_custom_call.1} parent=0
    #allocation5 [shape = 'u8[32768]{0}', space=vmem, size = 0x8000, scoped, tag = 'input window, operand 0']
    #allocation6 [shape = 's32[2]{0}', space=sflag, size = 0x8, scoped, tag = 'scoped memory for tpu_custom_call.1']
    #allocation7 [shape = 's32[2]{0}', space=sflag, size = 0x8, scoped, tag = 'scoped memory for tpu_custom_call.1']
    #allocation8 [shape = 's32[2]{0}', space=sflag, size = 0x8, scoped, tag = 'scoped memory for tpu_custom_call.1']
    #allocation9 [shape = 'u8[32768]{0}', space=vmem, size = 0x8000, scoped, tag = 'input window, operand 1']
    #allocation10 [shape = 's32[2]{0}', space=sflag, size = 0x8, scoped, tag = 'scoped memory for tpu_custom_call.1']
    #allocation11 [shape = 'u8[512]{0}', space=smem, size = 0x200, scoped, tag = 'input window, operand 6, single buffered']
    #allocation12 [shape = 'u8[32768]{0}', space=vmem, size = 0x8000, scoped, tag = 'output window, operand 0']
    %17 = vsyncpa [#allocation6], 0
    %s18 = scalar_lea.sflag [#allocation6], 1
    %19 = vsyncpa %s18, 0
    %20 = vsyncpa [#allocation10], 0
    %s21 = scalar_lea.sflag [#allocation10], 1
    %22 = vsyncpa %s21, 0
    %23 = vsyncpa [#allocation8], 0
    %24 = vsyncpa [#allocation7], 0
    %s25 = scalar_lea.sflag [#allocation7], 1
    %26 = vsyncpa %s25, 0
    loop: start=0, step=1, limit=4
    $region2: #{tpu_custom_call.1} parent=1 // loop_pre_header
      _
    $region3: #{tpu_custom_call.1} parent=1 // loop_header
      %s28 = sphi 0, %s32
      %p29 = scmp.ge.s32.totalorder %s28, 4
      %s38 = sphi 0, %s40
      %s41 = sphi 0, %s38
      %s42 = sphi 0, %s41
      %s58 = sphi 0, %s42
      %s64 = sphi 0, %s66
      %s67 = sphi 0, %s64
      %s68 = sphi 0, %s67
      %s84 = sphi 0, %s68
      %s88 = sphi 0, %s88
      %s90 = sphi 0, %s88
      %s91 = sphi 0, %s90
      %s105 = sphi 0, %s91
      %s109 = sphi 0, %s109
      %s111 = sphi 0, %s109
      %s112 = sphi 0, %s111
      %s126 = sphi 0, %s112
      %s130 = sphi 0, %s130
      %s132 = sphi 0, %s130
      %s133 = sphi 0, %s132
      %s147 = sphi 0, %s133
      %s151 = sphi 0, %s151
      %s153 = sphi 0, %s151
      %s154 = sphi 0, %s153
      %s168 = sphi 0, %s154
      %s172 = sphi 0, %s172
      %s174 = sphi 0, %s172
      %s175 = sphi 0, %s174
      %s189 = sphi 0, %s175
      %s193 = sphi 0, %s193
      %s195 = sphi 0, %s193
      %s196 = sphi 0, %s195
      %s210 = sphi 0, %s196
      %s214 = sphi 0, %s214
      %s216 = sphi 0, %s214
      %s217 = sphi 0, %s216
      %s231 = sphi 0, %s217
      %s235 = sphi 0, %s235
      %s237 = sphi 0, %s235
      %s238 = sphi 0, %s237
      %s252 = sphi 0, %s238
      %s256 = sphi 0, %s256
      %s258 = sphi 0, %s256
      %s259 = sphi 0, %s258
      %s273 = sphi 0, %s259
      %s279 = sphi 0, %s281
      %s282 = sphi 0, %s279
      %s283 = sphi 0, %s282
      %s299 = sphi 0, %s283
    $region4: #{tpu_custom_call.1} parent=1 // loop_header_branch
      %31 = sbr.rel (%p29) target = $region8
    $region5: #{tpu_custom_call.1} parent=1 // loop_body
      %s33 = ssub.s32 %s28, 1
      %s34 = ssub.s32 %s28, 2
      %s35 = sadd.s32 %s28, 1
      %s36 = ssub.s32 %s28, %s35
      %p37 = scmp.eq.s32.totalorder %s36, 0
      %s39 = sadd.s32 %s38, 1
      %s40 = scalar_select %p37, %s38, %s39
      %p43 = pneg %p37
      %p44 = scmp.eq.s32.totalorder %s28, 1
      %p45 = por %p43, %p44
      %p46 = scmp.ne.s32.totalorder %s38, %s41
      %p47 = scmp.eq.s32.totalorder %s28, 0
      %p48 = por %p46, %p47
      %p49 = scmp.ne.s32.totalorder %s38, %s41
      %p50 = scmp.eq.s32.totalorder %s33, 1
      %p51 = por %p49, %p50
      %p52 = scmp.ne.s32.totalorder %s41, %s42
      %p53 = scmp.eq.s32.totalorder %s33, 0
      %p54 = por %p52, %p53
      %p55 = scmp.ne.s32.totalorder %s41, %s42
      %p56 = scmp.eq.s32.totalorder %s34, 1
      %p57 = por %p55, %p56
      %p59 = scmp.ne.s32.totalorder %s42, %s58
      %p60 = scmp.eq.s32.totalorder %s34, 0
      %p61 = por %p59, %p60
      %s62 = ssub.s32 %s28, %s35
      %p63 = scmp.eq.s32.totalorder %s62, 0
      %s65 = sadd.s32 %s64, 1
      %s66 = scalar_select %p63, %s64, %s65
      %p69 = pneg %p63
      %p70 = scmp.eq.s32.totalorder %s28, 1
      %p71 = por %p69, %p70
      %p72 = scmp.ne.s32.totalorder %s64, %s67
      %p73 = scmp.eq.s32.totalorder %s28, 0
      %p74 = por %p72, %p73
      %p75 = scmp.ne.s32.totalorder %s64, %s67
      %p76 = scmp.eq.s32.totalorder %s33, 1
      %p77 = por %p75, %p76
      %p78 = scmp.ne.s32.totalorder %s67, %s68
      %p79 = scmp.eq.s32.totalorder %s33, 0
      %p80 = por %p78, %p79
      %p81 = scmp.ne.s32.totalorder %s67, %s68
      %p82 = scmp.eq.s32.totalorder %s34, 1
      %p83 = por %p81, %p82
      %p85 = scmp.ne.s32.totalorder %s68, %s84
      %p86 = scmp.eq.s32.totalorder %s34, 0
      %p87 = por %p85, %p86
      %s89 = sadd.s32 %s88, 1
      %p92 = scmp.eq.s32.totalorder %s28, 1
      %p93 = scmp.ne.s32.totalorder %s88, %s90
      %p94 = scmp.eq.s32.totalorder %s28, 0
      %p95 = por %p93, %p94
      %p96 = scmp.ne.s32.totalorder %s88, %s90
      %p97 = scmp.eq.s32.totalorder %s33, 1
      %p98 = por %p96, %p97
      %p99 = scmp.ne.s32.totalorder %s90, %s91
      %p100 = scmp.eq.s32.totalorder %s33, 0
      %p101 = por %p99, %p100
      %p102 = scmp.ne.s32.totalorder %s90, %s91
      %p103 = scmp.eq.s32.totalorder %s34, 1
      %p104 = por %p102, %p103
      %p106 = scmp.ne.s32.totalorder %s91, %s105
      %p107 = scmp.eq.s32.totalorder %s34, 0
      %p108 = por %p106, %p107
      %s110 = sadd.s32 %s109, 1
      %p113 = scmp.eq.s32.totalorder %s28, 1
      %p114 = scmp.ne.s32.totalorder %s109, %s111
      %p115 = scmp.eq.s32.totalorder %s28, 0
      %p116 = por %p114, %p115
      %p117 = scmp.ne.s32.totalorder %s109, %s111
      %p118 = scmp.eq.s32.totalorder %s33, 1
      %p119 = por %p117, %p118
      %p120 = scmp.ne.s32.totalorder %s111, %s112
      %p121 = scmp.eq.s32.totalorder %s33, 0
      %p122 = por %p120, %p121
      %p123 = scmp.ne.s32.totalorder %s111, %s112
      %p124 = scmp.eq.s32.totalorder %s34, 1
      %p125 = por %p123, %p124
      %p127 = scmp.ne.s32.totalorder %s112, %s126
      %p128 = scmp.eq.s32.totalorder %s34, 0
      %p129 = por %p127, %p128
      %s131 = sadd.s32 %s130, 1
      %p134 = scmp.eq.s32.totalorder %s28, 1
      %p135 = scmp.ne.s32.totalorder %s130, %s132
      %p136 = scmp.eq.s32.totalorder %s28, 0
      %p137 = por %p135, %p136
      %p138 = scmp.ne.s32.totalorder %s130, %s132
      %p139 = scmp.eq.s32.totalorder %s33, 1
      %p140 = por %p138, %p139
      %p141 = scmp.ne.s32.totalorder %s132, %s133
      %p142 = scmp.eq.s32.totalorder %s33, 0
      %p143 = por %p141, %p142
      %p144 = scmp.ne.s32.totalorder %s132, %s133
      %p145 = scmp.eq.s32.totalorder %s34, 1
      %p146 = por %p144, %p145
      %p148 = scmp.ne.s32.totalorder %s133, %s147
      %p149 = scmp.eq.s32.totalorder %s34, 0
      %p150 = por %p148, %p149
      %s152 = sadd.s32 %s151, 1
      %p155 = scmp.eq.s32.totalorder %s28, 1
      %p156 = scmp.ne.s32.totalorder %s151, %s153
      %p157 = scmp.eq.s32.totalorder %s28, 0
      %p158 = por %p156, %p157
      %p159 = scmp.ne.s32.totalorder %s151, %s153
      %p160 = scmp.eq.s32.totalorder %s33, 1
      %p161 = por %p159, %p160
      %p162 = scmp.ne.s32.totalorder %s153, %s154
      %p163 = scmp.eq.s32.totalorder %s33, 0
      %p164 = por %p162, %p163
      %p165 = scmp.ne.s32.totalorder %s153, %s154
      %p166 = scmp.eq.s32.totalorder %s34, 1
      %p167 = por %p165, %p166
      %p169 = scmp.ne.s32.totalorder %s154, %s168
      %p170 = scmp.eq.s32.totalorder %s34, 0
      %p171 = por %p169, %p170
      %s173 = sadd.s32 %s172, 1
      %p176 = scmp.eq.s32.totalorder %s28, 1
      %p177 = scmp.ne.s32.totalorder %s172, %s174
      %p178 = scmp.eq.s32.totalorder %s28, 0
      %p179 = por %p177, %p178
      %p180 = scmp.ne.s32.totalorder %s172, %s174
      %p181 = scmp.eq.s32.totalorder %s33, 1
      %p182 = por %p180, %p181
      %p183 = scmp.ne.s32.totalorder %s174, %s175
      %p184 = scmp.eq.s32.totalorder %s33, 0
      %p185 = por %p183, %p184
      %p186 = scmp.ne.s32.totalorder %s174, %s175
      %p187 = scmp.eq.s32.totalorder %s34, 1
      %p188 = por %p186, %p187
      %p190 = scmp.ne.s32.totalorder %s175, %s189
      %p191 = scmp.eq.s32.totalorder %s34, 0
      %p192 = por %p190, %p191
      %s194 = sadd.s32 %s193, 1
      %p197 = scmp.eq.s32.totalorder %s28, 1
      %p198 = scmp.ne.s32.totalorder %s193, %s195
      %p199 = scmp.eq.s32.totalorder %s28, 0
      %p200 = por %p198, %p199
      %p201 = scmp.ne.s32.totalorder %s193, %s195
      %p202 = scmp.eq.s32.totalorder %s33, 1
      %p203 = por %p201, %p202
      %p204 = scmp.ne.s32.totalorder %s195, %s196
      %p205 = scmp.eq.s32.totalorder %s33, 0
      %p206 = por %p204, %p205
      %p207 = scmp.ne.s32.totalorder %s195, %s196
      %p208 = scmp.eq.s32.totalorder %s34, 1
      %p209 = por %p207, %p208
      %p211 = scmp.ne.s32.totalorder %s196, %s210
      %p212 = scmp.eq.s32.totalorder %s34, 0
      %p213 = por %p211, %p212
      %s215 = sadd.s32 %s214, 1
      %p218 = scmp.eq.s32.totalorder %s28, 1
      %p219 = scmp.ne.s32.totalorder %s214, %s216
      %p220 = scmp.eq.s32.totalorder %s28, 0
      %p221 = por %p219, %p220
      %p222 = scmp.ne.s32.totalorder %s214, %s216
      %p223 = scmp.eq.s32.totalorder %s33, 1
      %p224 = por %p222, %p223
      %p225 = scmp.ne.s32.totalorder %s216, %s217
      %p226 = scmp.eq.s32.totalorder %s33, 0
      %p227 = por %p225, %p226
      %p228 = scmp.ne.s32.totalorder %s216, %s217
      %p229 = scmp.eq.s32.totalorder %s34, 1
      %p230 = por %p228, %p229
      %p232 = scmp.ne.s32.totalorder %s217, %s231
      %p233 = scmp.eq.s32.totalorder %s34, 0
      %p234 = por %p232, %p233
      %s236 = sadd.s32 %s235, 1
      %p239 = scmp.eq.s32.totalorder %s28, 1
      %p240 = scmp.ne.s32.totalorder %s235, %s237
      %p241 = scmp.eq.s32.totalorder %s28, 0
      %p242 = por %p240, %p241
      %p243 = scmp.ne.s32.totalorder %s235, %s237
      %p244 = scmp.eq.s32.totalorder %s33, 1
      %p245 = por %p243, %p244
      %p246 = scmp.ne.s32.totalorder %s237, %s238
      %p247 = scmp.eq.s32.totalorder %s33, 0
      %p248 = por %p246, %p247
      %p249 = scmp.ne.s32.totalorder %s237, %s238
      %p250 = scmp.eq.s32.totalorder %s34, 1
      %p251 = por %p249, %p250
      %p253 = scmp.ne.s32.totalorder %s238, %s252
      %p254 = scmp.eq.s32.totalorder %s34, 0
      %p255 = por %p253, %p254
      %s257 = sadd.s32 %s256, 1
      %p260 = scmp.eq.s32.totalorder %s28, 1
      %p261 = scmp.ne.s32.totalorder %s256, %s258
      %p262 = scmp.eq.s32.totalorder %s28, 0
      %p263 = por %p261, %p262
      %p264 = scmp.ne.s32.totalorder %s256, %s258
      %p265 = scmp.eq.s32.totalorder %s33, 1
      %p266 = por %p264, %p265
      %p267 = scmp.ne.s32.totalorder %s258, %s259
      %p268 = scmp.eq.s32.totalorder %s33, 0
      %p269 = por %p267, %p268
      %p270 = scmp.ne.s32.totalorder %s258, %s259
      %p271 = scmp.eq.s32.totalorder %s34, 1
      %p272 = por %p270, %p271
      %p274 = scmp.ne.s32.totalorder %s259, %s273
      %p275 = scmp.eq.s32.totalorder %s34, 0
      %p276 = por %p274, %p275
      %s277 = ssub.s32 %s28, %s35
      %p278 = scmp.eq.s32.totalorder %s277, 0
      %s280 = sadd.s32 %s279, 1
      %s281 = scalar_select %p278, %s279, %s280
      %p284 = pneg %p278
      %p285 = scmp.eq.s32.totalorder %s28, 1
      %p286 = por %p284, %p285
      %p287 = scmp.ne.s32.totalorder %s279, %s282
      %p288 = scmp.eq.s32.totalorder %s28, 0
      %p289 = por %p287, %p288
      %p290 = scmp.ne.s32.totalorder %s279, %s282
      %p291 = scmp.eq.s32.totalorder %s33, 1
      %p292 = por %p290, %p291
      %p293 = scmp.ne.s32.totalorder %s282, %s283
      %p294 = scmp.eq.s32.totalorder %s33, 0
      %p295 = por %p293, %p294
      %p296 = scmp.ne.s32.totalorder %s282, %s283
      %p297 = scmp.eq.s32.totalorder %s34, 1
      %p298 = por %p296, %p297
      %p300 = scmp.ne.s32.totalorder %s283, %s299
      %p301 = scmp.eq.s32.totalorder %s34, 0
      %p302 = por %p300, %p301
      %p303 = scmp.le.s32.totalorder 1, %s28
      %p304 = scmp.lt.s32.totalorder %s28, 3
      %p305 = pnand %p303, %p304
      %p306 = pneg %p305
      // Predicated region
      $region9: #{tpu_custom_call.1} parent=5 // pred_check
        _
      $region10: #{tpu_custom_call.1} parent=5 // pred_check_branch
        %308 = sbr.rel (%p305) target = $region12
      $region11: #{tpu_custom_call.1} parent=5 // pred_region
        %s309 = ssub.s32 %s28, 1
        // Predicated region
        $region13: #{tpu_custom_call.1} parent=11 // pred_check
          %p310 = pneg %p101
        $region14: #{tpu_custom_call.1} parent=11 // pred_check_branch
          %312 = sbr.rel (%p310) target = $region16
        $region15: #{tpu_custom_call.1} parent=11 // pred_region
          _
        $region16: #{tpu_custom_call.1} parent=11 // pred_fallthru
          _
        // Predicated region
        $region17: #{tpu_custom_call.1} parent=11 // pred_check
          %p313 = pneg %p122
        $region18: #{tpu_custom_call.1} parent=11 // pred_check_branch
          %315 = sbr.rel (%p313) target = $region20
        $region19: #{tpu_custom_call.1} parent=11 // pred_region
          _
        $region20: #{tpu_custom_call.1} parent=11 // pred_fallthru
          _
        // Predicated region
        $region21: #{tpu_custom_call.1} parent=11 // pred_check
          %p316 = pneg %p143
        $region22: #{tpu_custom_call.1} parent=11 // pred_check_branch
          %318 = sbr.rel (%p316) target = $region24
        $region23: #{tpu_custom_call.1} parent=11 // pred_region
          _
        $region24: #{tpu_custom_call.1} parent=11 // pred_fallthru
          _
        // Predicated region
        $region25: #{tpu_custom_call.1} parent=11 // pred_check
          %p319 = pneg %p164
        $region26: #{tpu_custom_call.1} parent=11 // pred_check_branch
          %321 = sbr.rel (%p319) target = $region28
        $region27: #{tpu_custom_call.1} parent=11 // pred_region
          _
        $region28: #{tpu_custom_call.1} parent=11 // pred_fallthru
          _
        // Predicated region
        $region29: #{tpu_custom_call.1} parent=11 // pred_check
          %p322 = pneg %p185
        $region30: #{tpu_custom_call.1} parent=11 // pred_check_branch
          %324 = sbr.rel (%p322) target = $region32
        $region31: #{tpu_custom_call.1} parent=11 // pred_region
          %s326 = ssub.s32 16, 16
          %327 = vsyncadd [#allocation8], %s326
          %s329 = sshll.u32 %s6, 4
          %s330 = int_to_ptr.vmem [resolvable:$true] %s329
          %332 = dma.vmem_to_smem %s330, 16, [#allocation11], [#allocation8]
        $region32: #{tpu_custom_call.1} parent=11 // pred_fallthru
          _
        // Predicated region
        $region33: #{tpu_custom_call.1} parent=11 // pred_check
          %p333 = pneg %p206
        $region34: #{tpu_custom_call.1} parent=11 // pred_check_branch
          %335 = sbr.rel (%p333) target = $region36
        $region35: #{tpu_custom_call.1} parent=11 // pred_region
          _
        $region36: #{tpu_custom_call.1} parent=11 // pred_fallthru
          _
        // Predicated region
        $region37: #{tpu_custom_call.1} parent=11 // pred_check
          %p336 = pneg %p227
        $region38: #{tpu_custom_call.1} parent=11 // pred_check_branch
          %338 = sbr.rel (%p336) target = $region40
        $region39: #{tpu_custom_call.1} parent=11 // pred_region
          _
        $region40: #{tpu_custom_call.1} parent=11 // pred_fallthru
          _
        // Predicated region
        $region41: #{tpu_custom_call.1} parent=11 // pred_check
          %p339 = pneg %p248
        $region42: #{tpu_custom_call.1} parent=11 // pred_check_branch
          %341 = sbr.rel (%p339) target = $region44
        $region43: #{tpu_custom_call.1} parent=11 // pred_region
          _
        $region44: #{tpu_custom_call.1} parent=11 // pred_fallthru
          _
        // Predicated region
        $region45: #{tpu_custom_call.1} parent=11 // pred_check
          %p342 = pneg %p269
        $region46: #{tpu_custom_call.1} parent=11 // pred_check_branch
          %344 = sbr.rel (%p342) target = $region48
        $region47: #{tpu_custom_call.1} parent=11 // pred_region
          _
        $region48: #{tpu_custom_call.1} parent=11 // pred_fallthru
          _
      $region12: #{tpu_custom_call.1} parent=5 // pred_fallthru
        _
      %p345 = scmp.lt.s32.totalorder %s28, 2
      // Predicated region
      $region49: #{tpu_custom_call.1} parent=5 // pred_check
        %p346 = pneg %p345
      $region50: #{tpu_custom_call.1} parent=5 // pred_check_branch
        %348 = sbr.rel (%p346) target = $region52
      $region51: #{tpu_custom_call.1} parent=5 // pred_region
        // Predicated region
        $region53: #{tpu_custom_call.1} parent=51 // pred_check
          %p349 = pneg %p48
        $region54: #{tpu_custom_call.1} parent=51 // pred_check_branch
          %351 = sbr.rel (%p349) target = $region56
        $region55: #{tpu_custom_call.1} parent=51 // pred_region
          %s352 = sand.u32 %s38, 1
          %s353 = scalar_lea.sflag [#allocation6], %s352
          %s354 = sand.u32 %s38, 1
          %s355 = smul.addr %s354, 32
          %s356 = scalar_lea.vmem [#allocation5], %s355
          %s358 = ssub.s32 512, 512
          %359 = vsyncadd %s353, %s358
          %s360 = smul.addr %s28, 4
          %s361 = smul.addr %s360, 128
          %s362 = scalar_lea.hbm %s0, %s361
          %s363 = sshll.u32 %s356, 4
          %s364 = int_to_ptr.vmem [resolvable:$true] %s363
          %369 = dma.hbm_to_vmem [thread:$0]  %s362, 512, %s364, %s353, 256, 256, 16
        $region56: #{tpu_custom_call.1} parent=51 // pred_fallthru
          _
        // Predicated region
        $region57: #{tpu_custom_call.1} parent=51 // pred_check
          %p370 = pneg %p74
        $region58: #{tpu_custom_call.1} parent=51 // pred_check_branch
          %372 = sbr.rel (%p370) target = $region60
        $region59: #{tpu_custom_call.1} parent=51 // pred_region
          %s373 = sand.u32 %s64, 1
          %s374 = scalar_lea.sflag [#allocation10], %s373
          %s375 = sand.u32 %s64, 1
          %s376 = smul.addr %s375, 32
          %s377 = scalar_lea.vmem [#allocation9], %s376
          %s379 = ssub.s32 512, 512
          %380 = vsyncadd %s374, %s379
          %s381 = smul.addr %s28, 4
          %s382 = smul.addr %s381, 128
          %s383 = scalar_lea.hbm %s1, %s382
          %s384 = sshll.u32 %s377, 4
          %s385 = int_to_ptr.vmem [resolvable:$true] %s384
          %390 = dma.hbm_to_vmem [thread:$0]  %s383, 512, %s385, %s374, 256, 256, 16
        $region60: #{tpu_custom_call.1} parent=51 // pred_fallthru
          _
      $region52: #{tpu_custom_call.1} parent=5 // pred_fallthru
        _
      %p391 = scmp.le.s32.totalorder 1, %s28
      %p392 = scmp.lt.s32.totalorder %s28, 3
      %p393 = pnand %p391, %p392
      %p394 = pneg %p393
      // Predicated region
      $region61: #{tpu_custom_call.1} parent=5 // pred_check
        _
      $region62: #{tpu_custom_call.1} parent=5 // pred_check_branch
        %396 = sbr.rel (%p393) target = $region64
      $region63: #{tpu_custom_call.1} parent=5 // pred_region
        %s397 = ssub.s32 %s28, 1
        %s398 = sand.u32 %s41, 1
        %s399 = scalar_lea.sflag [#allocation6], %s398
        %s400 = sand.u32 %s41, 1
        %s401 = smul.addr %s400, 32
        %s402 = scalar_lea.vmem [#allocation5], %s401
        // Predicated region
        $region65: #{tpu_custom_call.1} parent=63 // pred_check
          %p403 = pneg %p54
        $region66: #{tpu_custom_call.1} parent=63 // pred_check_branch
          %405 = sbr.rel (%p403) target = $region68
        $region67: #{tpu_custom_call.1} parent=63 // pred_region
          %406 = dma.done %s399, 512
        $region68: #{tpu_custom_call.1} parent=63 // pred_fallthru
          _
        %s407 = sand.u32 %s67, 1
        %s408 = scalar_lea.sflag [#allocation10], %s407
        %s409 = sand.u32 %s67, 1
        %s410 = smul.addr %s409, 32
        %s411 = scalar_lea.vmem [#allocation9], %s410
        // Predicated region
        $region69: #{tpu_custom_call.1} parent=63 // pred_check
          %p412 = pneg %p80
        $region70: #{tpu_custom_call.1} parent=63 // pred_check_branch
          %414 = sbr.rel (%p412) target = $region72
        $region71: #{tpu_custom_call.1} parent=63 // pred_region
          %415 = dma.done %s408, 512
        $region72: #{tpu_custom_call.1} parent=63 // pred_fallthru
          _
        // Predicated region
        $region73: #{tpu_custom_call.1} parent=63 // pred_check
          %p416 = pneg %p185
        $region74: #{tpu_custom_call.1} parent=63 // pred_check_branch
          %418 = sbr.rel (%p416) target = $region76
        $region75: #{tpu_custom_call.1} parent=63 // pred_region
          %419 = dma.done [#allocation8], 16
        $region76: #{tpu_custom_call.1} parent=63 // pred_fallthru
          _
        %420 = sfence
        %s421 = sand.u32 %s41, 1
        %s422 = scalar_lea.sflag [#allocation6], %s421
        %s423 = sand.u32 %s41, 1
        %s424 = smul.addr %s423, 32
        %s425 = scalar_lea.vmem [#allocation5], %s424
        %p426 = pneg %p54
        %p427 = pneg %p51
        %s428 = sand.u32 %s67, 1
        %s429 = scalar_lea.sflag [#allocation10], %s428
        %s430 = sand.u32 %s67, 1
        %s431 = smul.addr %s430, 32
        %s432 = scalar_lea.vmem [#allocation9], %s431
        %p433 = pneg %p80
        %p434 = pneg %p77
        %p435 = pneg %p101
        %p436 = pneg %p98
        %p437 = pneg %p122
        %p438 = pneg %p119
        %p439 = pneg %p143
        %p440 = pneg %p140
        %p441 = pneg %p164
        %p442 = pneg %p161
        %p443 = pneg %p185
        %p444 = pneg %p182
        %p445 = pneg %p206
        %p446 = pneg %p203
        %p447 = pneg %p227
        %p448 = pneg %p224
        %p449 = pneg %p248
        %p450 = pneg %p245
        %p451 = pneg %p269
        %p452 = pneg %p266
        %p453 = pneg %p295
        %p454 = pneg %p292
        %s455 = sand.u32 %s282, 1
        %s456 = scalar_lea.sflag [#allocation7], %s455
        %s457 = sand.u32 %s282, 1
        %s458 = smul.addr %s457, 32
        %s459 = scalar_lea.vmem [#allocation12], %s458
        %v460 = vld [vmem:[%s402] sm:$0xff]
        %v461 = vld [vmem:[%s402 + $0x8] sm:$0xff]
        %v462 = vld [vmem:[%s402 + $0x10] sm:$0xff]
        %v463 = vld [vmem:[%s402 + $0x18] sm:$0xff]
        %v464 = vld [vmem:[%s411] sm:$0xff]
        %v465 = vld [vmem:[%s411 + $0x8] sm:$0xff]
        %v466 = vld [vmem:[%s411 + $0x10] sm:$0xff]
        %v467 = vld [vmem:[%s411 + $0x18] sm:$0xff]
        %v468 = vadd.f32 %v460, %v464
        %v469 = vadd.f32 %v461, %v465
        %v470 = vadd.f32 %v462, %v466
        %v471 = vadd.f32 %v463, %v467
        %v472 = vadd.f32 %v468, %v470
        %v473 = vrot.slane %v472, 4
        %v474 = vadd.f32 %v472, %v473
        %v475 = vrot.slane %v474, 2
        %v476 = vadd.f32 %v474, %v475
        %v477 = vrot.slane %v476, 1
        %v478 = vadd.f32 %v476, %v477
        %v479 = vadd.f32 %v469, %v471
        %v480 = vrot.slane %v479, 4
        %v481 = vadd.f32 %v479, %v480
        %v482 = vrot.slane %v481, 2
        %v483 = vadd.f32 %v481, %v482
        %v484 = vrot.slane %v483, 1
        %v485 = vadd.f32 %v483, %v484
        %v486 = vrcp.pop 16.0
        %v487 = vmul.f32 %v478, %v486
        %v488 = vmul.f32 %v485, %v486
        %v489 = vld [vmem:[%s2] sm:$0xff]
        %v490 = vld [vmem:[%s2 + $0x8] sm:$0xff]
        %v491 = vld [vmem:[%s2 + $0x10] sm:$0xff]
        %v492 = vld [vmem:[%s2 + $0x18] sm:$0xff]
        %v493 = vld [vmem:[%s2 + $0x20] sm:$0xff]
        %v494 = vld [vmem:[%s2 + $0x28] sm:$0xff]
        %v495 = vld [vmem:[%s2 + $0x30] sm:$0xff]
        %v496 = vld [vmem:[%s2 + $0x38] sm:$0xff]
        %v497 = vld [vmem:[%s2 + $0x40] sm:$0xff]
        %v498 = vld [vmem:[%s2 + $0x48] sm:$0xff]
        %v499 = vld [vmem:[%s2 + $0x50] sm:$0xff]
        %v500 = vld [vmem:[%s2 + $0x58] sm:$0xff]
        %v501 = vld [vmem:[%s2 + $0x60] sm:$0xff]
        %v502 = vld [vmem:[%s2 + $0x68] sm:$0xff]
        %v503 = vld [vmem:[%s2 + $0x70] sm:$0xff]
        %v504 = vld [vmem:[%s2 + $0x78] sm:$0xff]
        %v505 = vld [vmem:[%s2 + $0x80] sm:$0xff]
        %v506 = vld [vmem:[%s2 + $0x88] sm:$0xff]
        %v507 = vld [vmem:[%s2 + $0x90] sm:$0xff]
        %v508 = vld [vmem:[%s2 + $0x98] sm:$0xff]
        %v509 = vld [vmem:[%s2 + $0xa0] sm:$0xff]
        %v510 = vld [vmem:[%s2 + $0xa8] sm:$0xff]
        %v511 = vld [vmem:[%s2 + $0xb0] sm:$0xff]
        %v512 = vld [vmem:[%s2 + $0xb8] sm:$0xff]
        %v513 = vld [vmem:[%s2 + $0xc0] sm:$0xff]
        %v514 = vld [vmem:[%s2 + $0xc8] sm:$0xff]
        %v515 = vld [vmem:[%s2 + $0xd0] sm:$0xff]
        %v516 = vld [vmem:[%s2 + $0xd8] sm:$0xff]
        %v517 = vld [vmem:[%s2 + $0xe0] sm:$0xff]
        %v518 = vld [vmem:[%s2 + $0xe8] sm:$0xff]
        %v519 = vld [vmem:[%s2 + $0xf0] sm:$0xff]
        %v520 = vld [vmem:[%s2 + $0xf8] sm:$0xff]
        %v521 = vld [vmem:[%s3] sm:$0x1]
        %522 = vmatprep.subr.mxu0 0.0
        %523 = vmatpush1.msra.mxu0 %v489
        %524 = vmatprep.subr.mxu0 0.0
        %525 = vmatpush1.msra.mxu0 %v490
        %526 = vmatprep.subr.mxu0 0.0
        %527 = vmatpush1.msra.mxu0 %v491
        %528 = vmatprep.subr.mxu0 0.0
        %529 = vmatpush1.msra.mxu0 %v492
        %530 = vmatprep.subr.mxu0 0.0
        %531 = vmatpush1.msra.mxu0 %v493
        %532 = vmatprep.subr.mxu0 0.0
        %533 = vmatpush1.msra.mxu0 %v494
        %534 = vmatprep.subr.mxu0 0.0
        %535 = vmatpush1.msra.mxu0 %v495
        %536 = vmatprep.subr.mxu0 0.0
        %537 = vmatpush1.msra.mxu0 %v496
        %538 = vmatprep.subr.mxu0 0.0
        %539 = vmatpush1.msra.mxu0 %v497
        %540 = vmatprep.subr.mxu0 0.0
        %541 = vmatpush1.msra.mxu0 %v498
        %542 = vmatprep.subr.mxu0 0.0
        %543 = vmatpush1.msra.mxu0 %v499
        %544 = vmatprep.subr.mxu0 0.0
        %545 = vmatpush1.msra.mxu0 %v500
        %546 = vmatprep.subr.mxu0 0.0
        %547 = vmatpush1.msra.mxu0 %v501
        %548 = vmatprep.subr.mxu0 0.0
        %549 = vmatpush1.msra.mxu0 %v502
        %550 = vmatprep.subr.mxu0 0.0
        %551 = vmatpush1.msra.mxu0 %v503
        %552 = vmatprep.subr.mxu0 0.0
        %553 = vmatpush1.msra.mxu0 %v504
        %554 = vmatprep.subr.mxu0 0.0
        %555 = vmatpush1.msra.mxu0 %v505
        %556 = vmatprep.subr.mxu0 0.0
        %557 = vmatpush1.msra.mxu0 %v506
        %558 = vmatprep.subr.mxu0 0.0
        %559 = vmatpush1.msra.mxu0 %v507
        %560 = vmatprep.subr.mxu0 0.0
        %561 = vmatpush1.msra.mxu0 %v508
        %562 = vmatprep.subr.mxu0 0.0
        %563 = vmatpush1.msra.mxu0 %v509
        %564 = vmatprep.subr.mxu0 0.0
        %565 = vmatpush1.msra.mxu0 %v510
        %566 = vmatprep.subr.mxu0 0.0
        %567 = vmatpush1.msra.mxu0 %v511
        %568 = vmatprep.subr.mxu0 0.0
        %569 = vmatpush1.msra.mxu0 %v512
        %570 = vmatprep.subr.mxu0 0.0
        %571 = vmatpush1.msra.mxu0 %v513
        %572 = vmatprep.subr.mxu0 0.0
        %573 = vmatpush1.msra.mxu0 %v514
        %574 = vmatprep.subr.mxu0 0.0
        %575 = vmatpush1.msra.mxu0 %v515
        %576 = vmatprep.subr.mxu0 0.0
        %577 = vmatpush1.msra.mxu0 %v516
        %578 = vmatprep.subr.mxu0 0.0
        %579 = vmatpush1.msra.mxu0 %v517
        %580 = vmatprep.subr.mxu0 0.0
        %581 = vmatpush1.msra.mxu0 %v518
        %582 = vmatprep.subr.mxu0 0.0
        %583 = vmatpush1.msra.mxu0 %v519
        %584 = vmatprep.subr.mxu0 0.0
        %585 = vmatpush1.msra.mxu0 %v520
        %586 = vmatprep.mubr.f32.mxu0 %v488
        %587 = vmatmul.mubr.f32.gmra.mrb[0].mxu0 %v487
        %v588 = vpop.f32.mrb[0].mxu0
        %v589 = vadd.f32 %v521, %v588
        %v590 = vpop.f32.mrb[0].mxu0
        %591 = vdwg.mxu0
        %v592 = vmax.f32 %v589, 0.0
        %v593 = vld [vmem:[%s4] sm:$0xff]
        %v594 = vld [vmem:[%s4 + $0x8] sm:$0xff]
        %v595 = vld [vmem:[%s5] sm:$0x3]
        %v597 = vlaneseq
        %v598 = vshrl.u32 %v597, 7
        %v599 = vsub.s32 0, %v598
        %v600 = vrot.slane %v595, %v599
        %v601 = vlaneseq
        %v602 = vshrl.u32 %v601, 7
        %v603 = vsub.s32 1, %v602
        %v604 = vrot.slane %v595, %v603
        %vm607 = vcmask 64512
        %v609 = vsel %vm607, %v592, 0
        %611 = vmatprep.subr.mxu0 %v594
        %612 = vmatpush1.msra.mxu0 %v593
        %613 = vmatprep.subr.mxu0 0.0
        %614 = vmatpush1.msra.mxu0 0.0
        %615 = vmatprep.subr.mxu0 0.0
        %616 = vmatpush1.msra.mxu0 0.0
        %617 = vmatprep.subr.mxu0 0.0
        %618 = vmatpush1.msra.mxu0 0.0
        %619 = vmatprep.subr.mxu0 0.0
        %620 = vmatpush1.msra.mxu0 0.0
        %621 = vmatprep.subr.mxu0 0.0
        %622 = vmatpush1.msra.mxu0 0.0
        %623 = vmatprep.subr.mxu0 0.0
        %624 = vmatpush1.msra.mxu0 0.0
        %625 = vmatprep.subr.mxu0 0.0
        %626 = vmatpush1.msra.mxu0 0.0
        %627 = vmatprep.subr.mxu0 0.0
        %628 = vmatpush1.msra.mxu0 0.0
        %629 = vmatprep.subr.mxu0 0.0
        %630 = vmatpush1.msra.mxu0 0.0
        %631 = vmatprep.subr.mxu0 0.0
        %632 = vmatpush1.msra.mxu0 0.0
        %633 = vmatprep.subr.mxu0 0.0
        %634 = vmatpush1.msra.mxu0 0.0
        %635 = vmatprep.subr.mxu0 0.0
        %636 = vmatpush1.msra.mxu0 0.0
        %637 = vmatprep.subr.mxu0 0.0
        %638 = vmatpush1.msra.mxu0 0.0
        %639 = vmatprep.subr.mxu0 0.0
        %640 = vmatpush1.msra.mxu0 0.0
        %641 = vmatprep.subr.mxu0 0.0
        %642 = vmatpush1.msra.mxu0 0.0
        %643 = vmatprep.subr.mxu0 0.0
        %644 = vmatpush1.msra.mxu0 0.0
        %645 = vmatprep.subr.mxu0 0.0
        %646 = vmatpush1.msra.mxu0 0.0
        %647 = vmatprep.subr.mxu0 0.0
        %648 = vmatpush1.msra.mxu0 0.0
        %649 = vmatprep.subr.mxu0 0.0
        %650 = vmatpush1.msra.mxu0 0.0
        %651 = vmatprep.subr.mxu0 0.0
        %652 = vmatpush1.msra.mxu0 0.0
        %653 = vmatprep.subr.mxu0 0.0
        %654 = vmatpush1.msra.mxu0 0.0
        %655 = vmatprep.subr.mxu0 0.0
        %656 = vmatpush1.msra.mxu0 0.0
        %657 = vmatprep.subr.mxu0 0.0
        %658 = vmatpush1.msra.mxu0 0.0
        %659 = vmatprep.subr.mxu0 0.0
        %660 = vmatpush1.msra.mxu0 0.0
        %661 = vmatprep.subr.mxu0 0.0
        %662 = vmatpush1.msra.mxu0 0.0
        %663 = vmatprep.subr.mxu0 0.0
        %664 = vmatpush1.msra.mxu0 0.0
        %665 = vmatprep.subr.mxu0 0.0
        %666 = vmatpush1.msra.mxu0 0.0
        %667 = vmatprep.subr.mxu0 0.0
        %668 = vmatpush1.msra.mxu0 0.0
        %669 = vmatprep.subr.mxu0 0.0
        %670 = vmatpush1.msra.mxu0 0.0
        %671 = vmatprep.subr.mxu0 0.0
        %672 = vmatpush1.msra.mxu0 0.0
        %673 = vmatprep.subr.mxu0 0.0
        %674 = vmatpush1.msra.mxu0 0.0
        %675 = vmatprep.mubr.f32.mxu0 0.0
        %676 = vmatmul.mubr.f32.gmra.mrb[0].mxu0 %v609
        %v677 = vpop.f32.mrb[0].mxu0
        %v678 = vadd.f32 %v600, %v677
        %v679 = vpop.f32.mrb[0].mxu0
        %v680 = vadd.f32 %v604, %v679
        %681 = vdwg.mxu0
        %vm682 = vcmask 130048
        %v683 = vsel %vm682, %v468, 0.0
        %684 = vadd.xlane.f32.xlu0 %v683
        %v685 = vpop.xlane.xlu0 %684
        %v686 = vsel %vm682, %v470, 0.0
        %687 = vadd.xlane.f32.xlu0 %v686
        %v688 = vpop.xlane.xlu0 %687
        %v689 = vmul.f32 %v685, %v486
        %v690 = vmul.f32 %v688, %v486
        %v691 = vsel %vm682, %v468, -inf
        %692 = vmax.xlane.f32.xlu0 %v691
        %v693 = vpop.xlane.xlu0 %692
        %v694 = vsel %vm682, %v470, -inf
        %695 = vmax.xlane.f32.xlu0 %v694
        %v696 = vpop.xlane.xlu0 %695
        %699 = vrot.lane.b32.xlu0 %v468, 112
        %v700 = vpop.permute.xlu0 %699
        %701 = vrot.lane.b32.xlu0 %v470, 112
        %v702 = vpop.permute.xlu0 %701
        %v705 = vsel %vm682, %v700, 0.0
        %706 = vadd.xlane.f32.xlu0 %v705
        %v707 = vpop.xlane.xlu0 %706
        %v708 = vsel %vm682, %v702, 0.0
        %709 = vadd.xlane.f32.xlu0 %v708
        %v710 = vpop.xlane.xlu0 %709
        %v711 = vmul.f32 %v707, %v486
        %v712 = vmul.f32 %v710, %v486
        %vm713 = vcmask 261248
        %v714 = vsel %vm713, %v468, -inf
        %715 = vmax.xlane.f32.xlu0 %v714
        %v716 = vpop.xlane.xlu0 %715
        %v717 = vsel %vm713, %v470, -inf
        %718 = vmax.xlane.f32.xlu0 %v717
        %v719 = vpop.xlane.xlu0 %718
        %720 = vrot.lane.b32.xlu0 %v468, 96
        %v721 = vpop.permute.xlu0 %720
        %722 = vrot.lane.b32.xlu0 %v470, 96
        %v723 = vpop.permute.xlu0 %722
        %v726 = vsel %vm682, %v721, 0.0
        %727 = vadd.xlane.f32.xlu0 %v726
        %v728 = vpop.xlane.xlu0 %727
        %v729 = vsel %vm682, %v723, 0.0
        %730 = vadd.xlane.f32.xlu0 %v729
        %v731 = vpop.xlane.xlu0 %730
        %v732 = vmul.f32 %v728, %v486
        %v733 = vmul.f32 %v731, %v486
        %vm734 = vcmask 392448
        %v735 = vsel %vm734, %v468, -inf
        %736 = vmax.xlane.f32.xlu0 %v735
        %v737 = vpop.xlane.xlu0 %736
        %v738 = vsel %vm734, %v470, -inf
        %739 = vmax.xlane.f32.xlu0 %v738
        %v740 = vpop.xlane.xlu0 %739
        %741 = vrot.lane.b32.xlu0 %v468, 80
        %v742 = vpop.permute.xlu0 %741
        %743 = vrot.lane.b32.xlu0 %v470, 80
        %v744 = vpop.permute.xlu0 %743
        %v747 = vsel %vm682, %v742, 0.0
        %748 = vadd.xlane.f32.xlu0 %v747
        %v749 = vpop.xlane.xlu0 %748
        %v750 = vsel %vm682, %v744, 0.0
        %751 = vadd.xlane.f32.xlu0 %v750
        %v752 = vpop.xlane.xlu0 %751
        %v753 = vmul.f32 %v749, %v486
        %v754 = vmul.f32 %v752, %v486
        %vm755 = vcmask 523648
        %v756 = vsel %vm755, %v468, -inf
        %757 = vmax.xlane.f32.xlu0 %v756
        %v758 = vpop.xlane.xlu0 %757
        %v759 = vsel %vm755, %v470, -inf
        %760 = vmax.xlane.f32.xlu0 %v759
        %v761 = vpop.xlane.xlu0 %760
        %762 = vrot.lane.b32.xlu0 %v468, 64
        %v763 = vpop.permute.xlu0 %762
        %764 = vrot.lane.b32.xlu0 %v470, 64
        %v765 = vpop.permute.xlu0 %764
        %v768 = vsel %vm682, %v763, 0.0
        %769 = vadd.xlane.f32.xlu0 %v768
        %v770 = vpop.xlane.xlu0 %769
        %v771 = vsel %vm682, %v765, 0.0
        %772 = vadd.xlane.f32.xlu0 %v771
        %v773 = vpop.xlane.xlu0 %772
        %v774 = vmul.f32 %v770, %v486
        %v775 = vmul.f32 %v773, %v486
        %vm776 = vcmask 654848
        %v777 = vsel %vm776, %v468, -inf
        %778 = vmax.xlane.f32.xlu0 %v777
        %v779 = vpop.xlane.xlu0 %778
        %v780 = vsel %vm776, %v470, -inf
        %781 = vmax.xlane.f32.xlu0 %v780
        %v782 = vpop.xlane.xlu0 %781
        %783 = vrot.lane.b32.xlu0 %v468, 48
        %v784 = vpop.permute.xlu0 %783
        %785 = vrot.lane.b32.xlu0 %v470, 48
        %v786 = vpop.permute.xlu0 %785
        %v789 = vsel %vm682, %v784, 0.0
        %790 = vadd.xlane.f32.xlu0 %v789
        %v791 = vpop.xlane.xlu0 %790
        %v792 = vsel %vm682, %v786, 0.0
        %793 = vadd.xlane.f32.xlu0 %v792
        %v794 = vpop.xlane.xlu0 %793
        %v795 = vmul.f32 %v791, %v486
        %v796 = vmul.f32 %v794, %v486
        %vm797 = vcmask 786048
        %v798 = vsel %vm797, %v468, -inf
        %799 = vmax.xlane.f32.xlu0 %v798
        %v800 = vpop.xlane.xlu0 %799
        %v801 = vsel %vm797, %v470, -inf
        %802 = vmax.xlane.f32.xlu0 %v801
        %v803 = vpop.xlane.xlu0 %802
        %804 = vrot.lane.b32.xlu0 %v468, 32
        %v805 = vpop.permute.xlu0 %804
        %806 = vrot.lane.b32.xlu0 %v470, 32
        %v807 = vpop.permute.xlu0 %806
        %v810 = vsel %vm682, %v805, 0.0
        %811 = vadd.xlane.f32.xlu0 %v810
        %v812 = vpop.xlane.xlu0 %811
        %v813 = vsel %vm682, %v807, 0.0
        %814 = vadd.xlane.f32.xlu0 %v813
        %v815 = vpop.xlane.xlu0 %814
        %v816 = vmul.f32 %v812, %v486
        %v817 = vmul.f32 %v815, %v486
        %vm818 = vcmask 917248
        %v819 = vsel %vm818, %v468, -inf
        %820 = vmax.xlane.f32.xlu0 %v819
        %v821 = vpop.xlane.xlu0 %820
        %v822 = vsel %vm818, %v470, -inf
        %823 = vmax.xlane.f32.xlu0 %v822
        %v824 = vpop.xlane.xlu0 %823
        %825 = vrot.lane.b32.xlu0 %v468, 16
        %v826 = vpop.permute.xlu0 %825
        %827 = vrot.lane.b32.xlu0 %v470, 16
        %v828 = vpop.permute.xlu0 %827
        %v831 = vsel %vm682, %v826, 0.0
        %832 = vadd.xlane.f32.xlu0 %v831
        %v833 = vpop.xlane.xlu0 %832
        %v834 = vsel %vm682, %v828, 0.0
        %835 = vadd.xlane.f32.xlu0 %v834
        %v836 = vpop.xlane.xlu0 %835
        %v837 = vmul.f32 %v833, %v486
        %v838 = vmul.f32 %v836, %v486
        %vm839 = vcmask 1048448
        %v840 = vsel %vm839, %v468, -inf
        %841 = vmax.xlane.f32.xlu0 %v840
        %v842 = vpop.xlane.xlu0 %841
        %v843 = vsel %vm839, %v470, -inf
        %844 = vmax.xlane.f32.xlu0 %v843
        %v845 = vpop.xlane.xlu0 %844
        %v846 = vsel %vm682, %v469, 0.0
        %847 = vadd.xlane.f32.xlu0 %v846
        %v848 = vpop.xlane.xlu0 %847
        %v849 = vsel %vm682, %v471, 0.0
        %850 = vadd.xlane.f32.xlu0 %v849
        %v851 = vpop.xlane.xlu0 %850
        %v852 = vmul.f32 %v848, %v486
        %v853 = vmul.f32 %v851, %v486
        %v854 = vsel %vm682, %v469, -inf
        %855 = vmax.xlane.f32.xlu0 %v854
        %v856 = vpop.xlane.xlu0 %855
        %v857 = vsel %vm682, %v471, -inf
        %858 = vmax.xlane.f32.xlu0 %v857
        %v859 = vpop.xlane.xlu0 %858
        %862 = vrot.lane.b32.xlu0 %v469, 112
        %v863 = vpop.permute.xlu0 %862
        %864 = vrot.lane.b32.xlu0 %v471, 112
        %v865 = vpop.permute.xlu0 %864
        %v868 = vsel %vm682, %v863, 0.0
        %869 = vadd.xlane.f32.xlu0 %v868
        %v870 = vpop.xlane.xlu0 %869
        %v871 = vsel %vm682, %v865, 0.0
        %872 = vadd.xlane.f32.xlu0 %v871
        %v873 = vpop.xlane.xlu0 %872
        %v874 = vmul.f32 %v870, %v486
        %v875 = vmul.f32 %v873, %v486
        %v876 = vsel %vm713, %v469, -inf
        %877 = vmax.xlane.f32.xlu0 %v876
        %v878 = vpop.xlane.xlu0 %877
        %v879 = vsel %vm713, %v471, -inf
        %880 = vmax.xlane.f32.xlu0 %v879
        %v881 = vpop.xlane.xlu0 %880
        %882 = vrot.lane.b32.xlu0 %v469, 96
        %v883 = vpop.permute.xlu0 %882
        %884 = vrot.lane.b32.xlu0 %v471, 96
        %v885 = vpop.permute.xlu0 %884
        %v888 = vsel %vm682, %v883, 0.0
        %889 = vadd.xlane.f32.xlu0 %v888
        %v890 = vpop.xlane.xlu0 %889
        %v891 = vsel %vm682, %v885, 0.0
        %892 = vadd.xlane.f32.xlu0 %v891
        %v893 = vpop.xlane.xlu0 %892
        %v894 = vmul.f32 %v890, %v486
        %v895 = vmul.f32 %v893, %v486
        %v896 = vsel %vm734, %v469, -inf
        %897 = vmax.xlane.f32.xlu0 %v896
        %v898 = vpop.xlane.xlu0 %897
        %v899 = vsel %vm734, %v471, -inf
        %900 = vmax.xlane.f32.xlu0 %v899
        %v901 = vpop.xlane.xlu0 %900
        %902 = vrot.lane.b32.xlu0 %v469, 80
        %v903 = vpop.permute.xlu0 %902
        %904 = vrot.lane.b32.xlu0 %v471, 80
        %v905 = vpop.permute.xlu0 %904
        %v908 = vsel %vm682, %v903, 0.0
        %909 = vadd.xlane.f32.xlu0 %v908
        %v910 = vpop.xlane.xlu0 %909
        %v911 = vsel %vm682, %v905, 0.0
        %912 = vadd.xlane.f32.xlu0 %v911
        %v913 = vpop.xlane.xlu0 %912
        %v914 = vmul.f32 %v910, %v486
        %v915 = vmul.f32 %v913, %v486
        %v916 = vsel %vm755, %v469, -inf
        %917 = vmax.xlane.f32.xlu0 %v916
        %v918 = vpop.xlane.xlu0 %917
        %v919 = vsel %vm755, %v471, -inf
        %920 = vmax.xlane.f32.xlu0 %v919
        %v921 = vpop.xlane.xlu0 %920
        %922 = vrot.lane.b32.xlu0 %v469, 64
        %v923 = vpop.permute.xlu0 %922
        %924 = vrot.lane.b32.xlu0 %v471, 64
        %v925 = vpop.permute.xlu0 %924
        %v928 = vsel %vm682, %v923, 0.0
        %929 = vadd.xlane.f32.xlu0 %v928
        %v930 = vpop.xlane.xlu0 %929
        %v931 = vsel %vm682, %v925, 0.0
        %932 = vadd.xlane.f32.xlu0 %v931
        %v933 = vpop.xlane.xlu0 %932
        %v934 = vmul.f32 %v930, %v486
        %v935 = vmul.f32 %v933, %v486
        %v936 = vsel %vm776, %v469, -inf
        %937 = vmax.xlane.f32.xlu0 %v936
        %v938 = vpop.xlane.xlu0 %937
        %v939 = vsel %vm776, %v471, -inf
        %940 = vmax.xlane.f32.xlu0 %v939
        %v941 = vpop.xlane.xlu0 %940
        %942 = vrot.lane.b32.xlu0 %v469, 48
        %v943 = vpop.permute.xlu0 %942
        %944 = vrot.lane.b32.xlu0 %v471, 48
        %v945 = vpop.permute.xlu0 %944
        %v948 = vsel %vm682, %v943, 0.0
        %949 = vadd.xlane.f32.xlu0 %v948
        %v950 = vpop.xlane.xlu0 %949
        %v951 = vsel %vm682, %v945, 0.0
        %952 = vadd.xlane.f32.xlu0 %v951
        %v953 = vpop.xlane.xlu0 %952
        %v954 = vmul.f32 %v950, %v486
        %v955 = vmul.f32 %v953, %v486
        %v956 = vsel %vm797, %v469, -inf
        %957 = vmax.xlane.f32.xlu0 %v956
        %v958 = vpop.xlane.xlu0 %957
        %v959 = vsel %vm797, %v471, -inf
        %960 = vmax.xlane.f32.xlu0 %v959
        %v961 = vpop.xlane.xlu0 %960
        %962 = vrot.lane.b32.xlu0 %v469, 32
        %v963 = vpop.permute.xlu0 %962
        %964 = vrot.lane.b32.xlu0 %v471, 32
        %v965 = vpop.permute.xlu0 %964
        %v968 = vsel %vm682, %v963, 0.0
        %969 = vadd.xlane.f32.xlu0 %v968
        %v970 = vpop.xlane.xlu0 %969
        %v971 = vsel %vm682, %v965, 0.0
        %972 = vadd.xlane.f32.xlu0 %v971
        %v973 = vpop.xlane.xlu0 %972
        %v974 = vmul.f32 %v970, %v486
        %v975 = vmul.f32 %v973, %v486
        %v976 = vsel %vm818, %v469, -inf
        %977 = vmax.xlane.f32.xlu0 %v976
        %v978 = vpop.xlane.xlu0 %977
        %v979 = vsel %vm818, %v471, -inf
        %980 = vmax.xlane.f32.xlu0 %v979
        %v981 = vpop.xlane.xlu0 %980
        %982 = vrot.lane.b32.xlu0 %v469, 16
        %v983 = vpop.permute.xlu0 %982
        %984 = vrot.lane.b32.xlu0 %v471, 16
        %v985 = vpop.permute.xlu0 %984
        %v988 = vsel %vm682, %v983, 0.0
        %989 = vadd.xlane.f32.xlu0 %v988
        %v990 = vpop.xlane.xlu0 %989
        %v991 = vsel %vm682, %v985, 0.0
        %992 = vadd.xlane.f32.xlu0 %v991
        %v993 = vpop.xlane.xlu0 %992
        %v994 = vmul.f32 %v990, %v486
        %v995 = vmul.f32 %v993, %v486
        %v996 = vsel %vm839, %v469, -inf
        %997 = vmax.xlane.f32.xlu0 %v996
        %v998 = vpop.xlane.xlu0 %997
        %v999 = vsel %vm839, %v471, -inf
        %1000 = vmax.xlane.f32.xlu0 %v999
        %v1001 = vpop.xlane.xlu0 %1000
        %vm1002 = vcmask 7168
        %v1003 = vsel %vm1002, %v689, %v711
        %v1004 = vsel %vm1002, %v690, %v712
        %vm1005 = vcmask 15360
        %v1006 = vsel %vm1005, %v1003, %v732
        %v1007 = vsel %vm1005, %v1004, %v733
        %vm1008 = vcmask 23552
        %v1009 = vsel %vm1008, %v1006, %v753
        %v1010 = vsel %vm1008, %v1007, %v754
        %vm1011 = vcmask 31744
        %v1012 = vsel %vm1011, %v1009, %v774
        %v1013 = vsel %vm1011, %v1010, %v775
        %vm1014 = vcmask 39936
        %v1015 = vsel %vm1014, %v1012, %v795
        %v1016 = vsel %vm1014, %v1013, %v796
        %vm1017 = vcmask 48128
        %v1018 = vsel %vm1017, %v1015, %v816
        %v1019 = vsel %vm1017, %v1016, %v817
        %vm1020 = vcmask 56320
        %v1021 = vsel %vm1020, %v1018, %v837
        %v1022 = vsel %vm1020, %v1019, %v838
        %v1023 = vsel %vm607, %v1021, %v852
        %v1024 = vsel %vm607, %v1022, %v853
        %vm1025 = vcmask 72704
        %v1026 = vsel %vm1025, %v1023, %v874
        %v1027 = vsel %vm1025, %v1024, %v875
        %vm1028 = vcmask 80896
        %v1029 = vsel %vm1028, %v1026, %v894
        %v1030 = vsel %vm1028, %v1027, %v895
        %vm1031 = vcmask 89088
        %v1032 = vsel %vm1031, %v1029, %v914
        %v1033 = vsel %vm1031, %v1030, %v915
        %vm1034 = vcmask 97280
        %v1035 = vsel %vm1034, %v1032, %v934
        %v1036 = vsel %vm1034, %v1033, %v935
        %vm1037 = vcmask 105472
        %v1038 = vsel %vm1037, %v1035, %v954
        %v1039 = vsel %vm1037, %v1036, %v955
        %vm1040 = vcmask 113664
        %v1041 = vsel %vm1040, %v1038, %v974
        %v1042 = vsel %vm1040, %v1039, %v975
        %vm1043 = vcmask 121856
        %v1044 = vsel %vm1043, %v1041, %v994
        %v1045 = vsel %vm1043, %v1042, %v995
        %v1046 = vsel %vm1002, %v693, %v716
        %v1047 = vsel %vm1002, %v696, %v719
        %v1048 = vsel %vm1005, %v1046, %v737
        %v1049 = vsel %vm1005, %v1047, %v740
        %v1050 = vsel %vm1008, %v1048, %v758
        %v1051 = vsel %vm1008, %v1049, %v761
        %v1052 = vsel %vm1011, %v1050, %v779
        %v1053 = vsel %vm1011, %v1051, %v782
        %v1054 = vsel %vm1014, %v1052, %v800
        %v1055 = vsel %vm1014, %v1053, %v803
        %v1056 = vsel %vm1017, %v1054, %v821
        %v1057 = vsel %vm1017, %v1055, %v824
        %v1058 = vsel %vm1020, %v1056, %v842
        %v1059 = vsel %vm1020, %v1057, %v845
        %v1060 = vsel %vm607, %v1058, %v856
        %v1061 = vsel %vm607, %v1059, %v859
        %v1062 = vsel %vm1025, %v1060, %v878
        %v1063 = vsel %vm1025, %v1061, %v881
        %v1064 = vsel %vm1028, %v1062, %v898
        %v1065 = vsel %vm1028, %v1063, %v901
        %v1066 = vsel %vm1031, %v1064, %v918
        %v1067 = vsel %vm1031, %v1065, %v921
        %v1068 = vsel %vm1034, %v1066, %v938
        %v1069 = vsel %vm1034, %v1067, %v941
        %v1070 = vsel %vm1037, %v1068, %v958
        %v1071 = vsel %vm1037, %v1069, %v961
        %v1072 = vsel %vm1040, %v1070, %v978
        %v1073 = vsel %vm1040, %v1071, %v981
        %v1074 = vsel %vm1043, %v1072, %v998
        %v1075 = vsel %vm1043, %v1073, %v1001
        %1078 = vrot.lane.b32.xlu0 %v1044, 125
        %v1079 = vpop.permute.xlu0 %1078
        %1080 = vrot.lane.b32.xlu0 %v1045, 125
        %v1081 = vpop.permute.xlu0 %1080
        %1084 = vrot.lane.b32.xlu0 %v1044, 127
        %v1085 = vpop.permute.xlu0 %1084
        %1086 = vrot.lane.b32.xlu0 %v1045, 127
        %v1087 = vpop.permute.xlu0 %1086
        %1090 = vrot.lane.b32.xlu0 %v1044, 1
        %v1091 = vpop.permute.xlu0 %1090
        %1092 = vrot.lane.b32.xlu0 %v1045, 1
        %v1093 = vpop.permute.xlu0 %1092
        %v1096 = vsel %vm1002, %v1079, %v1085
        %v1097 = vsel %vm1002, %v1081, %v1087
        %v1098 = vsel %vm1005, %v1096, %v1091
        %v1099 = vsel %vm1005, %v1097, %v1093
        %1100 = vrot.lane.b32.xlu0 %v1044, 114
        %v1101 = vpop.permute.xlu0 %1100
        %1102 = vrot.lane.b32.xlu0 %v1045, 114
        %v1103 = vpop.permute.xlu0 %1102
        %1106 = vrot.lane.b32.xlu0 %v1044, 116
        %v1107 = vpop.permute.xlu0 %1106
        %1108 = vrot.lane.b32.xlu0 %v1045, 116
        %v1109 = vpop.permute.xlu0 %1108
        %1112 = vrot.lane.b32.xlu0 %v1044, 118
        %v1113 = vpop.permute.xlu0 %1112
        %1114 = vrot.lane.b32.xlu0 %v1045, 118
        %v1115 = vpop.permute.xlu0 %1114
        %v1118 = vsel %vm1002, %v1101, %v1107
        %v1119 = vsel %vm1002, %v1103, %v1109
        %v1120 = vsel %vm1005, %v1118, %v1113
        %v1121 = vsel %vm1005, %v1119, %v1115
        %1122 = vrot.lane.b32.xlu0 %v1044, 3
        %v1123 = vpop.permute.xlu0 %1122
        %1124 = vrot.lane.b32.xlu0 %v1045, 3
        %v1125 = vpop.permute.xlu0 %1124
        %1130 = vrot.lane.b32.xlu0 %v1120, 19
        %v1131 = vpop.permute.xlu0 %1130
        %1132 = vrot.lane.b32.xlu0 %v1121, 19
        %v1133 = vpop.permute.xlu0 %1132
        %v1136 = vsel %vm1008, %v1098, %v1123
        %v1137 = vsel %vm1008, %v1099, %v1125
        %vm1138 = vcmask 154624
        %v1139 = vsel %vm1138, %v1136, %v1131
        %v1140 = vsel %vm1138, %v1137, %v1133
        %v1142 = vrot.slane %v1139, 3
        %v1144 = vrot.slane %v1139, 1
        %v1146 = vrot.slane %v1139, 7
        %vm1148 = vcmask 1040384
        %v1149 = vsel %vm1148, %v1142, %v1144
        %vm1150 = vcmask 1041408
        %v1151 = vsel %vm1150, %v1149, %v1146
        %v1153 = vrot.slane %v1140, 6
        %v1155 = vrot.slane %v1140, 4
        %v1157 = vrot.slane %v1140, 2
        %v1159 = vsel %vm1148, %v1153, %v1155
        %v1160 = vsel %vm1150, %v1159, %v1157
        %vm1161 = vcmask 1042432
        %v1162 = vrot.slane %v1139, 5
        %v1163 = vrot.slane %v1140, 5
        %v1164 = vsel %vm1161, %v1162, %v1163
        %v1169 = vrot.slane %v1160, 5
        %v1171 = vsel %vm1161, %v1151, %v1162
        %v1172 = vsel %vm1161, %v1163, %v1169
        %1175 = vrot.lane.b32.xlu0 %v1074, 125
        %v1176 = vpop.permute.xlu0 %1175
        %1177 = vrot.lane.b32.xlu0 %v1075, 125
        %v1178 = vpop.permute.xlu0 %1177
        %1181 = vrot.lane.b32.xlu0 %v1074, 127
        %v1182 = vpop.permute.xlu0 %1181
        %1183 = vrot.lane.b32.xlu0 %v1075, 127
        %v1184 = vpop.permute.xlu0 %1183
        %1187 = vrot.lane.b32.xlu0 %v1074, 1
        %v1188 = vpop.permute.xlu0 %1187
        %1189 = vrot.lane.b32.xlu0 %v1075, 1
        %v1190 = vpop.permute.xlu0 %1189
        %v1193 = vsel %vm1002, %v1176, %v1182
        %v1194 = vsel %vm1002, %v1178, %v1184
        %v1195 = vsel %vm1005, %v1193, %v1188
        %v1196 = vsel %vm1005, %v1194, %v1190
        %1197 = vrot.lane.b32.xlu0 %v1074, 114
        %v1198 = vpop.permute.xlu0 %1197
        %1199 = vrot.lane.b32.xlu0 %v1075, 114
        %v1200 = vpop.permute.xlu0 %1199
        %1203 = vrot.lane.b32.xlu0 %v1074, 116
        %v1204 = vpop.permute.xlu0 %1203
        %1205 = vrot.lane.b32.xlu0 %v1075, 116
        %v1206 = vpop.permute.xlu0 %1205
        %1209 = vrot.lane.b32.xlu0 %v1074, 118
        %v1210 = vpop.permute.xlu0 %1209
        %1211 = vrot.lane.b32.xlu0 %v1075, 118
        %v1212 = vpop.permute.xlu0 %1211
        %v1215 = vsel %vm1002, %v1198, %v1204
        %v1216 = vsel %vm1002, %v1200, %v1206
        %v1217 = vsel %vm1005, %v1215, %v1210
        %v1218 = vsel %vm1005, %v1216, %v1212
        %1219 = vrot.lane.b32.xlu0 %v1074, 3
        %v1220 = vpop.permute.xlu0 %1219
        %1221 = vrot.lane.b32.xlu0 %v1075, 3
        %v1222 = vpop.permute.xlu0 %1221
        %1227 = vrot.lane.b32.xlu0 %v1217, 19
        %v1228 = vpop.permute.xlu0 %1227
        %1229 = vrot.lane.b32.xlu0 %v1218, 19
        %v1230 = vpop.permute.xlu0 %1229
        %v1233 = vsel %vm1008, %v1195, %v1220
        %v1234 = vsel %vm1008, %v1196, %v1222
        %v1235 = vsel %vm1138, %v1233, %v1228
        %v1236 = vsel %vm1138, %v1234, %v1230
        %v1238 = vrot.slane %v1235, 3
        %v1240 = vrot.slane %v1235, 1
        %v1242 = vrot.slane %v1235, 7
        %v1244 = vsel %vm1148, %v1238, %v1240
        %v1245 = vsel %vm1150, %v1244, %v1242
        %v1247 = vrot.slane %v1236, 6
        %v1249 = vrot.slane %v1236, 4
        %v1251 = vrot.slane %v1236, 2
        %v1253 = vsel %vm1148, %v1247, %v1249
        %v1254 = vsel %vm1150, %v1253, %v1251
        %v1255 = vrot.slane %v1235, 5
        %v1256 = vrot.slane %v1236, 5
        %v1257 = vsel %vm1161, %v1255, %v1256
        %v1262 = vrot.slane %v1254, 5
        %v1264 = vsel %vm1161, %v1245, %v1255
        %v1265 = vsel %vm1161, %v1256, %v1262
        %s1266 = sld [smem:[#allocation4]]
        %v1267 = vstv %s1266
        %v1268 = vadd.f32 %v1267, 0.0
        %s1269 = sld [smem:[#allocation11]]
        %v1270 = vstv %s1269
        %v1271 = vmul.f32 %v1270, %v1171
        %v1272 = vmul.f32 %v1270, %v1164
        %v1273 = vadd.f32 %v1268, %v1271
        %v1274 = vadd.f32 %v1268, %v1272
        %s1275 = sld [smem:[#allocation11 + $0x31]]
        %v1276 = vstv %s1275
        %v1277 = vmul.f32 %v1276, %v1264
        %v1278 = vmul.f32 %v1276, %v1257
        %v1279 = vadd.f32 %v1273, %v1277
        %v1280 = vadd.f32 %v1274, %v1278
        %s1281 = sld [smem:[#allocation11 + $0x1]]
        %v1282 = vstv %s1281
        %v1283 = vmul.f32 %v1282, %v1171
        %v1284 = vmul.f32 %v1282, %v1164
        %1287 = vrot.lane.b32.xlu0 %v1283, 127
        %v1288 = vpop.permute.xlu0 %1287
        %1289 = vrot.lane.b32.xlu0 %v1284, 127
        %v1290 = vpop.permute.xlu0 %1289
        %v1293 = vadd.f32 %v1279, %v1288
        %v1294 = vadd.f32 %v1280, %v1290
        %s1295 = sld [smem:[#allocation11 + $0x32]]
        %v1296 = vstv %s1295
        %v1297 = vmul.f32 %v1296, %v1264
        %v1298 = vmul.f32 %v1296, %v1257
        %1301 = vrot.lane.b32.xlu0 %v1297, 127
        %v1302 = vpop.permute.xlu0 %1301
        %1303 = vrot.lane.b32.xlu0 %v1298, 127
        %v1304 = vpop.permute.xlu0 %1303
        %v1307 = vadd.f32 %v1293, %v1302
        %v1308 = vadd.f32 %v1294, %v1304
        %s1309 = sld [smem:[#allocation11 + $0x2]]
        %v1310 = vstv %s1309
        %v1311 = vmul.f32 %v1310, %v1171
        %v1312 = vmul.f32 %v1310, %v1164
        %1315 = vrot.lane.b32.xlu0 %v1311, 126
        %v1316 = vpop.permute.xlu0 %1315
        %1317 = vrot.lane.b32.xlu0 %v1312, 126
        %v1318 = vpop.permute.xlu0 %1317
        %v1321 = vadd.f32 %v1307, %v1316
        %v1322 = vadd.f32 %v1308, %v1318
        %s1323 = sld [smem:[#allocation11 + $0x33]]
        %v1324 = vstv %s1323
        %v1325 = vmul.f32 %v1324, %v1264
        %v1326 = vmul.f32 %v1324, %v1257
        %1329 = vrot.lane.b32.xlu0 %v1325, 126
        %v1330 = vpop.permute.xlu0 %1329
        %1331 = vrot.lane.b32.xlu0 %v1326, 126
        %v1332 = vpop.permute.xlu0 %1331
        %v1335 = vadd.f32 %v1321, %v1330
        %v1336 = vadd.f32 %v1322, %v1332
        %s1337 = sld [smem:[#allocation11 + $0x3]]
        %v1338 = vstv %s1337
        %v1339 = vmul.f32 %v1338, %v1171
        %v1340 = vmul.f32 %v1338, %v1164
        %1343 = vrot.lane.b32.xlu0 %v1339, 125
        %v1344 = vpop.permute.xlu0 %1343
        %1345 = vrot.lane.b32.xlu0 %v1340, 125
        %v1346 = vpop.permute.xlu0 %1345
        %v1349 = vadd.f32 %v1335, %v1344
        %v1350 = vadd.f32 %v1336, %v1346
        %s1351 = sld [smem:[#allocation11 + $0x34]]
        %v1352 = vstv %s1351
        %v1353 = vmul.f32 %v1352, %v1264
        %v1354 = vmul.f32 %v1352, %v1257
        %1357 = vrot.lane.b32.xlu0 %v1353, 125
        %v1358 = vpop.permute.xlu0 %1357
        %1359 = vrot.lane.b32.xlu0 %v1354, 125
        %v1360 = vpop.permute.xlu0 %1359
        %v1363 = vadd.f32 %v1349, %v1358
        %v1364 = vadd.f32 %v1350, %v1360
        %s1365 = sld [smem:[#allocation11 + $0x4]]
        %v1366 = vstv %s1365
        %v1367 = vmul.f32 %v1366, %v1171
        %v1368 = vmul.f32 %v1366, %v1164
        %1371 = vrot.lane.b32.xlu0 %v1367, 124
        %v1372 = vpop.permute.xlu0 %1371
        %1373 = vrot.lane.b32.xlu0 %v1368, 124
        %v1374 = vpop.permute.xlu0 %1373
        %v1377 = vadd.f32 %v1363, %v1372
        %v1378 = vadd.f32 %v1364, %v1374
        %s1379 = sld [smem:[#allocation11 + $0x35]]
        %v1380 = vstv %s1379
        %v1381 = vmul.f32 %v1380, %v1264
        %v1382 = vmul.f32 %v1380, %v1257
        %1385 = vrot.lane.b32.xlu0 %v1381, 124
        %v1386 = vpop.permute.xlu0 %1385
        %1387 = vrot.lane.b32.xlu0 %v1382, 124
        %v1388 = vpop.permute.xlu0 %1387
        %v1391 = vadd.f32 %v1377, %v1386
        %v1392 = vadd.f32 %v1378, %v1388
        %s1393 = sld [smem:[#allocation11 + $0x5]]
        %v1394 = vstv %s1393
        %v1395 = vmul.f32 %v1394, %v1171
        %v1396 = vmul.f32 %v1394, %v1164
        %1399 = vrot.lane.b32.xlu0 %v1395, 123
        %v1400 = vpop.permute.xlu0 %1399
        %1401 = vrot.lane.b32.xlu0 %v1396, 123
        %v1402 = vpop.permute.xlu0 %1401
        %v1405 = vadd.f32 %v1391, %v1400
        %v1406 = vadd.f32 %v1392, %v1402
        %s1407 = sld [smem:[#allocation11 + $0x36]]
        %v1408 = vstv %s1407
        %v1409 = vmul.f32 %v1408, %v1264
        %v1410 = vmul.f32 %v1408, %v1257
        %1413 = vrot.lane.b32.xlu0 %v1409, 123
        %v1414 = vpop.permute.xlu0 %1413
        %1415 = vrot.lane.b32.xlu0 %v1410, 123
        %v1416 = vpop.permute.xlu0 %1415
        %v1419 = vadd.f32 %v1405, %v1414
        %v1420 = vadd.f32 %v1406, %v1416
        %s1421 = sld [smem:[#allocation11 + $0x6]]
        %v1422 = vstv %s1421
        %v1423 = vmul.f32 %v1422, %v1171
        %v1424 = vmul.f32 %v1422, %v1164
        %1427 = vrot.lane.b32.xlu0 %v1423, 122
        %v1428 = vpop.permute.xlu0 %1427
        %1429 = vrot.lane.b32.xlu0 %v1424, 122
        %v1430 = vpop.permute.xlu0 %1429
        %v1433 = vadd.f32 %v1419, %v1428
        %v1434 = vadd.f32 %v1420, %v1430
        %s1435 = sld [smem:[#allocation11 + $0x37]]
        %v1436 = vstv %s1435
        %v1437 = vmul.f32 %v1436, %v1264
        %v1438 = vmul.f32 %v1436, %v1257
        %1441 = vrot.lane.b32.xlu0 %v1437, 122
        %v1442 = vpop.permute.xlu0 %1441
        %1443 = vrot.lane.b32.xlu0 %v1438, 122
        %v1444 = vpop.permute.xlu0 %1443
        %v1447 = vadd.f32 %v1433, %v1442
        %v1448 = vadd.f32 %v1434, %v1444
        %s1449 = sld [smem:[#allocation11 + $0x7]]
        %v1450 = vstv %s1449
        %v1451 = vmul.f32 %v1450, %v1171
        %v1452 = vmul.f32 %v1450, %v1164
        %v1453 = vmul.f32 %v1450, %v1172
        %vm1457 = vcmask 1046528
        %v1458 = vrot.slane %v1451, 1
        %v1459 = vrot.slane %v1452, 1
        %v1460 = vsel %vm1457, %v1458, %v1459
        %v1461 = vrot.slane %v1453, 1
        %v1462 = vsel %vm1457, %v1459, %v1461
        %v1465 = vadd.f32 %v1447, %v1460
        %v1466 = vadd.f32 %v1448, %v1462
        %s1467 = sld [smem:[#allocation11 + $0x38]]
        %v1468 = vstv %s1467
        %v1469 = vmul.f32 %v1468, %v1264
        %v1470 = vmul.f32 %v1468, %v1257
        %v1471 = vmul.f32 %v1468, %v1265
        %v1475 = vrot.slane %v1469, 1
        %v1476 = vrot.slane %v1470, 1
        %v1477 = vsel %vm1457, %v1475, %v1476
        %v1478 = vrot.slane %v1471, 1
        %v1479 = vsel %vm1457, %v1476, %v1478
        %v1482 = vadd.f32 %v1465, %v1477
        %v1483 = vadd.f32 %v1466, %v1479
        %s1484 = sld [smem:[#allocation11 + $0x8]]
        %v1485 = vstv %s1484
        %v1486 = vmul.f32 %v1485, %v1171
        %v1487 = vmul.f32 %v1485, %v1164
        %v1488 = vmul.f32 %v1485, %v1172
        %v1492 = vrot.slane %v1486, 1
        %v1493 = vrot.slane %v1487, 1
        %v1494 = vsel %vm1457, %v1492, %v1493
        %v1495 = vrot.slane %v1488, 1
        %v1496 = vsel %vm1457, %v1493, %v1495
        %1497 = vrot.lane.b32.xlu0 %v1494, 127
        %v1498 = vpop.permute.xlu0 %1497
        %1499 = vrot.lane.b32.xlu0 %v1496, 127
        %v1500 = vpop.permute.xlu0 %1499
        %v1503 = vadd.f32 %v1482, %v1498
        %v1504 = vadd.f32 %v1483, %v1500
        %s1505 = sld [smem:[#allocation11 + $0x39]]
        %v1506 = vstv %s1505
        %v1507 = vmul.f32 %v1506, %v1264
        %v1508 = vmul.f32 %v1506, %v1257
        %v1509 = vmul.f32 %v1506, %v1265
        %v1513 = vrot.slane %v1507, 1
        %v1514 = vrot.slane %v1508, 1
        %v1515 = vsel %vm1457, %v1513, %v1514
        %v1516 = vrot.slane %v1509, 1
        %v1517 = vsel %vm1457, %v1514, %v1516
        %1518 = vrot.lane.b32.xlu0 %v1515, 127
        %v1519 = vpop.permute.xlu0 %1518
        %1520 = vrot.lane.b32.xlu0 %v1517, 127
        %v1521 = vpop.permute.xlu0 %1520
        %v1524 = vadd.f32 %v1503, %v1519
        %v1525 = vadd.f32 %v1504, %v1521
        %s1526 = sld [smem:[#allocation11 + $0x9]]
        %v1527 = vstv %s1526
        %v1528 = vmul.f32 %v1527, %v1171
        %v1529 = vmul.f32 %v1527, %v1164
        %v1530 = vmul.f32 %v1527, %v1172
        %v1534 = vrot.slane %v1528, 1
        %v1535 = vrot.slane %v1529, 1
        %v1536 = vsel %vm1457, %v1534, %v1535
        %v1537 = vrot.slane %v1530, 1
        %v1538 = vsel %vm1457, %v1535, %v1537
        %1539 = vrot.lane.b32.xlu0 %v1536, 126
        %v1540 = vpop.permute.xlu0 %1539
        %1541 = vrot.lane.b32.xlu0 %v1538, 126
        %v1542 = vpop.permute.xlu0 %1541
        %v1545 = vadd.f32 %v1524, %v1540
        %v1546 = vadd.f32 %v1525, %v1542
        %s1547 = sld [smem:[#allocation11 + $0x3a]]
        %v1548 = vstv %s1547
        %v1549 = vmul.f32 %v1548, %v1264
        %v1550 = vmul.f32 %v1548, %v1257
        %v1551 = vmul.f32 %v1548, %v1265
        %v1555 = vrot.slane %v1549, 1
        %v1556 = vrot.slane %v1550, 1
        %v1557 = vsel %vm1457, %v1555, %v1556
        %v1558 = vrot.slane %v1551, 1
        %v1559 = vsel %vm1457, %v1556, %v1558
        %1560 = vrot.lane.b32.xlu0 %v1557, 126
        %v1561 = vpop.permute.xlu0 %1560
        %1562 = vrot.lane.b32.xlu0 %v1559, 126
        %v1563 = vpop.permute.xlu0 %1562
        %v1566 = vadd.f32 %v1545, %v1561
        %v1567 = vadd.f32 %v1546, %v1563
        %s1568 = sld [smem:[#allocation11 + $0xa]]
        %v1569 = vstv %s1568
        %v1570 = vmul.f32 %v1569, %v1171
        %v1571 = vmul.f32 %v1569, %v1164
        %v1572 = vmul.f32 %v1569, %v1172
        %v1576 = vrot.slane %v1570, 1
        %v1577 = vrot.slane %v1571, 1
        %v1578 = vsel %vm1457, %v1576, %v1577
        %v1579 = vrot.slane %v1572, 1
        %v1580 = vsel %vm1457, %v1577, %v1579
        %1581 = vrot.lane.b32.xlu0 %v1578, 125
        %v1582 = vpop.permute.xlu0 %1581
        %1583 = vrot.lane.b32.xlu0 %v1580, 125
        %v1584 = vpop.permute.xlu0 %1583
        %v1587 = vadd.f32 %v1566, %v1582
        %v1588 = vadd.f32 %v1567, %v1584
        %s1589 = sld [smem:[#allocation11 + $0x3b]]
        %v1590 = vstv %s1589
        %v1591 = vmul.f32 %v1590, %v1264
        %v1592 = vmul.f32 %v1590, %v1257
        %v1593 = vmul.f32 %v1590, %v1265
        %v1597 = vrot.slane %v1591, 1
        %v1598 = vrot.slane %v1592, 1
        %v1599 = vsel %vm1457, %v1597, %v1598
        %v1600 = vrot.slane %v1593, 1
        %v1601 = vsel %vm1457, %v1598, %v1600
        %1602 = vrot.lane.b32.xlu0 %v1599, 125
        %v1603 = vpop.permute.xlu0 %1602
        %1604 = vrot.lane.b32.xlu0 %v1601, 125
        %v1605 = vpop.permute.xlu0 %1604
        %v1608 = vadd.f32 %v1587, %v1603
        %v1609 = vadd.f32 %v1588, %v1605
        %s1610 = sld [smem:[#allocation11 + $0xb]]
        %v1611 = vstv %s1610
        %v1612 = vmul.f32 %v1611, %v1171
        %v1613 = vmul.f32 %v1611, %v1164
        %v1614 = vmul.f32 %v1611, %v1172
        %v1618 = vrot.slane %v1612, 1
        %v1619 = vrot.slane %v1613, 1
        %v1620 = vsel %vm1457, %v1618, %v1619
        %v1621 = vrot.slane %v1614, 1
        %v1622 = vsel %vm1457, %v1619, %v1621
        %1623 = vrot.lane.b32.xlu0 %v1620, 124
        %v1624 = vpop.permute.xlu0 %1623
        %1625 = vrot.lane.b32.xlu0 %v1622, 124
        %v1626 = vpop.permute.xlu0 %1625
        %v1629 = vadd.f32 %v1608, %v1624
        %v1630 = vadd.f32 %v1609, %v1626
        %s1631 = sld [smem:[#allocation11 + $0x3c]]
        %v1632 = vstv %s1631
        %v1633 = vmul.f32 %v1632, %v1264
        %v1634 = vmul.f32 %v1632, %v1257
        %v1635 = vmul.f32 %v1632, %v1265
        %v1639 = vrot.slane %v1633, 1
        %v1640 = vrot.slane %v1634, 1
        %v1641 = vsel %vm1457, %v1639, %v1640
        %v1642 = vrot.slane %v1635, 1
        %v1643 = vsel %vm1457, %v1640, %v1642
        %1644 = vrot.lane.b32.xlu0 %v1641, 124
        %v1645 = vpop.permute.xlu0 %1644
        %1646 = vrot.lane.b32.xlu0 %v1643, 124
        %v1647 = vpop.permute.xlu0 %1646
        %v1650 = vadd.f32 %v1629, %v1645
        %v1651 = vadd.f32 %v1630, %v1647
        %s1652 = sld [smem:[#allocation11 + $0xc]]
        %v1653 = vstv %s1652
        %v1654 = vmul.f32 %v1653, %v1171
        %v1655 = vmul.f32 %v1653, %v1164
        %v1656 = vmul.f32 %v1653, %v1172
        %v1660 = vrot.slane %v1654, 1
        %v1661 = vrot.slane %v1655, 1
        %v1662 = vsel %vm1457, %v1660, %v1661
        %v1663 = vrot.slane %v1656, 1
        %v1664 = vsel %vm1457, %v1661, %v1663
        %1665 = vrot.lane.b32.xlu0 %v1662, 123
        %v1666 = vpop.permute.xlu0 %1665
        %1667 = vrot.lane.b32.xlu0 %v1664, 123
        %v1668 = vpop.permute.xlu0 %1667
        %v1671 = vadd.f32 %v1650, %v1666
        %v1672 = vadd.f32 %v1651, %v1668
        %s1673 = sld [smem:[#allocation11 + $0x3d]]
        %v1674 = vstv %s1673
        %v1675 = vmul.f32 %v1674, %v1264
        %v1676 = vmul.f32 %v1674, %v1257
        %v1677 = vmul.f32 %v1674, %v1265
        %v1681 = vrot.slane %v1675, 1
        %v1682 = vrot.slane %v1676, 1
        %v1683 = vsel %vm1457, %v1681, %v1682
        %v1684 = vrot.slane %v1677, 1
        %v1685 = vsel %vm1457, %v1682, %v1684
        %1686 = vrot.lane.b32.xlu0 %v1683, 123
        %v1687 = vpop.permute.xlu0 %1686
        %1688 = vrot.lane.b32.xlu0 %v1685, 123
        %v1689 = vpop.permute.xlu0 %1688
        %v1692 = vadd.f32 %v1671, %v1687
        %v1693 = vadd.f32 %v1672, %v1689
        %s1694 = sld [smem:[#allocation11 + $0xd]]
        %v1695 = vstv %s1694
        %v1696 = vmul.f32 %v1695, %v1171
        %v1697 = vmul.f32 %v1695, %v1164
        %v1698 = vmul.f32 %v1695, %v1172
        %v1702 = vrot.slane %v1696, 1
        %v1703 = vrot.slane %v1697, 1
        %v1704 = vsel %vm1457, %v1702, %v1703
        %v1705 = vrot.slane %v1698, 1
        %v1706 = vsel %vm1457, %v1703, %v1705
        %1707 = vrot.lane.b32.xlu0 %v1704, 122
        %v1708 = vpop.permute.xlu0 %1707
        %1709 = vrot.lane.b32.xlu0 %v1706, 122
        %v1710 = vpop.permute.xlu0 %1709
        %v1713 = vadd.f32 %v1692, %v1708
        %v1714 = vadd.f32 %v1693, %v1710
        %s1715 = sld [smem:[#allocation11 + $0x3e]]
        %v1716 = vstv %s1715
        %v1717 = vmul.f32 %v1716, %v1264
        %v1718 = vmul.f32 %v1716, %v1257
        %v1719 = vmul.f32 %v1716, %v1265
        %v1723 = vrot.slane %v1717, 1
        %v1724 = vrot.slane %v1718, 1
        %v1725 = vsel %vm1457, %v1723, %v1724
        %v1726 = vrot.slane %v1719, 1
        %v1727 = vsel %vm1457, %v1724, %v1726
        %1728 = vrot.lane.b32.xlu0 %v1725, 122
        %v1729 = vpop.permute.xlu0 %1728
        %1730 = vrot.lane.b32.xlu0 %v1727, 122
        %v1731 = vpop.permute.xlu0 %1730
        %v1734 = vadd.f32 %v1713, %v1729
        %v1735 = vadd.f32 %v1714, %v1731
        %s1736 = sld [smem:[#allocation11 + $0xe]]
        %v1737 = vstv %s1736
        %v1738 = vmul.f32 %v1737, %v1171
        %v1739 = vmul.f32 %v1737, %v1164
        %v1740 = vmul.f32 %v1737, %v1172
        %vm1744 = vcmask 1045504
        %v1745 = vrot.slane %v1738, 2
        %v1746 = vrot.slane %v1739, 2
        %v1747 = vsel %vm1744, %v1745, %v1746
        %v1748 = vrot.slane %v1740, 2
        %v1749 = vsel %vm1744, %v1746, %v1748
        %v1752 = vadd.f32 %v1734, %v1747
        %v1753 = vadd.f32 %v1735, %v1749
        %s1754 = sld [smem:[#allocation11 + $0x3f]]
        %v1755 = vstv %s1754
        %v1756 = vmul.f32 %v1755, %v1264
        %v1757 = vmul.f32 %v1755, %v1257
        %v1758 = vmul.f32 %v1755, %v1265
        %v1762 = vrot.slane %v1756, 2
        %v1763 = vrot.slane %v1757, 2
        %v1764 = vsel %vm1744, %v1762, %v1763
        %v1765 = vrot.slane %v1758, 2
        %v1766 = vsel %vm1744, %v1763, %v1765
        %v1769 = vadd.f32 %v1752, %v1764
        %v1770 = vadd.f32 %v1753, %v1766
        %s1771 = sld [smem:[#allocation11 + $0xf]]
        %v1772 = vstv %s1771
        %v1773 = vmul.f32 %v1772, %v1171
        %v1774 = vmul.f32 %v1772, %v1164
        %v1775 = vmul.f32 %v1772, %v1172
        %v1779 = vrot.slane %v1773, 2
        %v1780 = vrot.slane %v1774, 2
        %v1781 = vsel %vm1744, %v1779, %v1780
        %v1782 = vrot.slane %v1775, 2
        %v1783 = vsel %vm1744, %v1780, %v1782
        %1784 = vrot.lane.b32.xlu0 %v1781, 127
        %v1785 = vpop.permute.xlu0 %1784
        %1786 = vrot.lane.b32.xlu0 %v1783, 127
        %v1787 = vpop.permute.xlu0 %1786
        %v1790 = vadd.f32 %v1769, %v1785
        %v1791 = vadd.f32 %v1770, %v1787
        %s1792 = sld [smem:[#allocation11 + $0x40]]
        %v1793 = vstv %s1792
        %v1794 = vmul.f32 %v1793, %v1264
        %v1795 = vmul.f32 %v1793, %v1257
        %v1796 = vmul.f32 %v1793, %v1265
        %v1800 = vrot.slane %v1794, 2
        %v1801 = vrot.slane %v1795, 2
        %v1802 = vsel %vm1744, %v1800, %v1801
        %v1803 = vrot.slane %v1796, 2
        %v1804 = vsel %vm1744, %v1801, %v1803
        %1805 = vrot.lane.b32.xlu0 %v1802, 127
        %v1806 = vpop.permute.xlu0 %1805
        %1807 = vrot.lane.b32.xlu0 %v1804, 127
        %v1808 = vpop.permute.xlu0 %1807
        %v1811 = vadd.f32 %v1790, %v1806
        %v1812 = vadd.f32 %v1791, %v1808
        %s1813 = sld [smem:[#allocation11 + $0x10]]
        %v1814 = vstv %s1813
        %v1815 = vmul.f32 %v1814, %v1171
        %v1816 = vmul.f32 %v1814, %v1164
        %v1817 = vmul.f32 %v1814, %v1172
        %v1821 = vrot.slane %v1815, 2
        %v1822 = vrot.slane %v1816, 2
        %v1823 = vsel %vm1744, %v1821, %v1822
        %v1824 = vrot.slane %v1817, 2
        %v1825 = vsel %vm1744, %v1822, %v1824
        %1826 = vrot.lane.b32.xlu0 %v1823, 126
        %v1827 = vpop.permute.xlu0 %1826
        %1828 = vrot.lane.b32.xlu0 %v1825, 126
        %v1829 = vpop.permute.xlu0 %1828
        %v1832 = vadd.f32 %v1811, %v1827
        %v1833 = vadd.f32 %v1812, %v1829
        %s1834 = sld [smem:[#allocation11 + $0x41]]
        %v1835 = vstv %s1834
        %v1836 = vmul.f32 %v1835, %v1264
        %v1837 = vmul.f32 %v1835, %v1257
        %v1838 = vmul.f32 %v1835, %v1265
        %v1842 = vrot.slane %v1836, 2
        %v1843 = vrot.slane %v1837, 2
        %v1844 = vsel %vm1744, %v1842, %v1843
        %v1845 = vrot.slane %v1838, 2
        %v1846 = vsel %vm1744, %v1843, %v1845
        %1847 = vrot.lane.b32.xlu0 %v1844, 126
        %v1848 = vpop.permute.xlu0 %1847
        %1849 = vrot.lane.b32.xlu0 %v1846, 126
        %v1850 = vpop.permute.xlu0 %1849
        %v1853 = vadd.f32 %v1832, %v1848
        %v1854 = vadd.f32 %v1833, %v1850
        %s1855 = sld [smem:[#allocation11 + $0x11]]
        %v1856 = vstv %s1855
        %v1857 = vmul.f32 %v1856, %v1171
        %v1858 = vmul.f32 %v1856, %v1164
        %v1859 = vmul.f32 %v1856, %v1172
        %v1863 = vrot.slane %v1857, 2
        %v1864 = vrot.slane %v1858, 2
        %v1865 = vsel %vm1744, %v1863, %v1864
        %v1866 = vrot.slane %v1859, 2
        %v1867 = vsel %vm1744, %v1864, %v1866
        %1868 = vrot.lane.b32.xlu0 %v1865, 125
        %v1869 = vpop.permute.xlu0 %1868
        %1870 = vrot.lane.b32.xlu0 %v1867, 125
        %v1871 = vpop.permute.xlu0 %1870
        %v1874 = vadd.f32 %v1853, %v1869
        %v1875 = vadd.f32 %v1854, %v1871
        %s1876 = sld [smem:[#allocation11 + $0x42]]
        %v1877 = vstv %s1876
        %v1878 = vmul.f32 %v1877, %v1264
        %v1879 = vmul.f32 %v1877, %v1257
        %v1880 = vmul.f32 %v1877, %v1265
        %v1884 = vrot.slane %v1878, 2
        %v1885 = vrot.slane %v1879, 2
        %v1886 = vsel %vm1744, %v1884, %v1885
        %v1887 = vrot.slane %v1880, 2
        %v1888 = vsel %vm1744, %v1885, %v1887
        %1889 = vrot.lane.b32.xlu0 %v1886, 125
        %v1890 = vpop.permute.xlu0 %1889
        %1891 = vrot.lane.b32.xlu0 %v1888, 125
        %v1892 = vpop.permute.xlu0 %1891
        %v1895 = vadd.f32 %v1874, %v1890
        %v1896 = vadd.f32 %v1875, %v1892
        %s1897 = sld [smem:[#allocation11 + $0x12]]
        %v1898 = vstv %s1897
        %v1899 = vmul.f32 %v1898, %v1171
        %v1900 = vmul.f32 %v1898, %v1164
        %v1901 = vmul.f32 %v1898, %v1172
        %v1905 = vrot.slane %v1899, 2
        %v1906 = vrot.slane %v1900, 2
        %v1907 = vsel %vm1744, %v1905, %v1906
        %v1908 = vrot.slane %v1901, 2
        %v1909 = vsel %vm1744, %v1906, %v1908
        %1910 = vrot.lane.b32.xlu0 %v1907, 124
        %v1911 = vpop.permute.xlu0 %1910
        %1912 = vrot.lane.b32.xlu0 %v1909, 124
        %v1913 = vpop.permute.xlu0 %1912
        %v1916 = vadd.f32 %v1895, %v1911
        %v1917 = vadd.f32 %v1896, %v1913
        %s1918 = sld [smem:[#allocation11 + $0x43]]
        %v1919 = vstv %s1918
        %v1920 = vmul.f32 %v1919, %v1264
        %v1921 = vmul.f32 %v1919, %v1257
        %v1922 = vmul.f32 %v1919, %v1265
        %v1926 = vrot.slane %v1920, 2
        %v1927 = vrot.slane %v1921, 2
        %v1928 = vsel %vm1744, %v1926, %v1927
        %v1929 = vrot.slane %v1922, 2
        %v1930 = vsel %vm1744, %v1927, %v1929
        %1931 = vrot.lane.b32.xlu0 %v1928, 124
        %v1932 = vpop.permute.xlu0 %1931
        %1933 = vrot.lane.b32.xlu0 %v1930, 124
        %v1934 = vpop.permute.xlu0 %1933
        %v1937 = vadd.f32 %v1916, %v1932
        %v1938 = vadd.f32 %v1917, %v1934
        %s1939 = sld [smem:[#allocation11 + $0x13]]
        %v1940 = vstv %s1939
        %v1941 = vmul.f32 %v1940, %v1171
        %v1942 = vmul.f32 %v1940, %v1164
        %v1943 = vmul.f32 %v1940, %v1172
        %v1947 = vrot.slane %v1941, 2
        %v1948 = vrot.slane %v1942, 2
        %v1949 = vsel %vm1744, %v1947, %v1948
        %v1950 = vrot.slane %v1943, 2
        %v1951 = vsel %vm1744, %v1948, %v1950
        %1952 = vrot.lane.b32.xlu0 %v1949, 123
        %v1953 = vpop.permute.xlu0 %1952
        %1954 = vrot.lane.b32.xlu0 %v1951, 123
        %v1955 = vpop.permute.xlu0 %1954
        %v1958 = vadd.f32 %v1937, %v1953
        %v1959 = vadd.f32 %v1938, %v1955
        %s1960 = sld [smem:[#allocation11 + $0x44]]
        %v1961 = vstv %s1960
        %v1962 = vmul.f32 %v1961, %v1264
        %v1963 = vmul.f32 %v1961, %v1257
        %v1964 = vmul.f32 %v1961, %v1265
        %v1968 = vrot.slane %v1962, 2
        %v1969 = vrot.slane %v1963, 2
        %v1970 = vsel %vm1744, %v1968, %v1969
        %v1971 = vrot.slane %v1964, 2
        %v1972 = vsel %vm1744, %v1969, %v1971
        %1973 = vrot.lane.b32.xlu0 %v1970, 123
        %v1974 = vpop.permute.xlu0 %1973
        %1975 = vrot.lane.b32.xlu0 %v1972, 123
        %v1976 = vpop.permute.xlu0 %1975
        %v1979 = vadd.f32 %v1958, %v1974
        %v1980 = vadd.f32 %v1959, %v1976
        %s1981 = sld [smem:[#allocation11 + $0x14]]
        %v1982 = vstv %s1981
        %v1983 = vmul.f32 %v1982, %v1171
        %v1984 = vmul.f32 %v1982, %v1164
        %v1985 = vmul.f32 %v1982, %v1172
        %v1989 = vrot.slane %v1983, 2
        %v1990 = vrot.slane %v1984, 2
        %v1991 = vsel %vm1744, %v1989, %v1990
        %v1992 = vrot.slane %v1985, 2
        %v1993 = vsel %vm1744, %v1990, %v1992
        %1994 = vrot.lane.b32.xlu0 %v1991, 122
        %v1995 = vpop.permute.xlu0 %1994
        %1996 = vrot.lane.b32.xlu0 %v1993, 122
        %v1997 = vpop.permute.xlu0 %1996
        %v2000 = vadd.f32 %v1979, %v1995
        %v2001 = vadd.f32 %v1980, %v1997
        %s2002 = sld [smem:[#allocation11 + $0x45]]
        %v2003 = vstv %s2002
        %v2004 = vmul.f32 %v2003, %v1264
        %v2005 = vmul.f32 %v2003, %v1257
        %v2006 = vmul.f32 %v2003, %v1265
        %v2010 = vrot.slane %v2004, 2
        %v2011 = vrot.slane %v2005, 2
        %v2012 = vsel %vm1744, %v2010, %v2011
        %v2013 = vrot.slane %v2006, 2
        %v2014 = vsel %vm1744, %v2011, %v2013
        %2015 = vrot.lane.b32.xlu0 %v2012, 122
        %v2016 = vpop.permute.xlu0 %2015
        %2017 = vrot.lane.b32.xlu0 %v2014, 122
        %v2018 = vpop.permute.xlu0 %2017
        %v2021 = vadd.f32 %v2000, %v2016
        %v2022 = vadd.f32 %v2001, %v2018
        %s2023 = sld [smem:[#allocation11 + $0x15]]
        %v2024 = vstv %s2023
        %v2025 = vmul.f32 %v2024, %v1171
        %v2026 = vmul.f32 %v2024, %v1164
        %v2027 = vmul.f32 %v2024, %v1172
        %vm2031 = vcmask 1044480
        %v2032 = vrot.slane %v2025, 3
        %v2033 = vrot.slane %v2026, 3
        %v2034 = vsel %vm2031, %v2032, %v2033
        %v2035 = vrot.slane %v2027, 3
        %v2036 = vsel %vm2031, %v2033, %v2035
        %v2039 = vadd.f32 %v2021, %v2034
        %v2040 = vadd.f32 %v2022, %v2036
        %s2041 = sld [smem:[#allocation11 + $0x46]]
        %v2042 = vstv %s2041
        %v2043 = vmul.f32 %v2042, %v1264
        %v2044 = vmul.f32 %v2042, %v1257
        %v2045 = vmul.f32 %v2042, %v1265
        %v2049 = vrot.slane %v2043, 3
        %v2050 = vrot.slane %v2044, 3
        %v2051 = vsel %vm2031, %v2049, %v2050
        %v2052 = vrot.slane %v2045, 3
        %v2053 = vsel %vm2031, %v2050, %v2052
        %v2056 = vadd.f32 %v2039, %v2051
        %v2057 = vadd.f32 %v2040, %v2053
        %s2058 = sld [smem:[#allocation11 + $0x16]]
        %v2059 = vstv %s2058
        %v2060 = vmul.f32 %v2059, %v1171
        %v2061 = vmul.f32 %v2059, %v1164
        %v2062 = vmul.f32 %v2059, %v1172
        %v2066 = vrot.slane %v2060, 3
        %v2067 = vrot.slane %v2061, 3
        %v2068 = vsel %vm2031, %v2066, %v2067
        %v2069 = vrot.slane %v2062, 3
        %v2070 = vsel %vm2031, %v2067, %v2069
        %2071 = vrot.lane.b32.xlu0 %v2068, 127
        %v2072 = vpop.permute.xlu0 %2071
        %2073 = vrot.lane.b32.xlu0 %v2070, 127
        %v2074 = vpop.permute.xlu0 %2073
        %v2077 = vadd.f32 %v2056, %v2072
        %v2078 = vadd.f32 %v2057, %v2074
        %s2079 = sld [smem:[#allocation11 + $0x47]]
        %v2080 = vstv %s2079
        %v2081 = vmul.f32 %v2080, %v1264
        %v2082 = vmul.f32 %v2080, %v1257
        %v2083 = vmul.f32 %v2080, %v1265
        %v2087 = vrot.slane %v2081, 3
        %v2088 = vrot.slane %v2082, 3
        %v2089 = vsel %vm2031, %v2087, %v2088
        %v2090 = vrot.slane %v2083, 3
        %v2091 = vsel %vm2031, %v2088, %v2090
        %2092 = vrot.lane.b32.xlu0 %v2089, 127
        %v2093 = vpop.permute.xlu0 %2092
        %2094 = vrot.lane.b32.xlu0 %v2091, 127
        %v2095 = vpop.permute.xlu0 %2094
        %v2098 = vadd.f32 %v2077, %v2093
        %v2099 = vadd.f32 %v2078, %v2095
        %s2100 = sld [smem:[#allocation11 + $0x17]]
        %v2101 = vstv %s2100
        %v2102 = vmul.f32 %v2101, %v1171
        %v2103 = vmul.f32 %v2101, %v1164
        %v2104 = vmul.f32 %v2101, %v1172
        %v2108 = vrot.slane %v2102, 3
        %v2109 = vrot.slane %v2103, 3
        %v2110 = vsel %vm2031, %v2108, %v2109
        %v2111 = vrot.slane %v2104, 3
        %v2112 = vsel %vm2031, %v2109, %v2111
        %2113 = vrot.lane.b32.xlu0 %v2110, 126
        %v2114 = vpop.permute.xlu0 %2113
        %2115 = vrot.lane.b32.xlu0 %v2112, 126
        %v2116 = vpop.permute.xlu0 %2115
        %v2119 = vadd.f32 %v2098, %v2114
        %v2120 = vadd.f32 %v2099, %v2116
        %s2121 = sld [smem:[#allocation11 + $0x48]]
        %v2122 = vstv %s2121
        %v2123 = vmul.f32 %v2122, %v1264
        %v2124 = vmul.f32 %v2122, %v1257
        %v2125 = vmul.f32 %v2122, %v1265
        %v2129 = vrot.slane %v2123, 3
        %v2130 = vrot.slane %v2124, 3
        %v2131 = vsel %vm2031, %v2129, %v2130
        %v2132 = vrot.slane %v2125, 3
        %v2133 = vsel %vm2031, %v2130, %v2132
        %2134 = vrot.lane.b32.xlu0 %v2131, 126
        %v2135 = vpop.permute.xlu0 %2134
        %2136 = vrot.lane.b32.xlu0 %v2133, 126
        %v2137 = vpop.permute.xlu0 %2136
        %v2140 = vadd.f32 %v2119, %v2135
        %v2141 = vadd.f32 %v2120, %v2137
        %s2142 = sld [smem:[#allocation11 + $0x18]]
        %v2143 = vstv %s2142
        %v2144 = vmul.f32 %v2143, %v1171
        %v2145 = vmul.f32 %v2143, %v1164
        %v2146 = vmul.f32 %v2143, %v1172
        %v2150 = vrot.slane %v2144, 3
        %v2151 = vrot.slane %v2145, 3
        %v2152 = vsel %vm2031, %v2150, %v2151
        %v2153 = vrot.slane %v2146, 3
        %v2154 = vsel %vm2031, %v2151, %v2153
        %2155 = vrot.lane.b32.xlu0 %v2152, 125
        %v2156 = vpop.permute.xlu0 %2155
        %2157 = vrot.lane.b32.xlu0 %v2154, 125
        %v2158 = vpop.permute.xlu0 %2157
        %v2161 = vadd.f32 %v2140, %v2156
        %v2162 = vadd.f32 %v2141, %v2158
        %s2163 = sld [smem:[#allocation11 + $0x49]]
        %v2164 = vstv %s2163
        %v2165 = vmul.f32 %v2164, %v1264
        %v2166 = vmul.f32 %v2164, %v1257
        %v2167 = vmul.f32 %v2164, %v1265
        %v2171 = vrot.slane %v2165, 3
        %v2172 = vrot.slane %v2166, 3
        %v2173 = vsel %vm2031, %v2171, %v2172
        %v2174 = vrot.slane %v2167, 3
        %v2175 = vsel %vm2031, %v2172, %v2174
        %2176 = vrot.lane.b32.xlu0 %v2173, 125
        %v2177 = vpop.permute.xlu0 %2176
        %2178 = vrot.lane.b32.xlu0 %v2175, 125
        %v2179 = vpop.permute.xlu0 %2178
        %v2182 = vadd.f32 %v2161, %v2177
        %v2183 = vadd.f32 %v2162, %v2179
        %s2184 = sld [smem:[#allocation11 + $0x19]]
        %v2185 = vstv %s2184
        %v2186 = vmul.f32 %v2185, %v1171
        %v2187 = vmul.f32 %v2185, %v1164
        %v2188 = vmul.f32 %v2185, %v1172
        %v2192 = vrot.slane %v2186, 3
        %v2193 = vrot.slane %v2187, 3
        %v2194 = vsel %vm2031, %v2192, %v2193
        %v2195 = vrot.slane %v2188, 3
        %v2196 = vsel %vm2031, %v2193, %v2195
        %2197 = vrot.lane.b32.xlu0 %v2194, 124
        %v2198 = vpop.permute.xlu0 %2197
        %2199 = vrot.lane.b32.xlu0 %v2196, 124
        %v2200 = vpop.permute.xlu0 %2199
        %v2203 = vadd.f32 %v2182, %v2198
        %v2204 = vadd.f32 %v2183, %v2200
        %s2205 = sld [smem:[#allocation11 + $0x4a]]
        %v2206 = vstv %s2205
        %v2207 = vmul.f32 %v2206, %v1264
        %v2208 = vmul.f32 %v2206, %v1257
        %v2209 = vmul.f32 %v2206, %v1265
        %v2213 = vrot.slane %v2207, 3
        %v2214 = vrot.slane %v2208, 3
        %v2215 = vsel %vm2031, %v2213, %v2214
        %v2216 = vrot.slane %v2209, 3
        %v2217 = vsel %vm2031, %v2214, %v2216
        %2218 = vrot.lane.b32.xlu0 %v2215, 124
        %v2219 = vpop.permute.xlu0 %2218
        %2220 = vrot.lane.b32.xlu0 %v2217, 124
        %v2221 = vpop.permute.xlu0 %2220
        %v2224 = vadd.f32 %v2203, %v2219
        %v2225 = vadd.f32 %v2204, %v2221
        %s2226 = sld [smem:[#allocation11 + $0x1a]]
        %v2227 = vstv %s2226
        %v2228 = vmul.f32 %v2227, %v1171
        %v2229 = vmul.f32 %v2227, %v1164
        %v2230 = vmul.f32 %v2227, %v1172
        %v2234 = vrot.slane %v2228, 3
        %v2235 = vrot.slane %v2229, 3
        %v2236 = vsel %vm2031, %v2234, %v2235
        %v2237 = vrot.slane %v2230, 3
        %v2238 = vsel %vm2031, %v2235, %v2237
        %2239 = vrot.lane.b32.xlu0 %v2236, 123
        %v2240 = vpop.permute.xlu0 %2239
        %2241 = vrot.lane.b32.xlu0 %v2238, 123
        %v2242 = vpop.permute.xlu0 %2241
        %v2245 = vadd.f32 %v2224, %v2240
        %v2246 = vadd.f32 %v2225, %v2242
        %s2247 = sld [smem:[#allocation11 + $0x4b]]
        %v2248 = vstv %s2247
        %v2249 = vmul.f32 %v2248, %v1264
        %v2250 = vmul.f32 %v2248, %v1257
        %v2251 = vmul.f32 %v2248, %v1265
        %v2255 = vrot.slane %v2249, 3
        %v2256 = vrot.slane %v2250, 3
        %v2257 = vsel %vm2031, %v2255, %v2256
        %v2258 = vrot.slane %v2251, 3
        %v2259 = vsel %vm2031, %v2256, %v2258
        %2260 = vrot.lane.b32.xlu0 %v2257, 123
        %v2261 = vpop.permute.xlu0 %2260
        %2262 = vrot.lane.b32.xlu0 %v2259, 123
        %v2263 = vpop.permute.xlu0 %2262
        %v2266 = vadd.f32 %v2245, %v2261
        %v2267 = vadd.f32 %v2246, %v2263
        %s2268 = sld [smem:[#allocation11 + $0x1b]]
        %v2269 = vstv %s2268
        %v2270 = vmul.f32 %v2269, %v1171
        %v2271 = vmul.f32 %v2269, %v1164
        %v2272 = vmul.f32 %v2269, %v1172
        %v2276 = vrot.slane %v2270, 3
        %v2277 = vrot.slane %v2271, 3
        %v2278 = vsel %vm2031, %v2276, %v2277
        %v2279 = vrot.slane %v2272, 3
        %v2280 = vsel %vm2031, %v2277, %v2279
        %2281 = vrot.lane.b32.xlu0 %v2278, 122
        %v2282 = vpop.permute.xlu0 %2281
        %2283 = vrot.lane.b32.xlu0 %v2280, 122
        %v2284 = vpop.permute.xlu0 %2283
        %v2287 = vadd.f32 %v2266, %v2282
        %v2288 = vadd.f32 %v2267, %v2284
        %s2289 = sld [smem:[#allocation11 + $0x4c]]
        %v2290 = vstv %s2289
        %v2291 = vmul.f32 %v2290, %v1264
        %v2292 = vmul.f32 %v2290, %v1257
        %v2293 = vmul.f32 %v2290, %v1265
        %v2297 = vrot.slane %v2291, 3
        %v2298 = vrot.slane %v2292, 3
        %v2299 = vsel %vm2031, %v2297, %v2298
        %v2300 = vrot.slane %v2293, 3
        %v2301 = vsel %vm2031, %v2298, %v2300
        %2302 = vrot.lane.b32.xlu0 %v2299, 122
        %v2303 = vpop.permute.xlu0 %2302
        %2304 = vrot.lane.b32.xlu0 %v2301, 122
        %v2305 = vpop.permute.xlu0 %2304
        %v2308 = vadd.f32 %v2287, %v2303
        %v2309 = vadd.f32 %v2288, %v2305
        %s2310 = sld [smem:[#allocation11 + $0x1c]]
        %v2311 = vstv %s2310
        %v2312 = vmul.f32 %v2311, %v1171
        %v2313 = vmul.f32 %v2311, %v1164
        %v2314 = vmul.f32 %v2311, %v1172
        %vm2318 = vcmask 1043456
        %v2319 = vrot.slane %v2312, 4
        %v2320 = vrot.slane %v2313, 4
        %v2321 = vsel %vm2318, %v2319, %v2320
        %v2322 = vrot.slane %v2314, 4
        %v2323 = vsel %vm2318, %v2320, %v2322
        %v2326 = vadd.f32 %v2308, %v2321
        %v2327 = vadd.f32 %v2309, %v2323
        %s2328 = sld [smem:[#allocation11 + $0x4d]]
        %v2329 = vstv %s2328
        %v2330 = vmul.f32 %v2329, %v1264
        %v2331 = vmul.f32 %v2329, %v1257
        %v2332 = vmul.f32 %v2329, %v1265
        %v2336 = vrot.slane %v2330, 4
        %v2337 = vrot.slane %v2331, 4
        %v2338 = vsel %vm2318, %v2336, %v2337
        %v2339 = vrot.slane %v2332, 4
        %v2340 = vsel %vm2318, %v2337, %v2339
        %v2343 = vadd.f32 %v2326, %v2338
        %v2344 = vadd.f32 %v2327, %v2340
        %s2345 = sld [smem:[#allocation11 + $0x1d]]
        %v2346 = vstv %s2345
        %v2347 = vmul.f32 %v2346, %v1171
        %v2348 = vmul.f32 %v2346, %v1164
        %v2349 = vmul.f32 %v2346, %v1172
        %v2353 = vrot.slane %v2347, 4
        %v2354 = vrot.slane %v2348, 4
        %v2355 = vsel %vm2318, %v2353, %v2354
        %v2356 = vrot.slane %v2349, 4
        %v2357 = vsel %vm2318, %v2354, %v2356
        %2358 = vrot.lane.b32.xlu0 %v2355, 127
        %v2359 = vpop.permute.xlu0 %2358
        %2360 = vrot.lane.b32.xlu0 %v2357, 127
        %v2361 = vpop.permute.xlu0 %2360
        %v2364 = vadd.f32 %v2343, %v2359
        %v2365 = vadd.f32 %v2344, %v2361
        %s2366 = sld [smem:[#allocation11 + $0x4e]]
        %v2367 = vstv %s2366
        %v2368 = vmul.f32 %v2367, %v1264
        %v2369 = vmul.f32 %v2367, %v1257
        %v2370 = vmul.f32 %v2367, %v1265
        %v2374 = vrot.slane %v2368, 4
        %v2375 = vrot.slane %v2369, 4
        %v2376 = vsel %vm2318, %v2374, %v2375
        %v2377 = vrot.slane %v2370, 4
        %v2378 = vsel %vm2318, %v2375, %v2377
        %2379 = vrot.lane.b32.xlu0 %v2376, 127
        %v2380 = vpop.permute.xlu0 %2379
        %2381 = vrot.lane.b32.xlu0 %v2378, 127
        %v2382 = vpop.permute.xlu0 %2381
        %v2385 = vadd.f32 %v2364, %v2380
        %v2386 = vadd.f32 %v2365, %v2382
        %s2387 = sld [smem:[#allocation11 + $0x1e]]
        %v2388 = vstv %s2387
        %v2389 = vmul.f32 %v2388, %v1171
        %v2390 = vmul.f32 %v2388, %v1164
        %v2391 = vmul.f32 %v2388, %v1172
        %v2395 = vrot.slane %v2389, 4
        %v2396 = vrot.slane %v2390, 4
        %v2397 = vsel %vm2318, %v2395, %v2396
        %v2398 = vrot.slane %v2391, 4
        %v2399 = vsel %vm2318, %v2396, %v2398
        %2400 = vrot.lane.b32.xlu0 %v2397, 126
        %v2401 = vpop.permute.xlu0 %2400
        %2402 = vrot.lane.b32.xlu0 %v2399, 126
        %v2403 = vpop.permute.xlu0 %2402
        %v2406 = vadd.f32 %v2385, %v2401
        %v2407 = vadd.f32 %v2386, %v2403
        %s2408 = sld [smem:[#allocation11 + $0x4f]]
        %v2409 = vstv %s2408
        %v2410 = vmul.f32 %v2409, %v1264
        %v2411 = vmul.f32 %v2409, %v1257
        %v2412 = vmul.f32 %v2409, %v1265
        %v2416 = vrot.slane %v2410, 4
        %v2417 = vrot.slane %v2411, 4
        %v2418 = vsel %vm2318, %v2416, %v2417
        %v2419 = vrot.slane %v2412, 4
        %v2420 = vsel %vm2318, %v2417, %v2419
        %2421 = vrot.lane.b32.xlu0 %v2418, 126
        %v2422 = vpop.permute.xlu0 %2421
        %2423 = vrot.lane.b32.xlu0 %v2420, 126
        %v2424 = vpop.permute.xlu0 %2423
        %v2427 = vadd.f32 %v2406, %v2422
        %v2428 = vadd.f32 %v2407, %v2424
        %s2429 = sld [smem:[#allocation11 + $0x1f]]
        %v2430 = vstv %s2429
        %v2431 = vmul.f32 %v2430, %v1171
        %v2432 = vmul.f32 %v2430, %v1164
        %v2433 = vmul.f32 %v2430, %v1172
        %v2437 = vrot.slane %v2431, 4
        %v2438 = vrot.slane %v2432, 4
        %v2439 = vsel %vm2318, %v2437, %v2438
        %v2440 = vrot.slane %v2433, 4
        %v2441 = vsel %vm2318, %v2438, %v2440
        %2442 = vrot.lane.b32.xlu0 %v2439, 125
        %v2443 = vpop.permute.xlu0 %2442
        %2444 = vrot.lane.b32.xlu0 %v2441, 125
        %v2445 = vpop.permute.xlu0 %2444
        %v2448 = vadd.f32 %v2427, %v2443
        %v2449 = vadd.f32 %v2428, %v2445
        %s2450 = sld [smem:[#allocation11 + $0x50]]
        %v2451 = vstv %s2450
        %v2452 = vmul.f32 %v2451, %v1264
        %v2453 = vmul.f32 %v2451, %v1257
        %v2454 = vmul.f32 %v2451, %v1265
        %v2458 = vrot.slane %v2452, 4
        %v2459 = vrot.slane %v2453, 4
        %v2460 = vsel %vm2318, %v2458, %v2459
        %v2461 = vrot.slane %v2454, 4
        %v2462 = vsel %vm2318, %v2459, %v2461
        %2463 = vrot.lane.b32.xlu0 %v2460, 125
        %v2464 = vpop.permute.xlu0 %2463
        %2465 = vrot.lane.b32.xlu0 %v2462, 125
        %v2466 = vpop.permute.xlu0 %2465
        %v2469 = vadd.f32 %v2448, %v2464
        %v2470 = vadd.f32 %v2449, %v2466
        %s2471 = sld [smem:[#allocation11 + $0x20]]
        %v2472 = vstv %s2471
        %v2473 = vmul.f32 %v2472, %v1171
        %v2474 = vmul.f32 %v2472, %v1164
        %v2475 = vmul.f32 %v2472, %v1172
        %v2479 = vrot.slane %v2473, 4
        %v2480 = vrot.slane %v2474, 4
        %v2481 = vsel %vm2318, %v2479, %v2480
        %v2482 = vrot.slane %v2475, 4
        %v2483 = vsel %vm2318, %v2480, %v2482
        %2484 = vrot.lane.b32.xlu0 %v2481, 124
        %v2485 = vpop.permute.xlu0 %2484
        %2486 = vrot.lane.b32.xlu0 %v2483, 124
        %v2487 = vpop.permute.xlu0 %2486
        %v2490 = vadd.f32 %v2469, %v2485
        %v2491 = vadd.f32 %v2470, %v2487
        %s2492 = sld [smem:[#allocation11 + $0x51]]
        %v2493 = vstv %s2492
        %v2494 = vmul.f32 %v2493, %v1264
        %v2495 = vmul.f32 %v2493, %v1257
        %v2496 = vmul.f32 %v2493, %v1265
        %v2500 = vrot.slane %v2494, 4
        %v2501 = vrot.slane %v2495, 4
        %v2502 = vsel %vm2318, %v2500, %v2501
        %v2503 = vrot.slane %v2496, 4
        %v2504 = vsel %vm2318, %v2501, %v2503
        %2505 = vrot.lane.b32.xlu0 %v2502, 124
        %v2506 = vpop.permute.xlu0 %2505
        %2507 = vrot.lane.b32.xlu0 %v2504, 124
        %v2508 = vpop.permute.xlu0 %2507
        %v2511 = vadd.f32 %v2490, %v2506
        %v2512 = vadd.f32 %v2491, %v2508
        %s2513 = sld [smem:[#allocation11 + $0x21]]
        %v2514 = vstv %s2513
        %v2515 = vmul.f32 %v2514, %v1171
        %v2516 = vmul.f32 %v2514, %v1164
        %v2517 = vmul.f32 %v2514, %v1172
        %v2521 = vrot.slane %v2515, 4
        %v2522 = vrot.slane %v2516, 4
        %v2523 = vsel %vm2318, %v2521, %v2522
        %v2524 = vrot.slane %v2517, 4
        %v2525 = vsel %vm2318, %v2522, %v2524
        %2526 = vrot.lane.b32.xlu0 %v2523, 123
        %v2527 = vpop.permute.xlu0 %2526
        %2528 = vrot.lane.b32.xlu0 %v2525, 123
        %v2529 = vpop.permute.xlu0 %2528
        %v2532 = vadd.f32 %v2511, %v2527
        %v2533 = vadd.f32 %v2512, %v2529
        %s2534 = sld [smem:[#allocation11 + $0x52]]
        %v2535 = vstv %s2534
        %v2536 = vmul.f32 %v2535, %v1264
        %v2537 = vmul.f32 %v2535, %v1257
        %v2538 = vmul.f32 %v2535, %v1265
        %v2542 = vrot.slane %v2536, 4
        %v2543 = vrot.slane %v2537, 4
        %v2544 = vsel %vm2318, %v2542, %v2543
        %v2545 = vrot.slane %v2538, 4
        %v2546 = vsel %vm2318, %v2543, %v2545
        %2547 = vrot.lane.b32.xlu0 %v2544, 123
        %v2548 = vpop.permute.xlu0 %2547
        %2549 = vrot.lane.b32.xlu0 %v2546, 123
        %v2550 = vpop.permute.xlu0 %2549
        %v2553 = vadd.f32 %v2532, %v2548
        %v2554 = vadd.f32 %v2533, %v2550
        %s2555 = sld [smem:[#allocation11 + $0x22]]
        %v2556 = vstv %s2555
        %v2557 = vmul.f32 %v2556, %v1171
        %v2558 = vmul.f32 %v2556, %v1164
        %v2559 = vmul.f32 %v2556, %v1172
        %v2563 = vrot.slane %v2557, 4
        %v2564 = vrot.slane %v2558, 4
        %v2565 = vsel %vm2318, %v2563, %v2564
        %v2566 = vrot.slane %v2559, 4
        %v2567 = vsel %vm2318, %v2564, %v2566
        %2568 = vrot.lane.b32.xlu0 %v2565, 122
        %v2569 = vpop.permute.xlu0 %2568
        %2570 = vrot.lane.b32.xlu0 %v2567, 122
        %v2571 = vpop.permute.xlu0 %2570
        %v2574 = vadd.f32 %v2553, %v2569
        %v2575 = vadd.f32 %v2554, %v2571
        %s2576 = sld [smem:[#allocation11 + $0x53]]
        %v2577 = vstv %s2576
        %v2578 = vmul.f32 %v2577, %v1264
        %v2579 = vmul.f32 %v2577, %v1257
        %v2580 = vmul.f32 %v2577, %v1265
        %v2584 = vrot.slane %v2578, 4
        %v2585 = vrot.slane %v2579, 4
        %v2586 = vsel %vm2318, %v2584, %v2585
        %v2587 = vrot.slane %v2580, 4
        %v2588 = vsel %vm2318, %v2585, %v2587
        %2589 = vrot.lane.b32.xlu0 %v2586, 122
        %v2590 = vpop.permute.xlu0 %2589
        %2591 = vrot.lane.b32.xlu0 %v2588, 122
        %v2592 = vpop.permute.xlu0 %2591
        %v2595 = vadd.f32 %v2574, %v2590
        %v2596 = vadd.f32 %v2575, %v2592
        %s2597 = sld [smem:[#allocation11 + $0x23]]
        %v2598 = vstv %s2597
        %v2599 = vmul.f32 %v2598, %v1171
        %v2600 = vmul.f32 %v2598, %v1164
        %v2601 = vmul.f32 %v2598, %v1172
        %v2605 = vrot.slane %v2599, 5
        %v2606 = vrot.slane %v2600, 5
        %v2607 = vsel %vm1161, %v2605, %v2606
        %v2608 = vrot.slane %v2601, 5
        %v2609 = vsel %vm1161, %v2606, %v2608
        %v2612 = vadd.f32 %v2595, %v2607
        %v2613 = vadd.f32 %v2596, %v2609
        %s2614 = sld [smem:[#allocation11 + $0x54]]
        %v2615 = vstv %s2614
        %v2616 = vmul.f32 %v2615, %v1264
        %v2617 = vmul.f32 %v2615, %v1257
        %v2618 = vmul.f32 %v2615, %v1265
        %v2622 = vrot.slane %v2616, 5
        %v2623 = vrot.slane %v2617, 5
        %v2624 = vsel %vm1161, %v2622, %v2623
        %v2625 = vrot.slane %v2618, 5
        %v2626 = vsel %vm1161, %v2623, %v2625
        %v2629 = vadd.f32 %v2612, %v2624
        %v2630 = vadd.f32 %v2613, %v2626
        %s2631 = sld [smem:[#allocation11 + $0x24]]
        %v2632 = vstv %s2631
        %v2633 = vmul.f32 %v2632, %v1171
        %v2634 = vmul.f32 %v2632, %v1164
        %v2635 = vmul.f32 %v2632, %v1172
        %v2639 = vrot.slane %v2633, 5
        %v2640 = vrot.slane %v2634, 5
        %v2641 = vsel %vm1161, %v2639, %v2640
        %v2642 = vrot.slane %v2635, 5
        %v2643 = vsel %vm1161, %v2640, %v2642
        %2644 = vrot.lane.b32.xlu0 %v2641, 127
        %v2645 = vpop.permute.xlu0 %2644
        %2646 = vrot.lane.b32.xlu0 %v2643, 127
        %v2647 = vpop.permute.xlu0 %2646
        %v2650 = vadd.f32 %v2629, %v2645
        %v2651 = vadd.f32 %v2630, %v2647
        %s2652 = sld [smem:[#allocation11 + $0x55]]
        %v2653 = vstv %s2652
        %v2654 = vmul.f32 %v2653, %v1264
        %v2655 = vmul.f32 %v2653, %v1257
        %v2656 = vmul.f32 %v2653, %v1265
        %v2660 = vrot.slane %v2654, 5
        %v2661 = vrot.slane %v2655, 5
        %v2662 = vsel %vm1161, %v2660, %v2661
        %v2663 = vrot.slane %v2656, 5
        %v2664 = vsel %vm1161, %v2661, %v2663
        %2665 = vrot.lane.b32.xlu0 %v2662, 127
        %v2666 = vpop.permute.xlu0 %2665
        %2667 = vrot.lane.b32.xlu0 %v2664, 127
        %v2668 = vpop.permute.xlu0 %2667
        %v2671 = vadd.f32 %v2650, %v2666
        %v2672 = vadd.f32 %v2651, %v2668
        %s2673 = sld [smem:[#allocation11 + $0x25]]
        %v2674 = vstv %s2673
        %v2675 = vmul.f32 %v2674, %v1171
        %v2676 = vmul.f32 %v2674, %v1164
        %v2677 = vmul.f32 %v2674, %v1172
        %v2681 = vrot.slane %v2675, 5
        %v2682 = vrot.slane %v2676, 5
        %v2683 = vsel %vm1161, %v2681, %v2682
        %v2684 = vrot.slane %v2677, 5
        %v2685 = vsel %vm1161, %v2682, %v2684
        %2686 = vrot.lane.b32.xlu0 %v2683, 126
        %v2687 = vpop.permute.xlu0 %2686
        %2688 = vrot.lane.b32.xlu0 %v2685, 126
        %v2689 = vpop.permute.xlu0 %2688
        %v2692 = vadd.f32 %v2671, %v2687
        %v2693 = vadd.f32 %v2672, %v2689
        %s2694 = sld [smem:[#allocation11 + $0x56]]
        %v2695 = vstv %s2694
        %v2696 = vmul.f32 %v2695, %v1264
        %v2697 = vmul.f32 %v2695, %v1257
        %v2698 = vmul.f32 %v2695, %v1265
        %v2702 = vrot.slane %v2696, 5
        %v2703 = vrot.slane %v2697, 5
        %v2704 = vsel %vm1161, %v2702, %v2703
        %v2705 = vrot.slane %v2698, 5
        %v2706 = vsel %vm1161, %v2703, %v2705
        %2707 = vrot.lane.b32.xlu0 %v2704, 126
        %v2708 = vpop.permute.xlu0 %2707
        %2709 = vrot.lane.b32.xlu0 %v2706, 126
        %v2710 = vpop.permute.xlu0 %2709
        %v2713 = vadd.f32 %v2692, %v2708
        %v2714 = vadd.f32 %v2693, %v2710
        %s2715 = sld [smem:[#allocation11 + $0x26]]
        %v2716 = vstv %s2715
        %v2717 = vmul.f32 %v2716, %v1171
        %v2718 = vmul.f32 %v2716, %v1164
        %v2719 = vmul.f32 %v2716, %v1172
        %v2723 = vrot.slane %v2717, 5
        %v2724 = vrot.slane %v2718, 5
        %v2725 = vsel %vm1161, %v2723, %v2724
        %v2726 = vrot.slane %v2719, 5
        %v2727 = vsel %vm1161, %v2724, %v2726
        %2728 = vrot.lane.b32.xlu0 %v2725, 125
        %v2729 = vpop.permute.xlu0 %2728
        %2730 = vrot.lane.b32.xlu0 %v2727, 125
        %v2731 = vpop.permute.xlu0 %2730
        %v2734 = vadd.f32 %v2713, %v2729
        %v2735 = vadd.f32 %v2714, %v2731
        %s2736 = sld [smem:[#allocation11 + $0x57]]
        %v2737 = vstv %s2736
        %v2738 = vmul.f32 %v2737, %v1264
        %v2739 = vmul.f32 %v2737, %v1257
        %v2740 = vmul.f32 %v2737, %v1265
        %v2744 = vrot.slane %v2738, 5
        %v2745 = vrot.slane %v2739, 5
        %v2746 = vsel %vm1161, %v2744, %v2745
        %v2747 = vrot.slane %v2740, 5
        %v2748 = vsel %vm1161, %v2745, %v2747
        %2749 = vrot.lane.b32.xlu0 %v2746, 125
        %v2750 = vpop.permute.xlu0 %2749
        %2751 = vrot.lane.b32.xlu0 %v2748, 125
        %v2752 = vpop.permute.xlu0 %2751
        %v2755 = vadd.f32 %v2734, %v2750
        %v2756 = vadd.f32 %v2735, %v2752
        %s2757 = sld [smem:[#allocation11 + $0x27]]
        %v2758 = vstv %s2757
        %v2759 = vmul.f32 %v2758, %v1171
        %v2760 = vmul.f32 %v2758, %v1164
        %v2761 = vmul.f32 %v2758, %v1172
        %v2765 = vrot.slane %v2759, 5
        %v2766 = vrot.slane %v2760, 5
        %v2767 = vsel %vm1161, %v2765, %v2766
        %v2768 = vrot.slane %v2761, 5
        %v2769 = vsel %vm1161, %v2766, %v2768
        %2770 = vrot.lane.b32.xlu0 %v2767, 124
        %v2771 = vpop.permute.xlu0 %2770
        %2772 = vrot.lane.b32.xlu0 %v2769, 124
        %v2773 = vpop.permute.xlu0 %2772
        %v2776 = vadd.f32 %v2755, %v2771
        %v2777 = vadd.f32 %v2756, %v2773
        %s2778 = sld [smem:[#allocation11 + $0x58]]
        %v2779 = vstv %s2778
        %v2780 = vmul.f32 %v2779, %v1264
        %v2781 = vmul.f32 %v2779, %v1257
        %v2782 = vmul.f32 %v2779, %v1265
        %v2786 = vrot.slane %v2780, 5
        %v2787 = vrot.slane %v2781, 5
        %v2788 = vsel %vm1161, %v2786, %v2787
        %v2789 = vrot.slane %v2782, 5
        %v2790 = vsel %vm1161, %v2787, %v2789
        %2791 = vrot.lane.b32.xlu0 %v2788, 124
        %v2792 = vpop.permute.xlu0 %2791
        %2793 = vrot.lane.b32.xlu0 %v2790, 124
        %v2794 = vpop.permute.xlu0 %2793
        %v2797 = vadd.f32 %v2776, %v2792
        %v2798 = vadd.f32 %v2777, %v2794
        %s2799 = sld [smem:[#allocation11 + $0x28]]
        %v2800 = vstv %s2799
        %v2801 = vmul.f32 %v2800, %v1171
        %v2802 = vmul.f32 %v2800, %v1164
        %v2803 = vmul.f32 %v2800, %v1172
        %v2807 = vrot.slane %v2801, 5
        %v2808 = vrot.slane %v2802, 5
        %v2809 = vsel %vm1161, %v2807, %v2808
        %v2810 = vrot.slane %v2803, 5
        %v2811 = vsel %vm1161, %v2808, %v2810
        %2812 = vrot.lane.b32.xlu0 %v2809, 123
        %v2813 = vpop.permute.xlu0 %2812
        %2814 = vrot.lane.b32.xlu0 %v2811, 123
        %v2815 = vpop.permute.xlu0 %2814
        %v2818 = vadd.f32 %v2797, %v2813
        %v2819 = vadd.f32 %v2798, %v2815
        %s2820 = sld [smem:[#allocation11 + $0x59]]
        %v2821 = vstv %s2820
        %v2822 = vmul.f32 %v2821, %v1264
        %v2823 = vmul.f32 %v2821, %v1257
        %v2824 = vmul.f32 %v2821, %v1265
        %v2828 = vrot.slane %v2822, 5
        %v2829 = vrot.slane %v2823, 5
        %v2830 = vsel %vm1161, %v2828, %v2829
        %v2831 = vrot.slane %v2824, 5
        %v2832 = vsel %vm1161, %v2829, %v2831
        %2833 = vrot.lane.b32.xlu0 %v2830, 123
        %v2834 = vpop.permute.xlu0 %2833
        %2835 = vrot.lane.b32.xlu0 %v2832, 123
        %v2836 = vpop.permute.xlu0 %2835
        %v2839 = vadd.f32 %v2818, %v2834
        %v2840 = vadd.f32 %v2819, %v2836
        %s2841 = sld [smem:[#allocation11 + $0x29]]
        %v2842 = vstv %s2841
        %v2843 = vmul.f32 %v2842, %v1171
        %v2844 = vmul.f32 %v2842, %v1164
        %v2845 = vmul.f32 %v2842, %v1172
        %v2849 = vrot.slane %v2843, 5
        %v2850 = vrot.slane %v2844, 5
        %v2851 = vsel %vm1161, %v2849, %v2850
        %v2852 = vrot.slane %v2845, 5
        %v2853 = vsel %vm1161, %v2850, %v2852
        %2854 = vrot.lane.b32.xlu0 %v2851, 122
        %v2855 = vpop.permute.xlu0 %2854
        %2856 = vrot.lane.b32.xlu0 %v2853, 122
        %v2857 = vpop.permute.xlu0 %2856
        %v2860 = vadd.f32 %v2839, %v2855
        %v2861 = vadd.f32 %v2840, %v2857
        %s2862 = sld [smem:[#allocation11 + $0x5a]]
        %v2863 = vstv %s2862
        %v2864 = vmul.f32 %v2863, %v1264
        %v2865 = vmul.f32 %v2863, %v1257
        %v2866 = vmul.f32 %v2863, %v1265
        %v2870 = vrot.slane %v2864, 5
        %v2871 = vrot.slane %v2865, 5
        %v2872 = vsel %vm1161, %v2870, %v2871
        %v2873 = vrot.slane %v2866, 5
        %v2874 = vsel %vm1161, %v2871, %v2873
        %2875 = vrot.lane.b32.xlu0 %v2872, 122
        %v2876 = vpop.permute.xlu0 %2875
        %2877 = vrot.lane.b32.xlu0 %v2874, 122
        %v2878 = vpop.permute.xlu0 %2877
        %v2881 = vadd.f32 %v2860, %v2876
        %v2882 = vadd.f32 %v2861, %v2878
        %s2883 = sld [smem:[#allocation11 + $0x2a]]
        %v2884 = vstv %s2883
        %v2885 = vmul.f32 %v2884, %v1171
        %v2886 = vmul.f32 %v2884, %v1164
        %v2887 = vmul.f32 %v2884, %v1172
        %v2891 = vrot.slane %v2885, 6
        %v2892 = vrot.slane %v2886, 6
        %v2893 = vsel %vm1150, %v2891, %v2892
        %v2894 = vrot.slane %v2887, 6
        %v2895 = vsel %vm1150, %v2892, %v2894
        %v2898 = vadd.f32 %v2881, %v2893
        %v2899 = vadd.f32 %v2882, %v2895
        %s2900 = sld [smem:[#allocation11 + $0x5b]]
        %v2901 = vstv %s2900
        %v2902 = vmul.f32 %v2901, %v1264
        %v2903 = vmul.f32 %v2901, %v1257
        %v2904 = vmul.f32 %v2901, %v1265
        %v2908 = vrot.slane %v2902, 6
        %v2909 = vrot.slane %v2903, 6
        %v2910 = vsel %vm1150, %v2908, %v2909
        %v2911 = vrot.slane %v2904, 6
        %v2912 = vsel %vm1150, %v2909, %v2911
        %v2915 = vadd.f32 %v2898, %v2910
        %v2916 = vadd.f32 %v2899, %v2912
        %s2917 = sld [smem:[#allocation11 + $0x2b]]
        %v2918 = vstv %s2917
        %v2919 = vmul.f32 %v2918, %v1171
        %v2920 = vmul.f32 %v2918, %v1164
        %v2921 = vmul.f32 %v2918, %v1172
        %v2925 = vrot.slane %v2919, 6
        %v2926 = vrot.slane %v2920, 6
        %v2927 = vsel %vm1150, %v2925, %v2926
        %v2928 = vrot.slane %v2921, 6
        %v2929 = vsel %vm1150, %v2926, %v2928
        %2930 = vrot.lane.b32.xlu0 %v2927, 127
        %v2931 = vpop.permute.xlu0 %2930
        %2932 = vrot.lane.b32.xlu0 %v2929, 127
        %v2933 = vpop.permute.xlu0 %2932
        %v2936 = vadd.f32 %v2915, %v2931
        %v2937 = vadd.f32 %v2916, %v2933
        %s2938 = sld [smem:[#allocation11 + $0x5c]]
        %v2939 = vstv %s2938
        %v2940 = vmul.f32 %v2939, %v1264
        %v2941 = vmul.f32 %v2939, %v1257
        %v2942 = vmul.f32 %v2939, %v1265
        %v2946 = vrot.slane %v2940, 6
        %v2947 = vrot.slane %v2941, 6
        %v2948 = vsel %vm1150, %v2946, %v2947
        %v2949 = vrot.slane %v2942, 6
        %v2950 = vsel %vm1150, %v2947, %v2949
        %2951 = vrot.lane.b32.xlu0 %v2948, 127
        %v2952 = vpop.permute.xlu0 %2951
        %2953 = vrot.lane.b32.xlu0 %v2950, 127
        %v2954 = vpop.permute.xlu0 %2953
        %v2957 = vadd.f32 %v2936, %v2952
        %v2958 = vadd.f32 %v2937, %v2954
        %s2959 = sld [smem:[#allocation11 + $0x2c]]
        %v2960 = vstv %s2959
        %v2961 = vmul.f32 %v2960, %v1171
        %v2962 = vmul.f32 %v2960, %v1164
        %v2963 = vmul.f32 %v2960, %v1172
        %v2967 = vrot.slane %v2961, 6
        %v2968 = vrot.slane %v2962, 6
        %v2969 = vsel %vm1150, %v2967, %v2968
        %v2970 = vrot.slane %v2963, 6
        %v2971 = vsel %vm1150, %v2968, %v2970
        %2972 = vrot.lane.b32.xlu0 %v2969, 126
        %v2973 = vpop.permute.xlu0 %2972
        %2974 = vrot.lane.b32.xlu0 %v2971, 126
        %v2975 = vpop.permute.xlu0 %2974
        %v2978 = vadd.f32 %v2957, %v2973
        %v2979 = vadd.f32 %v2958, %v2975
        %s2980 = sld [smem:[#allocation11 + $0x5d]]
        %v2981 = vstv %s2980
        %v2982 = vmul.f32 %v2981, %v1264
        %v2983 = vmul.f32 %v2981, %v1257
        %v2984 = vmul.f32 %v2981, %v1265
        %v2988 = vrot.slane %v2982, 6
        %v2989 = vrot.slane %v2983, 6
        %v2990 = vsel %vm1150, %v2988, %v2989
        %v2991 = vrot.slane %v2984, 6
        %v2992 = vsel %vm1150, %v2989, %v2991
        %2993 = vrot.lane.b32.xlu0 %v2990, 126
        %v2994 = vpop.permute.xlu0 %2993
        %2995 = vrot.lane.b32.xlu0 %v2992, 126
        %v2996 = vpop.permute.xlu0 %2995
        %v2999 = vadd.f32 %v2978, %v2994
        %v3000 = vadd.f32 %v2979, %v2996
        %s3001 = sld [smem:[#allocation11 + $0x2d]]
        %v3002 = vstv %s3001
        %v3003 = vmul.f32 %v3002, %v1171
        %v3004 = vmul.f32 %v3002, %v1164
        %v3005 = vmul.f32 %v3002, %v1172
        %v3009 = vrot.slane %v3003, 6
        %v3010 = vrot.slane %v3004, 6
        %v3011 = vsel %vm1150, %v3009, %v3010
        %v3012 = vrot.slane %v3005, 6
        %v3013 = vsel %vm1150, %v3010, %v3012
        %3014 = vrot.lane.b32.xlu0 %v3011, 125
        %v3015 = vpop.permute.xlu0 %3014
        %3016 = vrot.lane.b32.xlu0 %v3013, 125
        %v3017 = vpop.permute.xlu0 %3016
        %v3020 = vadd.f32 %v2999, %v3015
        %v3021 = vadd.f32 %v3000, %v3017
        %s3022 = sld [smem:[#allocation11 + $0x5e]]
        %v3023 = vstv %s3022
        %v3024 = vmul.f32 %v3023, %v1264
        %v3025 = vmul.f32 %v3023, %v1257
        %v3026 = vmul.f32 %v3023, %v1265
        %v3030 = vrot.slane %v3024, 6
        %v3031 = vrot.slane %v3025, 6
        %v3032 = vsel %vm1150, %v3030, %v3031
        %v3033 = vrot.slane %v3026, 6
        %v3034 = vsel %vm1150, %v3031, %v3033
        %3035 = vrot.lane.b32.xlu0 %v3032, 125
        %v3036 = vpop.permute.xlu0 %3035
        %3037 = vrot.lane.b32.xlu0 %v3034, 125
        %v3038 = vpop.permute.xlu0 %3037
        %v3041 = vadd.f32 %v3020, %v3036
        %v3042 = vadd.f32 %v3021, %v3038
        %s3043 = sld [smem:[#allocation11 + $0x2e]]
        %v3044 = vstv %s3043
        %v3045 = vmul.f32 %v3044, %v1171
        %v3046 = vmul.f32 %v3044, %v1164
        %v3047 = vmul.f32 %v3044, %v1172
        %v3051 = vrot.slane %v3045, 6
        %v3052 = vrot.slane %v3046, 6
        %v3053 = vsel %vm1150, %v3051, %v3052
        %v3054 = vrot.slane %v3047, 6
        %v3055 = vsel %vm1150, %v3052, %v3054
        %3056 = vrot.lane.b32.xlu0 %v3053, 124
        %v3057 = vpop.permute.xlu0 %3056
        %3058 = vrot.lane.b32.xlu0 %v3055, 124
        %v3059 = vpop.permute.xlu0 %3058
        %v3062 = vadd.f32 %v3041, %v3057
        %v3063 = vadd.f32 %v3042, %v3059
        %s3064 = sld [smem:[#allocation11 + $0x5f]]
        %v3065 = vstv %s3064
        %v3066 = vmul.f32 %v3065, %v1264
        %v3067 = vmul.f32 %v3065, %v1257
        %v3068 = vmul.f32 %v3065, %v1265
        %v3072 = vrot.slane %v3066, 6
        %v3073 = vrot.slane %v3067, 6
        %v3074 = vsel %vm1150, %v3072, %v3073
        %v3075 = vrot.slane %v3068, 6
        %v3076 = vsel %vm1150, %v3073, %v3075
        %3077 = vrot.lane.b32.xlu0 %v3074, 124
        %v3078 = vpop.permute.xlu0 %3077
        %3079 = vrot.lane.b32.xlu0 %v3076, 124
        %v3080 = vpop.permute.xlu0 %3079
        %v3083 = vadd.f32 %v3062, %v3078
        %v3084 = vadd.f32 %v3063, %v3080
        %s3085 = sld [smem:[#allocation11 + $0x2f]]
        %v3086 = vstv %s3085
        %v3087 = vmul.f32 %v3086, %v1171
        %v3088 = vmul.f32 %v3086, %v1164
        %v3089 = vmul.f32 %v3086, %v1172
        %v3093 = vrot.slane %v3087, 6
        %v3094 = vrot.slane %v3088, 6
        %v3095 = vsel %vm1150, %v3093, %v3094
        %v3096 = vrot.slane %v3089, 6
        %v3097 = vsel %vm1150, %v3094, %v3096
        %3098 = vrot.lane.b32.xlu0 %v3095, 123
        %v3099 = vpop.permute.xlu0 %3098
        %3100 = vrot.lane.b32.xlu0 %v3097, 123
        %v3101 = vpop.permute.xlu0 %3100
        %v3104 = vadd.f32 %v3083, %v3099
        %v3105 = vadd.f32 %v3084, %v3101
        %s3106 = sld [smem:[#allocation11 + $0x60]]
        %v3107 = vstv %s3106
        %v3108 = vmul.f32 %v3107, %v1264
        %v3109 = vmul.f32 %v3107, %v1257
        %v3110 = vmul.f32 %v3107, %v1265
        %v3114 = vrot.slane %v3108, 6
        %v3115 = vrot.slane %v3109, 6
        %v3116 = vsel %vm1150, %v3114, %v3115
        %v3117 = vrot.slane %v3110, 6
        %v3118 = vsel %vm1150, %v3115, %v3117
        %3119 = vrot.lane.b32.xlu0 %v3116, 123
        %v3120 = vpop.permute.xlu0 %3119
        %3121 = vrot.lane.b32.xlu0 %v3118, 123
        %v3122 = vpop.permute.xlu0 %3121
        %v3125 = vadd.f32 %v3104, %v3120
        %v3126 = vadd.f32 %v3105, %v3122
        %s3127 = sld [smem:[#allocation11 + $0x30]]
        %v3128 = vstv %s3127
        %v3129 = vmul.f32 %v3128, %v1171
        %v3130 = vmul.f32 %v3128, %v1164
        %v3131 = vmul.f32 %v3128, %v1172
        %v3135 = vrot.slane %v3129, 6
        %v3136 = vrot.slane %v3130, 6
        %v3137 = vsel %vm1150, %v3135, %v3136
        %v3138 = vrot.slane %v3131, 6
        %v3139 = vsel %vm1150, %v3136, %v3138
        %3140 = vrot.lane.b32.xlu0 %v3137, 122
        %v3141 = vpop.permute.xlu0 %3140
        %3142 = vrot.lane.b32.xlu0 %v3139, 122
        %v3143 = vpop.permute.xlu0 %3142
        %v3146 = vadd.f32 %v3125, %v3141
        %v3147 = vadd.f32 %v3126, %v3143
        %s3148 = sld [smem:[#allocation11 + $0x61]]
        %v3149 = vstv %s3148
        %v3150 = vmul.f32 %v3149, %v1264
        %v3151 = vmul.f32 %v3149, %v1257
        %v3152 = vmul.f32 %v3149, %v1265
        %v3156 = vrot.slane %v3150, 6
        %v3157 = vrot.slane %v3151, 6
        %v3158 = vsel %vm1150, %v3156, %v3157
        %v3159 = vrot.slane %v3152, 6
        %v3160 = vsel %vm1150, %v3157, %v3159
        %3161 = vrot.lane.b32.xlu0 %v3158, 122
        %v3162 = vpop.permute.xlu0 %3161
        %3163 = vrot.lane.b32.xlu0 %v3160, 122
        %v3164 = vpop.permute.xlu0 %3163
        %v3167 = vadd.f32 %v3146, %v3162
        %v3168 = vadd.f32 %v3147, %v3164
        %3170 = vset.pattern.permute.xlu0 0
        %3171 = vperm.xlu0 %3170, %v3167
        %v3172 = vpop.permute.xlu0 %3171
        %3175 = vset.pattern.permute.xlu0 0
        %3176 = vperm.xlu0 %3175, %v3168
        %v3177 = vpop.permute.xlu0 %3176
        %3179 = vset.pattern.permute.xlu0 1
        %3180 = vperm.xlu0 %3179, %v3167
        %v3181 = vpop.permute.xlu0 %3180
        %3183 = vset.pattern.permute.xlu0 1
        %3184 = vperm.xlu0 %3183, %v3168
        %v3185 = vpop.permute.xlu0 %3184
        %3187 = vset.pattern.permute.xlu0 2
        %3188 = vperm.xlu0 %3187, %v3167
        %v3189 = vpop.permute.xlu0 %3188
        %3191 = vset.pattern.permute.xlu0 2
        %3192 = vperm.xlu0 %3191, %v3168
        %v3193 = vpop.permute.xlu0 %3192
        %3195 = vset.pattern.permute.xlu0 3
        %3196 = vperm.xlu0 %3195, %v3167
        %v3197 = vpop.permute.xlu0 %3196
        %3199 = vset.pattern.permute.xlu0 3
        %3200 = vperm.xlu0 %3199, %v3168
        %v3201 = vpop.permute.xlu0 %3200
        %3203 = vset.pattern.permute.xlu0 4
        %3204 = vperm.xlu0 %3203, %v3167
        %v3205 = vpop.permute.xlu0 %3204
        %3207 = vset.pattern.permute.xlu0 4
        %3208 = vperm.xlu0 %3207, %v3168
        %v3209 = vpop.permute.xlu0 %3208
        %3211 = vset.pattern.permute.xlu0 5
        %3212 = vperm.xlu0 %3211, %v3167
        %v3213 = vpop.permute.xlu0 %3212
        %3215 = vset.pattern.permute.xlu0 5
        %3216 = vperm.xlu0 %3215, %v3168
        %v3217 = vpop.permute.xlu0 %3216
        %3219 = vset.pattern.permute.xlu0 6
        %3220 = vperm.xlu0 %3219, %v3167
        %v3221 = vpop.permute.xlu0 %3220
        %3223 = vset.pattern.permute.xlu0 6
        %3224 = vperm.xlu0 %3223, %v3168
        %v3225 = vpop.permute.xlu0 %3224
        %3227 = vset.pattern.permute.xlu0 7
        %3228 = vperm.xlu0 %3227, %v3167
        %v3229 = vpop.permute.xlu0 %3228
        %3231 = vset.pattern.permute.xlu0 7
        %3232 = vperm.xlu0 %3231, %v3168
        %v3233 = vpop.permute.xlu0 %3232
        %3235 = vset.pattern.permute.xlu0 8
        %3236 = vperm.xlu0 %3235, %v3167
        %v3237 = vpop.permute.xlu0 %3236
        %3239 = vset.pattern.permute.xlu0 8
        %3240 = vperm.xlu0 %3239, %v3168
        %v3241 = vpop.permute.xlu0 %3240
        %3243 = vset.pattern.permute.xlu0 9
        %3244 = vperm.xlu0 %3243, %v3167
        %v3245 = vpop.permute.xlu0 %3244
        %3247 = vset.pattern.permute.xlu0 9
        %3248 = vperm.xlu0 %3247, %v3168
        %v3249 = vpop.permute.xlu0 %3248
        %3251 = vset.pattern.permute.xlu0 10
        %3252 = vperm.xlu0 %3251, %v3167
        %v3253 = vpop.permute.xlu0 %3252
        %3255 = vset.pattern.permute.xlu0 10
        %3256 = vperm.xlu0 %3255, %v3168
        %v3257 = vpop.permute.xlu0 %3256
        %3259 = vset.pattern.permute.xlu0 11
        %3260 = vperm.xlu0 %3259, %v3167
        %v3261 = vpop.permute.xlu0 %3260
        %3263 = vset.pattern.permute.xlu0 11
        %3264 = vperm.xlu0 %3263, %v3168
        %v3265 = vpop.permute.xlu0 %3264
        %3267 = vset.pattern.permute.xlu0 12
        %3268 = vperm.xlu0 %3267, %v3167
        %v3269 = vpop.permute.xlu0 %3268
        %3271 = vset.pattern.permute.xlu0 12
        %3272 = vperm.xlu0 %3271, %v3168
        %v3273 = vpop.permute.xlu0 %3272
        %3275 = vset.pattern.permute.xlu0 13
        %3276 = vperm.xlu0 %3275, %v3167
        %v3277 = vpop.permute.xlu0 %3276
        %3279 = vset.pattern.permute.xlu0 13
        %3280 = vperm.xlu0 %3279, %v3168
        %v3281 = vpop.permute.xlu0 %3280
        %3283 = vset.pattern.permute.xlu0 14
        %3284 = vperm.xlu0 %3283, %v3167
        %v3285 = vpop.permute.xlu0 %3284
        %3287 = vset.pattern.permute.xlu0 14
        %3288 = vperm.xlu0 %3287, %v3168
        %v3289 = vpop.permute.xlu0 %3288
        %3291 = vset.pattern.permute.xlu0 15
        %3292 = vperm.xlu0 %3291, %v3167
        %v3293 = vpop.permute.xlu0 %3292
        %3295 = vset.pattern.permute.xlu0 15
        %3296 = vperm.xlu0 %3295, %v3168
        %v3297 = vpop.permute.xlu0 %3296
        %v3299 = vsel %vm682, %v3172, %v3181
        %v3300 = vsel %vm682, %v3177, %v3185
        %vm3301 = vcmask 261120
        %v3302 = vsel %vm3301, %v3299, %v3189
        %v3303 = vsel %vm3301, %v3300, %v3193
        %vm3304 = vcmask 392192
        %v3305 = vsel %vm3304, %v3302, %v3197
        %v3306 = vsel %vm3304, %v3303, %v3201
        %vm3307 = vcmask 523264
        %v3308 = vsel %vm3307, %v3305, %v3205
        %v3309 = vsel %vm3307, %v3306, %v3209
        %vm3310 = vcmask 654336
        %v3311 = vsel %vm3310, %v3308, %v3213
        %v3312 = vsel %vm3310, %v3309, %v3217
        %vm3313 = vcmask 785408
        %v3314 = vsel %vm3313, %v3311, %v3221
        %v3315 = vsel %vm3313, %v3312, %v3225
        %vm3316 = vcmask 916480
        %v3317 = vsel %vm3316, %v3314, %v3229
        %v3318 = vsel %vm3316, %v3315, %v3233
        %v3319 = vsel %vm682, %v3237, %v3245
        %v3320 = vsel %vm682, %v3241, %v3249
        %v3321 = vsel %vm3301, %v3319, %v3253
        %v3322 = vsel %vm3301, %v3320, %v3257
        %v3323 = vsel %vm3304, %v3321, %v3261
        %v3324 = vsel %vm3304, %v3322, %v3265
        %v3325 = vsel %vm3307, %v3323, %v3269
        %v3326 = vsel %vm3307, %v3324, %v3273
        %v3327 = vsel %vm3310, %v3325, %v3277
        %v3328 = vsel %vm3310, %v3326, %v3281
        %v3329 = vsel %vm3313, %v3327, %v3285
        %v3330 = vsel %vm3313, %v3328, %v3289
        %v3331 = vsel %vm3316, %v3329, %v3293
        %v3332 = vsel %vm3316, %v3330, %v3297
        %v3333 = vlaneseq
        %v3334 = vshrl.u32 %v3333, 7
        %v3335 = vsub.s32 0, %v3334
        %v3336 = vrot.slane %v678, %v3335
        %v3337 = vlaneseq
        %v3338 = vshrl.u32 %v3337, 7
        %v3339 = vsub.s32 0, %v3338
        %v3340 = vrot.slane %v680, %v3339
        %v3341 = vadd.f32 %v3317, %v3336
        %v3342 = vadd.f32 %v3331, %v3340
        %v3343 = vadd.f32 %v3318, %v3336
        %v3344 = vadd.f32 %v3332, %v3340
        %v3345 = vsel %vm682, %v742, %v700
        %v3346 = vsel %vm682, %v744, %v702
        %v3347 = vsel %vm3301, %v3345, %v826
        %v3348 = vsel %vm3301, %v3346, %v828
        %v3349 = vsel %vm682, %v963, %v923
        %v3350 = vsel %vm682, %v965, %v925
        %v3351 = vsel %vm3301, %v3349, %v883
        %v3352 = vsel %vm3301, %v3350, %v885
        %v3353 = vsel %vm3304, %v784, %v943
        %v3354 = vsel %vm3304, %v786, %v945
        %3357 = vrot.lane.b32.xlu0 %v3351, 48
        %v3358 = vpop.permute.xlu0 %3357
        %3359 = vrot.lane.b32.xlu0 %v3352, 48
        %v3360 = vpop.permute.xlu0 %3359
        %v3363 = vsel %vm3304, %v3347, %v784
        %v3364 = vsel %vm3304, %v3348, %v786
        %v3365 = vsel %vm3304, %v943, %v3358
        %v3366 = vsel %vm3304, %v945, %v3360
        %v3369 = vrot.slane %v3363, 3
        %v3370 = vrot.slane %v3353, 3
        %v3371 = vrot.slane %v3365, 3
        %v3375 = vrot.slane %v3363, 1
        %v3376 = vrot.slane %v3353, 1
        %v3377 = vrot.slane %v3365, 1
        %v3381 = vrot.slane %v3363, 7
        %v3382 = vrot.slane %v3353, 7
        %v3383 = vrot.slane %v3365, 7
        %v3387 = vsel %vm1148, %v3369, %v3375
        %v3388 = vsel %vm1148, %v3370, %v3376
        %v3389 = vsel %vm1148, %v3371, %v3377
        %v3390 = vsel %vm1150, %v3387, %v3381
        %v3391 = vsel %vm1150, %v3388, %v3382
        %v3392 = vsel %vm1150, %v3389, %v3383
        %v3395 = vrot.slane %v3364, 6
        %v3396 = vrot.slane %v3354, 6
        %v3397 = vrot.slane %v3366, 6
        %v3401 = vrot.slane %v3364, 4
        %v3402 = vrot.slane %v3354, 4
        %v3403 = vrot.slane %v3366, 4
        %v3407 = vrot.slane %v3364, 2
        %v3408 = vrot.slane %v3354, 2
        %v3409 = vrot.slane %v3366, 2
        %v3413 = vsel %vm1148, %v3395, %v3401
        %v3414 = vsel %vm1148, %v3396, %v3402
        %v3415 = vsel %vm1148, %v3397, %v3403
        %v3416 = vsel %vm1150, %v3413, %v3407
        %v3417 = vsel %vm1150, %v3414, %v3408
        %v3418 = vsel %vm1150, %v3415, %v3409
        %v3419 = vrot.slane %v3363, 5
        %v3420 = vrot.slane %v3353, 5
        %v3421 = vrot.slane %v3365, 5
        %v3422 = vrot.slane %v3364, 5
        %v3423 = vsel %vm1161, %v3419, %v3422
        %v3424 = vrot.slane %v3354, 5
        %v3425 = vsel %vm1161, %v3420, %v3424
        %v3426 = vrot.slane %v3366, 5
        %v3427 = vsel %vm1161, %v3421, %v3426
        %v3440 = vrot.slane %v3416, 5
        %v3441 = vrot.slane %v3417, 5
        %v3442 = vrot.slane %v3418, 5
        %v3446 = vsel %vm1161, %v3390, %v3419
        %v3447 = vsel %vm1161, %v3391, %v3420
        %v3448 = vsel %vm1161, %v3392, %v3421
        %v3449 = vsel %vm1161, %v3422, %v3440
        %v3450 = vsel %vm1161, %v3424, %v3441
        %v3451 = vsel %vm1161, %v3426, %v3442
        %3452 = vst [vmem:[#allocation2] sm:$0xff] %v3446
        %3453 = vst [vmem:[#allocation2 + $0x8] sm:$0xff] %v3447
        %3454 = vst.msk [vmem:[#allocation2 + $0x10] sm:$0xff] %vm3313, %v3448
        %3455 = vst [vmem:[#allocation2 + $0x18] sm:$0xff] %v3423
        %3456 = vst [vmem:[#allocation2 + $0x20] sm:$0xff] %v3425
        %3457 = vst.msk [vmem:[#allocation2 + $0x28] sm:$0xff] %vm3313, %v3427
        %3458 = vst [vmem:[#allocation2 + $0x30] sm:$0x3f] %v3449
        %3459 = vst [vmem:[#allocation2 + $0x38] sm:$0x3f] %v3450
        %vm3460 = vcmask 783360
        %3461 = vst.msk [vmem:[#allocation2 + $0x40] sm:$0x3f] %vm3460, %v3451
        %3464 = vrot.lane.b32.xlu0 %v3341, 80
        %v3465 = vpop.permute.xlu0 %3464
        %3466 = vrot.lane.b32.xlu0 %v3343, 80
        %v3467 = vpop.permute.xlu0 %3466
        %3470 = vrot.lane.b32.xlu0 %v3341, 112
        %v3471 = vpop.permute.xlu0 %3470
        %3472 = vrot.lane.b32.xlu0 %v3343, 112
        %v3473 = vpop.permute.xlu0 %3472
        %3476 = vrot.lane.b32.xlu0 %v3341, 16
        %v3477 = vpop.permute.xlu0 %3476
        %3478 = vrot.lane.b32.xlu0 %v3343, 16
        %v3479 = vpop.permute.xlu0 %3478
        %v3482 = vsel %vm682, %v3465, %v3471
        %v3483 = vsel %vm682, %v3467, %v3473
        %v3484 = vsel %vm3301, %v3482, %v3477
        %v3485 = vsel %vm3301, %v3483, %v3479
        %3488 = vrot.lane.b32.xlu0 %v3342, 32
        %v3489 = vpop.permute.xlu0 %3488
        %3490 = vrot.lane.b32.xlu0 %v3344, 32
        %v3491 = vpop.permute.xlu0 %3490
        %3494 = vrot.lane.b32.xlu0 %v3342, 64
        %v3495 = vpop.permute.xlu0 %3494
        %3496 = vrot.lane.b32.xlu0 %v3344, 64
        %v3497 = vpop.permute.xlu0 %3496
        %3500 = vrot.lane.b32.xlu0 %v3342, 96
        %v3501 = vpop.permute.xlu0 %3500
        %3502 = vrot.lane.b32.xlu0 %v3344, 96
        %v3503 = vpop.permute.xlu0 %3502
        %v3506 = vsel %vm682, %v3489, %v3495
        %v3507 = vsel %vm682, %v3491, %v3497
        %v3508 = vsel %vm3301, %v3506, %v3501
        %v3509 = vsel %vm3301, %v3507, %v3503
        %3510 = vrot.lane.b32.xlu0 %v3341, 48
        %v3511 = vpop.permute.xlu0 %3510
        %3512 = vrot.lane.b32.xlu0 %v3342, 48
        %v3513 = vpop.permute.xlu0 %3512
        %3514 = vrot.lane.b32.xlu0 %v3343, 48
        %v3515 = vpop.permute.xlu0 %3514
        %3516 = vrot.lane.b32.xlu0 %v3344, 48
        %v3517 = vpop.permute.xlu0 %3516
        %v3518 = vsel %vm3304, %v3511, %v3513
        %v3519 = vsel %vm3304, %v3515, %v3517
        %3526 = vrot.lane.b32.xlu0 %v3508, 48
        %v3527 = vpop.permute.xlu0 %3526
        %3528 = vrot.lane.b32.xlu0 %v3509, 48
        %v3529 = vpop.permute.xlu0 %3528
        %v3532 = vsel %vm3304, %v3484, %v3511
        %v3533 = vsel %vm3304, %v3485, %v3515
        %v3534 = vsel %vm3304, %v3513, %v3527
        %v3535 = vsel %vm3304, %v3517, %v3529
        %v3538 = vrot.slane %v3532, 3
        %v3539 = vrot.slane %v3518, 3
        %v3540 = vrot.slane %v3534, 3
        %v3544 = vrot.slane %v3532, 1
        %v3545 = vrot.slane %v3518, 1
        %v3546 = vrot.slane %v3534, 1
        %v3550 = vrot.slane %v3532, 7
        %v3551 = vrot.slane %v3518, 7
        %v3552 = vrot.slane %v3534, 7
        %v3556 = vsel %vm1148, %v3538, %v3544
        %v3557 = vsel %vm1148, %v3539, %v3545
        %v3558 = vsel %vm1148, %v3540, %v3546
        %v3559 = vsel %vm1150, %v3556, %v3550
        %v3560 = vsel %vm1150, %v3557, %v3551
        %v3561 = vsel %vm1150, %v3558, %v3552
        %v3564 = vrot.slane %v3533, 6
        %v3565 = vrot.slane %v3519, 6
        %v3566 = vrot.slane %v3535, 6
        %v3570 = vrot.slane %v3533, 4
        %v3571 = vrot.slane %v3519, 4
        %v3572 = vrot.slane %v3535, 4
        %v3576 = vrot.slane %v3533, 2
        %v3577 = vrot.slane %v3519, 2
        %v3578 = vrot.slane %v3535, 2
        %v3582 = vsel %vm1148, %v3564, %v3570
        %v3583 = vsel %vm1148, %v3565, %v3571
        %v3584 = vsel %vm1148, %v3566, %v3572
        %v3585 = vsel %vm1150, %v3582, %v3576
        %v3586 = vsel %vm1150, %v3583, %v3577
        %v3587 = vsel %vm1150, %v3584, %v3578
        %v3588 = vrot.slane %v3532, 5
        %v3589 = vrot.slane %v3518, 5
        %v3590 = vrot.slane %v3534, 5
        %v3591 = vrot.slane %v3533, 5
        %v3592 = vsel %vm1161, %v3588, %v3591
        %v3593 = vrot.slane %v3519, 5
        %v3594 = vsel %vm1161, %v3589, %v3593
        %v3595 = vrot.slane %v3535, 5
        %v3596 = vsel %vm1161, %v3590, %v3595
        %v3609 = vrot.slane %v3585, 5
        %v3610 = vrot.slane %v3586, 5
        %v3611 = vrot.slane %v3587, 5
        %v3615 = vsel %vm1161, %v3559, %v3588
        %v3616 = vsel %vm1161, %v3560, %v3589
        %v3617 = vsel %vm1161, %v3561, %v3590
        %v3618 = vsel %vm1161, %v3591, %v3609
        %v3619 = vsel %vm1161, %v3593, %v3610
        %v3620 = vsel %vm1161, %v3595, %v3611
        %3621 = vst [vmem:[#allocation3] sm:$0xff] %v3615
        %3622 = vst [vmem:[#allocation3 + $0x8] sm:$0xff] %v3616
        %3623 = vst.msk [vmem:[#allocation3 + $0x10] sm:$0xff] %vm3313, %v3617
        %3624 = vst [vmem:[#allocation3 + $0x18] sm:$0xff] %v3592
        %3625 = vst [vmem:[#allocation3 + $0x20] sm:$0xff] %v3594
        %3626 = vst.msk [vmem:[#allocation3 + $0x28] sm:$0xff] %vm3313, %v3596
        %3627 = vst [vmem:[#allocation3 + $0x30] sm:$0x3f] %v3618
        %3628 = vst [vmem:[#allocation3 + $0x38] sm:$0x3f] %v3619
        %3629 = vst.msk [vmem:[#allocation3 + $0x40] sm:$0x3f] %vm3460, %v3620
        %v3630 = vld [vmem:[%s10] sm:$0x3]
        %v3632 = vlaneseq
        %v3633 = vshrl.u32 %v3632, 7
        %v3634 = vsub.s32 0, %v3633
        %v3635 = vrot.slane %v3630, %v3634
        %v3636 = vlaneseq
        %v3637 = vshrl.u32 %v3636, 7
        %v3638 = vsub.s32 1, %v3637
        %v3639 = vrot.slane %v3630, %v3638
        %v3642 = vadd.f32 %v3635, 0.0
        %v3643 = vadd.f32 %v3639, 0.0
        %v3644 = vld [vmem:[#allocation2] sm:$0xff]
        %v3645 = vld [vmem:[#allocation2 + $0x8] sm:$0xff]
        %v3646 = vld [vmem:[#allocation2 + $0x10] sm:$0xff]
        %v3647 = vld [vmem:[#allocation2 + $0x18] sm:$0xff]
        %v3648 = vld [vmem:[#allocation2 + $0x20] sm:$0xff]
        %v3649 = vld [vmem:[#allocation2 + $0x28] sm:$0xff]
        %v3650 = vld [vmem:[#allocation3] sm:$0xff]
        %v3651 = vld [vmem:[#allocation3 + $0x8] sm:$0xff]
        %v3652 = vld [vmem:[#allocation3 + $0x10] sm:$0xff]
        %v3653 = vld [vmem:[#allocation3 + $0x18] sm:$0xff]
        %v3654 = vld [vmem:[#allocation3 + $0x20] sm:$0xff]
        %v3655 = vld [vmem:[#allocation3 + $0x28] sm:$0xff]
        %v3656 = vld [vmem:[%s8] ss:$8 sm:$0x3]
        %v3658 = vlaneseq
        %v3659 = vshrl.u32 %v3658, 7
        %v3660 = vsub.s32 0, %v3659
        %v3661 = vrot.slane %v3656, %v3660
        %v3662 = vlaneseq
        %v3663 = vshrl.u32 %v3662, 7
        %v3664 = vsub.s32 1, %v3663
        %v3665 = vrot.slane %v3656, %v3664
        %v3668 = vmul.f32 %v3661, %v3644
        %v3669 = vmul.f32 %v3665, %v3645
        %v3670 = vmul.f32 %v3661, %v3647
        %v3671 = vmul.f32 %v3665, %v3648
        %v3672 = vld [vmem:[%s9] ss:$8 sm:$0x3]
        %v3674 = vlaneseq
        %v3675 = vshrl.u32 %v3674, 7
        %v3676 = vsub.s32 0, %v3675
        %v3677 = vrot.slane %v3672, %v3676
        %v3678 = vlaneseq
        %v3679 = vshrl.u32 %v3678, 7
        %v3680 = vsub.s32 1, %v3679
        %v3681 = vrot.slane %v3672, %v3680
        %v3684 = vmul.f32 %v3677, %v3650
        %v3685 = vmul.f32 %v3681, %v3651
        %v3686 = vmul.f32 %v3677, %v3653
        %v3687 = vmul.f32 %v3681, %v3654
        %v3688 = vadd.f32 %v3668, %v3684
        %v3689 = vadd.f32 %v3669, %v3685
        %v3690 = vadd.f32 %v3670, %v3686
        %v3691 = vadd.f32 %v3671, %v3687
        %v3692 = vadd.f32 %v3642, %v3688
        %v3693 = vadd.f32 %v3643, %v3689
        %v3694 = vadd.f32 %v3642, %v3690
        %v3695 = vadd.f32 %v3643, %v3691
        %s3696 = scalar_lea.vmem %s8, 1
        %v3697 = vld [vmem:[%s3696] ss:$8 sm:$0x3]
        %v3699 = vlaneseq
        %v3700 = vshrl.u32 %v3699, 7
        %v3701 = vsub.s32 0, %v3700
        %v3702 = vrot.slane %v3697, %v3701
        %v3703 = vlaneseq
        %v3704 = vshrl.u32 %v3703, 7
        %v3705 = vsub.s32 1, %v3704
        %v3706 = vrot.slane %v3697, %v3705
        %3715 = vrot.lane.b32.xlu0 %v3644, 112
        %v3716 = vpop.permute.xlu0 %3715
        %3717 = vrot.lane.b32.xlu0 %v3645, 112
        %v3718 = vpop.permute.xlu0 %3717
        %3719 = vrot.lane.b32.xlu0 %v3646, 112
        %v3720 = vpop.permute.xlu0 %3719
        %3721 = vrot.lane.b32.xlu0 %v3647, 112
        %v3722 = vpop.permute.xlu0 %3721
        %3723 = vrot.lane.b32.xlu0 %v3648, 112
        %v3724 = vpop.permute.xlu0 %3723
        %3725 = vrot.lane.b32.xlu0 %v3649, 112
        %v3726 = vpop.permute.xlu0 %3725
        %v3727 = vsel %vm3316, %v3716, %v3718
        %v3728 = vsel %vm3316, %v3718, %v3720
        %v3729 = vsel %vm3316, %v3722, %v3724
        %v3730 = vsel %vm3316, %v3724, %v3726
        %v3735 = vmul.f32 %v3702, %v3727
        %v3736 = vmul.f32 %v3706, %v3728
        %v3737 = vmul.f32 %v3702, %v3729
        %v3738 = vmul.f32 %v3706, %v3730
        %s3739 = scalar_lea.vmem %s9, 1
        %v3740 = vld [vmem:[%s3739] ss:$8 sm:$0x3]
        %v3742 = vlaneseq
        %v3743 = vshrl.u32 %v3742, 7
        %v3744 = vsub.s32 0, %v3743
        %v3745 = vrot.slane %v3740, %v3744
        %v3746 = vlaneseq
        %v3747 = vshrl.u32 %v3746, 7
        %v3748 = vsub.s32 1, %v3747
        %v3749 = vrot.slane %v3740, %v3748
        %3758 = vrot.lane.b32.xlu0 %v3650, 112
        %v3759 = vpop.permute.xlu0 %3758
        %3760 = vrot.lane.b32.xlu0 %v3651, 112
        %v3761 = vpop.permute.xlu0 %3760
        %3762 = vrot.lane.b32.xlu0 %v3652, 112
        %v3763 = vpop.permute.xlu0 %3762
        %3764 = vrot.lane.b32.xlu0 %v3653, 112
        %v3765 = vpop.permute.xlu0 %3764
        %3766 = vrot.lane.b32.xlu0 %v3654, 112
        %v3767 = vpop.permute.xlu0 %3766
        %3768 = vrot.lane.b32.xlu0 %v3655, 112
        %v3769 = vpop.permute.xlu0 %3768
        %v3770 = vsel %vm3316, %v3759, %v3761
        %v3771 = vsel %vm3316, %v3761, %v3763
        %v3772 = vsel %vm3316, %v3765, %v3767
        %v3773 = vsel %vm3316, %v3767, %v3769
        %v3778 = vmul.f32 %v3745, %v3770
        %v3779 = vmul.f32 %v3749, %v3771
        %v3780 = vmul.f32 %v3745, %v3772
        %v3781 = vmul.f32 %v3749, %v3773
        %v3782 = vadd.f32 %v3735, %v3778
        %v3783 = vadd.f32 %v3736, %v3779
        %v3784 = vadd.f32 %v3737, %v3780
        %v3785 = vadd.f32 %v3738, %v3781
        %v3786 = vadd.f32 %v3692, %v3782
        %v3787 = vadd.f32 %v3693, %v3783
        %v3788 = vadd.f32 %v3694, %v3784
        %v3789 = vadd.f32 %v3695, %v3785
        %s3790 = scalar_lea.vmem %s8, 2
        %v3791 = vld [vmem:[%s3790] ss:$8 sm:$0x3]
        %v3793 = vlaneseq
        %v3794 = vshrl.u32 %v3793, 7
        %v3795 = vsub.s32 0, %v3794
        %v3796 = vrot.slane %v3791, %v3795
        %v3797 = vlaneseq
        %v3798 = vshrl.u32 %v3797, 7
        %v3799 = vsub.s32 1, %v3798
        %v3800 = vrot.slane %v3791, %v3799
        %3803 = vrot.lane.b32.xlu0 %v3644, 96
        %v3804 = vpop.permute.xlu0 %3803
        %3805 = vrot.lane.b32.xlu0 %v3645, 96
        %v3806 = vpop.permute.xlu0 %3805
        %3807 = vrot.lane.b32.xlu0 %v3646, 96
        %v3808 = vpop.permute.xlu0 %3807
        %3809 = vrot.lane.b32.xlu0 %v3647, 96
        %v3810 = vpop.permute.xlu0 %3809
        %3811 = vrot.lane.b32.xlu0 %v3648, 96
        %v3812 = vpop.permute.xlu0 %3811
        %3813 = vrot.lane.b32.xlu0 %v3649, 96
        %v3814 = vpop.permute.xlu0 %3813
        %v3815 = vsel %vm3313, %v3804, %v3806
        %v3816 = vsel %vm3313, %v3806, %v3808
        %v3817 = vsel %vm3313, %v3810, %v3812
        %v3818 = vsel %vm3313, %v3812, %v3814
        %v3823 = vmul.f32 %v3796, %v3815
        %v3824 = vmul.f32 %v3800, %v3816
        %v3825 = vmul.f32 %v3796, %v3817
        %v3826 = vmul.f32 %v3800, %v3818
        %s3827 = scalar_lea.vmem %s9, 2
        %v3828 = vld [vmem:[%s3827] ss:$8 sm:$0x3]
        %v3830 = vlaneseq
        %v3831 = vshrl.u32 %v3830, 7
        %v3832 = vsub.s32 0, %v3831
        %v3833 = vrot.slane %v3828, %v3832
        %v3834 = vlaneseq
        %v3835 = vshrl.u32 %v3834, 7
        %v3836 = vsub.s32 1, %v3835
        %v3837 = vrot.slane %v3828, %v3836
        %3840 = vrot.lane.b32.xlu0 %v3650, 96
        %v3841 = vpop.permute.xlu0 %3840
        %3842 = vrot.lane.b32.xlu0 %v3651, 96
        %v3843 = vpop.permute.xlu0 %3842
        %3844 = vrot.lane.b32.xlu0 %v3652, 96
        %v3845 = vpop.permute.xlu0 %3844
        %3846 = vrot.lane.b32.xlu0 %v3653, 96
        %v3847 = vpop.permute.xlu0 %3846
        %3848 = vrot.lane.b32.xlu0 %v3654, 96
        %v3849 = vpop.permute.xlu0 %3848
        %3850 = vrot.lane.b32.xlu0 %v3655, 96
        %v3851 = vpop.permute.xlu0 %3850
        %v3852 = vsel %vm3313, %v3841, %v3843
        %v3853 = vsel %vm3313, %v3843, %v3845
        %v3854 = vsel %vm3313, %v3847, %v3849
        %v3855 = vsel %vm3313, %v3849, %v3851
        %v3860 = vmul.f32 %v3833, %v3852
        %v3861 = vmul.f32 %v3837, %v3853
        %v3862 = vmul.f32 %v3833, %v3854
        %v3863 = vmul.f32 %v3837, %v3855
        %v3864 = vadd.f32 %v3823, %v3860
        %v3865 = vadd.f32 %v3824, %v3861
        %v3866 = vadd.f32 %v3825, %v3862
        %v3867 = vadd.f32 %v3826, %v3863
        %v3868 = vadd.f32 %v3786, %v3864
        %v3869 = vadd.f32 %v3787, %v3865
        %v3870 = vadd.f32 %v3788, %v3866
        %v3871 = vadd.f32 %v3789, %v3867
        %s3872 = scalar_lea.vmem %s8, 3
        %v3873 = vld [vmem:[%s3872] ss:$8 sm:$0x3]
        %v3875 = vlaneseq
        %v3876 = vshrl.u32 %v3875, 7
        %v3877 = vsub.s32 0, %v3876
        %v3878 = vrot.slane %v3873, %v3877
        %v3879 = vlaneseq
        %v3880 = vshrl.u32 %v3879, 7
        %v3881 = vsub.s32 1, %v3880
        %v3882 = vrot.slane %v3873, %v3881
        %3885 = vrot.lane.b32.xlu0 %v3644, 80
        %v3886 = vpop.permute.xlu0 %3885
        %3887 = vrot.lane.b32.xlu0 %v3645, 80
        %v3888 = vpop.permute.xlu0 %3887
        %3889 = vrot.lane.b32.xlu0 %v3646, 80
        %v3890 = vpop.permute.xlu0 %3889
        %3891 = vrot.lane.b32.xlu0 %v3647, 80
        %v3892 = vpop.permute.xlu0 %3891
        %3893 = vrot.lane.b32.xlu0 %v3648, 80
        %v3894 = vpop.permute.xlu0 %3893
        %3895 = vrot.lane.b32.xlu0 %v3649, 80
        %v3896 = vpop.permute.xlu0 %3895
        %v3897 = vsel %vm3310, %v3886, %v3888
        %v3898 = vsel %vm3310, %v3888, %v3890
        %v3899 = vsel %vm3310, %v3892, %v3894
        %v3900 = vsel %vm3310, %v3894, %v3896
        %v3905 = vmul.f32 %v3878, %v3897
        %v3906 = vmul.f32 %v3882, %v3898
        %v3907 = vmul.f32 %v3878, %v3899
        %v3908 = vmul.f32 %v3882, %v3900
        %s3909 = scalar_lea.vmem %s9, 3
        %v3910 = vld [vmem:[%s3909] ss:$8 sm:$0x3]
        %v3912 = vlaneseq
        %v3913 = vshrl.u32 %v3912, 7
        %v3914 = vsub.s32 0, %v3913
        %v3915 = vrot.slane %v3910, %v3914
        %v3916 = vlaneseq
        %v3917 = vshrl.u32 %v3916, 7
        %v3918 = vsub.s32 1, %v3917
        %v3919 = vrot.slane %v3910, %v3918
        %3922 = vrot.lane.b32.xlu0 %v3650, 80
        %v3923 = vpop.permute.xlu0 %3922
        %3924 = vrot.lane.b32.xlu0 %v3651, 80
        %v3925 = vpop.permute.xlu0 %3924
        %3926 = vrot.lane.b32.xlu0 %v3652, 80
        %v3927 = vpop.permute.xlu0 %3926
        %3928 = vrot.lane.b32.xlu0 %v3653, 80
        %v3929 = vpop.permute.xlu0 %3928
        %3930 = vrot.lane.b32.xlu0 %v3654, 80
        %v3931 = vpop.permute.xlu0 %3930
        %3932 = vrot.lane.b32.xlu0 %v3655, 80
        %v3933 = vpop.permute.xlu0 %3932
        %v3934 = vsel %vm3310, %v3923, %v3925
        %v3935 = vsel %vm3310, %v3925, %v3927
        %v3936 = vsel %vm3310, %v3929, %v3931
        %v3937 = vsel %vm3310, %v3931, %v3933
        %v3942 = vmul.f32 %v3915, %v3934
        %v3943 = vmul.f32 %v3919, %v3935
        %v3944 = vmul.f32 %v3915, %v3936
        %v3945 = vmul.f32 %v3919, %v3937
        %v3946 = vadd.f32 %v3905, %v3942
        %v3947 = vadd.f32 %v3906, %v3943
        %v3948 = vadd.f32 %v3907, %v3944
        %v3949 = vadd.f32 %v3908, %v3945
        %v3950 = vadd.f32 %v3868, %v3946
        %v3951 = vadd.f32 %v3869, %v3947
        %v3952 = vadd.f32 %v3870, %v3948
        %v3953 = vadd.f32 %v3871, %v3949
        %s3954 = scalar_lea.vmem %s8, 4
        %v3955 = vld [vmem:[%s3954] ss:$8 sm:$0x3]
        %v3957 = vlaneseq
        %v3958 = vshrl.u32 %v3957, 7
        %v3959 = vsub.s32 0, %v3958
        %v3960 = vrot.slane %v3955, %v3959
        %v3961 = vlaneseq
        %v3962 = vshrl.u32 %v3961, 7
        %v3963 = vsub.s32 1, %v3962
        %v3964 = vrot.slane %v3955, %v3963
        %3967 = vrot.lane.b32.xlu0 %v3644, 64
        %v3968 = vpop.permute.xlu0 %3967
        %3969 = vrot.lane.b32.xlu0 %v3645, 64
        %v3970 = vpop.permute.xlu0 %3969
        %3971 = vrot.lane.b32.xlu0 %v3646, 64
        %v3972 = vpop.permute.xlu0 %3971
        %3973 = vrot.lane.b32.xlu0 %v3647, 64
        %v3974 = vpop.permute.xlu0 %3973
        %3975 = vrot.lane.b32.xlu0 %v3648, 64
        %v3976 = vpop.permute.xlu0 %3975
        %3977 = vrot.lane.b32.xlu0 %v3649, 64
        %v3978 = vpop.permute.xlu0 %3977
        %v3979 = vsel %vm3307, %v3968, %v3970
        %v3980 = vsel %vm3307, %v3970, %v3972
        %v3981 = vsel %vm3307, %v3974, %v3976
        %v3982 = vsel %vm3307, %v3976, %v3978
        %v3987 = vmul.f32 %v3960, %v3979
        %v3988 = vmul.f32 %v3964, %v3980
        %v3989 = vmul.f32 %v3960, %v3981
        %v3990 = vmul.f32 %v3964, %v3982
        %s3991 = scalar_lea.vmem %s9, 4
        %v3992 = vld [vmem:[%s3991] ss:$8 sm:$0x3]
        %v3994 = vlaneseq
        %v3995 = vshrl.u32 %v3994, 7
        %v3996 = vsub.s32 0, %v3995
        %v3997 = vrot.slane %v3992, %v3996
        %v3998 = vlaneseq
        %v3999 = vshrl.u32 %v3998, 7
        %v4000 = vsub.s32 1, %v3999
        %v4001 = vrot.slane %v3992, %v4000
        %4004 = vrot.lane.b32.xlu0 %v3650, 64
        %v4005 = vpop.permute.xlu0 %4004
        %4006 = vrot.lane.b32.xlu0 %v3651, 64
        %v4007 = vpop.permute.xlu0 %4006
        %4008 = vrot.lane.b32.xlu0 %v3652, 64
        %v4009 = vpop.permute.xlu0 %4008
        %4010 = vrot.lane.b32.xlu0 %v3653, 64
        %v4011 = vpop.permute.xlu0 %4010
        %4012 = vrot.lane.b32.xlu0 %v3654, 64
        %v4013 = vpop.permute.xlu0 %4012
        %4014 = vrot.lane.b32.xlu0 %v3655, 64
        %v4015 = vpop.permute.xlu0 %4014
        %v4016 = vsel %vm3307, %v4005, %v4007
        %v4017 = vsel %vm3307, %v4007, %v4009
        %v4018 = vsel %vm3307, %v4011, %v4013
        %v4019 = vsel %vm3307, %v4013, %v4015
        %v4024 = vmul.f32 %v3997, %v4016
        %v4025 = vmul.f32 %v4001, %v4017
        %v4026 = vmul.f32 %v3997, %v4018
        %v4027 = vmul.f32 %v4001, %v4019
        %v4028 = vadd.f32 %v3987, %v4024
        %v4029 = vadd.f32 %v3988, %v4025
        %v4030 = vadd.f32 %v3989, %v4026
        %v4031 = vadd.f32 %v3990, %v4027
        %v4032 = vadd.f32 %v3950, %v4028
        %v4033 = vadd.f32 %v3951, %v4029
        %v4034 = vadd.f32 %v3952, %v4030
        %v4035 = vadd.f32 %v3953, %v4031
        %s4036 = scalar_lea.vmem %s8, 5
        %v4037 = vld [vmem:[%s4036] ss:$8 sm:$0x3]
        %v4039 = vlaneseq
        %v4040 = vshrl.u32 %v4039, 7
        %v4041 = vsub.s32 0, %v4040
        %v4042 = vrot.slane %v4037, %v4041
        %v4043 = vlaneseq
        %v4044 = vshrl.u32 %v4043, 7
        %v4045 = vsub.s32 1, %v4044
        %v4046 = vrot.slane %v4037, %v4045
        %4049 = vrot.lane.b32.xlu0 %v3644, 48
        %v4050 = vpop.permute.xlu0 %4049
        %4051 = vrot.lane.b32.xlu0 %v3645, 48
        %v4052 = vpop.permute.xlu0 %4051
        %4053 = vrot.lane.b32.xlu0 %v3646, 48
        %v4054 = vpop.permute.xlu0 %4053
        %4055 = vrot.lane.b32.xlu0 %v3647, 48
        %v4056 = vpop.permute.xlu0 %4055
        %4057 = vrot.lane.b32.xlu0 %v3648, 48
        %v4058 = vpop.permute.xlu0 %4057
        %4059 = vrot.lane.b32.xlu0 %v3649, 48
        %v4060 = vpop.permute.xlu0 %4059
        %v4061 = vsel %vm3304, %v4050, %v4052
        %v4062 = vsel %vm3304, %v4052, %v4054
        %v4063 = vsel %vm3304, %v4056, %v4058
        %v4064 = vsel %vm3304, %v4058, %v4060
        %v4069 = vmul.f32 %v4042, %v4061
        %v4070 = vmul.f32 %v4046, %v4062
        %v4071 = vmul.f32 %v4042, %v4063
        %v4072 = vmul.f32 %v4046, %v4064
        %s4073 = scalar_lea.vmem %s9, 5
        %v4074 = vld [vmem:[%s4073] ss:$8 sm:$0x3]
        %v4076 = vlaneseq
        %v4077 = vshrl.u32 %v4076, 7
        %v4078 = vsub.s32 0, %v4077
        %v4079 = vrot.slane %v4074, %v4078
        %v4080 = vlaneseq
        %v4081 = vshrl.u32 %v4080, 7
        %v4082 = vsub.s32 1, %v4081
        %v4083 = vrot.slane %v4074, %v4082
        %4086 = vrot.lane.b32.xlu0 %v3650, 48
        %v4087 = vpop.permute.xlu0 %4086
        %4088 = vrot.lane.b32.xlu0 %v3651, 48
        %v4089 = vpop.permute.xlu0 %4088
        %4090 = vrot.lane.b32.xlu0 %v3652, 48
        %v4091 = vpop.permute.xlu0 %4090
        %4092 = vrot.lane.b32.xlu0 %v3653, 48
        %v4093 = vpop.permute.xlu0 %4092
        %4094 = vrot.lane.b32.xlu0 %v3654, 48
        %v4095 = vpop.permute.xlu0 %4094
        %4096 = vrot.lane.b32.xlu0 %v3655, 48
        %v4097 = vpop.permute.xlu0 %4096
        %v4098 = vsel %vm3304, %v4087, %v4089
        %v4099 = vsel %vm3304, %v4089, %v4091
        %v4100 = vsel %vm3304, %v4093, %v4095
        %v4101 = vsel %vm3304, %v4095, %v4097
        %v4106 = vmul.f32 %v4079, %v4098
        %v4107 = vmul.f32 %v4083, %v4099
        %v4108 = vmul.f32 %v4079, %v4100
        %v4109 = vmul.f32 %v4083, %v4101
        %v4110 = vadd.f32 %v4069, %v4106
        %v4111 = vadd.f32 %v4070, %v4107
        %v4112 = vadd.f32 %v4071, %v4108
        %v4113 = vadd.f32 %v4072, %v4109
        %v4114 = vadd.f32 %v4032, %v4110
        %v4115 = vadd.f32 %v4033, %v4111
        %v4116 = vadd.f32 %v4034, %v4112
        %v4117 = vadd.f32 %v4035, %v4113
        %s4118 = scalar_lea.vmem %s8, 6
        %v4119 = vld [vmem:[%s4118] ss:$8 sm:$0x3]
        %v4121 = vlaneseq
        %v4122 = vshrl.u32 %v4121, 7
        %v4123 = vsub.s32 0, %v4122
        %v4124 = vrot.slane %v4119, %v4123
        %v4125 = vlaneseq
        %v4126 = vshrl.u32 %v4125, 7
        %v4127 = vsub.s32 1, %v4126
        %v4128 = vrot.slane %v4119, %v4127
        %4131 = vrot.lane.b32.xlu0 %v3644, 32
        %v4132 = vpop.permute.xlu0 %4131
        %4133 = vrot.lane.b32.xlu0 %v3645, 32
        %v4134 = vpop.permute.xlu0 %4133
        %4135 = vrot.lane.b32.xlu0 %v3646, 32
        %v4136 = vpop.permute.xlu0 %4135
        %4137 = vrot.lane.b32.xlu0 %v3647, 32
        %v4138 = vpop.permute.xlu0 %4137
        %4139 = vrot.lane.b32.xlu0 %v3648, 32
        %v4140 = vpop.permute.xlu0 %4139
        %4141 = vrot.lane.b32.xlu0 %v3649, 32
        %v4142 = vpop.permute.xlu0 %4141
        %v4143 = vsel %vm3301, %v4132, %v4134
        %v4144 = vsel %vm3301, %v4134, %v4136
        %v4145 = vsel %vm3301, %v4138, %v4140
        %v4146 = vsel %vm3301, %v4140, %v4142
        %v4151 = vmul.f32 %v4124, %v4143
        %v4152 = vmul.f32 %v4128, %v4144
        %v4153 = vmul.f32 %v4124, %v4145
        %v4154 = vmul.f32 %v4128, %v4146
        %s4155 = scalar_lea.vmem %s9, 6
        %v4156 = vld [vmem:[%s4155] ss:$8 sm:$0x3]
        %v4158 = vlaneseq
        %v4159 = vshrl.u32 %v4158, 7
        %v4160 = vsub.s32 0, %v4159
        %v4161 = vrot.slane %v4156, %v4160
        %v4162 = vlaneseq
        %v4163 = vshrl.u32 %v4162, 7
        %v4164 = vsub.s32 1, %v4163
        %v4165 = vrot.slane %v4156, %v4164
        %4168 = vrot.lane.b32.xlu0 %v3650, 32
        %v4169 = vpop.permute.xlu0 %4168
        %4170 = vrot.lane.b32.xlu0 %v3651, 32
        %v4171 = vpop.permute.xlu0 %4170
        %4172 = vrot.lane.b32.xlu0 %v3652, 32
        %v4173 = vpop.permute.xlu0 %4172
        %4174 = vrot.lane.b32.xlu0 %v3653, 32
        %v4175 = vpop.permute.xlu0 %4174
        %4176 = vrot.lane.b32.xlu0 %v3654, 32
        %v4177 = vpop.permute.xlu0 %4176
        %4178 = vrot.lane.b32.xlu0 %v3655, 32
        %v4179 = vpop.permute.xlu0 %4178
        %v4180 = vsel %vm3301, %v4169, %v4171
        %v4181 = vsel %vm3301, %v4171, %v4173
        %v4182 = vsel %vm3301, %v4175, %v4177
        %v4183 = vsel %vm3301, %v4177, %v4179
        %v4188 = vmul.f32 %v4161, %v4180
        %v4189 = vmul.f32 %v4165, %v4181
        %v4190 = vmul.f32 %v4161, %v4182
        %v4191 = vmul.f32 %v4165, %v4183
        %v4192 = vadd.f32 %v4151, %v4188
        %v4193 = vadd.f32 %v4152, %v4189
        %v4194 = vadd.f32 %v4153, %v4190
        %v4195 = vadd.f32 %v4154, %v4191
        %v4196 = vadd.f32 %v4114, %v4192
        %v4197 = vadd.f32 %v4115, %v4193
        %v4198 = vadd.f32 %v4116, %v4194
        %v4199 = vadd.f32 %v4117, %v4195
        %v4200 = vld [vmem:[#allocation2] sm:$0xfe]
        %v4201 = vld [vmem:[#allocation2 + $0x8] sm:$0xfe]
        %v4202 = vld [vmem:[#allocation2 + $0x10] sm:$0xfe]
        %v4203 = vld [vmem:[#allocation2 + $0x30] sm:$0x1]
        %v4204 = vld [vmem:[#allocation2 + $0x38] sm:$0x1]
        %v4205 = vld [vmem:[#allocation2 + $0x40] sm:$0x1]
        %v4206 = vld [vmem:[#allocation3] sm:$0xfe]
        %v4207 = vld [vmem:[#allocation3 + $0x8] sm:$0xfe]
        %v4208 = vld [vmem:[#allocation3 + $0x10] sm:$0xfe]
        %v4209 = vld [vmem:[#allocation3 + $0x30] sm:$0x1]
        %v4210 = vld [vmem:[#allocation3 + $0x38] sm:$0x1]
        %v4211 = vld [vmem:[#allocation3 + $0x40] sm:$0x1]
        %s4212 = scalar_lea.vmem %s8, 7
        %v4213 = vld [vmem:[%s4212] ss:$8 sm:$0x3]
        %v4215 = vlaneseq
        %v4216 = vshrl.u32 %v4215, 7
        %v4217 = vsub.s32 0, %v4216
        %v4218 = vrot.slane %v4213, %v4217
        %v4219 = vlaneseq
        %v4220 = vshrl.u32 %v4219, 7
        %v4221 = vsub.s32 1, %v4220
        %v4222 = vrot.slane %v4213, %v4221
        %v4225 = vmul.f32 %v4218, %v4200
        %v4226 = vmul.f32 %v4222, %v4201
        %v4227 = vmul.f32 %v4218, %v3647
        %v4228 = vmul.f32 %v4222, %v3648
        %v4229 = vmul.f32 %v4218, %v4203
        %v4230 = vmul.f32 %v4222, %v4204
        %s4231 = scalar_lea.vmem %s9, 7
        %v4232 = vld [vmem:[%s4231] ss:$8 sm:$0x3]
        %v4234 = vlaneseq
        %v4235 = vshrl.u32 %v4234, 7
        %v4236 = vsub.s32 0, %v4235
        %v4237 = vrot.slane %v4232, %v4236
        %v4238 = vlaneseq
        %v4239 = vshrl.u32 %v4238, 7
        %v4240 = vsub.s32 1, %v4239
        %v4241 = vrot.slane %v4232, %v4240
        %v4244 = vmul.f32 %v4237, %v4206
        %v4245 = vmul.f32 %v4241, %v4207
        %v4246 = vmul.f32 %v4237, %v3653
        %v4247 = vmul.f32 %v4241, %v3654
        %v4248 = vmul.f32 %v4237, %v4209
        %v4249 = vmul.f32 %v4241, %v4210
        %v4250 = vadd.f32 %v4225, %v4244
        %v4251 = vadd.f32 %v4226, %v4245
        %v4252 = vadd.f32 %v4227, %v4246
        %v4253 = vadd.f32 %v4228, %v4247
        %v4254 = vadd.f32 %v4229, %v4248
        %v4255 = vadd.f32 %v4230, %v4249
        %v4262 = vrot.slane %v4250, 1
        %v4263 = vrot.slane %v4252, 1
        %v4264 = vsel %vm1457, %v4262, %v4263
        %v4265 = vrot.slane %v4251, 1
        %v4266 = vrot.slane %v4253, 1
        %v4267 = vsel %vm1457, %v4265, %v4266
        %v4268 = vrot.slane %v4254, 1
        %v4269 = vsel %vm1457, %v4263, %v4268
        %v4270 = vrot.slane %v4255, 1
        %v4271 = vsel %vm1457, %v4266, %v4270
        %v4276 = vadd.f32 %v4196, %v4264
        %v4277 = vadd.f32 %v4197, %v4267
        %v4278 = vadd.f32 %v4198, %v4269
        %v4279 = vadd.f32 %v4199, %v4271
        %s4280 = scalar_lea.vmem %s8, 16
        %v4281 = vld [vmem:[%s4280] ss:$8 sm:$0x3]
        %v4283 = vlaneseq
        %v4284 = vshrl.u32 %v4283, 7
        %v4285 = vsub.s32 0, %v4284
        %v4286 = vrot.slane %v4281, %v4285
        %v4287 = vlaneseq
        %v4288 = vshrl.u32 %v4287, 7
        %v4289 = vsub.s32 1, %v4288
        %v4290 = vrot.slane %v4281, %v4289
        %v4299 = vrot.slane %v4200, 1
        %v4300 = vrot.slane %v3647, 1
        %v4301 = vsel %vm1457, %v4299, %v4300
        %v4302 = vrot.slane %v4201, 1
        %v4303 = vrot.slane %v3648, 1
        %v4304 = vsel %vm1457, %v4302, %v4303
        %v4305 = vrot.slane %v4202, 1
        %v4306 = vrot.slane %v3649, 1
        %v4307 = vsel %vm1457, %v4305, %v4306
        %v4308 = vrot.slane %v4203, 1
        %v4309 = vsel %vm1457, %v4300, %v4308
        %v4310 = vrot.slane %v4204, 1
        %v4311 = vsel %vm1457, %v4303, %v4310
        %v4312 = vrot.slane %v4205, 1
        %v4313 = vsel %vm1457, %v4306, %v4312
        %4314 = vrot.lane.b32.xlu0 %v4301, 112
        %v4315 = vpop.permute.xlu0 %4314
        %4316 = vrot.lane.b32.xlu0 %v4304, 112
        %v4317 = vpop.permute.xlu0 %4316
        %4318 = vrot.lane.b32.xlu0 %v4307, 112
        %v4319 = vpop.permute.xlu0 %4318
        %4320 = vrot.lane.b32.xlu0 %v4309, 112
        %v4321 = vpop.permute.xlu0 %4320
        %4322 = vrot.lane.b32.xlu0 %v4311, 112
        %v4323 = vpop.permute.xlu0 %4322
        %4324 = vrot.lane.b32.xlu0 %v4313, 112
        %v4325 = vpop.permute.xlu0 %4324
        %v4326 = vsel %vm3316, %v4315, %v4317
        %v4327 = vsel %vm3316, %v4317, %v4319
        %v4328 = vsel %vm3316, %v4321, %v4323
        %v4329 = vsel %vm3316, %v4323, %v4325
        %v4334 = vmul.f32 %v4286, %v4326
        %v4335 = vmul.f32 %v4290, %v4327
        %v4336 = vmul.f32 %v4286, %v4328
        %v4337 = vmul.f32 %v4290, %v4329
        %s4338 = scalar_lea.vmem %s9, 16
        %v4339 = vld [vmem:[%s4338] ss:$8 sm:$0x3]
        %v4341 = vlaneseq
        %v4342 = vshrl.u32 %v4341, 7
        %v4343 = vsub.s32 0, %v4342
        %v4344 = vrot.slane %v4339, %v4343
        %v4345 = vlaneseq
        %v4346 = vshrl.u32 %v4345, 7
        %v4347 = vsub.s32 1, %v4346
        %v4348 = vrot.slane %v4339, %v4347
        %v4357 = vrot.slane %v4206, 1
        %v4358 = vrot.slane %v3653, 1
        %v4359 = vsel %vm1457, %v4357, %v4358
        %v4360 = vrot.slane %v4207, 1
        %v4361 = vrot.slane %v3654, 1
        %v4362 = vsel %vm1457, %v4360, %v4361
        %v4363 = vrot.slane %v4208, 1
        %v4364 = vrot.slane %v3655, 1
        %v4365 = vsel %vm1457, %v4363, %v4364
        %v4366 = vrot.slane %v4209, 1
        %v4367 = vsel %vm1457, %v4358, %v4366
        %v4368 = vrot.slane %v4210, 1
        %v4369 = vsel %vm1457, %v4361, %v4368
        %v4370 = vrot.slane %v4211, 1
        %v4371 = vsel %vm1457, %v4364, %v4370
        %4372 = vrot.lane.b32.xlu0 %v4359, 112
        %v4373 = vpop.permute.xlu0 %4372
        %4374 = vrot.lane.b32.xlu0 %v4362, 112
        %v4375 = vpop.permute.xlu0 %4374
        %4376 = vrot.lane.b32.xlu0 %v4365, 112
        %v4377 = vpop.permute.xlu0 %4376
        %4378 = vrot.lane.b32.xlu0 %v4367, 112
        %v4379 = vpop.permute.xlu0 %4378
        %4380 = vrot.lane.b32.xlu0 %v4369, 112
        %v4381 = vpop.permute.xlu0 %4380
        %4382 = vrot.lane.b32.xlu0 %v4371, 112
        %v4383 = vpop.permute.xlu0 %4382
        %v4384 = vsel %vm3316, %v4373, %v4375
        %v4385 = vsel %vm3316, %v4375, %v4377
        %v4386 = vsel %vm3316, %v4379, %v4381
        %v4387 = vsel %vm3316, %v4381, %v4383
        %v4392 = vmul.f32 %v4344, %v4384
        %v4393 = vmul.f32 %v4348, %v4385
        %v4394 = vmul.f32 %v4344, %v4386
        %v4395 = vmul.f32 %v4348, %v4387
        %v4396 = vadd.f32 %v4334, %v4392
        %v4397 = vadd.f32 %v4335, %v4393
        %v4398 = vadd.f32 %v4336, %v4394
        %v4399 = vadd.f32 %v4337, %v4395
        %v4400 = vadd.f32 %v4276, %v4396
        %v4401 = vadd.f32 %v4277, %v4397
        %v4402 = vadd.f32 %v4278, %v4398
        %v4403 = vadd.f32 %v4279, %v4399
        %s4404 = scalar_lea.vmem %s8, 17
        %v4405 = vld [vmem:[%s4404] ss:$8 sm:$0x3]
        %v4407 = vlaneseq
        %v4408 = vshrl.u32 %v4407, 7
        %v4409 = vsub.s32 0, %v4408
        %v4410 = vrot.slane %v4405, %v4409
        %v4411 = vlaneseq
        %v4412 = vshrl.u32 %v4411, 7
        %v4413 = vsub.s32 1, %v4412
        %v4414 = vrot.slane %v4405, %v4413
        %4417 = vrot.lane.b32.xlu0 %v4301, 96
        %v4418 = vpop.permute.xlu0 %4417
        %4419 = vrot.lane.b32.xlu0 %v4304, 96
        %v4420 = vpop.permute.xlu0 %4419
        %4421 = vrot.lane.b32.xlu0 %v4307, 96
        %v4422 = vpop.permute.xlu0 %4421
        %4423 = vrot.lane.b32.xlu0 %v4309, 96
        %v4424 = vpop.permute.xlu0 %4423
        %4425 = vrot.lane.b32.xlu0 %v4311, 96
        %v4426 = vpop.permute.xlu0 %4425
        %4427 = vrot.lane.b32.xlu0 %v4313, 96
        %v4428 = vpop.permute.xlu0 %4427
        %v4429 = vsel %vm3313, %v4418, %v4420
        %v4430 = vsel %vm3313, %v4420, %v4422
        %v4431 = vsel %vm3313, %v4424, %v4426
        %v4432 = vsel %vm3313, %v4426, %v4428
        %v4437 = vmul.f32 %v4410, %v4429
        %v4438 = vmul.f32 %v4414, %v4430
        %v4439 = vmul.f32 %v4410, %v4431
        %v4440 = vmul.f32 %v4414, %v4432
        %s4441 = scalar_lea.vmem %s9, 17
        %v4442 = vld [vmem:[%s4441] ss:$8 sm:$0x3]
        %v4444 = vlaneseq
        %v4445 = vshrl.u32 %v4444, 7
        %v4446 = vsub.s32 0, %v4445
        %v4447 = vrot.slane %v4442, %v4446
        %v4448 = vlaneseq
        %v4449 = vshrl.u32 %v4448, 7
        %v4450 = vsub.s32 1, %v4449
        %v4451 = vrot.slane %v4442, %v4450
        %4454 = vrot.lane.b32.xlu0 %v4359, 96
        %v4455 = vpop.permute.xlu0 %4454
        %4456 = vrot.lane.b32.xlu0 %v4362, 96
        %v4457 = vpop.permute.xlu0 %4456
        %4458 = vrot.lane.b32.xlu0 %v4365, 96
        %v4459 = vpop.permute.xlu0 %4458
        %4460 = vrot.lane.b32.xlu0 %v4367, 96
        %v4461 = vpop.permute.xlu0 %4460
        %4462 = vrot.lane.b32.xlu0 %v4369, 96
        %v4463 = vpop.permute.xlu0 %4462
        %4464 = vrot.lane.b32.xlu0 %v4371, 96
        %v4465 = vpop.permute.xlu0 %4464
        %v4466 = vsel %vm3313, %v4455, %v4457
        %v4467 = vsel %vm3313, %v4457, %v4459
        %v4468 = vsel %vm3313, %v4461, %v4463
        %v4469 = vsel %vm3313, %v4463, %v4465
        %v4474 = vmul.f32 %v4447, %v4466
        %v4475 = vmul.f32 %v4451, %v4467
        %v4476 = vmul.f32 %v4447, %v4468
        %v4477 = vmul.f32 %v4451, %v4469
        %v4478 = vadd.f32 %v4437, %v4474
        %v4479 = vadd.f32 %v4438, %v4475
        %v4480 = vadd.f32 %v4439, %v4476
        %v4481 = vadd.f32 %v4440, %v4477
        %v4482 = vadd.f32 %v4400, %v4478
        %v4483 = vadd.f32 %v4401, %v4479
        %v4484 = vadd.f32 %v4402, %v4480
        %v4485 = vadd.f32 %v4403, %v4481
        %s4486 = scalar_lea.vmem %s8, 18
        %v4487 = vld [vmem:[%s4486] ss:$8 sm:$0x3]
        %v4489 = vlaneseq
        %v4490 = vshrl.u32 %v4489, 7
        %v4491 = vsub.s32 0, %v4490
        %v4492 = vrot.slane %v4487, %v4491
        %v4493 = vlaneseq
        %v4494 = vshrl.u32 %v4493, 7
        %v4495 = vsub.s32 1, %v4494
        %v4496 = vrot.slane %v4487, %v4495
        %4499 = vrot.lane.b32.xlu0 %v4301, 80
        %v4500 = vpop.permute.xlu0 %4499
        %4501 = vrot.lane.b32.xlu0 %v4304, 80
        %v4502 = vpop.permute.xlu0 %4501
        %4503 = vrot.lane.b32.xlu0 %v4307, 80
        %v4504 = vpop.permute.xlu0 %4503
        %4505 = vrot.lane.b32.xlu0 %v4309, 80
        %v4506 = vpop.permute.xlu0 %4505
        %4507 = vrot.lane.b32.xlu0 %v4311, 80
        %v4508 = vpop.permute.xlu0 %4507
        %4509 = vrot.lane.b32.xlu0 %v4313, 80
        %v4510 = vpop.permute.xlu0 %4509
        %v4511 = vsel %vm3310, %v4500, %v4502
        %v4512 = vsel %vm3310, %v4502, %v4504
        %v4513 = vsel %vm3310, %v4506, %v4508
        %v4514 = vsel %vm3310, %v4508, %v4510
        %v4519 = vmul.f32 %v4492, %v4511
        %v4520 = vmul.f32 %v4496, %v4512
        %v4521 = vmul.f32 %v4492, %v4513
        %v4522 = vmul.f32 %v4496, %v4514
        %s4523 = scalar_lea.vmem %s9, 18
        %v4524 = vld [vmem:[%s4523] ss:$8 sm:$0x3]
        %v4526 = vlaneseq
        %v4527 = vshrl.u32 %v4526, 7
        %v4528 = vsub.s32 0, %v4527
        %v4529 = vrot.slane %v4524, %v4528
        %v4530 = vlaneseq
        %v4531 = vshrl.u32 %v4530, 7
        %v4532 = vsub.s32 1, %v4531
        %v4533 = vrot.slane %v4524, %v4532
        %4536 = vrot.lane.b32.xlu0 %v4359, 80
        %v4537 = vpop.permute.xlu0 %4536
        %4538 = vrot.lane.b32.xlu0 %v4362, 80
        %v4539 = vpop.permute.xlu0 %4538
        %4540 = vrot.lane.b32.xlu0 %v4365, 80
        %v4541 = vpop.permute.xlu0 %4540
        %4542 = vrot.lane.b32.xlu0 %v4367, 80
        %v4543 = vpop.permute.xlu0 %4542
        %4544 = vrot.lane.b32.xlu0 %v4369, 80
        %v4545 = vpop.permute.xlu0 %4544
        %4546 = vrot.lane.b32.xlu0 %v4371, 80
        %v4547 = vpop.permute.xlu0 %4546
        %v4548 = vsel %vm3310, %v4537, %v4539
        %v4549 = vsel %vm3310, %v4539, %v4541
        %v4550 = vsel %vm3310, %v4543, %v4545
        %v4551 = vsel %vm3310, %v4545, %v4547
        %v4556 = vmul.f32 %v4529, %v4548
        %v4557 = vmul.f32 %v4533, %v4549
        %v4558 = vmul.f32 %v4529, %v4550
        %v4559 = vmul.f32 %v4533, %v4551
        %v4560 = vadd.f32 %v4519, %v4556
        %v4561 = vadd.f32 %v4520, %v4557
        %v4562 = vadd.f32 %v4521, %v4558
        %v4563 = vadd.f32 %v4522, %v4559
        %v4564 = vadd.f32 %v4482, %v4560
        %v4565 = vadd.f32 %v4483, %v4561
        %v4566 = vadd.f32 %v4484, %v4562
        %v4567 = vadd.f32 %v4485, %v4563
        %s4568 = scalar_lea.vmem %s8, 19
        %v4569 = vld [vmem:[%s4568] ss:$8 sm:$0x3]
        %v4571 = vlaneseq
        %v4572 = vshrl.u32 %v4571, 7
        %v4573 = vsub.s32 0, %v4572
        %v4574 = vrot.slane %v4569, %v4573
        %v4575 = vlaneseq
        %v4576 = vshrl.u32 %v4575, 7
        %v4577 = vsub.s32 1, %v4576
        %v4578 = vrot.slane %v4569, %v4577
        %4581 = vrot.lane.b32.xlu0 %v4301, 64
        %v4582 = vpop.permute.xlu0 %4581
        %4583 = vrot.lane.b32.xlu0 %v4304, 64
        %v4584 = vpop.permute.xlu0 %4583
        %4585 = vrot.lane.b32.xlu0 %v4307, 64
        %v4586 = vpop.permute.xlu0 %4585
        %4587 = vrot.lane.b32.xlu0 %v4309, 64
        %v4588 = vpop.permute.xlu0 %4587
        %4589 = vrot.lane.b32.xlu0 %v4311, 64
        %v4590 = vpop.permute.xlu0 %4589
        %4591 = vrot.lane.b32.xlu0 %v4313, 64
        %v4592 = vpop.permute.xlu0 %4591
        %v4593 = vsel %vm3307, %v4582, %v4584
        %v4594 = vsel %vm3307, %v4584, %v4586
        %v4595 = vsel %vm3307, %v4588, %v4590
        %v4596 = vsel %vm3307, %v4590, %v4592
        %v4601 = vmul.f32 %v4574, %v4593
        %v4602 = vmul.f32 %v4578, %v4594
        %v4603 = vmul.f32 %v4574, %v4595
        %v4604 = vmul.f32 %v4578, %v4596
        %s4605 = scalar_lea.vmem %s9, 19
        %v4606 = vld [vmem:[%s4605] ss:$8 sm:$0x3]
        %v4608 = vlaneseq
        %v4609 = vshrl.u32 %v4608, 7
        %v4610 = vsub.s32 0, %v4609
        %v4611 = vrot.slane %v4606, %v4610
        %v4612 = vlaneseq
        %v4613 = vshrl.u32 %v4612, 7
        %v4614 = vsub.s32 1, %v4613
        %v4615 = vrot.slane %v4606, %v4614
        %4618 = vrot.lane.b32.xlu0 %v4359, 64
        %v4619 = vpop.permute.xlu0 %4618
        %4620 = vrot.lane.b32.xlu0 %v4362, 64
        %v4621 = vpop.permute.xlu0 %4620
        %4622 = vrot.lane.b32.xlu0 %v4365, 64
        %v4623 = vpop.permute.xlu0 %4622
        %4624 = vrot.lane.b32.xlu0 %v4367, 64
        %v4625 = vpop.permute.xlu0 %4624
        %4626 = vrot.lane.b32.xlu0 %v4369, 64
        %v4627 = vpop.permute.xlu0 %4626
        %4628 = vrot.lane.b32.xlu0 %v4371, 64
        %v4629 = vpop.permute.xlu0 %4628
        %v4630 = vsel %vm3307, %v4619, %v4621
        %v4631 = vsel %vm3307, %v4621, %v4623
        %v4632 = vsel %vm3307, %v4625, %v4627
        %v4633 = vsel %vm3307, %v4627, %v4629
        %v4638 = vmul.f32 %v4611, %v4630
        %v4639 = vmul.f32 %v4615, %v4631
        %v4640 = vmul.f32 %v4611, %v4632
        %v4641 = vmul.f32 %v4615, %v4633
        %v4642 = vadd.f32 %v4601, %v4638
        %v4643 = vadd.f32 %v4602, %v4639
        %v4644 = vadd.f32 %v4603, %v4640
        %v4645 = vadd.f32 %v4604, %v4641
        %v4646 = vadd.f32 %v4564, %v4642
        %v4647 = vadd.f32 %v4565, %v4643
        %v4648 = vadd.f32 %v4566, %v4644
        %v4649 = vadd.f32 %v4567, %v4645
        %s4650 = scalar_lea.vmem %s8, 20
        %v4651 = vld [vmem:[%s4650] ss:$8 sm:$0x3]
        %v4653 = vlaneseq
        %v4654 = vshrl.u32 %v4653, 7
        %v4655 = vsub.s32 0, %v4654
        %v4656 = vrot.slane %v4651, %v4655
        %v4657 = vlaneseq
        %v4658 = vshrl.u32 %v4657, 7
        %v4659 = vsub.s32 1, %v4658
        %v4660 = vrot.slane %v4651, %v4659
        %4663 = vrot.lane.b32.xlu0 %v4301, 48
        %v4664 = vpop.permute.xlu0 %4663
        %4665 = vrot.lane.b32.xlu0 %v4304, 48
        %v4666 = vpop.permute.xlu0 %4665
        %4667 = vrot.lane.b32.xlu0 %v4307, 48
        %v4668 = vpop.permute.xlu0 %4667
        %4669 = vrot.lane.b32.xlu0 %v4309, 48
        %v4670 = vpop.permute.xlu0 %4669
        %4671 = vrot.lane.b32.xlu0 %v4311, 48
        %v4672 = vpop.permute.xlu0 %4671
        %4673 = vrot.lane.b32.xlu0 %v4313, 48
        %v4674 = vpop.permute.xlu0 %4673
        %v4675 = vsel %vm3304, %v4664, %v4666
        %v4676 = vsel %vm3304, %v4666, %v4668
        %v4677 = vsel %vm3304, %v4670, %v4672
        %v4678 = vsel %vm3304, %v4672, %v4674
        %v4683 = vmul.f32 %v4656, %v4675
        %v4684 = vmul.f32 %v4660, %v4676
        %v4685 = vmul.f32 %v4656, %v4677
        %v4686 = vmul.f32 %v4660, %v4678
        %s4687 = scalar_lea.vmem %s9, 20
        %v4688 = vld [vmem:[%s4687] ss:$8 sm:$0x3]
        %v4690 = vlaneseq
        %v4691 = vshrl.u32 %v4690, 7
        %v4692 = vsub.s32 0, %v4691
        %v4693 = vrot.slane %v4688, %v4692
        %v4694 = vlaneseq
        %v4695 = vshrl.u32 %v4694, 7
        %v4696 = vsub.s32 1, %v4695
        %v4697 = vrot.slane %v4688, %v4696
        %4700 = vrot.lane.b32.xlu0 %v4359, 48
        %v4701 = vpop.permute.xlu0 %4700
        %4702 = vrot.lane.b32.xlu0 %v4362, 48
        %v4703 = vpop.permute.xlu0 %4702
        %4704 = vrot.lane.b32.xlu0 %v4365, 48
        %v4705 = vpop.permute.xlu0 %4704
        %4706 = vrot.lane.b32.xlu0 %v4367, 48
        %v4707 = vpop.permute.xlu0 %4706
        %4708 = vrot.lane.b32.xlu0 %v4369, 48
        %v4709 = vpop.permute.xlu0 %4708
        %4710 = vrot.lane.b32.xlu0 %v4371, 48
        %v4711 = vpop.permute.xlu0 %4710
        %v4712 = vsel %vm3304, %v4701, %v4703
        %v4713 = vsel %vm3304, %v4703, %v4705
        %v4714 = vsel %vm3304, %v4707, %v4709
        %v4715 = vsel %vm3304, %v4709, %v4711
        %v4720 = vmul.f32 %v4693, %v4712
        %v4721 = vmul.f32 %v4697, %v4713
        %v4722 = vmul.f32 %v4693, %v4714
        %v4723 = vmul.f32 %v4697, %v4715
        %v4724 = vadd.f32 %v4683, %v4720
        %v4725 = vadd.f32 %v4684, %v4721
        %v4726 = vadd.f32 %v4685, %v4722
        %v4727 = vadd.f32 %v4686, %v4723
        %v4728 = vadd.f32 %v4646, %v4724
        %v4729 = vadd.f32 %v4647, %v4725
        %v4730 = vadd.f32 %v4648, %v4726
        %v4731 = vadd.f32 %v4649, %v4727
        %s4732 = scalar_lea.vmem %s8, 21
        %v4733 = vld [vmem:[%s4732] ss:$8 sm:$0x3]
        %v4735 = vlaneseq
        %v4736 = vshrl.u32 %v4735, 7
        %v4737 = vsub.s32 0, %v4736
        %v4738 = vrot.slane %v4733, %v4737
        %v4739 = vlaneseq
        %v4740 = vshrl.u32 %v4739, 7
        %v4741 = vsub.s32 1, %v4740
        %v4742 = vrot.slane %v4733, %v4741
        %4745 = vrot.lane.b32.xlu0 %v4301, 32
        %v4746 = vpop.permute.xlu0 %4745
        %4747 = vrot.lane.b32.xlu0 %v4304, 32
        %v4748 = vpop.permute.xlu0 %4747
        %4749 = vrot.lane.b32.xlu0 %v4307, 32
        %v4750 = vpop.permute.xlu0 %4749
        %4751 = vrot.lane.b32.xlu0 %v4309, 32
        %v4752 = vpop.permute.xlu0 %4751
        %4753 = vrot.lane.b32.xlu0 %v4311, 32
        %v4754 = vpop.permute.xlu0 %4753
        %4755 = vrot.lane.b32.xlu0 %v4313, 32
        %v4756 = vpop.permute.xlu0 %4755
        %v4757 = vsel %vm3301, %v4746, %v4748
        %v4758 = vsel %vm3301, %v4748, %v4750
        %v4759 = vsel %vm3301, %v4752, %v4754
        %v4760 = vsel %vm3301, %v4754, %v4756
        %v4765 = vmul.f32 %v4738, %v4757
        %v4766 = vmul.f32 %v4742, %v4758
        %v4767 = vmul.f32 %v4738, %v4759
        %v4768 = vmul.f32 %v4742, %v4760
        %s4769 = scalar_lea.vmem %s9, 21
        %v4770 = vld [vmem:[%s4769] ss:$8 sm:$0x3]
        %v4772 = vlaneseq
        %v4773 = vshrl.u32 %v4772, 7
        %v4774 = vsub.s32 0, %v4773
        %v4775 = vrot.slane %v4770, %v4774
        %v4776 = vlaneseq
        %v4777 = vshrl.u32 %v4776, 7
        %v4778 = vsub.s32 1, %v4777
        %v4779 = vrot.slane %v4770, %v4778
        %4782 = vrot.lane.b32.xlu0 %v4359, 32
        %v4783 = vpop.permute.xlu0 %4782
        %4784 = vrot.lane.b32.xlu0 %v4362, 32
        %v4785 = vpop.permute.xlu0 %4784
        %4786 = vrot.lane.b32.xlu0 %v4365, 32
        %v4787 = vpop.permute.xlu0 %4786
        %4788 = vrot.lane.b32.xlu0 %v4367, 32
        %v4789 = vpop.permute.xlu0 %4788
        %4790 = vrot.lane.b32.xlu0 %v4369, 32
        %v4791 = vpop.permute.xlu0 %4790
        %4792 = vrot.lane.b32.xlu0 %v4371, 32
        %v4793 = vpop.permute.xlu0 %4792
        %v4794 = vsel %vm3301, %v4783, %v4785
        %v4795 = vsel %vm3301, %v4785, %v4787
        %v4796 = vsel %vm3301, %v4789, %v4791
        %v4797 = vsel %vm3301, %v4791, %v4793
        %v4802 = vmul.f32 %v4775, %v4794
        %v4803 = vmul.f32 %v4779, %v4795
        %v4804 = vmul.f32 %v4775, %v4796
        %v4805 = vmul.f32 %v4779, %v4797
        %v4806 = vadd.f32 %v4765, %v4802
        %v4807 = vadd.f32 %v4766, %v4803
        %v4808 = vadd.f32 %v4767, %v4804
        %v4809 = vadd.f32 %v4768, %v4805
        %v4810 = vadd.f32 %v4728, %v4806
        %v4811 = vadd.f32 %v4729, %v4807
        %v4812 = vadd.f32 %v4730, %v4808
        %v4813 = vadd.f32 %v4731, %v4809
        %v4814 = vld [vmem:[#allocation2] sm:$0xfc]
        %v4815 = vld [vmem:[#allocation2 + $0x8] sm:$0xfc]
        %v4816 = vld [vmem:[#allocation2 + $0x10] sm:$0xfc]
        %v4817 = vld [vmem:[#allocation2 + $0x30] sm:$0x3]
        %v4818 = vld [vmem:[#allocation2 + $0x38] sm:$0x3]
        %v4819 = vld [vmem:[#allocation2 + $0x40] sm:$0x3]
        %v4820 = vld [vmem:[#allocation3] sm:$0xfc]
        %v4821 = vld [vmem:[#allocation3 + $0x8] sm:$0xfc]
        %v4822 = vld [vmem:[#allocation3 + $0x10] sm:$0xfc]
        %v4823 = vld [vmem:[#allocation3 + $0x30] sm:$0x3]
        %v4824 = vld [vmem:[#allocation3 + $0x38] sm:$0x3]
        %v4825 = vld [vmem:[#allocation3 + $0x40] sm:$0x3]
        %s4826 = scalar_lea.vmem %s8, 22
        %v4827 = vld [vmem:[%s4826] ss:$8 sm:$0x3]
        %v4829 = vlaneseq
        %v4830 = vshrl.u32 %v4829, 7
        %v4831 = vsub.s32 0, %v4830
        %v4832 = vrot.slane %v4827, %v4831
        %v4833 = vlaneseq
        %v4834 = vshrl.u32 %v4833, 7
        %v4835 = vsub.s32 1, %v4834
        %v4836 = vrot.slane %v4827, %v4835
        %v4839 = vmul.f32 %v4832, %v4814
        %v4840 = vmul.f32 %v4836, %v4815
        %v4841 = vmul.f32 %v4832, %v3647
        %v4842 = vmul.f32 %v4836, %v3648
        %v4843 = vmul.f32 %v4832, %v4817
        %v4844 = vmul.f32 %v4836, %v4818
        %s4845 = scalar_lea.vmem %s9, 22
        %v4846 = vld [vmem:[%s4845] ss:$8 sm:$0x3]
        %v4848 = vlaneseq
        %v4849 = vshrl.u32 %v4848, 7
        %v4850 = vsub.s32 0, %v4849
        %v4851 = vrot.slane %v4846, %v4850
        %v4852 = vlaneseq
        %v4853 = vshrl.u32 %v4852, 7
        %v4854 = vsub.s32 1, %v4853
        %v4855 = vrot.slane %v4846, %v4854
        %v4858 = vmul.f32 %v4851, %v4820
        %v4859 = vmul.f32 %v4855, %v4821
        %v4860 = vmul.f32 %v4851, %v3653
        %v4861 = vmul.f32 %v4855, %v3654
        %v4862 = vmul.f32 %v4851, %v4823
        %v4863 = vmul.f32 %v4855, %v4824
        %v4864 = vadd.f32 %v4839, %v4858
        %v4865 = vadd.f32 %v4840, %v4859
        %v4866 = vadd.f32 %v4841, %v4860
        %v4867 = vadd.f32 %v4842, %v4861
        %v4868 = vadd.f32 %v4843, %v4862
        %v4869 = vadd.f32 %v4844, %v4863
        %v4876 = vrot.slane %v4864, 2
        %v4877 = vrot.slane %v4866, 2
        %v4878 = vsel %vm1744, %v4876, %v4877
        %v4879 = vrot.slane %v4865, 2
        %v4880 = vrot.slane %v4867, 2
        %v4881 = vsel %vm1744, %v4879, %v4880
        %v4882 = vrot.slane %v4868, 2
        %v4883 = vsel %vm1744, %v4877, %v4882
        %v4884 = vrot.slane %v4869, 2
        %v4885 = vsel %vm1744, %v4880, %v4884
        %v4890 = vadd.f32 %v4810, %v4878
        %v4891 = vadd.f32 %v4811, %v4881
        %v4892 = vadd.f32 %v4812, %v4883
        %v4893 = vadd.f32 %v4813, %v4885
        %s4894 = scalar_lea.vmem %s8, 23
        %v4895 = vld [vmem:[%s4894] ss:$8 sm:$0x3]
        %v4897 = vlaneseq
        %v4898 = vshrl.u32 %v4897, 7
        %v4899 = vsub.s32 0, %v4898
        %v4900 = vrot.slane %v4895, %v4899
        %v4901 = vlaneseq
        %v4902 = vshrl.u32 %v4901, 7
        %v4903 = vsub.s32 1, %v4902
        %v4904 = vrot.slane %v4895, %v4903
        %v4913 = vrot.slane %v4814, 2
        %v4914 = vrot.slane %v3647, 2
        %v4915 = vsel %vm1744, %v4913, %v4914
        %v4916 = vrot.slane %v4815, 2
        %v4917 = vrot.slane %v3648, 2
        %v4918 = vsel %vm1744, %v4916, %v4917
        %v4919 = vrot.slane %v4816, 2
        %v4920 = vrot.slane %v3649, 2
        %v4921 = vsel %vm1744, %v4919, %v4920
        %v4922 = vrot.slane %v4817, 2
        %v4923 = vsel %vm1744, %v4914, %v4922
        %v4924 = vrot.slane %v4818, 2
        %v4925 = vsel %vm1744, %v4917, %v4924
        %v4926 = vrot.slane %v4819, 2
        %v4927 = vsel %vm1744, %v4920, %v4926
        %4928 = vrot.lane.b32.xlu0 %v4915, 112
        %v4929 = vpop.permute.xlu0 %4928
        %4930 = vrot.lane.b32.xlu0 %v4918, 112
        %v4931 = vpop.permute.xlu0 %4930
        %4932 = vrot.lane.b32.xlu0 %v4921, 112
        %v4933 = vpop.permute.xlu0 %4932
        %4934 = vrot.lane.b32.xlu0 %v4923, 112
        %v4935 = vpop.permute.xlu0 %4934
        %4936 = vrot.lane.b32.xlu0 %v4925, 112
        %v4937 = vpop.permute.xlu0 %4936
        %4938 = vrot.lane.b32.xlu0 %v4927, 112
        %v4939 = vpop.permute.xlu0 %4938
        %v4940 = vsel %vm3316, %v4929, %v4931
        %v4941 = vsel %vm3316, %v4931, %v4933
        %v4942 = vsel %vm3316, %v4935, %v4937
        %v4943 = vsel %vm3316, %v4937, %v4939
        %v4948 = vmul.f32 %v4900, %v4940
        %v4949 = vmul.f32 %v4904, %v4941
        %v4950 = vmul.f32 %v4900, %v4942
        %v4951 = vmul.f32 %v4904, %v4943
        %s4952 = scalar_lea.vmem %s9, 23
        %v4953 = vld [vmem:[%s4952] ss:$8 sm:$0x3]
        %v4955 = vlaneseq
        %v4956 = vshrl.u32 %v4955, 7
        %v4957 = vsub.s32 0, %v4956
        %v4958 = vrot.slane %v4953, %v4957
        %v4959 = vlaneseq
        %v4960 = vshrl.u32 %v4959, 7
        %v4961 = vsub.s32 1, %v4960
        %v4962 = vrot.slane %v4953, %v4961
        %v4971 = vrot.slane %v4820, 2
        %v4972 = vrot.slane %v3653, 2
        %v4973 = vsel %vm1744, %v4971, %v4972
        %v4974 = vrot.slane %v4821, 2
        %v4975 = vrot.slane %v3654, 2
        %v4976 = vsel %vm1744, %v4974, %v4975
        %v4977 = vrot.slane %v4822, 2
        %v4978 = vrot.slane %v3655, 2
        %v4979 = vsel %vm1744, %v4977, %v4978
        %v4980 = vrot.slane %v4823, 2
        %v4981 = vsel %vm1744, %v4972, %v4980
        %v4982 = vrot.slane %v4824, 2
        %v4983 = vsel %vm1744, %v4975, %v4982
        %v4984 = vrot.slane %v4825, 2
        %v4985 = vsel %vm1744, %v4978, %v4984
        %4986 = vrot.lane.b32.xlu0 %v4973, 112
        %v4987 = vpop.permute.xlu0 %4986
        %4988 = vrot.lane.b32.xlu0 %v4976, 112
        %v4989 = vpop.permute.xlu0 %4988
        %4990 = vrot.lane.b32.xlu0 %v4979, 112
        %v4991 = vpop.permute.xlu0 %4990
        %4992 = vrot.lane.b32.xlu0 %v4981, 112
        %v4993 = vpop.permute.xlu0 %4992
        %4994 = vrot.lane.b32.xlu0 %v4983, 112
        %v4995 = vpop.permute.xlu0 %4994
        %4996 = vrot.lane.b32.xlu0 %v4985, 112
        %v4997 = vpop.permute.xlu0 %4996
        %v4998 = vsel %vm3316, %v4987, %v4989
        %v4999 = vsel %vm3316, %v4989, %v4991
        %v5000 = vsel %vm3316, %v4993, %v4995
        %v5001 = vsel %vm3316, %v4995, %v4997
        %v5006 = vmul.f32 %v4958, %v4998
        %v5007 = vmul.f32 %v4962, %v4999
        %v5008 = vmul.f32 %v4958, %v5000
        %v5009 = vmul.f32 %v4962, %v5001
        %v5010 = vadd.f32 %v4948, %v5006
        %v5011 = vadd.f32 %v4949, %v5007
        %v5012 = vadd.f32 %v4950, %v5008
        %v5013 = vadd.f32 %v4951, %v5009
        %v5014 = vadd.f32 %v4890, %v5010
        %v5015 = vadd.f32 %v4891, %v5011
        %v5016 = vadd.f32 %v4892, %v5012
        %v5017 = vadd.f32 %v4893, %v5013
        %s5018 = scalar_lea.vmem %s8, 32
        %v5019 = vld [vmem:[%s5018] ss:$8 sm:$0x3]
        %v5021 = vlaneseq
        %v5022 = vshrl.u32 %v5021, 7
        %v5023 = vsub.s32 0, %v5022
        %v5024 = vrot.slane %v5019, %v5023
        %v5025 = vlaneseq
        %v5026 = vshrl.u32 %v5025, 7
        %v5027 = vsub.s32 1, %v5026
        %v5028 = vrot.slane %v5019, %v5027
        %5031 = vrot.lane.b32.xlu0 %v4915, 96
        %v5032 = vpop.permute.xlu0 %5031
        %5033 = vrot.lane.b32.xlu0 %v4918, 96
        %v5034 = vpop.permute.xlu0 %5033
        %5035 = vrot.lane.b32.xlu0 %v4921, 96
        %v5036 = vpop.permute.xlu0 %5035
        %5037 = vrot.lane.b32.xlu0 %v4923, 96
        %v5038 = vpop.permute.xlu0 %5037
        %5039 = vrot.lane.b32.xlu0 %v4925, 96
        %v5040 = vpop.permute.xlu0 %5039
        %5041 = vrot.lane.b32.xlu0 %v4927, 96
        %v5042 = vpop.permute.xlu0 %5041
        %v5043 = vsel %vm3313, %v5032, %v5034
        %v5044 = vsel %vm3313, %v5034, %v5036
        %v5045 = vsel %vm3313, %v5038, %v5040
        %v5046 = vsel %vm3313, %v5040, %v5042
        %v5051 = vmul.f32 %v5024, %v5043
        %v5052 = vmul.f32 %v5028, %v5044
        %v5053 = vmul.f32 %v5024, %v5045
        %v5054 = vmul.f32 %v5028, %v5046
        %s5055 = scalar_lea.vmem %s9, 32
        %v5056 = vld [vmem:[%s5055] ss:$8 sm:$0x3]
        %v5058 = vlaneseq
        %v5059 = vshrl.u32 %v5058, 7
        %v5060 = vsub.s32 0, %v5059
        %v5061 = vrot.slane %v5056, %v5060
        %v5062 = vlaneseq
        %v5063 = vshrl.u32 %v5062, 7
        %v5064 = vsub.s32 1, %v5063
        %v5065 = vrot.slane %v5056, %v5064
        %5068 = vrot.lane.b32.xlu0 %v4973, 96
        %v5069 = vpop.permute.xlu0 %5068
        %5070 = vrot.lane.b32.xlu0 %v4976, 96
        %v5071 = vpop.permute.xlu0 %5070
        %5072 = vrot.lane.b32.xlu0 %v4979, 96
        %v5073 = vpop.permute.xlu0 %5072
        %5074 = vrot.lane.b32.xlu0 %v4981, 96
        %v5075 = vpop.permute.xlu0 %5074
        %5076 = vrot.lane.b32.xlu0 %v4983, 96
        %v5077 = vpop.permute.xlu0 %5076
        %5078 = vrot.lane.b32.xlu0 %v4985, 96
        %v5079 = vpop.permute.xlu0 %5078
        %v5080 = vsel %vm3313, %v5069, %v5071
        %v5081 = vsel %vm3313, %v5071, %v5073
        %v5082 = vsel %vm3313, %v5075, %v5077
        %v5083 = vsel %vm3313, %v5077, %v5079
        %v5088 = vmul.f32 %v5061, %v5080
        %v5089 = vmul.f32 %v5065, %v5081
        %v5090 = vmul.f32 %v5061, %v5082
        %v5091 = vmul.f32 %v5065, %v5083
        %v5092 = vadd.f32 %v5051, %v5088
        %v5093 = vadd.f32 %v5052, %v5089
        %v5094 = vadd.f32 %v5053, %v5090
        %v5095 = vadd.f32 %v5054, %v5091
        %v5096 = vadd.f32 %v5014, %v5092
        %v5097 = vadd.f32 %v5015, %v5093
        %v5098 = vadd.f32 %v5016, %v5094
        %v5099 = vadd.f32 %v5017, %v5095
        %s5100 = scalar_lea.vmem %s8, 33
        %v5101 = vld [vmem:[%s5100] ss:$8 sm:$0x3]
        %v5103 = vlaneseq
        %v5104 = vshrl.u32 %v5103, 7
        %v5105 = vsub.s32 0, %v5104
        %v5106 = vrot.slane %v5101, %v5105
        %v5107 = vlaneseq
        %v5108 = vshrl.u32 %v5107, 7
        %v5109 = vsub.s32 1, %v5108
        %v5110 = vrot.slane %v5101, %v5109
        %5113 = vrot.lane.b32.xlu0 %v4915, 80
        %v5114 = vpop.permute.xlu0 %5113
        %5115 = vrot.lane.b32.xlu0 %v4918, 80
        %v5116 = vpop.permute.xlu0 %5115
        %5117 = vrot.lane.b32.xlu0 %v4921, 80
        %v5118 = vpop.permute.xlu0 %5117
        %5119 = vrot.lane.b32.xlu0 %v4923, 80
        %v5120 = vpop.permute.xlu0 %5119
        %5121 = vrot.lane.b32.xlu0 %v4925, 80
        %v5122 = vpop.permute.xlu0 %5121
        %5123 = vrot.lane.b32.xlu0 %v4927, 80
        %v5124 = vpop.permute.xlu0 %5123
        %v5125 = vsel %vm3310, %v5114, %v5116
        %v5126 = vsel %vm3310, %v5116, %v5118
        %v5127 = vsel %vm3310, %v5120, %v5122
        %v5128 = vsel %vm3310, %v5122, %v5124
        %v5133 = vmul.f32 %v5106, %v5125
        %v5134 = vmul.f32 %v5110, %v5126
        %v5135 = vmul.f32 %v5106, %v5127
        %v5136 = vmul.f32 %v5110, %v5128
        %s5137 = scalar_lea.vmem %s9, 33
        %v5138 = vld [vmem:[%s5137] ss:$8 sm:$0x3]
        %v5140 = vlaneseq
        %v5141 = vshrl.u32 %v5140, 7
        %v5142 = vsub.s32 0, %v5141
        %v5143 = vrot.slane %v5138, %v5142
        %v5144 = vlaneseq
        %v5145 = vshrl.u32 %v5144, 7
        %v5146 = vsub.s32 1, %v5145
        %v5147 = vrot.slane %v5138, %v5146
        %5150 = vrot.lane.b32.xlu0 %v4973, 80
        %v5151 = vpop.permute.xlu0 %5150
        %5152 = vrot.lane.b32.xlu0 %v4976, 80
        %v5153 = vpop.permute.xlu0 %5152
        %5154 = vrot.lane.b32.xlu0 %v4979, 80
        %v5155 = vpop.permute.xlu0 %5154
        %5156 = vrot.lane.b32.xlu0 %v4981, 80
        %v5157 = vpop.permute.xlu0 %5156
        %5158 = vrot.lane.b32.xlu0 %v4983, 80
        %v5159 = vpop.permute.xlu0 %5158
        %5160 = vrot.lane.b32.xlu0 %v4985, 80
        %v5161 = vpop.permute.xlu0 %5160
        %v5162 = vsel %vm3310, %v5151, %v5153
        %v5163 = vsel %vm3310, %v5153, %v5155
        %v5164 = vsel %vm3310, %v5157, %v5159
        %v5165 = vsel %vm3310, %v5159, %v5161
        %v5170 = vmul.f32 %v5143, %v5162
        %v5171 = vmul.f32 %v5147, %v5163
        %v5172 = vmul.f32 %v5143, %v5164
        %v5173 = vmul.f32 %v5147, %v5165
        %v5174 = vadd.f32 %v5133, %v5170
        %v5175 = vadd.f32 %v5134, %v5171
        %v5176 = vadd.f32 %v5135, %v5172
        %v5177 = vadd.f32 %v5136, %v5173
        %v5178 = vadd.f32 %v5096, %v5174
        %v5179 = vadd.f32 %v5097, %v5175
        %v5180 = vadd.f32 %v5098, %v5176
        %v5181 = vadd.f32 %v5099, %v5177
        %s5182 = scalar_lea.vmem %s8, 34
        %v5183 = vld [vmem:[%s5182] ss:$8 sm:$0x3]
        %v5185 = vlaneseq
        %v5186 = vshrl.u32 %v5185, 7
        %v5187 = vsub.s32 0, %v5186
        %v5188 = vrot.slane %v5183, %v5187
        %v5189 = vlaneseq
        %v5190 = vshrl.u32 %v5189, 7
        %v5191 = vsub.s32 1, %v5190
        %v5192 = vrot.slane %v5183, %v5191
        %5195 = vrot.lane.b32.xlu0 %v4915, 64
        %v5196 = vpop.permute.xlu0 %5195
        %5197 = vrot.lane.b32.xlu0 %v4918, 64
        %v5198 = vpop.permute.xlu0 %5197
        %5199 = vrot.lane.b32.xlu0 %v4921, 64
        %v5200 = vpop.permute.xlu0 %5199
        %5201 = vrot.lane.b32.xlu0 %v4923, 64
        %v5202 = vpop.permute.xlu0 %5201
        %5203 = vrot.lane.b32.xlu0 %v4925, 64
        %v5204 = vpop.permute.xlu0 %5203
        %5205 = vrot.lane.b32.xlu0 %v4927, 64
        %v5206 = vpop.permute.xlu0 %5205
        %v5207 = vsel %vm3307, %v5196, %v5198
        %v5208 = vsel %vm3307, %v5198, %v5200
        %v5209 = vsel %vm3307, %v5202, %v5204
        %v5210 = vsel %vm3307, %v5204, %v5206
        %v5215 = vmul.f32 %v5188, %v5207
        %v5216 = vmul.f32 %v5192, %v5208
        %v5217 = vmul.f32 %v5188, %v5209
        %v5218 = vmul.f32 %v5192, %v5210
        %s5219 = scalar_lea.vmem %s9, 34
        %v5220 = vld [vmem:[%s5219] ss:$8 sm:$0x3]
        %v5222 = vlaneseq
        %v5223 = vshrl.u32 %v5222, 7
        %v5224 = vsub.s32 0, %v5223
        %v5225 = vrot.slane %v5220, %v5224
        %v5226 = vlaneseq
        %v5227 = vshrl.u32 %v5226, 7
        %v5228 = vsub.s32 1, %v5227
        %v5229 = vrot.slane %v5220, %v5228
        %5232 = vrot.lane.b32.xlu0 %v4973, 64
        %v5233 = vpop.permute.xlu0 %5232
        %5234 = vrot.lane.b32.xlu0 %v4976, 64
        %v5235 = vpop.permute.xlu0 %5234
        %5236 = vrot.lane.b32.xlu0 %v4979, 64
        %v5237 = vpop.permute.xlu0 %5236
        %5238 = vrot.lane.b32.xlu0 %v4981, 64
        %v5239 = vpop.permute.xlu0 %5238
        %5240 = vrot.lane.b32.xlu0 %v4983, 64
        %v5241 = vpop.permute.xlu0 %5240
        %5242 = vrot.lane.b32.xlu0 %v4985, 64
        %v5243 = vpop.permute.xlu0 %5242
        %v5244 = vsel %vm3307, %v5233, %v5235
        %v5245 = vsel %vm3307, %v5235, %v5237
        %v5246 = vsel %vm3307, %v5239, %v5241
        %v5247 = vsel %vm3307, %v5241, %v5243
        %v5252 = vmul.f32 %v5225, %v5244
        %v5253 = vmul.f32 %v5229, %v5245
        %v5254 = vmul.f32 %v5225, %v5246
        %v5255 = vmul.f32 %v5229, %v5247
        %v5256 = vadd.f32 %v5215, %v5252
        %v5257 = vadd.f32 %v5216, %v5253
        %v5258 = vadd.f32 %v5217, %v5254
        %v5259 = vadd.f32 %v5218, %v5255
        %v5260 = vadd.f32 %v5178, %v5256
        %v5261 = vadd.f32 %v5179, %v5257
        %v5262 = vadd.f32 %v5180, %v5258
        %v5263 = vadd.f32 %v5181, %v5259
        %s5264 = scalar_lea.vmem %s8, 35
        %v5265 = vld [vmem:[%s5264] ss:$8 sm:$0x3]
        %v5267 = vlaneseq
        %v5268 = vshrl.u32 %v5267, 7
        %v5269 = vsub.s32 0, %v5268
        %v5270 = vrot.slane %v5265, %v5269
        %v5271 = vlaneseq
        %v5272 = vshrl.u32 %v5271, 7
        %v5273 = vsub.s32 1, %v5272
        %v5274 = vrot.slane %v5265, %v5273
        %5277 = vrot.lane.b32.xlu0 %v4915, 48
        %v5278 = vpop.permute.xlu0 %5277
        %5279 = vrot.lane.b32.xlu0 %v4918, 48
        %v5280 = vpop.permute.xlu0 %5279
        %5281 = vrot.lane.b32.xlu0 %v4921, 48
        %v5282 = vpop.permute.xlu0 %5281
        %5283 = vrot.lane.b32.xlu0 %v4923, 48
        %v5284 = vpop.permute.xlu0 %5283
        %5285 = vrot.lane.b32.xlu0 %v4925, 48
        %v5286 = vpop.permute.xlu0 %5285
        %5287 = vrot.lane.b32.xlu0 %v4927, 48
        %v5288 = vpop.permute.xlu0 %5287
        %v5289 = vsel %vm3304, %v5278, %v5280
        %v5290 = vsel %vm3304, %v5280, %v5282
        %v5291 = vsel %vm3304, %v5284, %v5286
        %v5292 = vsel %vm3304, %v5286, %v5288
        %v5297 = vmul.f32 %v5270, %v5289
        %v5298 = vmul.f32 %v5274, %v5290
        %v5299 = vmul.f32 %v5270, %v5291
        %v5300 = vmul.f32 %v5274, %v5292
        %s5301 = scalar_lea.vmem %s9, 35
        %v5302 = vld [vmem:[%s5301] ss:$8 sm:$0x3]
        %v5304 = vlaneseq
        %v5305 = vshrl.u32 %v5304, 7
        %v5306 = vsub.s32 0, %v5305
        %v5307 = vrot.slane %v5302, %v5306
        %v5308 = vlaneseq
        %v5309 = vshrl.u32 %v5308, 7
        %v5310 = vsub.s32 1, %v5309
        %v5311 = vrot.slane %v5302, %v5310
        %5314 = vrot.lane.b32.xlu0 %v4973, 48
        %v5315 = vpop.permute.xlu0 %5314
        %5316 = vrot.lane.b32.xlu0 %v4976, 48
        %v5317 = vpop.permute.xlu0 %5316
        %5318 = vrot.lane.b32.xlu0 %v4979, 48
        %v5319 = vpop.permute.xlu0 %5318
        %5320 = vrot.lane.b32.xlu0 %v4981, 48
        %v5321 = vpop.permute.xlu0 %5320
        %5322 = vrot.lane.b32.xlu0 %v4983, 48
        %v5323 = vpop.permute.xlu0 %5322
        %5324 = vrot.lane.b32.xlu0 %v4985, 48
        %v5325 = vpop.permute.xlu0 %5324
        %v5326 = vsel %vm3304, %v5315, %v5317
        %v5327 = vsel %vm3304, %v5317, %v5319
        %v5328 = vsel %vm3304, %v5321, %v5323
        %v5329 = vsel %vm3304, %v5323, %v5325
        %v5334 = vmul.f32 %v5307, %v5326
        %v5335 = vmul.f32 %v5311, %v5327
        %v5336 = vmul.f32 %v5307, %v5328
        %v5337 = vmul.f32 %v5311, %v5329
        %v5338 = vadd.f32 %v5297, %v5334
        %v5339 = vadd.f32 %v5298, %v5335
        %v5340 = vadd.f32 %v5299, %v5336
        %v5341 = vadd.f32 %v5300, %v5337
        %v5342 = vadd.f32 %v5260, %v5338
        %v5343 = vadd.f32 %v5261, %v5339
        %v5344 = vadd.f32 %v5262, %v5340
        %v5345 = vadd.f32 %v5263, %v5341
        %s5346 = scalar_lea.vmem %s8, 36
        %v5347 = vld [vmem:[%s5346] ss:$8 sm:$0x3]
        %v5349 = vlaneseq
        %v5350 = vshrl.u32 %v5349, 7
        %v5351 = vsub.s32 0, %v5350
        %v5352 = vrot.slane %v5347, %v5351
        %v5353 = vlaneseq
        %v5354 = vshrl.u32 %v5353, 7
        %v5355 = vsub.s32 1, %v5354
        %v5356 = vrot.slane %v5347, %v5355
        %5359 = vrot.lane.b32.xlu0 %v4915, 32
        %v5360 = vpop.permute.xlu0 %5359
        %5361 = vrot.lane.b32.xlu0 %v4918, 32
        %v5362 = vpop.permute.xlu0 %5361
        %5363 = vrot.lane.b32.xlu0 %v4921, 32
        %v5364 = vpop.permute.xlu0 %5363
        %5365 = vrot.lane.b32.xlu0 %v4923, 32
        %v5366 = vpop.permute.xlu0 %5365
        %5367 = vrot.lane.b32.xlu0 %v4925, 32
        %v5368 = vpop.permute.xlu0 %5367
        %5369 = vrot.lane.b32.xlu0 %v4927, 32
        %v5370 = vpop.permute.xlu0 %5369
        %v5371 = vsel %vm3301, %v5360, %v5362
        %v5372 = vsel %vm3301, %v5362, %v5364
        %v5373 = vsel %vm3301, %v5366, %v5368
        %v5374 = vsel %vm3301, %v5368, %v5370
        %v5379 = vmul.f32 %v5352, %v5371
        %v5380 = vmul.f32 %v5356, %v5372
        %v5381 = vmul.f32 %v5352, %v5373
        %v5382 = vmul.f32 %v5356, %v5374
        %s5383 = scalar_lea.vmem %s9, 36
        %v5384 = vld [vmem:[%s5383] ss:$8 sm:$0x3]
        %v5386 = vlaneseq
        %v5387 = vshrl.u32 %v5386, 7
        %v5388 = vsub.s32 0, %v5387
        %v5389 = vrot.slane %v5384, %v5388
        %v5390 = vlaneseq
        %v5391 = vshrl.u32 %v5390, 7
        %v5392 = vsub.s32 1, %v5391
        %v5393 = vrot.slane %v5384, %v5392
        %5396 = vrot.lane.b32.xlu0 %v4973, 32
        %v5397 = vpop.permute.xlu0 %5396
        %5398 = vrot.lane.b32.xlu0 %v4976, 32
        %v5399 = vpop.permute.xlu0 %5398
        %5400 = vrot.lane.b32.xlu0 %v4979, 32
        %v5401 = vpop.permute.xlu0 %5400
        %5402 = vrot.lane.b32.xlu0 %v4981, 32
        %v5403 = vpop.permute.xlu0 %5402
        %5404 = vrot.lane.b32.xlu0 %v4983, 32
        %v5405 = vpop.permute.xlu0 %5404
        %5406 = vrot.lane.b32.xlu0 %v4985, 32
        %v5407 = vpop.permute.xlu0 %5406
        %v5408 = vsel %vm3301, %v5397, %v5399
        %v5409 = vsel %vm3301, %v5399, %v5401
        %v5410 = vsel %vm3301, %v5403, %v5405
        %v5411 = vsel %vm3301, %v5405, %v5407
        %v5416 = vmul.f32 %v5389, %v5408
        %v5417 = vmul.f32 %v5393, %v5409
        %v5418 = vmul.f32 %v5389, %v5410
        %v5419 = vmul.f32 %v5393, %v5411
        %v5420 = vadd.f32 %v5379, %v5416
        %v5421 = vadd.f32 %v5380, %v5417
        %v5422 = vadd.f32 %v5381, %v5418
        %v5423 = vadd.f32 %v5382, %v5419
        %v5424 = vadd.f32 %v5342, %v5420
        %v5425 = vadd.f32 %v5343, %v5421
        %v5426 = vadd.f32 %v5344, %v5422
        %v5427 = vadd.f32 %v5345, %v5423
        %v5428 = vld [vmem:[#allocation2] sm:$0xf8]
        %v5429 = vld [vmem:[#allocation2 + $0x8] sm:$0xf8]
        %v5430 = vld [vmem:[#allocation2 + $0x10] sm:$0xf8]
        %v5431 = vld [vmem:[#allocation2 + $0x30] sm:$0x7]
        %v5432 = vld [vmem:[#allocation2 + $0x38] sm:$0x7]
        %v5433 = vld [vmem:[#allocation2 + $0x40] sm:$0x7]
        %v5434 = vld [vmem:[#allocation3] sm:$0xf8]
        %v5435 = vld [vmem:[#allocation3 + $0x8] sm:$0xf8]
        %v5436 = vld [vmem:[#allocation3 + $0x10] sm:$0xf8]
        %v5437 = vld [vmem:[#allocation3 + $0x30] sm:$0x7]
        %v5438 = vld [vmem:[#allocation3 + $0x38] sm:$0x7]
        %v5439 = vld [vmem:[#allocation3 + $0x40] sm:$0x7]
        %s5440 = scalar_lea.vmem %s8, 37
        %v5441 = vld [vmem:[%s5440] ss:$8 sm:$0x3]
        %v5443 = vlaneseq
        %v5444 = vshrl.u32 %v5443, 7
        %v5445 = vsub.s32 0, %v5444
        %v5446 = vrot.slane %v5441, %v5445
        %v5447 = vlaneseq
        %v5448 = vshrl.u32 %v5447, 7
        %v5449 = vsub.s32 1, %v5448
        %v5450 = vrot.slane %v5441, %v5449
        %v5453 = vmul.f32 %v5446, %v5428
        %v5454 = vmul.f32 %v5450, %v5429
        %v5455 = vmul.f32 %v5446, %v3647
        %v5456 = vmul.f32 %v5450, %v3648
        %v5457 = vmul.f32 %v5446, %v5431
        %v5458 = vmul.f32 %v5450, %v5432
        %s5459 = scalar_lea.vmem %s9, 37
        %v5460 = vld [vmem:[%s5459] ss:$8 sm:$0x3]
        %v5462 = vlaneseq
        %v5463 = vshrl.u32 %v5462, 7
        %v5464 = vsub.s32 0, %v5463
        %v5465 = vrot.slane %v5460, %v5464
        %v5466 = vlaneseq
        %v5467 = vshrl.u32 %v5466, 7
        %v5468 = vsub.s32 1, %v5467
        %v5469 = vrot.slane %v5460, %v5468
        %v5472 = vmul.f32 %v5465, %v5434
        %v5473 = vmul.f32 %v5469, %v5435
        %v5474 = vmul.f32 %v5465, %v3653
        %v5475 = vmul.f32 %v5469, %v3654
        %v5476 = vmul.f32 %v5465, %v5437
        %v5477 = vmul.f32 %v5469, %v5438
        %v5478 = vadd.f32 %v5453, %v5472
        %v5479 = vadd.f32 %v5454, %v5473
        %v5480 = vadd.f32 %v5455, %v5474
        %v5481 = vadd.f32 %v5456, %v5475
        %v5482 = vadd.f32 %v5457, %v5476
        %v5483 = vadd.f32 %v5458, %v5477
        %v5490 = vrot.slane %v5478, 3
        %v5491 = vrot.slane %v5480, 3
        %v5492 = vsel %vm2031, %v5490, %v5491
        %v5493 = vrot.slane %v5479, 3
        %v5494 = vrot.slane %v5481, 3
        %v5495 = vsel %vm2031, %v5493, %v5494
        %v5496 = vrot.slane %v5482, 3
        %v5497 = vsel %vm2031, %v5491, %v5496
        %v5498 = vrot.slane %v5483, 3
        %v5499 = vsel %vm2031, %v5494, %v5498
        %v5504 = vadd.f32 %v5424, %v5492
        %v5505 = vadd.f32 %v5425, %v5495
        %v5506 = vadd.f32 %v5426, %v5497
        %v5507 = vadd.f32 %v5427, %v5499
        %s5508 = scalar_lea.vmem %s8, 38
        %v5509 = vld [vmem:[%s5508] ss:$8 sm:$0x3]
        %v5511 = vlaneseq
        %v5512 = vshrl.u32 %v5511, 7
        %v5513 = vsub.s32 0, %v5512
        %v5514 = vrot.slane %v5509, %v5513
        %v5515 = vlaneseq
        %v5516 = vshrl.u32 %v5515, 7
        %v5517 = vsub.s32 1, %v5516
        %v5518 = vrot.slane %v5509, %v5517
        %v5527 = vrot.slane %v5428, 3
        %v5528 = vrot.slane %v3647, 3
        %v5529 = vsel %vm2031, %v5527, %v5528
        %v5530 = vrot.slane %v5429, 3
        %v5531 = vrot.slane %v3648, 3
        %v5532 = vsel %vm2031, %v5530, %v5531
        %v5533 = vrot.slane %v5430, 3
        %v5534 = vrot.slane %v3649, 3
        %v5535 = vsel %vm2031, %v5533, %v5534
        %v5536 = vrot.slane %v5431, 3
        %v5537 = vsel %vm2031, %v5528, %v5536
        %v5538 = vrot.slane %v5432, 3
        %v5539 = vsel %vm2031, %v5531, %v5538
        %v5540 = vrot.slane %v5433, 3
        %v5541 = vsel %vm2031, %v5534, %v5540
        %5542 = vrot.lane.b32.xlu0 %v5529, 112
        %v5543 = vpop.permute.xlu0 %5542
        %5544 = vrot.lane.b32.xlu0 %v5532, 112
        %v5545 = vpop.permute.xlu0 %5544
        %5546 = vrot.lane.b32.xlu0 %v5535, 112
        %v5547 = vpop.permute.xlu0 %5546
        %5548 = vrot.lane.b32.xlu0 %v5537, 112
        %v5549 = vpop.permute.xlu0 %5548
        %5550 = vrot.lane.b32.xlu0 %v5539, 112
        %v5551 = vpop.permute.xlu0 %5550
        %5552 = vrot.lane.b32.xlu0 %v5541, 112
        %v5553 = vpop.permute.xlu0 %5552
        %v5554 = vsel %vm3316, %v5543, %v5545
        %v5555 = vsel %vm3316, %v5545, %v5547
        %v5556 = vsel %vm3316, %v5549, %v5551
        %v5557 = vsel %vm3316, %v5551, %v5553
        %v5562 = vmul.f32 %v5514, %v5554
        %v5563 = vmul.f32 %v5518, %v5555
        %v5564 = vmul.f32 %v5514, %v5556
        %v5565 = vmul.f32 %v5518, %v5557
        %s5566 = scalar_lea.vmem %s9, 38
        %v5567 = vld [vmem:[%s5566] ss:$8 sm:$0x3]
        %v5569 = vlaneseq
        %v5570 = vshrl.u32 %v5569, 7
        %v5571 = vsub.s32 0, %v5570
        %v5572 = vrot.slane %v5567, %v5571
        %v5573 = vlaneseq
        %v5574 = vshrl.u32 %v5573, 7
        %v5575 = vsub.s32 1, %v5574
        %v5576 = vrot.slane %v5567, %v5575
        %v5585 = vrot.slane %v5434, 3
        %v5586 = vrot.slane %v3653, 3
        %v5587 = vsel %vm2031, %v5585, %v5586
        %v5588 = vrot.slane %v5435, 3
        %v5589 = vrot.slane %v3654, 3
        %v5590 = vsel %vm2031, %v5588, %v5589
        %v5591 = vrot.slane %v5436, 3
        %v5592 = vrot.slane %v3655, 3
        %v5593 = vsel %vm2031, %v5591, %v5592
        %v5594 = vrot.slane %v5437, 3
        %v5595 = vsel %vm2031, %v5586, %v5594
        %v5596 = vrot.slane %v5438, 3
        %v5597 = vsel %vm2031, %v5589, %v5596
        %v5598 = vrot.slane %v5439, 3
        %v5599 = vsel %vm2031, %v5592, %v5598
        %5600 = vrot.lane.b32.xlu0 %v5587, 112
        %v5601 = vpop.permute.xlu0 %5600
        %5602 = vrot.lane.b32.xlu0 %v5590, 112
        %v5603 = vpop.permute.xlu0 %5602
        %5604 = vrot.lane.b32.xlu0 %v5593, 112
        %v5605 = vpop.permute.xlu0 %5604
        %5606 = vrot.lane.b32.xlu0 %v5595, 112
        %v5607 = vpop.permute.xlu0 %5606
        %5608 = vrot.lane.b32.xlu0 %v5597, 112
        %v5609 = vpop.permute.xlu0 %5608
        %5610 = vrot.lane.b32.xlu0 %v5599, 112
        %v5611 = vpop.permute.xlu0 %5610
        %v5612 = vsel %vm3316, %v5601, %v5603
        %v5613 = vsel %vm3316, %v5603, %v5605
        %v5614 = vsel %vm3316, %v5607, %v5609
        %v5615 = vsel %vm3316, %v5609, %v5611
        %v5620 = vmul.f32 %v5572, %v5612
        %v5621 = vmul.f32 %v5576, %v5613
        %v5622 = vmul.f32 %v5572, %v5614
        %v5623 = vmul.f32 %v5576, %v5615
        %v5624 = vadd.f32 %v5562, %v5620
        %v5625 = vadd.f32 %v5563, %v5621
        %v5626 = vadd.f32 %v5564, %v5622
        %v5627 = vadd.f32 %v5565, %v5623
        %v5628 = vadd.f32 %v5504, %v5624
        %v5629 = vadd.f32 %v5505, %v5625
        %v5630 = vadd.f32 %v5506, %v5626
        %v5631 = vadd.f32 %v5507, %v5627
        %s5632 = scalar_lea.vmem %s8, 39
        %v5633 = vld [vmem:[%s5632] ss:$8 sm:$0x3]
        %v5635 = vlaneseq
        %v5636 = vshrl.u32 %v5635, 7
        %v5637 = vsub.s32 0, %v5636
        %v5638 = vrot.slane %v5633, %v5637
        %v5639 = vlaneseq
        %v5640 = vshrl.u32 %v5639, 7
        %v5641 = vsub.s32 1, %v5640
        %v5642 = vrot.slane %v5633, %v5641
        %5645 = vrot.lane.b32.xlu0 %v5529, 96
        %v5646 = vpop.permute.xlu0 %5645
        %5647 = vrot.lane.b32.xlu0 %v5532, 96
        %v5648 = vpop.permute.xlu0 %5647
        %5649 = vrot.lane.b32.xlu0 %v5535, 96
        %v5650 = vpop.permute.xlu0 %5649
        %5651 = vrot.lane.b32.xlu0 %v5537, 96
        %v5652 = vpop.permute.xlu0 %5651
        %5653 = vrot.lane.b32.xlu0 %v5539, 96
        %v5654 = vpop.permute.xlu0 %5653
        %5655 = vrot.lane.b32.xlu0 %v5541, 96
        %v5656 = vpop.permute.xlu0 %5655
        %v5657 = vsel %vm3313, %v5646, %v5648
        %v5658 = vsel %vm3313, %v5648, %v5650
        %v5659 = vsel %vm3313, %v5652, %v5654
        %v5660 = vsel %vm3313, %v5654, %v5656
        %v5665 = vmul.f32 %v5638, %v5657
        %v5666 = vmul.f32 %v5642, %v5658
        %v5667 = vmul.f32 %v5638, %v5659
        %v5668 = vmul.f32 %v5642, %v5660
        %s5669 = scalar_lea.vmem %s9, 39
        %v5670 = vld [vmem:[%s5669] ss:$8 sm:$0x3]
        %v5672 = vlaneseq
        %v5673 = vshrl.u32 %v5672, 7
        %v5674 = vsub.s32 0, %v5673
        %v5675 = vrot.slane %v5670, %v5674
        %v5676 = vlaneseq
        %v5677 = vshrl.u32 %v5676, 7
        %v5678 = vsub.s32 1, %v5677
        %v5679 = vrot.slane %v5670, %v5678
        %5682 = vrot.lane.b32.xlu0 %v5587, 96
        %v5683 = vpop.permute.xlu0 %5682
        %5684 = vrot.lane.b32.xlu0 %v5590, 96
        %v5685 = vpop.permute.xlu0 %5684
        %5686 = vrot.lane.b32.xlu0 %v5593, 96
        %v5687 = vpop.permute.xlu0 %5686
        %5688 = vrot.lane.b32.xlu0 %v5595, 96
        %v5689 = vpop.permute.xlu0 %5688
        %5690 = vrot.lane.b32.xlu0 %v5597, 96
        %v5691 = vpop.permute.xlu0 %5690
        %5692 = vrot.lane.b32.xlu0 %v5599, 96
        %v5693 = vpop.permute.xlu0 %5692
        %v5694 = vsel %vm3313, %v5683, %v5685
        %v5695 = vsel %vm3313, %v5685, %v5687
        %v5696 = vsel %vm3313, %v5689, %v5691
        %v5697 = vsel %vm3313, %v5691, %v5693
        %v5702 = vmul.f32 %v5675, %v5694
        %v5703 = vmul.f32 %v5679, %v5695
        %v5704 = vmul.f32 %v5675, %v5696
        %v5705 = vmul.f32 %v5679, %v5697
        %v5706 = vadd.f32 %v5665, %v5702
        %v5707 = vadd.f32 %v5666, %v5703
        %v5708 = vadd.f32 %v5667, %v5704
        %v5709 = vadd.f32 %v5668, %v5705
        %v5710 = vadd.f32 %v5628, %v5706
        %v5711 = vadd.f32 %v5629, %v5707
        %v5712 = vadd.f32 %v5630, %v5708
        %v5713 = vadd.f32 %v5631, %v5709
        %s5714 = scalar_lea.vmem %s8, 48
        %v5715 = vld [vmem:[%s5714] ss:$8 sm:$0x3]
        %v5717 = vlaneseq
        %v5718 = vshrl.u32 %v5717, 7
        %v5719 = vsub.s32 0, %v5718
        %v5720 = vrot.slane %v5715, %v5719
        %v5721 = vlaneseq
        %v5722 = vshrl.u32 %v5721, 7
        %v5723 = vsub.s32 1, %v5722
        %v5724 = vrot.slane %v5715, %v5723
        %5727 = vrot.lane.b32.xlu0 %v5529, 80
        %v5728 = vpop.permute.xlu0 %5727
        %5729 = vrot.lane.b32.xlu0 %v5532, 80
        %v5730 = vpop.permute.xlu0 %5729
        %5731 = vrot.lane.b32.xlu0 %v5535, 80
        %v5732 = vpop.permute.xlu0 %5731
        %5733 = vrot.lane.b32.xlu0 %v5537, 80
        %v5734 = vpop.permute.xlu0 %5733
        %5735 = vrot.lane.b32.xlu0 %v5539, 80
        %v5736 = vpop.permute.xlu0 %5735
        %5737 = vrot.lane.b32.xlu0 %v5541, 80
        %v5738 = vpop.permute.xlu0 %5737
        %v5739 = vsel %vm3310, %v5728, %v5730
        %v5740 = vsel %vm3310, %v5730, %v5732
        %v5741 = vsel %vm3310, %v5734, %v5736
        %v5742 = vsel %vm3310, %v5736, %v5738
        %v5747 = vmul.f32 %v5720, %v5739
        %v5748 = vmul.f32 %v5724, %v5740
        %v5749 = vmul.f32 %v5720, %v5741
        %v5750 = vmul.f32 %v5724, %v5742
        %s5751 = scalar_lea.vmem %s9, 48
        %v5752 = vld [vmem:[%s5751] ss:$8 sm:$0x3]
        %v5754 = vlaneseq
        %v5755 = vshrl.u32 %v5754, 7
        %v5756 = vsub.s32 0, %v5755
        %v5757 = vrot.slane %v5752, %v5756
        %v5758 = vlaneseq
        %v5759 = vshrl.u32 %v5758, 7
        %v5760 = vsub.s32 1, %v5759
        %v5761 = vrot.slane %v5752, %v5760
        %5764 = vrot.lane.b32.xlu0 %v5587, 80
        %v5765 = vpop.permute.xlu0 %5764
        %5766 = vrot.lane.b32.xlu0 %v5590, 80
        %v5767 = vpop.permute.xlu0 %5766
        %5768 = vrot.lane.b32.xlu0 %v5593, 80
        %v5769 = vpop.permute.xlu0 %5768
        %5770 = vrot.lane.b32.xlu0 %v5595, 80
        %v5771 = vpop.permute.xlu0 %5770
        %5772 = vrot.lane.b32.xlu0 %v5597, 80
        %v5773 = vpop.permute.xlu0 %5772
        %5774 = vrot.lane.b32.xlu0 %v5599, 80
        %v5775 = vpop.permute.xlu0 %5774
        %v5776 = vsel %vm3310, %v5765, %v5767
        %v5777 = vsel %vm3310, %v5767, %v5769
        %v5778 = vsel %vm3310, %v5771, %v5773
        %v5779 = vsel %vm3310, %v5773, %v5775
        %v5784 = vmul.f32 %v5757, %v5776
        %v5785 = vmul.f32 %v5761, %v5777
        %v5786 = vmul.f32 %v5757, %v5778
        %v5787 = vmul.f32 %v5761, %v5779
        %v5788 = vadd.f32 %v5747, %v5784
        %v5789 = vadd.f32 %v5748, %v5785
        %v5790 = vadd.f32 %v5749, %v5786
        %v5791 = vadd.f32 %v5750, %v5787
        %v5792 = vadd.f32 %v5710, %v5788
        %v5793 = vadd.f32 %v5711, %v5789
        %v5794 = vadd.f32 %v5712, %v5790
        %v5795 = vadd.f32 %v5713, %v5791
        %s5796 = scalar_lea.vmem %s8, 49
        %v5797 = vld [vmem:[%s5796] ss:$8 sm:$0x3]
        %v5799 = vlaneseq
        %v5800 = vshrl.u32 %v5799, 7
        %v5801 = vsub.s32 0, %v5800
        %v5802 = vrot.slane %v5797, %v5801
        %v5803 = vlaneseq
        %v5804 = vshrl.u32 %v5803, 7
        %v5805 = vsub.s32 1, %v5804
        %v5806 = vrot.slane %v5797, %v5805
        %5809 = vrot.lane.b32.xlu0 %v5529, 64
        %v5810 = vpop.permute.xlu0 %5809
        %5811 = vrot.lane.b32.xlu0 %v5532, 64
        %v5812 = vpop.permute.xlu0 %5811
        %5813 = vrot.lane.b32.xlu0 %v5535, 64
        %v5814 = vpop.permute.xlu0 %5813
        %5815 = vrot.lane.b32.xlu0 %v5537, 64
        %v5816 = vpop.permute.xlu0 %5815
        %5817 = vrot.lane.b32.xlu0 %v5539, 64
        %v5818 = vpop.permute.xlu0 %5817
        %5819 = vrot.lane.b32.xlu0 %v5541, 64
        %v5820 = vpop.permute.xlu0 %5819
        %v5821 = vsel %vm3307, %v5810, %v5812
        %v5822 = vsel %vm3307, %v5812, %v5814
        %v5823 = vsel %vm3307, %v5816, %v5818
        %v5824 = vsel %vm3307, %v5818, %v5820
        %v5829 = vmul.f32 %v5802, %v5821
        %v5830 = vmul.f32 %v5806, %v5822
        %v5831 = vmul.f32 %v5802, %v5823
        %v5832 = vmul.f32 %v5806, %v5824
        %s5833 = scalar_lea.vmem %s9, 49
        %v5834 = vld [vmem:[%s5833] ss:$8 sm:$0x3]
        %v5836 = vlaneseq
        %v5837 = vshrl.u32 %v5836, 7
        %v5838 = vsub.s32 0, %v5837
        %v5839 = vrot.slane %v5834, %v5838
        %v5840 = vlaneseq
        %v5841 = vshrl.u32 %v5840, 7
        %v5842 = vsub.s32 1, %v5841
        %v5843 = vrot.slane %v5834, %v5842
        %5846 = vrot.lane.b32.xlu0 %v5587, 64
        %v5847 = vpop.permute.xlu0 %5846
        %5848 = vrot.lane.b32.xlu0 %v5590, 64
        %v5849 = vpop.permute.xlu0 %5848
        %5850 = vrot.lane.b32.xlu0 %v5593, 64
        %v5851 = vpop.permute.xlu0 %5850
        %5852 = vrot.lane.b32.xlu0 %v5595, 64
        %v5853 = vpop.permute.xlu0 %5852
        %5854 = vrot.lane.b32.xlu0 %v5597, 64
        %v5855 = vpop.permute.xlu0 %5854
        %5856 = vrot.lane.b32.xlu0 %v5599, 64
        %v5857 = vpop.permute.xlu0 %5856
        %v5858 = vsel %vm3307, %v5847, %v5849
        %v5859 = vsel %vm3307, %v5849, %v5851
        %v5860 = vsel %vm3307, %v5853, %v5855
        %v5861 = vsel %vm3307, %v5855, %v5857
        %v5866 = vmul.f32 %v5839, %v5858
        %v5867 = vmul.f32 %v5843, %v5859
        %v5868 = vmul.f32 %v5839, %v5860
        %v5869 = vmul.f32 %v5843, %v5861
        %v5870 = vadd.f32 %v5829, %v5866
        %v5871 = vadd.f32 %v5830, %v5867
        %v5872 = vadd.f32 %v5831, %v5868
        %v5873 = vadd.f32 %v5832, %v5869
        %v5874 = vadd.f32 %v5792, %v5870
        %v5875 = vadd.f32 %v5793, %v5871
        %v5876 = vadd.f32 %v5794, %v5872
        %v5877 = vadd.f32 %v5795, %v5873
        %s5878 = scalar_lea.vmem %s8, 50
        %v5879 = vld [vmem:[%s5878] ss:$8 sm:$0x3]
        %v5881 = vlaneseq
        %v5882 = vshrl.u32 %v5881, 7
        %v5883 = vsub.s32 0, %v5882
        %v5884 = vrot.slane %v5879, %v5883
        %v5885 = vlaneseq
        %v5886 = vshrl.u32 %v5885, 7
        %v5887 = vsub.s32 1, %v5886
        %v5888 = vrot.slane %v5879, %v5887
        %5891 = vrot.lane.b32.xlu0 %v5529, 48
        %v5892 = vpop.permute.xlu0 %5891
        %5893 = vrot.lane.b32.xlu0 %v5532, 48
        %v5894 = vpop.permute.xlu0 %5893
        %5895 = vrot.lane.b32.xlu0 %v5535, 48
        %v5896 = vpop.permute.xlu0 %5895
        %5897 = vrot.lane.b32.xlu0 %v5537, 48
        %v5898 = vpop.permute.xlu0 %5897
        %5899 = vrot.lane.b32.xlu0 %v5539, 48
        %v5900 = vpop.permute.xlu0 %5899
        %5901 = vrot.lane.b32.xlu0 %v5541, 48
        %v5902 = vpop.permute.xlu0 %5901
        %v5903 = vsel %vm3304, %v5892, %v5894
        %v5904 = vsel %vm3304, %v5894, %v5896
        %v5905 = vsel %vm3304, %v5898, %v5900
        %v5906 = vsel %vm3304, %v5900, %v5902
        %v5911 = vmul.f32 %v5884, %v5903
        %v5912 = vmul.f32 %v5888, %v5904
        %v5913 = vmul.f32 %v5884, %v5905
        %v5914 = vmul.f32 %v5888, %v5906
        %s5915 = scalar_lea.vmem %s9, 50
        %v5916 = vld [vmem:[%s5915] ss:$8 sm:$0x3]
        %v5918 = vlaneseq
        %v5919 = vshrl.u32 %v5918, 7
        %v5920 = vsub.s32 0, %v5919
        %v5921 = vrot.slane %v5916, %v5920
        %v5922 = vlaneseq
        %v5923 = vshrl.u32 %v5922, 7
        %v5924 = vsub.s32 1, %v5923
        %v5925 = vrot.slane %v5916, %v5924
        %5928 = vrot.lane.b32.xlu0 %v5587, 48
        %v5929 = vpop.permute.xlu0 %5928
        %5930 = vrot.lane.b32.xlu0 %v5590, 48
        %v5931 = vpop.permute.xlu0 %5930
        %5932 = vrot.lane.b32.xlu0 %v5593, 48
        %v5933 = vpop.permute.xlu0 %5932
        %5934 = vrot.lane.b32.xlu0 %v5595, 48
        %v5935 = vpop.permute.xlu0 %5934
        %5936 = vrot.lane.b32.xlu0 %v5597, 48
        %v5937 = vpop.permute.xlu0 %5936
        %5938 = vrot.lane.b32.xlu0 %v5599, 48
        %v5939 = vpop.permute.xlu0 %5938
        %v5940 = vsel %vm3304, %v5929, %v5931
        %v5941 = vsel %vm3304, %v5931, %v5933
        %v5942 = vsel %vm3304, %v5935, %v5937
        %v5943 = vsel %vm3304, %v5937, %v5939
        %v5948 = vmul.f32 %v5921, %v5940
        %v5949 = vmul.f32 %v5925, %v5941
        %v5950 = vmul.f32 %v5921, %v5942
        %v5951 = vmul.f32 %v5925, %v5943
        %v5952 = vadd.f32 %v5911, %v5948
        %v5953 = vadd.f32 %v5912, %v5949
        %v5954 = vadd.f32 %v5913, %v5950
        %v5955 = vadd.f32 %v5914, %v5951
        %v5956 = vadd.f32 %v5874, %v5952
        %v5957 = vadd.f32 %v5875, %v5953
        %v5958 = vadd.f32 %v5876, %v5954
        %v5959 = vadd.f32 %v5877, %v5955
        %s5960 = scalar_lea.vmem %s8, 51
        %v5961 = vld [vmem:[%s5960] ss:$8 sm:$0x3]
        %v5963 = vlaneseq
        %v5964 = vshrl.u32 %v5963, 7
        %v5965 = vsub.s32 0, %v5964
        %v5966 = vrot.slane %v5961, %v5965
        %v5967 = vlaneseq
        %v5968 = vshrl.u32 %v5967, 7
        %v5969 = vsub.s32 1, %v5968
        %v5970 = vrot.slane %v5961, %v5969
        %5973 = vrot.lane.b32.xlu0 %v5529, 32
        %v5974 = vpop.permute.xlu0 %5973
        %5975 = vrot.lane.b32.xlu0 %v5532, 32
        %v5976 = vpop.permute.xlu0 %5975
        %5977 = vrot.lane.b32.xlu0 %v5535, 32
        %v5978 = vpop.permute.xlu0 %5977
        %5979 = vrot.lane.b32.xlu0 %v5537, 32
        %v5980 = vpop.permute.xlu0 %5979
        %5981 = vrot.lane.b32.xlu0 %v5539, 32
        %v5982 = vpop.permute.xlu0 %5981
        %5983 = vrot.lane.b32.xlu0 %v5541, 32
        %v5984 = vpop.permute.xlu0 %5983
        %v5985 = vsel %vm3301, %v5974, %v5976
        %v5986 = vsel %vm3301, %v5976, %v5978
        %v5987 = vsel %vm3301, %v5980, %v5982
        %v5988 = vsel %vm3301, %v5982, %v5984
        %v5993 = vmul.f32 %v5966, %v5985
        %v5994 = vmul.f32 %v5970, %v5986
        %v5995 = vmul.f32 %v5966, %v5987
        %v5996 = vmul.f32 %v5970, %v5988
        %s5997 = scalar_lea.vmem %s9, 51
        %v5998 = vld [vmem:[%s5997] ss:$8 sm:$0x3]
        %v6000 = vlaneseq
        %v6001 = vshrl.u32 %v6000, 7
        %v6002 = vsub.s32 0, %v6001
        %v6003 = vrot.slane %v5998, %v6002
        %v6004 = vlaneseq
        %v6005 = vshrl.u32 %v6004, 7
        %v6006 = vsub.s32 1, %v6005
        %v6007 = vrot.slane %v5998, %v6006
        %6010 = vrot.lane.b32.xlu0 %v5587, 32
        %v6011 = vpop.permute.xlu0 %6010
        %6012 = vrot.lane.b32.xlu0 %v5590, 32
        %v6013 = vpop.permute.xlu0 %6012
        %6014 = vrot.lane.b32.xlu0 %v5593, 32
        %v6015 = vpop.permute.xlu0 %6014
        %6016 = vrot.lane.b32.xlu0 %v5595, 32
        %v6017 = vpop.permute.xlu0 %6016
        %6018 = vrot.lane.b32.xlu0 %v5597, 32
        %v6019 = vpop.permute.xlu0 %6018
        %6020 = vrot.lane.b32.xlu0 %v5599, 32
        %v6021 = vpop.permute.xlu0 %6020
        %v6022 = vsel %vm3301, %v6011, %v6013
        %v6023 = vsel %vm3301, %v6013, %v6015
        %v6024 = vsel %vm3301, %v6017, %v6019
        %v6025 = vsel %vm3301, %v6019, %v6021
        %v6030 = vmul.f32 %v6003, %v6022
        %v6031 = vmul.f32 %v6007, %v6023
        %v6032 = vmul.f32 %v6003, %v6024
        %v6033 = vmul.f32 %v6007, %v6025
        %v6034 = vadd.f32 %v5993, %v6030
        %v6035 = vadd.f32 %v5994, %v6031
        %v6036 = vadd.f32 %v5995, %v6032
        %v6037 = vadd.f32 %v5996, %v6033
        %v6038 = vadd.f32 %v5956, %v6034
        %v6039 = vadd.f32 %v5957, %v6035
        %v6040 = vadd.f32 %v5958, %v6036
        %v6041 = vadd.f32 %v5959, %v6037
        %v6042 = vld [vmem:[#allocation2] sm:$0xf0]
        %v6043 = vld [vmem:[#allocation2 + $0x8] sm:$0xf0]
        %v6044 = vld [vmem:[#allocation2 + $0x10] sm:$0xf0]
        %v6045 = vld [vmem:[#allocation2 + $0x30] sm:$0xf]
        %v6046 = vld [vmem:[#allocation2 + $0x38] sm:$0xf]
        %v6047 = vld [vmem:[#allocation2 + $0x40] sm:$0xf]
        %v6048 = vld [vmem:[#allocation3] sm:$0xf0]
        %v6049 = vld [vmem:[#allocation3 + $0x8] sm:$0xf0]
        %v6050 = vld [vmem:[#allocation3 + $0x10] sm:$0xf0]
        %v6051 = vld [vmem:[#allocation3 + $0x30] sm:$0xf]
        %v6052 = vld [vmem:[#allocation3 + $0x38] sm:$0xf]
        %v6053 = vld [vmem:[#allocation3 + $0x40] sm:$0xf]
        %s6054 = scalar_lea.vmem %s8, 52
        %v6055 = vld [vmem:[%s6054] ss:$8 sm:$0x3]
        %v6057 = vlaneseq
        %v6058 = vshrl.u32 %v6057, 7
        %v6059 = vsub.s32 0, %v6058
        %v6060 = vrot.slane %v6055, %v6059
        %v6061 = vlaneseq
        %v6062 = vshrl.u32 %v6061, 7
        %v6063 = vsub.s32 1, %v6062
        %v6064 = vrot.slane %v6055, %v6063
        %v6067 = vmul.f32 %v6060, %v6042
        %v6068 = vmul.f32 %v6064, %v6043
        %v6069 = vmul.f32 %v6060, %v3647
        %v6070 = vmul.f32 %v6064, %v3648
        %v6071 = vmul.f32 %v6060, %v6045
        %v6072 = vmul.f32 %v6064, %v6046
        %s6073 = scalar_lea.vmem %s9, 52
        %v6074 = vld [vmem:[%s6073] ss:$8 sm:$0x3]
        %v6076 = vlaneseq
        %v6077 = vshrl.u32 %v6076, 7
        %v6078 = vsub.s32 0, %v6077
        %v6079 = vrot.slane %v6074, %v6078
        %v6080 = vlaneseq
        %v6081 = vshrl.u32 %v6080, 7
        %v6082 = vsub.s32 1, %v6081
        %v6083 = vrot.slane %v6074, %v6082
        %v6086 = vmul.f32 %v6079, %v6048
        %v6087 = vmul.f32 %v6083, %v6049
        %v6088 = vmul.f32 %v6079, %v3653
        %v6089 = vmul.f32 %v6083, %v3654
        %v6090 = vmul.f32 %v6079, %v6051
        %v6091 = vmul.f32 %v6083, %v6052
        %v6092 = vadd.f32 %v6067, %v6086
        %v6093 = vadd.f32 %v6068, %v6087
        %v6094 = vadd.f32 %v6069, %v6088
        %v6095 = vadd.f32 %v6070, %v6089
        %v6096 = vadd.f32 %v6071, %v6090
        %v6097 = vadd.f32 %v6072, %v6091
        %v6104 = vrot.slane %v6092, 4
        %v6105 = vrot.slane %v6094, 4
        %v6106 = vsel %vm2318, %v6104, %v6105
        %v6107 = vrot.slane %v6093, 4
        %v6108 = vrot.slane %v6095, 4
        %v6109 = vsel %vm2318, %v6107, %v6108
        %v6110 = vrot.slane %v6096, 4
        %v6111 = vsel %vm2318, %v6105, %v6110
        %v6112 = vrot.slane %v6097, 4
        %v6113 = vsel %vm2318, %v6108, %v6112
        %v6118 = vadd.f32 %v6038, %v6106
        %v6119 = vadd.f32 %v6039, %v6109
        %v6120 = vadd.f32 %v6040, %v6111
        %v6121 = vadd.f32 %v6041, %v6113
        %s6122 = scalar_lea.vmem %s8, 53
        %v6123 = vld [vmem:[%s6122] ss:$8 sm:$0x3]
        %v6125 = vlaneseq
        %v6126 = vshrl.u32 %v6125, 7
        %v6127 = vsub.s32 0, %v6126
        %v6128 = vrot.slane %v6123, %v6127
        %v6129 = vlaneseq
        %v6130 = vshrl.u32 %v6129, 7
        %v6131 = vsub.s32 1, %v6130
        %v6132 = vrot.slane %v6123, %v6131
        %v6141 = vrot.slane %v6042, 4
        %v6142 = vrot.slane %v3647, 4
        %v6143 = vsel %vm2318, %v6141, %v6142
        %v6144 = vrot.slane %v6043, 4
        %v6145 = vrot.slane %v3648, 4
        %v6146 = vsel %vm2318, %v6144, %v6145
        %v6147 = vrot.slane %v6044, 4
        %v6148 = vrot.slane %v3649, 4
        %v6149 = vsel %vm2318, %v6147, %v6148
        %v6150 = vrot.slane %v6045, 4
        %v6151 = vsel %vm2318, %v6142, %v6150
        %v6152 = vrot.slane %v6046, 4
        %v6153 = vsel %vm2318, %v6145, %v6152
        %v6154 = vrot.slane %v6047, 4
        %v6155 = vsel %vm2318, %v6148, %v6154
        %6156 = vrot.lane.b32.xlu0 %v6143, 112
        %v6157 = vpop.permute.xlu0 %6156
        %6158 = vrot.lane.b32.xlu0 %v6146, 112
        %v6159 = vpop.permute.xlu0 %6158
        %6160 = vrot.lane.b32.xlu0 %v6149, 112
        %v6161 = vpop.permute.xlu0 %6160
        %6162 = vrot.lane.b32.xlu0 %v6151, 112
        %v6163 = vpop.permute.xlu0 %6162
        %6164 = vrot.lane.b32.xlu0 %v6153, 112
        %v6165 = vpop.permute.xlu0 %6164
        %6166 = vrot.lane.b32.xlu0 %v6155, 112
        %v6167 = vpop.permute.xlu0 %6166
        %v6168 = vsel %vm3316, %v6157, %v6159
        %v6169 = vsel %vm3316, %v6159, %v6161
        %v6170 = vsel %vm3316, %v6163, %v6165
        %v6171 = vsel %vm3316, %v6165, %v6167
        %v6176 = vmul.f32 %v6128, %v6168
        %v6177 = vmul.f32 %v6132, %v6169
        %v6178 = vmul.f32 %v6128, %v6170
        %v6179 = vmul.f32 %v6132, %v6171
        %s6180 = scalar_lea.vmem %s9, 53
        %v6181 = vld [vmem:[%s6180] ss:$8 sm:$0x3]
        %v6183 = vlaneseq
        %v6184 = vshrl.u32 %v6183, 7
        %v6185 = vsub.s32 0, %v6184
        %v6186 = vrot.slane %v6181, %v6185
        %v6187 = vlaneseq
        %v6188 = vshrl.u32 %v6187, 7
        %v6189 = vsub.s32 1, %v6188
        %v6190 = vrot.slane %v6181, %v6189
        %v6199 = vrot.slane %v6048, 4
        %v6200 = vrot.slane %v3653, 4
        %v6201 = vsel %vm2318, %v6199, %v6200
        %v6202 = vrot.slane %v6049, 4
        %v6203 = vrot.slane %v3654, 4
        %v6204 = vsel %vm2318, %v6202, %v6203
        %v6205 = vrot.slane %v6050, 4
        %v6206 = vrot.slane %v3655, 4
        %v6207 = vsel %vm2318, %v6205, %v6206
        %v6208 = vrot.slane %v6051, 4
        %v6209 = vsel %vm2318, %v6200, %v6208
        %v6210 = vrot.slane %v6052, 4
        %v6211 = vsel %vm2318, %v6203, %v6210
        %v6212 = vrot.slane %v6053, 4
        %v6213 = vsel %vm2318, %v6206, %v6212
        %6214 = vrot.lane.b32.xlu0 %v6201, 112
        %v6215 = vpop.permute.xlu0 %6214
        %6216 = vrot.lane.b32.xlu0 %v6204, 112
        %v6217 = vpop.permute.xlu0 %6216
        %6218 = vrot.lane.b32.xlu0 %v6207, 112
        %v6219 = vpop.permute.xlu0 %6218
        %6220 = vrot.lane.b32.xlu0 %v6209, 112
        %v6221 = vpop.permute.xlu0 %6220
        %6222 = vrot.lane.b32.xlu0 %v6211, 112
        %v6223 = vpop.permute.xlu0 %6222
        %6224 = vrot.lane.b32.xlu0 %v6213, 112
        %v6225 = vpop.permute.xlu0 %6224
        %v6226 = vsel %vm3316, %v6215, %v6217
        %v6227 = vsel %vm3316, %v6217, %v6219
        %v6228 = vsel %vm3316, %v6221, %v6223
        %v6229 = vsel %vm3316, %v6223, %v6225
        %v6234 = vmul.f32 %v6186, %v6226
        %v6235 = vmul.f32 %v6190, %v6227
        %v6236 = vmul.f32 %v6186, %v6228
        %v6237 = vmul.f32 %v6190, %v6229
        %v6238 = vadd.f32 %v6176, %v6234
        %v6239 = vadd.f32 %v6177, %v6235
        %v6240 = vadd.f32 %v6178, %v6236
        %v6241 = vadd.f32 %v6179, %v6237
        %v6242 = vadd.f32 %v6118, %v6238
        %v6243 = vadd.f32 %v6119, %v6239
        %v6244 = vadd.f32 %v6120, %v6240
        %v6245 = vadd.f32 %v6121, %v6241
        %s6246 = scalar_lea.vmem %s8, 54
        %v6247 = vld [vmem:[%s6246] ss:$8 sm:$0x3]
        %v6249 = vlaneseq
        %v6250 = vshrl.u32 %v6249, 7
        %v6251 = vsub.s32 0, %v6250
        %v6252 = vrot.slane %v6247, %v6251
        %v6253 = vlaneseq
        %v6254 = vshrl.u32 %v6253, 7
        %v6255 = vsub.s32 1, %v6254
        %v6256 = vrot.slane %v6247, %v6255
        %6259 = vrot.lane.b32.xlu0 %v6143, 96
        %v6260 = vpop.permute.xlu0 %6259
        %6261 = vrot.lane.b32.xlu0 %v6146, 96
        %v6262 = vpop.permute.xlu0 %6261
        %6263 = vrot.lane.b32.xlu0 %v6149, 96
        %v6264 = vpop.permute.xlu0 %6263
        %6265 = vrot.lane.b32.xlu0 %v6151, 96
        %v6266 = vpop.permute.xlu0 %6265
        %6267 = vrot.lane.b32.xlu0 %v6153, 96
        %v6268 = vpop.permute.xlu0 %6267
        %6269 = vrot.lane.b32.xlu0 %v6155, 96
        %v6270 = vpop.permute.xlu0 %6269
        %v6271 = vsel %vm3313, %v6260, %v6262
        %v6272 = vsel %vm3313, %v6262, %v6264
        %v6273 = vsel %vm3313, %v6266, %v6268
        %v6274 = vsel %vm3313, %v6268, %v6270
        %v6279 = vmul.f32 %v6252, %v6271
        %v6280 = vmul.f32 %v6256, %v6272
        %v6281 = vmul.f32 %v6252, %v6273
        %v6282 = vmul.f32 %v6256, %v6274
        %s6283 = scalar_lea.vmem %s9, 54
        %v6284 = vld [vmem:[%s6283] ss:$8 sm:$0x3]
        %v6286 = vlaneseq
        %v6287 = vshrl.u32 %v6286, 7
        %v6288 = vsub.s32 0, %v6287
        %v6289 = vrot.slane %v6284, %v6288
        %v6290 = vlaneseq
        %v6291 = vshrl.u32 %v6290, 7
        %v6292 = vsub.s32 1, %v6291
        %v6293 = vrot.slane %v6284, %v6292
        %6296 = vrot.lane.b32.xlu0 %v6201, 96
        %v6297 = vpop.permute.xlu0 %6296
        %6298 = vrot.lane.b32.xlu0 %v6204, 96
        %v6299 = vpop.permute.xlu0 %6298
        %6300 = vrot.lane.b32.xlu0 %v6207, 96
        %v6301 = vpop.permute.xlu0 %6300
        %6302 = vrot.lane.b32.xlu0 %v6209, 96
        %v6303 = vpop.permute.xlu0 %6302
        %6304 = vrot.lane.b32.xlu0 %v6211, 96
        %v6305 = vpop.permute.xlu0 %6304
        %6306 = vrot.lane.b32.xlu0 %v6213, 96
        %v6307 = vpop.permute.xlu0 %6306
        %v6308 = vsel %vm3313, %v6297, %v6299
        %v6309 = vsel %vm3313, %v6299, %v6301
        %v6310 = vsel %vm3313, %v6303, %v6305
        %v6311 = vsel %vm3313, %v6305, %v6307
        %v6316 = vmul.f32 %v6289, %v6308
        %v6317 = vmul.f32 %v6293, %v6309
        %v6318 = vmul.f32 %v6289, %v6310
        %v6319 = vmul.f32 %v6293, %v6311
        %v6320 = vadd.f32 %v6279, %v6316
        %v6321 = vadd.f32 %v6280, %v6317
        %v6322 = vadd.f32 %v6281, %v6318
        %v6323 = vadd.f32 %v6282, %v6319
        %v6324 = vadd.f32 %v6242, %v6320
        %v6325 = vadd.f32 %v6243, %v6321
        %v6326 = vadd.f32 %v6244, %v6322
        %v6327 = vadd.f32 %v6245, %v6323
        %s6328 = scalar_lea.vmem %s8, 55
        %v6329 = vld [vmem:[%s6328] ss:$8 sm:$0x3]
        %v6331 = vlaneseq
        %v6332 = vshrl.u32 %v6331, 7
        %v6333 = vsub.s32 0, %v6332
        %v6334 = vrot.slane %v6329, %v6333
        %v6335 = vlaneseq
        %v6336 = vshrl.u32 %v6335, 7
        %v6337 = vsub.s32 1, %v6336
        %v6338 = vrot.slane %v6329, %v6337
        %6341 = vrot.lane.b32.xlu0 %v6143, 80
        %v6342 = vpop.permute.xlu0 %6341
        %6343 = vrot.lane.b32.xlu0 %v6146, 80
        %v6344 = vpop.permute.xlu0 %6343
        %6345 = vrot.lane.b32.xlu0 %v6149, 80
        %v6346 = vpop.permute.xlu0 %6345
        %6347 = vrot.lane.b32.xlu0 %v6151, 80
        %v6348 = vpop.permute.xlu0 %6347
        %6349 = vrot.lane.b32.xlu0 %v6153, 80
        %v6350 = vpop.permute.xlu0 %6349
        %6351 = vrot.lane.b32.xlu0 %v6155, 80
        %v6352 = vpop.permute.xlu0 %6351
        %v6353 = vsel %vm3310, %v6342, %v6344
        %v6354 = vsel %vm3310, %v6344, %v6346
        %v6355 = vsel %vm3310, %v6348, %v6350
        %v6356 = vsel %vm3310, %v6350, %v6352
        %v6361 = vmul.f32 %v6334, %v6353
        %v6362 = vmul.f32 %v6338, %v6354
        %v6363 = vmul.f32 %v6334, %v6355
        %v6364 = vmul.f32 %v6338, %v6356
        %s6365 = scalar_lea.vmem %s9, 55
        %v6366 = vld [vmem:[%s6365] ss:$8 sm:$0x3]
        %v6368 = vlaneseq
        %v6369 = vshrl.u32 %v6368, 7
        %v6370 = vsub.s32 0, %v6369
        %v6371 = vrot.slane %v6366, %v6370
        %v6372 = vlaneseq
        %v6373 = vshrl.u32 %v6372, 7
        %v6374 = vsub.s32 1, %v6373
        %v6375 = vrot.slane %v6366, %v6374
        %6378 = vrot.lane.b32.xlu0 %v6201, 80
        %v6379 = vpop.permute.xlu0 %6378
        %6380 = vrot.lane.b32.xlu0 %v6204, 80
        %v6381 = vpop.permute.xlu0 %6380
        %6382 = vrot.lane.b32.xlu0 %v6207, 80
        %v6383 = vpop.permute.xlu0 %6382
        %6384 = vrot.lane.b32.xlu0 %v6209, 80
        %v6385 = vpop.permute.xlu0 %6384
        %6386 = vrot.lane.b32.xlu0 %v6211, 80
        %v6387 = vpop.permute.xlu0 %6386
        %6388 = vrot.lane.b32.xlu0 %v6213, 80
        %v6389 = vpop.permute.xlu0 %6388
        %v6390 = vsel %vm3310, %v6379, %v6381
        %v6391 = vsel %vm3310, %v6381, %v6383
        %v6392 = vsel %vm3310, %v6385, %v6387
        %v6393 = vsel %vm3310, %v6387, %v6389
        %v6398 = vmul.f32 %v6371, %v6390
        %v6399 = vmul.f32 %v6375, %v6391
        %v6400 = vmul.f32 %v6371, %v6392
        %v6401 = vmul.f32 %v6375, %v6393
        %v6402 = vadd.f32 %v6361, %v6398
        %v6403 = vadd.f32 %v6362, %v6399
        %v6404 = vadd.f32 %v6363, %v6400
        %v6405 = vadd.f32 %v6364, %v6401
        %v6406 = vadd.f32 %v6324, %v6402
        %v6407 = vadd.f32 %v6325, %v6403
        %v6408 = vadd.f32 %v6326, %v6404
        %v6409 = vadd.f32 %v6327, %v6405
        %s6410 = scalar_lea.vmem %s8, 64
        %v6411 = vld [vmem:[%s6410] ss:$8 sm:$0x3]
        %v6413 = vlaneseq
        %v6414 = vshrl.u32 %v6413, 7
        %v6415 = vsub.s32 0, %v6414
        %v6416 = vrot.slane %v6411, %v6415
        %v6417 = vlaneseq
        %v6418 = vshrl.u32 %v6417, 7
        %v6419 = vsub.s32 1, %v6418
        %v6420 = vrot.slane %v6411, %v6419
        %6423 = vrot.lane.b32.xlu0 %v6143, 64
        %v6424 = vpop.permute.xlu0 %6423
        %6425 = vrot.lane.b32.xlu0 %v6146, 64
        %v6426 = vpop.permute.xlu0 %6425
        %6427 = vrot.lane.b32.xlu0 %v6149, 64
        %v6428 = vpop.permute.xlu0 %6427
        %6429 = vrot.lane.b32.xlu0 %v6151, 64
        %v6430 = vpop.permute.xlu0 %6429
        %6431 = vrot.lane.b32.xlu0 %v6153, 64
        %v6432 = vpop.permute.xlu0 %6431
        %6433 = vrot.lane.b32.xlu0 %v6155, 64
        %v6434 = vpop.permute.xlu0 %6433
        %v6435 = vsel %vm3307, %v6424, %v6426
        %v6436 = vsel %vm3307, %v6426, %v6428
        %v6437 = vsel %vm3307, %v6430, %v6432
        %v6438 = vsel %vm3307, %v6432, %v6434
        %v6443 = vmul.f32 %v6416, %v6435
        %v6444 = vmul.f32 %v6420, %v6436
        %v6445 = vmul.f32 %v6416, %v6437
        %v6446 = vmul.f32 %v6420, %v6438
        %s6447 = scalar_lea.vmem %s9, 64
        %v6448 = vld [vmem:[%s6447] ss:$8 sm:$0x3]
        %v6450 = vlaneseq
        %v6451 = vshrl.u32 %v6450, 7
        %v6452 = vsub.s32 0, %v6451
        %v6453 = vrot.slane %v6448, %v6452
        %v6454 = vlaneseq
        %v6455 = vshrl.u32 %v6454, 7
        %v6456 = vsub.s32 1, %v6455
        %v6457 = vrot.slane %v6448, %v6456
        %6460 = vrot.lane.b32.xlu0 %v6201, 64
        %v6461 = vpop.permute.xlu0 %6460
        %6462 = vrot.lane.b32.xlu0 %v6204, 64
        %v6463 = vpop.permute.xlu0 %6462
        %6464 = vrot.lane.b32.xlu0 %v6207, 64
        %v6465 = vpop.permute.xlu0 %6464
        %6466 = vrot.lane.b32.xlu0 %v6209, 64
        %v6467 = vpop.permute.xlu0 %6466
        %6468 = vrot.lane.b32.xlu0 %v6211, 64
        %v6469 = vpop.permute.xlu0 %6468
        %6470 = vrot.lane.b32.xlu0 %v6213, 64
        %v6471 = vpop.permute.xlu0 %6470
        %v6472 = vsel %vm3307, %v6461, %v6463
        %v6473 = vsel %vm3307, %v6463, %v6465
        %v6474 = vsel %vm3307, %v6467, %v6469
        %v6475 = vsel %vm3307, %v6469, %v6471
        %v6480 = vmul.f32 %v6453, %v6472
        %v6481 = vmul.f32 %v6457, %v6473
        %v6482 = vmul.f32 %v6453, %v6474
        %v6483 = vmul.f32 %v6457, %v6475
        %v6484 = vadd.f32 %v6443, %v6480
        %v6485 = vadd.f32 %v6444, %v6481
        %v6486 = vadd.f32 %v6445, %v6482
        %v6487 = vadd.f32 %v6446, %v6483
        %v6488 = vadd.f32 %v6406, %v6484
        %v6489 = vadd.f32 %v6407, %v6485
        %v6490 = vadd.f32 %v6408, %v6486
        %v6491 = vadd.f32 %v6409, %v6487
        %s6492 = scalar_lea.vmem %s8, 65
        %v6493 = vld [vmem:[%s6492] ss:$8 sm:$0x3]
        %v6495 = vlaneseq
        %v6496 = vshrl.u32 %v6495, 7
        %v6497 = vsub.s32 0, %v6496
        %v6498 = vrot.slane %v6493, %v6497
        %v6499 = vlaneseq
        %v6500 = vshrl.u32 %v6499, 7
        %v6501 = vsub.s32 1, %v6500
        %v6502 = vrot.slane %v6493, %v6501
        %6505 = vrot.lane.b32.xlu0 %v6143, 48
        %v6506 = vpop.permute.xlu0 %6505
        %6507 = vrot.lane.b32.xlu0 %v6146, 48
        %v6508 = vpop.permute.xlu0 %6507
        %6509 = vrot.lane.b32.xlu0 %v6149, 48
        %v6510 = vpop.permute.xlu0 %6509
        %6511 = vrot.lane.b32.xlu0 %v6151, 48
        %v6512 = vpop.permute.xlu0 %6511
        %6513 = vrot.lane.b32.xlu0 %v6153, 48
        %v6514 = vpop.permute.xlu0 %6513
        %6515 = vrot.lane.b32.xlu0 %v6155, 48
        %v6516 = vpop.permute.xlu0 %6515
        %v6517 = vsel %vm3304, %v6506, %v6508
        %v6518 = vsel %vm3304, %v6508, %v6510
        %v6519 = vsel %vm3304, %v6512, %v6514
        %v6520 = vsel %vm3304, %v6514, %v6516
        %v6525 = vmul.f32 %v6498, %v6517
        %v6526 = vmul.f32 %v6502, %v6518
        %v6527 = vmul.f32 %v6498, %v6519
        %v6528 = vmul.f32 %v6502, %v6520
        %s6529 = scalar_lea.vmem %s9, 65
        %v6530 = vld [vmem:[%s6529] ss:$8 sm:$0x3]
        %v6532 = vlaneseq
        %v6533 = vshrl.u32 %v6532, 7
        %v6534 = vsub.s32 0, %v6533
        %v6535 = vrot.slane %v6530, %v6534
        %v6536 = vlaneseq
        %v6537 = vshrl.u32 %v6536, 7
        %v6538 = vsub.s32 1, %v6537
        %v6539 = vrot.slane %v6530, %v6538
        %6542 = vrot.lane.b32.xlu0 %v6201, 48
        %v6543 = vpop.permute.xlu0 %6542
        %6544 = vrot.lane.b32.xlu0 %v6204, 48
        %v6545 = vpop.permute.xlu0 %6544
        %6546 = vrot.lane.b32.xlu0 %v6207, 48
        %v6547 = vpop.permute.xlu0 %6546
        %6548 = vrot.lane.b32.xlu0 %v6209, 48
        %v6549 = vpop.permute.xlu0 %6548
        %6550 = vrot.lane.b32.xlu0 %v6211, 48
        %v6551 = vpop.permute.xlu0 %6550
        %6552 = vrot.lane.b32.xlu0 %v6213, 48
        %v6553 = vpop.permute.xlu0 %6552
        %v6554 = vsel %vm3304, %v6543, %v6545
        %v6555 = vsel %vm3304, %v6545, %v6547
        %v6556 = vsel %vm3304, %v6549, %v6551
        %v6557 = vsel %vm3304, %v6551, %v6553
        %v6562 = vmul.f32 %v6535, %v6554
        %v6563 = vmul.f32 %v6539, %v6555
        %v6564 = vmul.f32 %v6535, %v6556
        %v6565 = vmul.f32 %v6539, %v6557
        %v6566 = vadd.f32 %v6525, %v6562
        %v6567 = vadd.f32 %v6526, %v6563
        %v6568 = vadd.f32 %v6527, %v6564
        %v6569 = vadd.f32 %v6528, %v6565
        %v6570 = vadd.f32 %v6488, %v6566
        %v6571 = vadd.f32 %v6489, %v6567
        %v6572 = vadd.f32 %v6490, %v6568
        %v6573 = vadd.f32 %v6491, %v6569
        %s6574 = scalar_lea.vmem %s8, 66
        %v6575 = vld [vmem:[%s6574] ss:$8 sm:$0x3]
        %v6577 = vlaneseq
        %v6578 = vshrl.u32 %v6577, 7
        %v6579 = vsub.s32 0, %v6578
        %v6580 = vrot.slane %v6575, %v6579
        %v6581 = vlaneseq
        %v6582 = vshrl.u32 %v6581, 7
        %v6583 = vsub.s32 1, %v6582
        %v6584 = vrot.slane %v6575, %v6583
        %6587 = vrot.lane.b32.xlu0 %v6143, 32
        %v6588 = vpop.permute.xlu0 %6587
        %6589 = vrot.lane.b32.xlu0 %v6146, 32
        %v6590 = vpop.permute.xlu0 %6589
        %6591 = vrot.lane.b32.xlu0 %v6149, 32
        %v6592 = vpop.permute.xlu0 %6591
        %6593 = vrot.lane.b32.xlu0 %v6151, 32
        %v6594 = vpop.permute.xlu0 %6593
        %6595 = vrot.lane.b32.xlu0 %v6153, 32
        %v6596 = vpop.permute.xlu0 %6595
        %6597 = vrot.lane.b32.xlu0 %v6155, 32
        %v6598 = vpop.permute.xlu0 %6597
        %v6599 = vsel %vm3301, %v6588, %v6590
        %v6600 = vsel %vm3301, %v6590, %v6592
        %v6601 = vsel %vm3301, %v6594, %v6596
        %v6602 = vsel %vm3301, %v6596, %v6598
        %v6607 = vmul.f32 %v6580, %v6599
        %v6608 = vmul.f32 %v6584, %v6600
        %v6609 = vmul.f32 %v6580, %v6601
        %v6610 = vmul.f32 %v6584, %v6602
        %s6611 = scalar_lea.vmem %s9, 66
        %v6612 = vld [vmem:[%s6611] ss:$8 sm:$0x3]
        %v6614 = vlaneseq
        %v6615 = vshrl.u32 %v6614, 7
        %v6616 = vsub.s32 0, %v6615
        %v6617 = vrot.slane %v6612, %v6616
        %v6618 = vlaneseq
        %v6619 = vshrl.u32 %v6618, 7
        %v6620 = vsub.s32 1, %v6619
        %v6621 = vrot.slane %v6612, %v6620
        %6624 = vrot.lane.b32.xlu0 %v6201, 32
        %v6625 = vpop.permute.xlu0 %6624
        %6626 = vrot.lane.b32.xlu0 %v6204, 32
        %v6627 = vpop.permute.xlu0 %6626
        %6628 = vrot.lane.b32.xlu0 %v6207, 32
        %v6629 = vpop.permute.xlu0 %6628
        %6630 = vrot.lane.b32.xlu0 %v6209, 32
        %v6631 = vpop.permute.xlu0 %6630
        %6632 = vrot.lane.b32.xlu0 %v6211, 32
        %v6633 = vpop.permute.xlu0 %6632
        %6634 = vrot.lane.b32.xlu0 %v6213, 32
        %v6635 = vpop.permute.xlu0 %6634
        %v6636 = vsel %vm3301, %v6625, %v6627
        %v6637 = vsel %vm3301, %v6627, %v6629
        %v6638 = vsel %vm3301, %v6631, %v6633
        %v6639 = vsel %vm3301, %v6633, %v6635
        %v6644 = vmul.f32 %v6617, %v6636
        %v6645 = vmul.f32 %v6621, %v6637
        %v6646 = vmul.f32 %v6617, %v6638
        %v6647 = vmul.f32 %v6621, %v6639
        %v6648 = vadd.f32 %v6607, %v6644
        %v6649 = vadd.f32 %v6608, %v6645
        %v6650 = vadd.f32 %v6609, %v6646
        %v6651 = vadd.f32 %v6610, %v6647
        %v6652 = vadd.f32 %v6570, %v6648
        %v6653 = vadd.f32 %v6571, %v6649
        %v6654 = vadd.f32 %v6572, %v6650
        %v6655 = vadd.f32 %v6573, %v6651
        %v6656 = vld [vmem:[#allocation2] sm:$0xe0]
        %v6657 = vld [vmem:[#allocation2 + $0x8] sm:$0xe0]
        %v6658 = vld [vmem:[#allocation2 + $0x10] sm:$0xe0]
        %v6659 = vld [vmem:[#allocation2 + $0x30] sm:$0x1f]
        %v6660 = vld [vmem:[#allocation2 + $0x38] sm:$0x1f]
        %v6661 = vld [vmem:[#allocation2 + $0x40] sm:$0x1f]
        %v6662 = vld [vmem:[#allocation3] sm:$0xe0]
        %v6663 = vld [vmem:[#allocation3 + $0x8] sm:$0xe0]
        %v6664 = vld [vmem:[#allocation3 + $0x10] sm:$0xe0]
        %v6665 = vld [vmem:[#allocation3 + $0x30] sm:$0x1f]
        %v6666 = vld [vmem:[#allocation3 + $0x38] sm:$0x1f]
        %v6667 = vld [vmem:[#allocation3 + $0x40] sm:$0x1f]
        %s6668 = scalar_lea.vmem %s8, 67
        %v6669 = vld [vmem:[%s6668] ss:$8 sm:$0x3]
        %v6671 = vlaneseq
        %v6672 = vshrl.u32 %v6671, 7
        %v6673 = vsub.s32 0, %v6672
        %v6674 = vrot.slane %v6669, %v6673
        %v6675 = vlaneseq
        %v6676 = vshrl.u32 %v6675, 7
        %v6677 = vsub.s32 1, %v6676
        %v6678 = vrot.slane %v6669, %v6677
        %v6681 = vmul.f32 %v6674, %v6656
        %v6682 = vmul.f32 %v6678, %v6657
        %v6683 = vmul.f32 %v6674, %v3647
        %v6684 = vmul.f32 %v6678, %v3648
        %v6685 = vmul.f32 %v6674, %v6659
        %v6686 = vmul.f32 %v6678, %v6660
        %s6687 = scalar_lea.vmem %s9, 67
        %v6688 = vld [vmem:[%s6687] ss:$8 sm:$0x3]
        %v6690 = vlaneseq
        %v6691 = vshrl.u32 %v6690, 7
        %v6692 = vsub.s32 0, %v6691
        %v6693 = vrot.slane %v6688, %v6692
        %v6694 = vlaneseq
        %v6695 = vshrl.u32 %v6694, 7
        %v6696 = vsub.s32 1, %v6695
        %v6697 = vrot.slane %v6688, %v6696
        %v6700 = vmul.f32 %v6693, %v6662
        %v6701 = vmul.f32 %v6697, %v6663
        %v6702 = vmul.f32 %v6693, %v3653
        %v6703 = vmul.f32 %v6697, %v3654
        %v6704 = vmul.f32 %v6693, %v6665
        %v6705 = vmul.f32 %v6697, %v6666
        %v6706 = vadd.f32 %v6681, %v6700
        %v6707 = vadd.f32 %v6682, %v6701
        %v6708 = vadd.f32 %v6683, %v6702
        %v6709 = vadd.f32 %v6684, %v6703
        %v6710 = vadd.f32 %v6685, %v6704
        %v6711 = vadd.f32 %v6686, %v6705
        %v6718 = vrot.slane %v6706, 5
        %v6719 = vrot.slane %v6708, 5
        %v6720 = vsel %vm1161, %v6718, %v6719
        %v6721 = vrot.slane %v6707, 5
        %v6722 = vrot.slane %v6709, 5
        %v6723 = vsel %vm1161, %v6721, %v6722
        %v6724 = vrot.slane %v6710, 5
        %v6725 = vsel %vm1161, %v6719, %v6724
        %v6726 = vrot.slane %v6711, 5
        %v6727 = vsel %vm1161, %v6722, %v6726
        %v6732 = vadd.f32 %v6652, %v6720
        %v6733 = vadd.f32 %v6653, %v6723
        %v6734 = vadd.f32 %v6654, %v6725
        %v6735 = vadd.f32 %v6655, %v6727
        %s6736 = scalar_lea.vmem %s8, 68
        %v6737 = vld [vmem:[%s6736] ss:$8 sm:$0x3]
        %v6739 = vlaneseq
        %v6740 = vshrl.u32 %v6739, 7
        %v6741 = vsub.s32 0, %v6740
        %v6742 = vrot.slane %v6737, %v6741
        %v6743 = vlaneseq
        %v6744 = vshrl.u32 %v6743, 7
        %v6745 = vsub.s32 1, %v6744
        %v6746 = vrot.slane %v6737, %v6745
        %v6755 = vrot.slane %v6656, 5
        %v6756 = vrot.slane %v3647, 5
        %v6757 = vsel %vm1161, %v6755, %v6756
        %v6758 = vrot.slane %v6657, 5
        %v6759 = vrot.slane %v3648, 5
        %v6760 = vsel %vm1161, %v6758, %v6759
        %v6761 = vrot.slane %v6658, 5
        %v6762 = vrot.slane %v3649, 5
        %v6763 = vsel %vm1161, %v6761, %v6762
        %v6764 = vrot.slane %v6659, 5
        %v6765 = vsel %vm1161, %v6756, %v6764
        %v6766 = vrot.slane %v6660, 5
        %v6767 = vsel %vm1161, %v6759, %v6766
        %v6768 = vrot.slane %v6661, 5
        %v6769 = vsel %vm1161, %v6762, %v6768
        %6770 = vrot.lane.b32.xlu0 %v6757, 112
        %v6771 = vpop.permute.xlu0 %6770
        %6772 = vrot.lane.b32.xlu0 %v6760, 112
        %v6773 = vpop.permute.xlu0 %6772
        %6774 = vrot.lane.b32.xlu0 %v6763, 112
        %v6775 = vpop.permute.xlu0 %6774
        %6776 = vrot.lane.b32.xlu0 %v6765, 112
        %v6777 = vpop.permute.xlu0 %6776
        %6778 = vrot.lane.b32.xlu0 %v6767, 112
        %v6779 = vpop.permute.xlu0 %6778
        %6780 = vrot.lane.b32.xlu0 %v6769, 112
        %v6781 = vpop.permute.xlu0 %6780
        %v6782 = vsel %vm3316, %v6771, %v6773
        %v6783 = vsel %vm3316, %v6773, %v6775
        %v6784 = vsel %vm3316, %v6777, %v6779
        %v6785 = vsel %vm3316, %v6779, %v6781
        %v6790 = vmul.f32 %v6742, %v6782
        %v6791 = vmul.f32 %v6746, %v6783
        %v6792 = vmul.f32 %v6742, %v6784
        %v6793 = vmul.f32 %v6746, %v6785
        %s6794 = scalar_lea.vmem %s9, 68
        %v6795 = vld [vmem:[%s6794] ss:$8 sm:$0x3]
        %v6797 = vlaneseq
        %v6798 = vshrl.u32 %v6797, 7
        %v6799 = vsub.s32 0, %v6798
        %v6800 = vrot.slane %v6795, %v6799
        %v6801 = vlaneseq
        %v6802 = vshrl.u32 %v6801, 7
        %v6803 = vsub.s32 1, %v6802
        %v6804 = vrot.slane %v6795, %v6803
        %v6813 = vrot.slane %v6662, 5
        %v6814 = vrot.slane %v3653, 5
        %v6815 = vsel %vm1161, %v6813, %v6814
        %v6816 = vrot.slane %v6663, 5
        %v6817 = vrot.slane %v3654, 5
        %v6818 = vsel %vm1161, %v6816, %v6817
        %v6819 = vrot.slane %v6664, 5
        %v6820 = vrot.slane %v3655, 5
        %v6821 = vsel %vm1161, %v6819, %v6820
        %v6822 = vrot.slane %v6665, 5
        %v6823 = vsel %vm1161, %v6814, %v6822
        %v6824 = vrot.slane %v6666, 5
        %v6825 = vsel %vm1161, %v6817, %v6824
        %v6826 = vrot.slane %v6667, 5
        %v6827 = vsel %vm1161, %v6820, %v6826
        %6828 = vrot.lane.b32.xlu0 %v6815, 112
        %v6829 = vpop.permute.xlu0 %6828
        %6830 = vrot.lane.b32.xlu0 %v6818, 112
        %v6831 = vpop.permute.xlu0 %6830
        %6832 = vrot.lane.b32.xlu0 %v6821, 112
        %v6833 = vpop.permute.xlu0 %6832
        %6834 = vrot.lane.b32.xlu0 %v6823, 112
        %v6835 = vpop.permute.xlu0 %6834
        %6836 = vrot.lane.b32.xlu0 %v6825, 112
        %v6837 = vpop.permute.xlu0 %6836
        %6838 = vrot.lane.b32.xlu0 %v6827, 112
        %v6839 = vpop.permute.xlu0 %6838
        %v6840 = vsel %vm3316, %v6829, %v6831
        %v6841 = vsel %vm3316, %v6831, %v6833
        %v6842 = vsel %vm3316, %v6835, %v6837
        %v6843 = vsel %vm3316, %v6837, %v6839
        %v6848 = vmul.f32 %v6800, %v6840
        %v6849 = vmul.f32 %v6804, %v6841
        %v6850 = vmul.f32 %v6800, %v6842
        %v6851 = vmul.f32 %v6804, %v6843
        %v6852 = vadd.f32 %v6790, %v6848
        %v6853 = vadd.f32 %v6791, %v6849
        %v6854 = vadd.f32 %v6792, %v6850
        %v6855 = vadd.f32 %v6793, %v6851
        %v6856 = vadd.f32 %v6732, %v6852
        %v6857 = vadd.f32 %v6733, %v6853
        %v6858 = vadd.f32 %v6734, %v6854
        %v6859 = vadd.f32 %v6735, %v6855
        %s6860 = scalar_lea.vmem %s8, 69
        %v6861 = vld [vmem:[%s6860] ss:$8 sm:$0x3]
        %v6863 = vlaneseq
        %v6864 = vshrl.u32 %v6863, 7
        %v6865 = vsub.s32 0, %v6864
        %v6866 = vrot.slane %v6861, %v6865
        %v6867 = vlaneseq
        %v6868 = vshrl.u32 %v6867, 7
        %v6869 = vsub.s32 1, %v6868
        %v6870 = vrot.slane %v6861, %v6869
        %6873 = vrot.lane.b32.xlu0 %v6757, 96
        %v6874 = vpop.permute.xlu0 %6873
        %6875 = vrot.lane.b32.xlu0 %v6760, 96
        %v6876 = vpop.permute.xlu0 %6875
        %6877 = vrot.lane.b32.xlu0 %v6763, 96
        %v6878 = vpop.permute.xlu0 %6877
        %6879 = vrot.lane.b32.xlu0 %v6765, 96
        %v6880 = vpop.permute.xlu0 %6879
        %6881 = vrot.lane.b32.xlu0 %v6767, 96
        %v6882 = vpop.permute.xlu0 %6881
        %6883 = vrot.lane.b32.xlu0 %v6769, 96
        %v6884 = vpop.permute.xlu0 %6883
        %v6885 = vsel %vm3313, %v6874, %v6876
        %v6886 = vsel %vm3313, %v6876, %v6878
        %v6887 = vsel %vm3313, %v6880, %v6882
        %v6888 = vsel %vm3313, %v6882, %v6884
        %v6893 = vmul.f32 %v6866, %v6885
        %v6894 = vmul.f32 %v6870, %v6886
        %v6895 = vmul.f32 %v6866, %v6887
        %v6896 = vmul.f32 %v6870, %v6888
        %s6897 = scalar_lea.vmem %s9, 69
        %v6898 = vld [vmem:[%s6897] ss:$8 sm:$0x3]
        %v6900 = vlaneseq
        %v6901 = vshrl.u32 %v6900, 7
        %v6902 = vsub.s32 0, %v6901
        %v6903 = vrot.slane %v6898, %v6902
        %v6904 = vlaneseq
        %v6905 = vshrl.u32 %v6904, 7
        %v6906 = vsub.s32 1, %v6905
        %v6907 = vrot.slane %v6898, %v6906
        %6910 = vrot.lane.b32.xlu0 %v6815, 96
        %v6911 = vpop.permute.xlu0 %6910
        %6912 = vrot.lane.b32.xlu0 %v6818, 96
        %v6913 = vpop.permute.xlu0 %6912
        %6914 = vrot.lane.b32.xlu0 %v6821, 96
        %v6915 = vpop.permute.xlu0 %6914
        %6916 = vrot.lane.b32.xlu0 %v6823, 96
        %v6917 = vpop.permute.xlu0 %6916
        %6918 = vrot.lane.b32.xlu0 %v6825, 96
        %v6919 = vpop.permute.xlu0 %6918
        %6920 = vrot.lane.b32.xlu0 %v6827, 96
        %v6921 = vpop.permute.xlu0 %6920
        %v6922 = vsel %vm3313, %v6911, %v6913
        %v6923 = vsel %vm3313, %v6913, %v6915
        %v6924 = vsel %vm3313, %v6917, %v6919
        %v6925 = vsel %vm3313, %v6919, %v6921
        %v6930 = vmul.f32 %v6903, %v6922
        %v6931 = vmul.f32 %v6907, %v6923
        %v6932 = vmul.f32 %v6903, %v6924
        %v6933 = vmul.f32 %v6907, %v6925
        %v6934 = vadd.f32 %v6893, %v6930
        %v6935 = vadd.f32 %v6894, %v6931
        %v6936 = vadd.f32 %v6895, %v6932
        %v6937 = vadd.f32 %v6896, %v6933
        %v6938 = vadd.f32 %v6856, %v6934
        %v6939 = vadd.f32 %v6857, %v6935
        %v6940 = vadd.f32 %v6858, %v6936
        %v6941 = vadd.f32 %v6859, %v6937
        %s6942 = scalar_lea.vmem %s8, 70
        %v6943 = vld [vmem:[%s6942] ss:$8 sm:$0x3]
        %v6945 = vlaneseq
        %v6946 = vshrl.u32 %v6945, 7
        %v6947 = vsub.s32 0, %v6946
        %v6948 = vrot.slane %v6943, %v6947
        %v6949 = vlaneseq
        %v6950 = vshrl.u32 %v6949, 7
        %v6951 = vsub.s32 1, %v6950
        %v6952 = vrot.slane %v6943, %v6951
        %6955 = vrot.lane.b32.xlu0 %v6757, 80
        %v6956 = vpop.permute.xlu0 %6955
        %6957 = vrot.lane.b32.xlu0 %v6760, 80
        %v6958 = vpop.permute.xlu0 %6957
        %6959 = vrot.lane.b32.xlu0 %v6763, 80
        %v6960 = vpop.permute.xlu0 %6959
        %6961 = vrot.lane.b32.xlu0 %v6765, 80
        %v6962 = vpop.permute.xlu0 %6961
        %6963 = vrot.lane.b32.xlu0 %v6767, 80
        %v6964 = vpop.permute.xlu0 %6963
        %6965 = vrot.lane.b32.xlu0 %v6769, 80
        %v6966 = vpop.permute.xlu0 %6965
        %v6967 = vsel %vm3310, %v6956, %v6958
        %v6968 = vsel %vm3310, %v6958, %v6960
        %v6969 = vsel %vm3310, %v6962, %v6964
        %v6970 = vsel %vm3310, %v6964, %v6966
        %v6975 = vmul.f32 %v6948, %v6967
        %v6976 = vmul.f32 %v6952, %v6968
        %v6977 = vmul.f32 %v6948, %v6969
        %v6978 = vmul.f32 %v6952, %v6970
        %s6979 = scalar_lea.vmem %s9, 70
        %v6980 = vld [vmem:[%s6979] ss:$8 sm:$0x3]
        %v6982 = vlaneseq
        %v6983 = vshrl.u32 %v6982, 7
        %v6984 = vsub.s32 0, %v6983
        %v6985 = vrot.slane %v6980, %v6984
        %v6986 = vlaneseq
        %v6987 = vshrl.u32 %v6986, 7
        %v6988 = vsub.s32 1, %v6987
        %v6989 = vrot.slane %v6980, %v6988
        %6992 = vrot.lane.b32.xlu0 %v6815, 80
        %v6993 = vpop.permute.xlu0 %6992
        %6994 = vrot.lane.b32.xlu0 %v6818, 80
        %v6995 = vpop.permute.xlu0 %6994
        %6996 = vrot.lane.b32.xlu0 %v6821, 80
        %v6997 = vpop.permute.xlu0 %6996
        %6998 = vrot.lane.b32.xlu0 %v6823, 80
        %v6999 = vpop.permute.xlu0 %6998
        %7000 = vrot.lane.b32.xlu0 %v6825, 80
        %v7001 = vpop.permute.xlu0 %7000
        %7002 = vrot.lane.b32.xlu0 %v6827, 80
        %v7003 = vpop.permute.xlu0 %7002
        %v7004 = vsel %vm3310, %v6993, %v6995
        %v7005 = vsel %vm3310, %v6995, %v6997
        %v7006 = vsel %vm3310, %v6999, %v7001
        %v7007 = vsel %vm3310, %v7001, %v7003
        %v7012 = vmul.f32 %v6985, %v7004
        %v7013 = vmul.f32 %v6989, %v7005
        %v7014 = vmul.f32 %v6985, %v7006
        %v7015 = vmul.f32 %v6989, %v7007
        %v7016 = vadd.f32 %v6975, %v7012
        %v7017 = vadd.f32 %v6976, %v7013
        %v7018 = vadd.f32 %v6977, %v7014
        %v7019 = vadd.f32 %v6978, %v7015
        %v7020 = vadd.f32 %v6938, %v7016
        %v7021 = vadd.f32 %v6939, %v7017
        %v7022 = vadd.f32 %v6940, %v7018
        %v7023 = vadd.f32 %v6941, %v7019
        %s7024 = scalar_lea.vmem %s8, 71
        %v7025 = vld [vmem:[%s7024] ss:$8 sm:$0x3]
        %v7027 = vlaneseq
        %v7028 = vshrl.u32 %v7027, 7
        %v7029 = vsub.s32 0, %v7028
        %v7030 = vrot.slane %v7025, %v7029
        %v7031 = vlaneseq
        %v7032 = vshrl.u32 %v7031, 7
        %v7033 = vsub.s32 1, %v7032
        %v7034 = vrot.slane %v7025, %v7033
        %7037 = vrot.lane.b32.xlu0 %v6757, 64
        %v7038 = vpop.permute.xlu0 %7037
        %7039 = vrot.lane.b32.xlu0 %v6760, 64
        %v7040 = vpop.permute.xlu0 %7039
        %7041 = vrot.lane.b32.xlu0 %v6763, 64
        %v7042 = vpop.permute.xlu0 %7041
        %7043 = vrot.lane.b32.xlu0 %v6765, 64
        %v7044 = vpop.permute.xlu0 %7043
        %7045 = vrot.lane.b32.xlu0 %v6767, 64
        %v7046 = vpop.permute.xlu0 %7045
        %7047 = vrot.lane.b32.xlu0 %v6769, 64
        %v7048 = vpop.permute.xlu0 %7047
        %v7049 = vsel %vm3307, %v7038, %v7040
        %v7050 = vsel %vm3307, %v7040, %v7042
        %v7051 = vsel %vm3307, %v7044, %v7046
        %v7052 = vsel %vm3307, %v7046, %v7048
        %v7057 = vmul.f32 %v7030, %v7049
        %v7058 = vmul.f32 %v7034, %v7050
        %v7059 = vmul.f32 %v7030, %v7051
        %v7060 = vmul.f32 %v7034, %v7052
        %s7061 = scalar_lea.vmem %s9, 71
        %v7062 = vld [vmem:[%s7061] ss:$8 sm:$0x3]
        %v7064 = vlaneseq
        %v7065 = vshrl.u32 %v7064, 7
        %v7066 = vsub.s32 0, %v7065
        %v7067 = vrot.slane %v7062, %v7066
        %v7068 = vlaneseq
        %v7069 = vshrl.u32 %v7068, 7
        %v7070 = vsub.s32 1, %v7069
        %v7071 = vrot.slane %v7062, %v7070
        %7074 = vrot.lane.b32.xlu0 %v6815, 64
        %v7075 = vpop.permute.xlu0 %7074
        %7076 = vrot.lane.b32.xlu0 %v6818, 64
        %v7077 = vpop.permute.xlu0 %7076
        %7078 = vrot.lane.b32.xlu0 %v6821, 64
        %v7079 = vpop.permute.xlu0 %7078
        %7080 = vrot.lane.b32.xlu0 %v6823, 64
        %v7081 = vpop.permute.xlu0 %7080
        %7082 = vrot.lane.b32.xlu0 %v6825, 64
        %v7083 = vpop.permute.xlu0 %7082
        %7084 = vrot.lane.b32.xlu0 %v6827, 64
        %v7085 = vpop.permute.xlu0 %7084
        %v7086 = vsel %vm3307, %v7075, %v7077
        %v7087 = vsel %vm3307, %v7077, %v7079
        %v7088 = vsel %vm3307, %v7081, %v7083
        %v7089 = vsel %vm3307, %v7083, %v7085
        %v7094 = vmul.f32 %v7067, %v7086
        %v7095 = vmul.f32 %v7071, %v7087
        %v7096 = vmul.f32 %v7067, %v7088
        %v7097 = vmul.f32 %v7071, %v7089
        %v7098 = vadd.f32 %v7057, %v7094
        %v7099 = vadd.f32 %v7058, %v7095
        %v7100 = vadd.f32 %v7059, %v7096
        %v7101 = vadd.f32 %v7060, %v7097
        %v7102 = vadd.f32 %v7020, %v7098
        %v7103 = vadd.f32 %v7021, %v7099
        %v7104 = vadd.f32 %v7022, %v7100
        %v7105 = vadd.f32 %v7023, %v7101
        %s7106 = scalar_lea.vmem %s8, 80
        %v7107 = vld [vmem:[%s7106] ss:$8 sm:$0x3]
        %v7109 = vlaneseq
        %v7110 = vshrl.u32 %v7109, 7
        %v7111 = vsub.s32 0, %v7110
        %v7112 = vrot.slane %v7107, %v7111
        %v7113 = vlaneseq
        %v7114 = vshrl.u32 %v7113, 7
        %v7115 = vsub.s32 1, %v7114
        %v7116 = vrot.slane %v7107, %v7115
        %7119 = vrot.lane.b32.xlu0 %v6757, 48
        %v7120 = vpop.permute.xlu0 %7119
        %7121 = vrot.lane.b32.xlu0 %v6760, 48
        %v7122 = vpop.permute.xlu0 %7121
        %7123 = vrot.lane.b32.xlu0 %v6763, 48
        %v7124 = vpop.permute.xlu0 %7123
        %7125 = vrot.lane.b32.xlu0 %v6765, 48
        %v7126 = vpop.permute.xlu0 %7125
        %7127 = vrot.lane.b32.xlu0 %v6767, 48
        %v7128 = vpop.permute.xlu0 %7127
        %7129 = vrot.lane.b32.xlu0 %v6769, 48
        %v7130 = vpop.permute.xlu0 %7129
        %v7131 = vsel %vm3304, %v7120, %v7122
        %v7132 = vsel %vm3304, %v7122, %v7124
        %v7133 = vsel %vm3304, %v7126, %v7128
        %v7134 = vsel %vm3304, %v7128, %v7130
        %v7139 = vmul.f32 %v7112, %v7131
        %v7140 = vmul.f32 %v7116, %v7132
        %v7141 = vmul.f32 %v7112, %v7133
        %v7142 = vmul.f32 %v7116, %v7134
        %s7143 = scalar_lea.vmem %s9, 80
        %v7144 = vld [vmem:[%s7143] ss:$8 sm:$0x3]
        %v7146 = vlaneseq
        %v7147 = vshrl.u32 %v7146, 7
        %v7148 = vsub.s32 0, %v7147
        %v7149 = vrot.slane %v7144, %v7148
        %v7150 = vlaneseq
        %v7151 = vshrl.u32 %v7150, 7
        %v7152 = vsub.s32 1, %v7151
        %v7153 = vrot.slane %v7144, %v7152
        %7156 = vrot.lane.b32.xlu0 %v6815, 48
        %v7157 = vpop.permute.xlu0 %7156
        %7158 = vrot.lane.b32.xlu0 %v6818, 48
        %v7159 = vpop.permute.xlu0 %7158
        %7160 = vrot.lane.b32.xlu0 %v6821, 48
        %v7161 = vpop.permute.xlu0 %7160
        %7162 = vrot.lane.b32.xlu0 %v6823, 48
        %v7163 = vpop.permute.xlu0 %7162
        %7164 = vrot.lane.b32.xlu0 %v6825, 48
        %v7165 = vpop.permute.xlu0 %7164
        %7166 = vrot.lane.b32.xlu0 %v6827, 48
        %v7167 = vpop.permute.xlu0 %7166
        %v7168 = vsel %vm3304, %v7157, %v7159
        %v7169 = vsel %vm3304, %v7159, %v7161
        %v7170 = vsel %vm3304, %v7163, %v7165
        %v7171 = vsel %vm3304, %v7165, %v7167
        %v7176 = vmul.f32 %v7149, %v7168
        %v7177 = vmul.f32 %v7153, %v7169
        %v7178 = vmul.f32 %v7149, %v7170
        %v7179 = vmul.f32 %v7153, %v7171
        %v7180 = vadd.f32 %v7139, %v7176
        %v7181 = vadd.f32 %v7140, %v7177
        %v7182 = vadd.f32 %v7141, %v7178
        %v7183 = vadd.f32 %v7142, %v7179
        %v7184 = vadd.f32 %v7102, %v7180
        %v7185 = vadd.f32 %v7103, %v7181
        %v7186 = vadd.f32 %v7104, %v7182
        %v7187 = vadd.f32 %v7105, %v7183
        %s7188 = scalar_lea.vmem %s8, 81
        %v7189 = vld [vmem:[%s7188] ss:$8 sm:$0x3]
        %v7191 = vlaneseq
        %v7192 = vshrl.u32 %v7191, 7
        %v7193 = vsub.s32 0, %v7192
        %v7194 = vrot.slane %v7189, %v7193
        %v7195 = vlaneseq
        %v7196 = vshrl.u32 %v7195, 7
        %v7197 = vsub.s32 1, %v7196
        %v7198 = vrot.slane %v7189, %v7197
        %7201 = vrot.lane.b32.xlu0 %v6757, 32
        %v7202 = vpop.permute.xlu0 %7201
        %7203 = vrot.lane.b32.xlu0 %v6760, 32
        %v7204 = vpop.permute.xlu0 %7203
        %7205 = vrot.lane.b32.xlu0 %v6763, 32
        %v7206 = vpop.permute.xlu0 %7205
        %7207 = vrot.lane.b32.xlu0 %v6765, 32
        %v7208 = vpop.permute.xlu0 %7207
        %7209 = vrot.lane.b32.xlu0 %v6767, 32
        %v7210 = vpop.permute.xlu0 %7209
        %7211 = vrot.lane.b32.xlu0 %v6769, 32
        %v7212 = vpop.permute.xlu0 %7211
        %v7213 = vsel %vm3301, %v7202, %v7204
        %v7214 = vsel %vm3301, %v7204, %v7206
        %v7215 = vsel %vm3301, %v7208, %v7210
        %v7216 = vsel %vm3301, %v7210, %v7212
        %v7221 = vmul.f32 %v7194, %v7213
        %v7222 = vmul.f32 %v7198, %v7214
        %v7223 = vmul.f32 %v7194, %v7215
        %v7224 = vmul.f32 %v7198, %v7216
        %s7225 = scalar_lea.vmem %s9, 81
        %v7226 = vld [vmem:[%s7225] ss:$8 sm:$0x3]
        %v7228 = vlaneseq
        %v7229 = vshrl.u32 %v7228, 7
        %v7230 = vsub.s32 0, %v7229
        %v7231 = vrot.slane %v7226, %v7230
        %v7232 = vlaneseq
        %v7233 = vshrl.u32 %v7232, 7
        %v7234 = vsub.s32 1, %v7233
        %v7235 = vrot.slane %v7226, %v7234
        %7238 = vrot.lane.b32.xlu0 %v6815, 32
        %v7239 = vpop.permute.xlu0 %7238
        %7240 = vrot.lane.b32.xlu0 %v6818, 32
        %v7241 = vpop.permute.xlu0 %7240
        %7242 = vrot.lane.b32.xlu0 %v6821, 32
        %v7243 = vpop.permute.xlu0 %7242
        %7244 = vrot.lane.b32.xlu0 %v6823, 32
        %v7245 = vpop.permute.xlu0 %7244
        %7246 = vrot.lane.b32.xlu0 %v6825, 32
        %v7247 = vpop.permute.xlu0 %7246
        %7248 = vrot.lane.b32.xlu0 %v6827, 32
        %v7249 = vpop.permute.xlu0 %7248
        %v7250 = vsel %vm3301, %v7239, %v7241
        %v7251 = vsel %vm3301, %v7241, %v7243
        %v7252 = vsel %vm3301, %v7245, %v7247
        %v7253 = vsel %vm3301, %v7247, %v7249
        %v7258 = vmul.f32 %v7231, %v7250
        %v7259 = vmul.f32 %v7235, %v7251
        %v7260 = vmul.f32 %v7231, %v7252
        %v7261 = vmul.f32 %v7235, %v7253
        %v7262 = vadd.f32 %v7221, %v7258
        %v7263 = vadd.f32 %v7222, %v7259
        %v7264 = vadd.f32 %v7223, %v7260
        %v7265 = vadd.f32 %v7224, %v7261
        %v7266 = vadd.f32 %v7184, %v7262
        %v7267 = vadd.f32 %v7185, %v7263
        %v7268 = vadd.f32 %v7186, %v7264
        %v7269 = vadd.f32 %v7187, %v7265
        %v7270 = vld [vmem:[#allocation2] sm:$0xc0]
        %v7271 = vld [vmem:[#allocation2 + $0x8] sm:$0xc0]
        %v7272 = vld [vmem:[#allocation2 + $0x10] sm:$0xc0]
        %v7273 = vld [vmem:[#allocation2 + $0x30] sm:$0x3f]
        %v7274 = vld [vmem:[#allocation2 + $0x38] sm:$0x3f]
        %v7275 = vld [vmem:[#allocation2 + $0x40] sm:$0x3f]
        %v7276 = vld [vmem:[#allocation3] sm:$0xc0]
        %v7277 = vld [vmem:[#allocation3 + $0x8] sm:$0xc0]
        %v7278 = vld [vmem:[#allocation3 + $0x10] sm:$0xc0]
        %v7279 = vld [vmem:[#allocation3 + $0x30] sm:$0x3f]
        %v7280 = vld [vmem:[#allocation3 + $0x38] sm:$0x3f]
        %v7281 = vld [vmem:[#allocation3 + $0x40] sm:$0x3f]
        %s7282 = scalar_lea.vmem %s8, 82
        %v7283 = vld [vmem:[%s7282] ss:$8 sm:$0x3]
        %v7285 = vlaneseq
        %v7286 = vshrl.u32 %v7285, 7
        %v7287 = vsub.s32 0, %v7286
        %v7288 = vrot.slane %v7283, %v7287
        %v7289 = vlaneseq
        %v7290 = vshrl.u32 %v7289, 7
        %v7291 = vsub.s32 1, %v7290
        %v7292 = vrot.slane %v7283, %v7291
        %v7295 = vmul.f32 %v7288, %v7270
        %v7296 = vmul.f32 %v7292, %v7271
        %v7297 = vmul.f32 %v7288, %v3647
        %v7298 = vmul.f32 %v7292, %v3648
        %v7299 = vmul.f32 %v7288, %v7273
        %v7300 = vmul.f32 %v7292, %v7274
        %s7301 = scalar_lea.vmem %s9, 82
        %v7302 = vld [vmem:[%s7301] ss:$8 sm:$0x3]
        %v7304 = vlaneseq
        %v7305 = vshrl.u32 %v7304, 7
        %v7306 = vsub.s32 0, %v7305
        %v7307 = vrot.slane %v7302, %v7306
        %v7308 = vlaneseq
        %v7309 = vshrl.u32 %v7308, 7
        %v7310 = vsub.s32 1, %v7309
        %v7311 = vrot.slane %v7302, %v7310
        %v7314 = vmul.f32 %v7307, %v7276
        %v7315 = vmul.f32 %v7311, %v7277
        %v7316 = vmul.f32 %v7307, %v3653
        %v7317 = vmul.f32 %v7311, %v3654
        %v7318 = vmul.f32 %v7307, %v7279
        %v7319 = vmul.f32 %v7311, %v7280
        %v7320 = vadd.f32 %v7295, %v7314
        %v7321 = vadd.f32 %v7296, %v7315
        %v7322 = vadd.f32 %v7297, %v7316
        %v7323 = vadd.f32 %v7298, %v7317
        %v7324 = vadd.f32 %v7299, %v7318
        %v7325 = vadd.f32 %v7300, %v7319
        %v7332 = vrot.slane %v7320, 6
        %v7333 = vrot.slane %v7322, 6
        %v7334 = vsel %vm1150, %v7332, %v7333
        %v7335 = vrot.slane %v7321, 6
        %v7336 = vrot.slane %v7323, 6
        %v7337 = vsel %vm1150, %v7335, %v7336
        %v7338 = vrot.slane %v7324, 6
        %v7339 = vsel %vm1150, %v7333, %v7338
        %v7340 = vrot.slane %v7325, 6
        %v7341 = vsel %vm1150, %v7336, %v7340
        %v7346 = vadd.f32 %v7266, %v7334
        %v7347 = vadd.f32 %v7267, %v7337
        %v7348 = vadd.f32 %v7268, %v7339
        %v7349 = vadd.f32 %v7269, %v7341
        %s7350 = scalar_lea.vmem %s8, 83
        %v7351 = vld [vmem:[%s7350] ss:$8 sm:$0x3]
        %v7353 = vlaneseq
        %v7354 = vshrl.u32 %v7353, 7
        %v7355 = vsub.s32 0, %v7354
        %v7356 = vrot.slane %v7351, %v7355
        %v7357 = vlaneseq
        %v7358 = vshrl.u32 %v7357, 7
        %v7359 = vsub.s32 1, %v7358
        %v7360 = vrot.slane %v7351, %v7359
        %v7369 = vrot.slane %v7270, 6
        %v7370 = vrot.slane %v3647, 6
        %v7371 = vsel %vm1150, %v7369, %v7370
        %v7372 = vrot.slane %v7271, 6
        %v7373 = vrot.slane %v3648, 6
        %v7374 = vsel %vm1150, %v7372, %v7373
        %v7375 = vrot.slane %v7272, 6
        %v7376 = vrot.slane %v3649, 6
        %v7377 = vsel %vm1150, %v7375, %v7376
        %v7378 = vrot.slane %v7273, 6
        %v7379 = vsel %vm1150, %v7370, %v7378
        %v7380 = vrot.slane %v7274, 6
        %v7381 = vsel %vm1150, %v7373, %v7380
        %v7382 = vrot.slane %v7275, 6
        %v7383 = vsel %vm1150, %v7376, %v7382
        %7384 = vrot.lane.b32.xlu0 %v7371, 112
        %v7385 = vpop.permute.xlu0 %7384
        %7386 = vrot.lane.b32.xlu0 %v7374, 112
        %v7387 = vpop.permute.xlu0 %7386
        %7388 = vrot.lane.b32.xlu0 %v7377, 112
        %v7389 = vpop.permute.xlu0 %7388
        %7390 = vrot.lane.b32.xlu0 %v7379, 112
        %v7391 = vpop.permute.xlu0 %7390
        %7392 = vrot.lane.b32.xlu0 %v7381, 112
        %v7393 = vpop.permute.xlu0 %7392
        %7394 = vrot.lane.b32.xlu0 %v7383, 112
        %v7395 = vpop.permute.xlu0 %7394
        %v7396 = vsel %vm3316, %v7385, %v7387
        %v7397 = vsel %vm3316, %v7387, %v7389
        %v7398 = vsel %vm3316, %v7391, %v7393
        %v7399 = vsel %vm3316, %v7393, %v7395
        %v7404 = vmul.f32 %v7356, %v7396
        %v7405 = vmul.f32 %v7360, %v7397
        %v7406 = vmul.f32 %v7356, %v7398
        %v7407 = vmul.f32 %v7360, %v7399
        %s7408 = scalar_lea.vmem %s9, 83
        %v7409 = vld [vmem:[%s7408] ss:$8 sm:$0x3]
        %v7411 = vlaneseq
        %v7412 = vshrl.u32 %v7411, 7
        %v7413 = vsub.s32 0, %v7412
        %v7414 = vrot.slane %v7409, %v7413
        %v7415 = vlaneseq
        %v7416 = vshrl.u32 %v7415, 7
        %v7417 = vsub.s32 1, %v7416
        %v7418 = vrot.slane %v7409, %v7417
        %v7427 = vrot.slane %v7276, 6
        %v7428 = vrot.slane %v3653, 6
        %v7429 = vsel %vm1150, %v7427, %v7428
        %v7430 = vrot.slane %v7277, 6
        %v7431 = vrot.slane %v3654, 6
        %v7432 = vsel %vm1150, %v7430, %v7431
        %v7433 = vrot.slane %v7278, 6
        %v7434 = vrot.slane %v3655, 6
        %v7435 = vsel %vm1150, %v7433, %v7434
        %v7436 = vrot.slane %v7279, 6
        %v7437 = vsel %vm1150, %v7428, %v7436
        %v7438 = vrot.slane %v7280, 6
        %v7439 = vsel %vm1150, %v7431, %v7438
        %v7440 = vrot.slane %v7281, 6
        %v7441 = vsel %vm1150, %v7434, %v7440
        %7442 = vrot.lane.b32.xlu0 %v7429, 112
        %v7443 = vpop.permute.xlu0 %7442
        %7444 = vrot.lane.b32.xlu0 %v7432, 112
        %v7445 = vpop.permute.xlu0 %7444
        %7446 = vrot.lane.b32.xlu0 %v7435, 112
        %v7447 = vpop.permute.xlu0 %7446
        %7448 = vrot.lane.b32.xlu0 %v7437, 112
        %v7449 = vpop.permute.xlu0 %7448
        %7450 = vrot.lane.b32.xlu0 %v7439, 112
        %v7451 = vpop.permute.xlu0 %7450
        %7452 = vrot.lane.b32.xlu0 %v7441, 112
        %v7453 = vpop.permute.xlu0 %7452
        %v7454 = vsel %vm3316, %v7443, %v7445
        %v7455 = vsel %vm3316, %v7445, %v7447
        %v7456 = vsel %vm3316, %v7449, %v7451
        %v7457 = vsel %vm3316, %v7451, %v7453
        %v7462 = vmul.f32 %v7414, %v7454
        %v7463 = vmul.f32 %v7418, %v7455
        %v7464 = vmul.f32 %v7414, %v7456
        %v7465 = vmul.f32 %v7418, %v7457
        %v7466 = vadd.f32 %v7404, %v7462
        %v7467 = vadd.f32 %v7405, %v7463
        %v7468 = vadd.f32 %v7406, %v7464
        %v7469 = vadd.f32 %v7407, %v7465
        %v7470 = vadd.f32 %v7346, %v7466
        %v7471 = vadd.f32 %v7347, %v7467
        %v7472 = vadd.f32 %v7348, %v7468
        %v7473 = vadd.f32 %v7349, %v7469
        %s7474 = scalar_lea.vmem %s8, 84
        %v7475 = vld [vmem:[%s7474] ss:$8 sm:$0x3]
        %v7477 = vlaneseq
        %v7478 = vshrl.u32 %v7477, 7
        %v7479 = vsub.s32 0, %v7478
        %v7480 = vrot.slane %v7475, %v7479
        %v7481 = vlaneseq
        %v7482 = vshrl.u32 %v7481, 7
        %v7483 = vsub.s32 1, %v7482
        %v7484 = vrot.slane %v7475, %v7483
        %7487 = vrot.lane.b32.xlu0 %v7371, 96
        %v7488 = vpop.permute.xlu0 %7487
        %7489 = vrot.lane.b32.xlu0 %v7374, 96
        %v7490 = vpop.permute.xlu0 %7489
        %7491 = vrot.lane.b32.xlu0 %v7377, 96
        %v7492 = vpop.permute.xlu0 %7491
        %7493 = vrot.lane.b32.xlu0 %v7379, 96
        %v7494 = vpop.permute.xlu0 %7493
        %7495 = vrot.lane.b32.xlu0 %v7381, 96
        %v7496 = vpop.permute.xlu0 %7495
        %7497 = vrot.lane.b32.xlu0 %v7383, 96
        %v7498 = vpop.permute.xlu0 %7497
        %v7499 = vsel %vm3313, %v7488, %v7490
        %v7500 = vsel %vm3313, %v7490, %v7492
        %v7501 = vsel %vm3313, %v7494, %v7496
        %v7502 = vsel %vm3313, %v7496, %v7498
        %v7507 = vmul.f32 %v7480, %v7499
        %v7508 = vmul.f32 %v7484, %v7500
        %v7509 = vmul.f32 %v7480, %v7501
        %v7510 = vmul.f32 %v7484, %v7502
        %s7511 = scalar_lea.vmem %s9, 84
        %v7512 = vld [vmem:[%s7511] ss:$8 sm:$0x3]
        %v7514 = vlaneseq
        %v7515 = vshrl.u32 %v7514, 7
        %v7516 = vsub.s32 0, %v7515
        %v7517 = vrot.slane %v7512, %v7516
        %v7518 = vlaneseq
        %v7519 = vshrl.u32 %v7518, 7
        %v7520 = vsub.s32 1, %v7519
        %v7521 = vrot.slane %v7512, %v7520
        %7524 = vrot.lane.b32.xlu0 %v7429, 96
        %v7525 = vpop.permute.xlu0 %7524
        %7526 = vrot.lane.b32.xlu0 %v7432, 96
        %v7527 = vpop.permute.xlu0 %7526
        %7528 = vrot.lane.b32.xlu0 %v7435, 96
        %v7529 = vpop.permute.xlu0 %7528
        %7530 = vrot.lane.b32.xlu0 %v7437, 96
        %v7531 = vpop.permute.xlu0 %7530
        %7532 = vrot.lane.b32.xlu0 %v7439, 96
        %v7533 = vpop.permute.xlu0 %7532
        %7534 = vrot.lane.b32.xlu0 %v7441, 96
        %v7535 = vpop.permute.xlu0 %7534
        %v7536 = vsel %vm3313, %v7525, %v7527
        %v7537 = vsel %vm3313, %v7527, %v7529
        %v7538 = vsel %vm3313, %v7531, %v7533
        %v7539 = vsel %vm3313, %v7533, %v7535
        %v7544 = vmul.f32 %v7517, %v7536
        %v7545 = vmul.f32 %v7521, %v7537
        %v7546 = vmul.f32 %v7517, %v7538
        %v7547 = vmul.f32 %v7521, %v7539
        %v7548 = vadd.f32 %v7507, %v7544
        %v7549 = vadd.f32 %v7508, %v7545
        %v7550 = vadd.f32 %v7509, %v7546
        %v7551 = vadd.f32 %v7510, %v7547
        %v7552 = vadd.f32 %v7470, %v7548
        %v7553 = vadd.f32 %v7471, %v7549
        %v7554 = vadd.f32 %v7472, %v7550
        %v7555 = vadd.f32 %v7473, %v7551
        %s7556 = scalar_lea.vmem %s8, 85
        %v7557 = vld [vmem:[%s7556] ss:$8 sm:$0x3]
        %v7559 = vlaneseq
        %v7560 = vshrl.u32 %v7559, 7
        %v7561 = vsub.s32 0, %v7560
        %v7562 = vrot.slane %v7557, %v7561
        %v7563 = vlaneseq
        %v7564 = vshrl.u32 %v7563, 7
        %v7565 = vsub.s32 1, %v7564
        %v7566 = vrot.slane %v7557, %v7565
        %7569 = vrot.lane.b32.xlu0 %v7371, 80
        %v7570 = vpop.permute.xlu0 %7569
        %7571 = vrot.lane.b32.xlu0 %v7374, 80
        %v7572 = vpop.permute.xlu0 %7571
        %7573 = vrot.lane.b32.xlu0 %v7377, 80
        %v7574 = vpop.permute.xlu0 %7573
        %7575 = vrot.lane.b32.xlu0 %v7379, 80
        %v7576 = vpop.permute.xlu0 %7575
        %7577 = vrot.lane.b32.xlu0 %v7381, 80
        %v7578 = vpop.permute.xlu0 %7577
        %7579 = vrot.lane.b32.xlu0 %v7383, 80
        %v7580 = vpop.permute.xlu0 %7579
        %v7581 = vsel %vm3310, %v7570, %v7572
        %v7582 = vsel %vm3310, %v7572, %v7574
        %v7583 = vsel %vm3310, %v7576, %v7578
        %v7584 = vsel %vm3310, %v7578, %v7580
        %v7589 = vmul.f32 %v7562, %v7581
        %v7590 = vmul.f32 %v7566, %v7582
        %v7591 = vmul.f32 %v7562, %v7583
        %v7592 = vmul.f32 %v7566, %v7584
        %s7593 = scalar_lea.vmem %s9, 85
        %v7594 = vld [vmem:[%s7593] ss:$8 sm:$0x3]
        %v7596 = vlaneseq
        %v7597 = vshrl.u32 %v7596, 7
        %v7598 = vsub.s32 0, %v7597
        %v7599 = vrot.slane %v7594, %v7598
        %v7600 = vlaneseq
        %v7601 = vshrl.u32 %v7600, 7
        %v7602 = vsub.s32 1, %v7601
        %v7603 = vrot.slane %v7594, %v7602
        %7606 = vrot.lane.b32.xlu0 %v7429, 80
        %v7607 = vpop.permute.xlu0 %7606
        %7608 = vrot.lane.b32.xlu0 %v7432, 80
        %v7609 = vpop.permute.xlu0 %7608
        %7610 = vrot.lane.b32.xlu0 %v7435, 80
        %v7611 = vpop.permute.xlu0 %7610
        %7612 = vrot.lane.b32.xlu0 %v7437, 80
        %v7613 = vpop.permute.xlu0 %7612
        %7614 = vrot.lane.b32.xlu0 %v7439, 80
        %v7615 = vpop.permute.xlu0 %7614
        %7616 = vrot.lane.b32.xlu0 %v7441, 80
        %v7617 = vpop.permute.xlu0 %7616
        %v7618 = vsel %vm3310, %v7607, %v7609
        %v7619 = vsel %vm3310, %v7609, %v7611
        %v7620 = vsel %vm3310, %v7613, %v7615
        %v7621 = vsel %vm3310, %v7615, %v7617
        %v7626 = vmul.f32 %v7599, %v7618
        %v7627 = vmul.f32 %v7603, %v7619
        %v7628 = vmul.f32 %v7599, %v7620
        %v7629 = vmul.f32 %v7603, %v7621
        %v7630 = vadd.f32 %v7589, %v7626
        %v7631 = vadd.f32 %v7590, %v7627
        %v7632 = vadd.f32 %v7591, %v7628
        %v7633 = vadd.f32 %v7592, %v7629
        %v7634 = vadd.f32 %v7552, %v7630
        %v7635 = vadd.f32 %v7553, %v7631
        %v7636 = vadd.f32 %v7554, %v7632
        %v7637 = vadd.f32 %v7555, %v7633
        %s7638 = scalar_lea.vmem %s8, 86
        %v7639 = vld [vmem:[%s7638] ss:$8 sm:$0x3]
        %v7641 = vlaneseq
        %v7642 = vshrl.u32 %v7641, 7
        %v7643 = vsub.s32 0, %v7642
        %v7644 = vrot.slane %v7639, %v7643
        %v7645 = vlaneseq
        %v7646 = vshrl.u32 %v7645, 7
        %v7647 = vsub.s32 1, %v7646
        %v7648 = vrot.slane %v7639, %v7647
        %7651 = vrot.lane.b32.xlu0 %v7371, 64
        %v7652 = vpop.permute.xlu0 %7651
        %7653 = vrot.lane.b32.xlu0 %v7374, 64
        %v7654 = vpop.permute.xlu0 %7653
        %7655 = vrot.lane.b32.xlu0 %v7377, 64
        %v7656 = vpop.permute.xlu0 %7655
        %7657 = vrot.lane.b32.xlu0 %v7379, 64
        %v7658 = vpop.permute.xlu0 %7657
        %7659 = vrot.lane.b32.xlu0 %v7381, 64
        %v7660 = vpop.permute.xlu0 %7659
        %7661 = vrot.lane.b32.xlu0 %v7383, 64
        %v7662 = vpop.permute.xlu0 %7661
        %v7663 = vsel %vm3307, %v7652, %v7654
        %v7664 = vsel %vm3307, %v7654, %v7656
        %v7665 = vsel %vm3307, %v7658, %v7660
        %v7666 = vsel %vm3307, %v7660, %v7662
        %v7671 = vmul.f32 %v7644, %v7663
        %v7672 = vmul.f32 %v7648, %v7664
        %v7673 = vmul.f32 %v7644, %v7665
        %v7674 = vmul.f32 %v7648, %v7666
        %s7675 = scalar_lea.vmem %s9, 86
        %v7676 = vld [vmem:[%s7675] ss:$8 sm:$0x3]
        %v7678 = vlaneseq
        %v7679 = vshrl.u32 %v7678, 7
        %v7680 = vsub.s32 0, %v7679
        %v7681 = vrot.slane %v7676, %v7680
        %v7682 = vlaneseq
        %v7683 = vshrl.u32 %v7682, 7
        %v7684 = vsub.s32 1, %v7683
        %v7685 = vrot.slane %v7676, %v7684
        %7688 = vrot.lane.b32.xlu0 %v7429, 64
        %v7689 = vpop.permute.xlu0 %7688
        %7690 = vrot.lane.b32.xlu0 %v7432, 64
        %v7691 = vpop.permute.xlu0 %7690
        %7692 = vrot.lane.b32.xlu0 %v7435, 64
        %v7693 = vpop.permute.xlu0 %7692
        %7694 = vrot.lane.b32.xlu0 %v7437, 64
        %v7695 = vpop.permute.xlu0 %7694
        %7696 = vrot.lane.b32.xlu0 %v7439, 64
        %v7697 = vpop.permute.xlu0 %7696
        %7698 = vrot.lane.b32.xlu0 %v7441, 64
        %v7699 = vpop.permute.xlu0 %7698
        %v7700 = vsel %vm3307, %v7689, %v7691
        %v7701 = vsel %vm3307, %v7691, %v7693
        %v7702 = vsel %vm3307, %v7695, %v7697
        %v7703 = vsel %vm3307, %v7697, %v7699
        %v7708 = vmul.f32 %v7681, %v7700
        %v7709 = vmul.f32 %v7685, %v7701
        %v7710 = vmul.f32 %v7681, %v7702
        %v7711 = vmul.f32 %v7685, %v7703
        %v7712 = vadd.f32 %v7671, %v7708
        %v7713 = vadd.f32 %v7672, %v7709
        %v7714 = vadd.f32 %v7673, %v7710
        %v7715 = vadd.f32 %v7674, %v7711
        %v7716 = vadd.f32 %v7634, %v7712
        %v7717 = vadd.f32 %v7635, %v7713
        %v7718 = vadd.f32 %v7636, %v7714
        %v7719 = vadd.f32 %v7637, %v7715
        %s7720 = scalar_lea.vmem %s8, 87
        %v7721 = vld [vmem:[%s7720] ss:$8 sm:$0x3]
        %v7723 = vlaneseq
        %v7724 = vshrl.u32 %v7723, 7
        %v7725 = vsub.s32 0, %v7724
        %v7726 = vrot.slane %v7721, %v7725
        %v7727 = vlaneseq
        %v7728 = vshrl.u32 %v7727, 7
        %v7729 = vsub.s32 1, %v7728
        %v7730 = vrot.slane %v7721, %v7729
        %7733 = vrot.lane.b32.xlu0 %v7371, 48
        %v7734 = vpop.permute.xlu0 %7733
        %7735 = vrot.lane.b32.xlu0 %v7374, 48
        %v7736 = vpop.permute.xlu0 %7735
        %7737 = vrot.lane.b32.xlu0 %v7377, 48
        %v7738 = vpop.permute.xlu0 %7737
        %7739 = vrot.lane.b32.xlu0 %v7379, 48
        %v7740 = vpop.permute.xlu0 %7739
        %7741 = vrot.lane.b32.xlu0 %v7381, 48
        %v7742 = vpop.permute.xlu0 %7741
        %7743 = vrot.lane.b32.xlu0 %v7383, 48
        %v7744 = vpop.permute.xlu0 %7743
        %v7745 = vsel %vm3304, %v7734, %v7736
        %v7746 = vsel %vm3304, %v7736, %v7738
        %v7747 = vsel %vm3304, %v7740, %v7742
        %v7748 = vsel %vm3304, %v7742, %v7744
        %v7753 = vmul.f32 %v7726, %v7745
        %v7754 = vmul.f32 %v7730, %v7746
        %v7755 = vmul.f32 %v7726, %v7747
        %v7756 = vmul.f32 %v7730, %v7748
        %s7757 = scalar_lea.vmem %s9, 87
        %v7758 = vld [vmem:[%s7757] ss:$8 sm:$0x3]
        %v7760 = vlaneseq
        %v7761 = vshrl.u32 %v7760, 7
        %v7762 = vsub.s32 0, %v7761
        %v7763 = vrot.slane %v7758, %v7762
        %v7764 = vlaneseq
        %v7765 = vshrl.u32 %v7764, 7
        %v7766 = vsub.s32 1, %v7765
        %v7767 = vrot.slane %v7758, %v7766
        %7770 = vrot.lane.b32.xlu0 %v7429, 48
        %v7771 = vpop.permute.xlu0 %7770
        %7772 = vrot.lane.b32.xlu0 %v7432, 48
        %v7773 = vpop.permute.xlu0 %7772
        %7774 = vrot.lane.b32.xlu0 %v7435, 48
        %v7775 = vpop.permute.xlu0 %7774
        %7776 = vrot.lane.b32.xlu0 %v7437, 48
        %v7777 = vpop.permute.xlu0 %7776
        %7778 = vrot.lane.b32.xlu0 %v7439, 48
        %v7779 = vpop.permute.xlu0 %7778
        %7780 = vrot.lane.b32.xlu0 %v7441, 48
        %v7781 = vpop.permute.xlu0 %7780
        %v7782 = vsel %vm3304, %v7771, %v7773
        %v7783 = vsel %vm3304, %v7773, %v7775
        %v7784 = vsel %vm3304, %v7777, %v7779
        %v7785 = vsel %vm3304, %v7779, %v7781
        %v7790 = vmul.f32 %v7763, %v7782
        %v7791 = vmul.f32 %v7767, %v7783
        %v7792 = vmul.f32 %v7763, %v7784
        %v7793 = vmul.f32 %v7767, %v7785
        %v7794 = vadd.f32 %v7753, %v7790
        %v7795 = vadd.f32 %v7754, %v7791
        %v7796 = vadd.f32 %v7755, %v7792
        %v7797 = vadd.f32 %v7756, %v7793
        %v7798 = vadd.f32 %v7716, %v7794
        %v7799 = vadd.f32 %v7717, %v7795
        %v7800 = vadd.f32 %v7718, %v7796
        %v7801 = vadd.f32 %v7719, %v7797
        %s7802 = scalar_lea.vmem %s8, 96
        %v7803 = vld [vmem:[%s7802] ss:$8 sm:$0x3]
        %v7805 = vlaneseq
        %v7806 = vshrl.u32 %v7805, 7
        %v7807 = vsub.s32 0, %v7806
        %v7808 = vrot.slane %v7803, %v7807
        %v7809 = vlaneseq
        %v7810 = vshrl.u32 %v7809, 7
        %v7811 = vsub.s32 1, %v7810
        %v7812 = vrot.slane %v7803, %v7811
        %7815 = vrot.lane.b32.xlu0 %v7371, 32
        %v7816 = vpop.permute.xlu0 %7815
        %7817 = vrot.lane.b32.xlu0 %v7374, 32
        %v7818 = vpop.permute.xlu0 %7817
        %7819 = vrot.lane.b32.xlu0 %v7377, 32
        %v7820 = vpop.permute.xlu0 %7819
        %7821 = vrot.lane.b32.xlu0 %v7379, 32
        %v7822 = vpop.permute.xlu0 %7821
        %7823 = vrot.lane.b32.xlu0 %v7381, 32
        %v7824 = vpop.permute.xlu0 %7823
        %7825 = vrot.lane.b32.xlu0 %v7383, 32
        %v7826 = vpop.permute.xlu0 %7825
        %v7827 = vsel %vm3301, %v7816, %v7818
        %v7828 = vsel %vm3301, %v7818, %v7820
        %v7829 = vsel %vm3301, %v7822, %v7824
        %v7830 = vsel %vm3301, %v7824, %v7826
        %v7835 = vmul.f32 %v7808, %v7827
        %v7836 = vmul.f32 %v7812, %v7828
        %v7837 = vmul.f32 %v7808, %v7829
        %v7838 = vmul.f32 %v7812, %v7830
        %s7839 = scalar_lea.vmem %s9, 96
        %v7840 = vld [vmem:[%s7839] ss:$8 sm:$0x3]
        %v7842 = vlaneseq
        %v7843 = vshrl.u32 %v7842, 7
        %v7844 = vsub.s32 0, %v7843
        %v7845 = vrot.slane %v7840, %v7844
        %v7846 = vlaneseq
        %v7847 = vshrl.u32 %v7846, 7
        %v7848 = vsub.s32 1, %v7847
        %v7849 = vrot.slane %v7840, %v7848
        %7852 = vrot.lane.b32.xlu0 %v7429, 32
        %v7853 = vpop.permute.xlu0 %7852
        %7854 = vrot.lane.b32.xlu0 %v7432, 32
        %v7855 = vpop.permute.xlu0 %7854
        %7856 = vrot.lane.b32.xlu0 %v7435, 32
        %v7857 = vpop.permute.xlu0 %7856
        %7858 = vrot.lane.b32.xlu0 %v7437, 32
        %v7859 = vpop.permute.xlu0 %7858
        %7860 = vrot.lane.b32.xlu0 %v7439, 32
        %v7861 = vpop.permute.xlu0 %7860
        %7862 = vrot.lane.b32.xlu0 %v7441, 32
        %v7863 = vpop.permute.xlu0 %7862
        %v7864 = vsel %vm3301, %v7853, %v7855
        %v7865 = vsel %vm3301, %v7855, %v7857
        %v7866 = vsel %vm3301, %v7859, %v7861
        %v7867 = vsel %vm3301, %v7861, %v7863
        %v7872 = vmul.f32 %v7845, %v7864
        %v7873 = vmul.f32 %v7849, %v7865
        %v7874 = vmul.f32 %v7845, %v7866
        %v7875 = vmul.f32 %v7849, %v7867
        %v7876 = vadd.f32 %v7835, %v7872
        %v7877 = vadd.f32 %v7836, %v7873
        %v7878 = vadd.f32 %v7837, %v7874
        %v7879 = vadd.f32 %v7838, %v7875
        %v7880 = vadd.f32 %v7798, %v7876
        %v7881 = vadd.f32 %v7799, %v7877
        %v7882 = vadd.f32 %v7800, %v7878
        %v7883 = vadd.f32 %v7801, %v7879
        %v7884 = vxor.u32 %v7880, 2147483648
        %v7885 = vxor.u32 %v7881, 2147483648
        %v7886 = vxor.u32 %v7882, 2147483648
        %v7887 = vxor.u32 %v7883, 2147483648
        %v7888 = vmul.f32 %v7884, 1.442695
        %v7889 = vpow.pop %v7888
        %v7890 = vmul.f32 %v7885, 1.442695
        %v7891 = vpow.pop %v7890
        %v7892 = vmul.f32 %v7886, 1.442695
        %v7893 = vpow.pop %v7892
        %v7894 = vmul.f32 %v7887, 1.442695
        %v7895 = vpow.pop %v7894
        %v7896 = vadd.f32 %v7889, 1.0
        %v7897 = vadd.f32 %v7891, 1.0
        %v7898 = vadd.f32 %v7893, 1.0
        %v7899 = vadd.f32 %v7895, 1.0
        %v7900 = vrcp.pop %v7896
        %v7901 = vmul.f32 1.0, %v7900
        %v7902 = vrcp.pop %v7897
        %v7903 = vmul.f32 1.0, %v7902
        %v7904 = vrcp.pop %v7898
        %v7905 = vmul.f32 1.0, %v7904
        %v7906 = vrcp.pop %v7899
        %v7907 = vmul.f32 1.0, %v7906
        %v7908 = vxor.u32 %v7901, 2147483648
        %v7909 = vxor.u32 %v7903, 2147483648
        %v7910 = vxor.u32 %v7905, 2147483648
        %v7911 = vxor.u32 %v7907, 2147483648
        %v7912 = vmul.f32 %v7908, 1.442695
        %v7913 = vpow.pop %v7912
        %v7914 = vmul.f32 %v7909, 1.442695
        %v7915 = vpow.pop %v7914
        %v7916 = vmul.f32 %v7910, 1.442695
        %v7917 = vpow.pop %v7916
        %v7918 = vmul.f32 %v7911, 1.442695
        %v7919 = vpow.pop %v7918
        %v7920 = vadd.f32 %v7913, 1.0
        %v7921 = vadd.f32 %v7915, 1.0
        %v7922 = vadd.f32 %v7917, 1.0
        %v7923 = vadd.f32 %v7919, 1.0
        %v7924 = vrcp.pop %v7920
        %v7925 = vmul.f32 1.0, %v7924
        %v7926 = vrcp.pop %v7921
        %v7927 = vmul.f32 1.0, %v7926
        %v7928 = vrcp.pop %v7922
        %v7929 = vmul.f32 1.0, %v7928
        %v7930 = vrcp.pop %v7923
        %v7931 = vmul.f32 1.0, %v7930
        %v7932 = vmul.f32 %v7925, %v460
        %v7933 = vmul.f32 %v7927, %v461
        %v7934 = vmul.f32 %v7929, %v462
        %v7935 = vmul.f32 %v7931, %v463
        %v7936 = vadd.f32 %v468, %v7932
        %v7937 = vadd.f32 %v469, %v7933
        %v7938 = vadd.f32 %v470, %v7934
        %v7939 = vadd.f32 %v471, %v7935
        %v7940 = vsub.f32 1.0, %v7925
        %v7941 = vsub.f32 1.0, %v7927
        %v7942 = vsub.f32 1.0, %v7929
        %v7943 = vsub.f32 1.0, %v7931
        %v7944 = vmul.f32 %v7940, %v464
        %v7945 = vmul.f32 %v7941, %v465
        %v7946 = vmul.f32 %v7942, %v466
        %v7947 = vmul.f32 %v7943, %v467
        %v7948 = vadd.f32 %v7936, %v7944
        %v7949 = vadd.f32 %v7937, %v7945
        %v7950 = vadd.f32 %v7938, %v7946
        %v7951 = vadd.f32 %v7939, %v7947
        %7952 = vst [vmem:[%s459] sm:$0xff] %v7948
        %7953 = vst [vmem:[%s459 + $0x8] sm:$0xff] %v7949
        %7954 = vst [vmem:[%s459 + $0x10] sm:$0xff] %v7950
        %7955 = vst [vmem:[%s459 + $0x18] sm:$0xff] %v7951
        %s7956 = sand.u32 %s282, 1
        %s7957 = scalar_lea.sflag [#allocation7], %s7956
        %s7958 = sand.u32 %s282, 1
        %s7959 = smul.addr %s7958, 32
        %s7960 = scalar_lea.vmem [#allocation12], %s7959
        // Predicated region
        $region77: #{tpu_custom_call.1} parent=63 // pred_check
          %p7961 = pneg %p292
        $region78: #{tpu_custom_call.1} parent=63 // pred_check_branch
          %7963 = sbr.rel (%p7961) target = $region80
        $region79: #{tpu_custom_call.1} parent=63 // pred_region
          %s7965 = ssub.s32 512, 512
          %7966 = vsyncadd %s7957, %s7965
          %s7967 = smul.addr %s33, 4
          %s7968 = smul.addr %s7967, 128
          %s7969 = scalar_lea.hbm %s11, %s7968
          %s7970 = sshll.u32 %s7960, 4
          %s7971 = int_to_ptr.vmem [resolvable:$true] %s7970
          %7976 = dma.vmem_to_hbm [thread:$0]  %s7971, 512, %s7969, %s7957, 256, 256, 16
        $region80: #{tpu_custom_call.1} parent=63 // pred_fallthru
          _
      $region64: #{tpu_custom_call.1} parent=5 // pred_fallthru
        _
      %p7977 = scmp.le.s32.totalorder 2, %s28
      // Predicated region
      $region81: #{tpu_custom_call.1} parent=5 // pred_check
        %p7978 = pneg %p7977
      $region82: #{tpu_custom_call.1} parent=5 // pred_check_branch
        %7980 = sbr.rel (%p7978) target = $region84
      $region83: #{tpu_custom_call.1} parent=5 // pred_region
        %s7981 = ssub.s32 %s28, 2
        // Predicated region
        $region85: #{tpu_custom_call.1} parent=83 // pred_check
          %p7982 = pneg %p298
        $region86: #{tpu_custom_call.1} parent=83 // pred_check_branch
          %7984 = sbr.rel (%p7982) target = $region88
        $region87: #{tpu_custom_call.1} parent=83 // pred_region
          %s7985 = sand.u32 %s283, 1
          %s7986 = scalar_lea.sflag [#allocation7], %s7985
          %s7987 = sand.u32 %s283, 1
          %s7988 = smul.addr %s7987, 32
          %s7989 = scalar_lea.vmem [#allocation12], %s7988
          %7990 = dma.done %s7986, 512
        $region88: #{tpu_custom_call.1} parent=83 // pred_fallthru
          _
      $region84: #{tpu_custom_call.1} parent=5 // pred_fallthru
        _
    $region6: #{tpu_custom_call.1} parent=1 // loop_footer
      %s32 = sadd.s32 1, %s28
    $region7: #{tpu_custom_call.1} parent=1 // loop_footer_branch
      %27 = sbr.rel target = $region3
    $region8: #{tpu_custom_call.1} parent=1 // loop_exit
      _
    %7991 = vsyncpa [#allocation6], 1
    %s7992 = scalar_lea.sflag [#allocation6], 1
    %7993 = vsyncpa %s7992, 1
    %7994 = vsyncpa [#allocation10], 1
    %s7995 = scalar_lea.sflag [#allocation10], 1
    %7996 = vsyncpa %s7995, 1
    %7997 = vsyncpa [#allocation7], 1
    %s7998 = scalar_lea.sflag [#allocation7], 1
    %7999 = vsyncpa %s7998, 1
    %8000 = vsyncpa [#allocation8], 1
    %s8001 = scalar_lea.sflag [#allocation8], 1
    %8002 = vsyncpa %s8001, 1

</llo_original>
